<compile_context>
chip_gen: v7x
topology: tpu7x:2x2x1
jax: 0.10.0
libtpu: 0.0.40
codegen_flags: <defaults>
</compile_context>

<pallas_src>
import functools

import jax
import jax.numpy as jnp
from jax.experimental import pallas as pl
from jax.experimental.pallas import tpu as pltpu

# ----------------------------- config ----------------------------------------
B = 2            # batch
S = 8            # sequence length
H = 32           # hidden size (xlm-roberta-base uses 768; scaled down)
NH = 4           # attention heads
HD = H // NH     # head dim
I = 64           # FFN intermediate size
L = 4            # encoder layers (need >= 4 hidden states)
VOCAB = 100
NUM_CLS = 6
NUM_REG = 30
LN_EPS = 1e-12
BN_EPS = 1e-5
OUT_ROWS = 8     # lane-dense packed output slab
OUT_LANES = 128

# ---- packed weight-slab layout (all matrices start on a 128-lane boundary) ----
WQ_OFF, WK_OFF, WV_OFF, WO_OFF, W1_OFF, W2_OFF = 0, 128, 256, 384, 512, 640
W_SLAB_LANES = 768
W_SLAB_ROWS = 80          # rows 0..63: matrices, rows 64..79: bias / LN vectors
VROW = 64                 # first vector row
(R_BQ, R_BK, R_BV, R_BO, R_LN1G, R_LN1B,
 R_B1, R_B2, R_LN2G, R_LN2B) = range(10)
HEAD_ROWS = 136           # rows 0..127 = fused head weight (4H x 128), row 128 = bias


# ----------------------------- fused Pallas kernel ----------------------------
def model_kernel(x_ref, mask_ref, w_ref, head_ref, out_ref,
                 *, num_layers, num_heads, batch, seq):
    """Whole model (4 encoder layers + classification/regression head).

    x_ref    : (B*S, H)   embedded + LayerNorm'ed tokens.
    mask_ref : (B*NH, S, S) additive attention mask (0 / -1e9), pre-broadcast.
    w_ref    : (L, 80, 768) per-layer weight slab (see layout constants above).
    head_ref : (136, 128)  fused classifier|regressor weight (BN folded) + bias row.
    out_ref  : (8, 128) lane-dense packed output
               rows 0..B-1: [ sigmoid(classifier) (6) | regressor (30) | zeros ].
    """
    h = x_ref.shape[-1]
    hd = h // num_heads
    bh = batch * num_heads
    scale = 1.0 / jnp.sqrt(jnp.float32(hd))

    x = x_ref[...].astype(jnp.float32)       # (B*S, H)
    mask = mask_ref[...]                     # (B*NH, S, S) — hoisted broadcast

    def vec(l, row, width):                  # one padded bias / LN vector row
        return w_ref[l, VROW + row:VROW + row + 1, 0:width]        # (1, width)

    def to_heads(t):                         # (B*S, H) -> (B*NH, S, hd), no transpose
        t3 = t.reshape(batch, seq, h)
        return jnp.stack(
            [t3[:, :, hh * hd:(hh + 1) * hd] for hh in range(num_heads)],
            axis=1).reshape(bh, seq, hd)

    cls_tokens = []
    for l in range(num_layers):              # static unroll over 4 layers
        # ---- fused QKV projection: one (H, 3*128) padded matmul, vreg-aligned splits ----
        wqkv = w_ref[l, 0:h, 0:WO_OFF]                                   # (H, 384)
        qkv = jnp.dot(x, wqkv, preferred_element_type=jnp.float32)      # (B*S, 384)
        q = qkv[:, WQ_OFF:WQ_OFF + h] + vec(l, R_BQ, h)
        k = qkv[:, WK_OFF:WK_OFF + h] + vec(l, R_BK, h)
        v = qkv[:, WV_OFF:WV_OFF + h] + vec(l, R_BV, h)

        # ---- multi-head attention: heads batched, 2 einsums + 1 matmul ----
        qh, kh, vh = to_heads(q), to_heads(k), to_heads(v)              # (B*NH, S, hd)
        s = jnp.einsum('bqd,bkd->bqk', qh, kh,
                       preferred_element_type=jnp.float32) * scale + mask
        m = jnp.max(s, axis=-1, keepdims=True)
        p = jnp.exp(s - m)
        p = p * pl.reciprocal(jnp.sum(p, axis=-1, keepdims=True), approx=True)
        ctx = jnp.einsum('bqk,bkd->bqd', p, vh,
                         preferred_element_type=jnp.float32)            # (B*NH, S, hd)

        ctx4 = ctx.reshape(batch, num_heads, seq, hd)
        ctx2 = jnp.concatenate([ctx4[:, hh] for hh in range(num_heads)],
                               axis=-1).reshape(batch * seq, h)         # (B*S, H)
        wo = w_ref[l, 0:h, WO_OFF:WO_OFF + h]                           # (H, H)
        attn = jnp.dot(ctx2, wo, preferred_element_type=jnp.float32) + vec(l, R_BO, h)

        # ---- residual + LayerNorm 1 (single-pass mean / mean-of-squares) ----
        r1 = x + attn
        mu = jnp.mean(r1, axis=-1, keepdims=True)
        ms = jnp.mean(r1 * r1, axis=-1, keepdims=True)
        r1n = (r1 - mu) * jax.lax.rsqrt(ms - mu * mu + LN_EPS) \
              * vec(l, R_LN1G, h) + vec(l, R_LN1B, h)

        # ---- FFN (GELU) ----
        # TODO(synk): HF xlm-roberta uses exact erf GELU; tanh approximation kept
        # for robust Mosaic lowering (tiny numeric drift only).
        w1 = w_ref[l, 0:h, W1_OFF:W1_OFF + I]                           # (H, I)
        w2 = w_ref[l, 0:I, W2_OFF:W2_OFF + h]                           # (I, H)
        h1 = jnp.dot(r1n, w1, preferred_element_type=jnp.float32) + vec(l, R_B1, I)
        h1 = jax.nn.gelu(h1, approximate=True)
        h2 = jnp.dot(h1, w2, preferred_element_type=jnp.float32) + vec(l, R_B2, h)

        # ---- residual + LayerNorm 2 ----
        r2 = r1n + h2
        mu2 = jnp.mean(r2, axis=-1, keepdims=True)
        ms2 = jnp.mean(r2 * r2, axis=-1, keepdims=True)
        x = (r2 - mu2) * jax.lax.rsqrt(ms2 - mu2 * mu2 + LN_EPS) \
            * vec(l, R_LN2G, h) + vec(l, R_LN2B, h)

        cls_tokens.append(x.reshape(batch, seq, h)[:, 0, :])            # (B, H)

    # cat(hidden_states[-1][:,0], [-2][:,0], [-3][:,0], [-4][:,0]) -> (B, 4H)
    feats = jnp.concatenate(cls_tokens[::-1], axis=-1)                  # (B, 128)

    # dropout1 / dropout2 -> identity in eval mode.
    # TODO(synk): dead layer1->bn1->relu branch not computed (result unused because
    # classifier/regressor consume the 4H concat per their declared (4H, .) shapes).

    # Fused head: [classifier(BN-folded) | regressor | zero-pad] in one matmul that
    # directly produces the lane-dense output row.
    w_head = head_ref[0:4 * h, :]                                       # (128, 128)
    b_head = head_ref[4 * h:4 * h + 1, :]                               # (1, 128)
    z = jnp.dot(feats, w_head, preferred_element_type=jnp.float32) + b_head   # (B, 128)
    lane = jax.lax.broadcasted_iota(jnp.int32, (batch, OUT_LANES), 1)
    z = jnp.where(lane < NUM_CLS, jax.nn.sigmoid(z), z)

    out_ref[...] = jnp.concatenate(
        [z, jnp.zeros((OUT_ROWS - batch, OUT_LANES), jnp.float32)], axis=0)


# ----------------------------- wrapper ----------------------------------------
@jax.jit
def forward(input_ids, attention_mask, packed):
    """Full CustomXLMModel_before forward pass. Returns ((B,6) sigmoid, (B,6,5))."""
    emb = packed["embed"]
    # Embedding lookup + position/type embeddings + LayerNorm (plain-JAX glue, fused by XLA).
    x = emb["word"][input_ids] + emb["pos"][None, :S, :] + emb["type"][None, None, 0, :]
    mu = jnp.mean(x, axis=-1, keepdims=True)
    var = jnp.mean((x - mu) ** 2, axis=-1, keepdims=True)
    x = (x - mu) * jax.lax.rsqrt(var + LN_EPS) * emb["ln_g"] + emb["ln_b"]
    x2d = x.reshape(B * S, H).astype(jnp.float32)

    # Additive mask, broadcast ONCE (hoisted out of the kernel's layer loop).
    mask_add = (1.0 - attention_mask.astype(jnp.float32)) * -1e9               # (B, S)
    mask_b = jnp.broadcast_to(mask_add[:, None, None, :],
                              (B, NH, S, S)).reshape(B * NH, S, S)

    vm = pl.BlockSpec(memory_space=pltpu.MemorySpace.VMEM)
    out = pl.pallas_call(
        functools.partial(model_kernel, num_layers=L, num_heads=NH, batch=B, seq=S),
        out_shape=jax.ShapeDtypeStruct((OUT_ROWS, OUT_LANES), jnp.float32),
        in_specs=[vm] * 4,
        out_specs=vm,
    )(x2d, mask_b, packed["w_slab"], packed["head_slab"])

    cls_out = out[:B, :NUM_CLS]
    reg_out = out[:B, NUM_CLS:NUM_CLS + NUM_REG].reshape(-1, 6, 5)
    return cls_out, reg_out


# ----------------------------- parameter init / packing ------------------------
def xavier(key, shape):
    fan_in, fan_out = shape[0], shape[1]
    limit = jnp.sqrt(6.0 / (fan_in + fan_out))
    return jax.random.uniform(key, shape, jnp.float32, -limit, limit)


def init_params(key):
    keys = iter(jax.random.split(key, 256))
    embed = {
        "word": jax.random.normal(next(keys), (VOCAB, H), jnp.float32) * 0.02,
        "pos": jax.random.normal(next(keys), (S, H), jnp.float32) * 0.02,
        "type": jax.random.normal(next(keys), (1, H), jnp.float32) * 0.02,
        "ln_g": jnp.ones((1, 1, H), jnp.float32),
        "ln_b": jnp.zeros((1, 1, H), jnp.float32),
    }
    wqkv_l, wo_l, w1_l, w2_l = [], [], [], []
    for _ in range(L):
        wq = xavier(next(keys), (H, H))
        wk = xavier(next(keys), (H, H))
        wv = xavier(next(keys), (H, H))
        wqkv_l.append(jnp.concatenate([wq, wk, wv], axis=1))   # (H, 3H)
        wo_l.append(xavier(next(keys), (H, H)))
        w1_l.append(xavier(next(keys), (H, I)))
        w2_l.append(xavier(next(keys), (I, H)))
    layers = {
        "wqkv": jnp.stack(wqkv_l),                              # (L, H, 3H)
        "bqkv": jnp.zeros((L, 1, 3 * H), jnp.float32),
        "wo": jnp.stack(wo_l), "bo": jnp.zeros((L, 1, H), jnp.float32),
        "ln1_g": jnp.ones((L, 1, H), jnp.float32), "ln1_b": jnp.zeros((L, 1, H), jnp.float32),
        "w1": jnp.stack(w1_l), "b1": jnp.zeros((L, 1, I), jnp.float32),
        "w2": jnp.stack(w2_l), "b2": jnp.zeros((L, 1, H), jnp.float32),
        "ln2_g": jnp.ones((L, 1, H), jnp.float32), "ln2_b": jnp.zeros((L, 1, H), jnp.float32),
    }
    # BatchNorm1d(6) packs [gamma; beta; running_mean; running_var] along axis 0.
    bn2 = jnp.stack([jnp.ones((NUM_CLS,)), jnp.zeros((NUM_CLS,)),
                     jnp.zeros((NUM_CLS,)), jnp.ones((NUM_CLS,))]).astype(jnp.float32)
    head = {
        "wc": xavier(next(keys), (4 * H, NUM_CLS)), "bc": jnp.zeros((1, NUM_CLS), jnp.float32),
        "bn2": bn2,
        "wr": xavier(next(keys), (4 * H, NUM_REG)), "br": jnp.zeros((1, NUM_REG), jnp.float32),
    }
    return {"embed": embed, "layers": layers, "head": head}


def pack_params(params):
    """Pack all encoder / head parameters into 2 lane-aligned VMEM slabs (run once)."""
    lp, hp = params["layers"], params["head"]

    w_slab = jnp.zeros((L, W_SLAB_ROWS, W_SLAB_LANES), jnp.float32)
    wqkv = lp["wqkv"]                                           # (L, H, 3H)
    w_slab = w_slab.at[:, 0:H, WQ_OFF:WQ_OFF + H].set(wqkv[:, :, 0:H])
    w_slab = w_slab.at[:, 0:H, WK_OFF:WK_OFF + H].set(wqkv[:, :, H:2 * H])
    w_slab = w_slab.at[:, 0:H, WV_OFF:WV_OFF + H].set(wqkv[:, :, 2 * H:3 * H])
    w_slab = w_slab.at[:, 0:H, WO_OFF:WO_OFF + H].set(lp["wo"])
    w_slab = w_slab.at[:, 0:H, W1_OFF:W1_OFF + I].set(lp["w1"])
    w_slab = w_slab.at[:, 0:I, W2_OFF:W2_OFF + H].set(lp["w2"])

    def setv(slab, row, val, width):
        return slab.at[:, VROW + row, 0:width].set(val)
    w_slab = setv(w_slab, R_BQ, lp["bqkv"][:, 0, 0:H], H)
    w_slab = setv(w_slab, R_BK, lp["bqkv"][:, 0, H:2 * H], H)
    w_slab = setv(w_slab, R_BV, lp["bqkv"][:, 0, 2 * H:3 * H], H)
    w_slab = setv(w_slab, R_BO, lp["bo"][:, 0, :], H)
    w_slab = setv(w_slab, R_LN1G, lp["ln1_g"][:, 0, :], H)
    w_slab = setv(w_slab, R_LN1B, lp["ln1_b"][:, 0, :], H)
    w_slab = setv(w_slab, R_B1, lp["b1"][:, 0, :], I)
    w_slab = setv(w_slab, R_B2, lp["b2"][:, 0, :], H)
    w_slab = setv(w_slab, R_LN2G, lp["ln2_g"][:, 0, :], H)
    w_slab = setv(w_slab, R_LN2B, lp["ln2_b"][:, 0, :], H)

    # Fold eval-mode BatchNorm1d(6) into classifier weight/bias, then pack
    # classifier | regressor into one (4H, 128) lane-dense weight + (1, 128) bias.
    g, be, m, v = hp["bn2"][0], hp["bn2"][1], hp["bn2"][2], hp["bn2"][3]
    inv = g * jax.lax.rsqrt(v + BN_EPS)                         # (6,)
    wc_f = hp["wc"] * inv[None, :]                              # (4H, 6)
    bc_f = (hp["bc"][0] - m) * inv + be                         # (6,)
    head_slab = jnp.zeros((HEAD_ROWS, OUT_LANES), jnp.float32)
    head_slab = head_slab.at[0:4 * H, 0:NUM_CLS].set(wc_f)
    head_slab = head_slab.at[0:4 * H, NUM_CLS:NUM_CLS + NUM_REG].set(hp["wr"])
    head_slab = head_slab.at[4 * H, 0:NUM_CLS].set(bc_f)
    head_slab = head_slab.at[4 * H, NUM_CLS:NUM_CLS + NUM_REG].set(hp["br"][0])

    # TODO(synk): for real xlm-roberta-base sizes, cast w_slab/head_slab to bf16
    # (keeping in-kernel math f32) and stream per-layer; unnecessary at ~1 MB total.
    return {"embed": params["embed"], "w_slab": w_slab, "head_slab": head_slab}


# ----------------------------- main --------------------------------------------
if __name__ == "__main__":
    key = jax.random.PRNGKey(0)
    k_ids, k_params = jax.random.split(key)

    input_ids = jax.random.randint(k_ids, (B, S), 0, VOCAB, dtype=jnp.int32)
    attention_mask = jnp.ones((B, S), jnp.int32).at[1, -2:].set(0)

    params = init_params(k_params)
    packed = pack_params(params)

    cls_out, reg_out = forward(input_ids, attention_mask, packed)
    jax.block_until_ready((cls_out, reg_out))

    assert cls_out.shape == (B, NUM_CLS)
    assert reg_out.shape == (B, 6, 5)
    assert bool(jnp.all(jnp.isfinite(cls_out))) and bool(jnp.all(jnp.isfinite(reg_out)))
    assert bool(jnp.all((cls_out >= 0.0) & (cls_out <= 1.0)))
    print("KERNEL_OK")
</pallas_src>

<mosaic_0001>
module attributes {stable_mosaic.version = 11 : i64} {
  func.func @model_kernel(%arg0: memref<16x32xf32, #tpu.memory_space<vmem>>, %arg1: memref<8x8x8xf32, #tpu.memory_space<vmem>>, %arg2: memref<4x80x768xf32, #tpu.memory_space<vmem>>, %arg3: memref<136x128xf32, #tpu.memory_space<vmem>>, %arg4: memref<8x128xf32, #tpu.memory_space<vmem>>) attributes {dimension_semantics = [], scalar_prefetch = 0 : i64, scratch_operands = 0 : i64, tpu.core_type = #tpu.core_type<tc>} {
    %cst = arith.constant 8.000000e+00 : f32
    %0 = math.sqrt %cst : f32
    %cst_0 = arith.constant 1.000000e+00 : f32
    %1 = arith.divf %cst_0, %0 : f32
    %c0 = arith.constant 0 : index
    %c0_1 = arith.constant 0 : index
    %2 = vector.load %arg0[%c0, %c0_1] : memref<16x32xf32, #tpu.memory_space<vmem>>, vector<16x32xf32>
    %c0_2 = arith.constant 0 : index
    %c0_3 = arith.constant 0 : index
    %c0_4 = arith.constant 0 : index
    %3 = vector.load %arg1[%c0_2, %c0_3, %c0_4] : memref<8x8x8xf32, #tpu.memory_space<vmem>>, vector<8x8x8xf32>
    %c0_5 = arith.constant 0 : index
    %c0_6 = arith.constant 0 : index
    %c0_7 = arith.constant 0 : index
    %4 = vector.load %arg2[%c0_5, %c0_6, %c0_7] : memref<4x80x768xf32, #tpu.memory_space<vmem>>, vector<1x32x384xf32>
    %5 = vector.shape_cast %4 : vector<1x32x384xf32> to vector<32x384xf32>
    %cst_8 = arith.constant dense<0.000000e+00> : vector<16x384xf32>
    %6 = tpu.matmul %2, %5, %cst_8 {dimension_numbers = #tpu.dot_dimension_numbers<[1], [0], [0], [1], [0, 0, 1, 1], [], []>} : vector<16x32xf32>, vector<32x384xf32>, vector<16x384xf32> -> vector<16x384xf32>
    %7 = vector.extract_strided_slice %6 {offsets = [0, 0], sizes = [16, 32], strides = [1, 1]} : vector<16x384xf32> to vector<16x32xf32>
    %c0_9 = arith.constant 0 : index
    %c64 = arith.constant 64 : index
    %c0_10 = arith.constant 0 : index
    %8 = vector.load %arg2[%c0_9, %c64, %c0_10] : memref<4x80x768xf32, #tpu.memory_space<vmem>>, vector<1x1x32xf32>
    %9 = vector.shape_cast %8 : vector<1x1x32xf32> to vector<1x32xf32>
    %10 = vector.broadcast %9 : vector<1x32xf32> to vector<16x32xf32>
    %11 = arith.addf %7, %10 : vector<16x32xf32>
    %12 = vector.extract_strided_slice %6 {offsets = [0, 128], sizes = [16, 32], strides = [1, 1]} : vector<16x384xf32> to vector<16x32xf32>
    %c0_11 = arith.constant 0 : index
    %c65 = arith.constant 65 : index
    %c0_12 = arith.constant 0 : index
    %13 = vector.load %arg2[%c0_11, %c65, %c0_12] : memref<4x80x768xf32, #tpu.memory_space<vmem>>, vector<1x1x32xf32>
    %14 = vector.shape_cast %13 : vector<1x1x32xf32> to vector<1x32xf32>
    %15 = vector.broadcast %14 : vector<1x32xf32> to vector<16x32xf32>
    %16 = arith.addf %12, %15 : vector<16x32xf32>
    %17 = vector.extract_strided_slice %6 {offsets = [0, 256], sizes = [16, 32], strides = [1, 1]} : vector<16x384xf32> to vector<16x32xf32>
    %c0_13 = arith.constant 0 : index
    %c66 = arith.constant 66 : index
    %c0_14 = arith.constant 0 : index
    %18 = vector.load %arg2[%c0_13, %c66, %c0_14] : memref<4x80x768xf32, #tpu.memory_space<vmem>>, vector<1x1x32xf32>
    %19 = vector.shape_cast %18 : vector<1x1x32xf32> to vector<1x32xf32>
    %20 = vector.broadcast %19 : vector<1x32xf32> to vector<16x32xf32>
    %21 = arith.addf %17, %20 : vector<16x32xf32>
    %22 = vector.shape_cast %11 : vector<16x32xf32> to vector<2x8x32xf32>
    %23 = vector.extract_strided_slice %22 {offsets = [0, 0, 0], sizes = [2, 8, 8], strides = [1, 1, 1]} : vector<2x8x32xf32> to vector<2x8x8xf32>
    %24 = vector.extract_strided_slice %22 {offsets = [0, 0, 8], sizes = [2, 8, 8], strides = [1, 1, 1]} : vector<2x8x32xf32> to vector<2x8x8xf32>
    %25 = vector.extract_strided_slice %22 {offsets = [0, 0, 16], sizes = [2, 8, 8], strides = [1, 1, 1]} : vector<2x8x32xf32> to vector<2x8x8xf32>
    %26 = vector.extract_strided_slice %22 {offsets = [0, 0, 24], sizes = [2, 8, 8], strides = [1, 1, 1]} : vector<2x8x32xf32> to vector<2x8x8xf32>
    %27 = vector.shape_cast %23 : vector<2x8x8xf32> to vector<2x1x8x8xf32>
    %28 = vector.shape_cast %24 : vector<2x8x8xf32> to vector<2x1x8x8xf32>
    %29 = vector.shape_cast %25 : vector<2x8x8xf32> to vector<2x1x8x8xf32>
    %30 = vector.shape_cast %26 : vector<2x8x8xf32> to vector<2x1x8x8xf32>
    %31 = tpu.concatenate %27, %28, %29, %30 in 1 : vector<2x1x8x8xf32>, vector<2x1x8x8xf32>, vector<2x1x8x8xf32>, vector<2x1x8x8xf32> -> vector<2x4x8x8xf32>
    %32 = vector.shape_cast %31 : vector<2x4x8x8xf32> to vector<8x8x8xf32>
    %33 = vector.shape_cast %16 : vector<16x32xf32> to vector<2x8x32xf32>
    %34 = vector.extract_strided_slice %33 {offsets = [0, 0, 0], sizes = [2, 8, 8], strides = [1, 1, 1]} : vector<2x8x32xf32> to vector<2x8x8xf32>
    %35 = vector.extract_strided_slice %33 {offsets = [0, 0, 8], sizes = [2, 8, 8], strides = [1, 1, 1]} : vector<2x8x32xf32> to vector<2x8x8xf32>
    %36 = vector.extract_strided_slice %33 {offsets = [0, 0, 16], sizes = [2, 8, 8], strides = [1, 1, 1]} : vector<2x8x32xf32> to vector<2x8x8xf32>
    %37 = vector.extract_strided_slice %33 {offsets = [0, 0, 24], sizes = [2, 8, 8], strides = [1, 1, 1]} : vector<2x8x32xf32> to vector<2x8x8xf32>
    %38 = vector.shape_cast %34 : vector<2x8x8xf32> to vector<2x1x8x8xf32>
    %39 = vector.shape_cast %35 : vector<2x8x8xf32> to vector<2x1x8x8xf32>
    %40 = vector.shape_cast %36 : vector<2x8x8xf32> to vector<2x1x8x8xf32>
    %41 = vector.shape_cast %37 : vector<2x8x8xf32> to vector<2x1x8x8xf32>
    %42 = tpu.concatenate %38, %39, %40, %41 in 1 : vector<2x1x8x8xf32>, vector<2x1x8x8xf32>, vector<2x1x8x8xf32>, vector<2x1x8x8xf32> -> vector<2x4x8x8xf32>
    %43 = vector.shape_cast %42 : vector<2x4x8x8xf32> to vector<8x8x8xf32>
    %44 = vector.shape_cast %21 : vector<16x32xf32> to vector<2x8x32xf32>
    %45 = vector.extract_strided_slice %44 {offsets = [0, 0, 0], sizes = [2, 8, 8], strides = [1, 1, 1]} : vector<2x8x32xf32> to vector<2x8x8xf32>
    %46 = vector.extract_strided_slice %44 {offsets = [0, 0, 8], sizes = [2, 8, 8], strides = [1, 1, 1]} : vector<2x8x32xf32> to vector<2x8x8xf32>
    %47 = vector.extract_strided_slice %44 {offsets = [0, 0, 16], sizes = [2, 8, 8], strides = [1, 1, 1]} : vector<2x8x32xf32> to vector<2x8x8xf32>
    %48 = vector.extract_strided_slice %44 {offsets = [0, 0, 24], sizes = [2, 8, 8], strides = [1, 1, 1]} : vector<2x8x32xf32> to vector<2x8x8xf32>
    %49 = vector.shape_cast %45 : vector<2x8x8xf32> to vector<2x1x8x8xf32>
    %50 = vector.shape_cast %46 : vector<2x8x8xf32> to vector<2x1x8x8xf32>
    %51 = vector.shape_cast %47 : vector<2x8x8xf32> to vector<2x1x8x8xf32>
    %52 = vector.shape_cast %48 : vector<2x8x8xf32> to vector<2x1x8x8xf32>
    %53 = tpu.concatenate %49, %50, %51, %52 in 1 : vector<2x1x8x8xf32>, vector<2x1x8x8xf32>, vector<2x1x8x8xf32>, vector<2x1x8x8xf32> -> vector<2x4x8x8xf32>
    %54 = vector.shape_cast %53 : vector<2x4x8x8xf32> to vector<8x8x8xf32>
    "tpu.trace_start"() <{level = 10 : i32, message = "bqd,bkd->bqk"}> : () -> ()
    %cst_15 = arith.constant dense<0.000000e+00> : vector<8x8x8xf32>
    %55 = tpu.matmul %32, %43, %cst_15 {dimension_numbers = #tpu.dot_dimension_numbers<[2], [2], [1], [1], [0, 0, 0, 1, 1, 1], [0], [0]>} : vector<8x8x8xf32>, vector<8x8x8xf32>, vector<8x8x8xf32> -> vector<8x8x8xf32>
    "tpu.trace_stop"() : () -> ()
    %56 = vector.broadcast %1 : f32 to vector<8x8x8xf32>
    %57 = arith.mulf %55, %56 : vector<8x8x8xf32>
    %58 = arith.addf %57, %3 : vector<8x8x8xf32>
    %cst_16 = arith.constant dense<0xFF800000> : vector<8x8xf32>
    %59 = vector.multi_reduction <maximumf>, %58, %cst_16 [2] : vector<8x8x8xf32> to vector<8x8xf32>
    %60 = vector.shape_cast %59 : vector<8x8xf32> to vector<8x8x1xf32>
    %61 = vector.broadcast %60 : vector<8x8x1xf32> to vector<8x8x8xf32>
    %62 = arith.subf %58, %61 : vector<8x8x8xf32>
    %63 = math.exp %62 : vector<8x8x8xf32>
    %cst_17 = arith.constant dense<0.000000e+00> : vector<8x8xf32>
    %64 = vector.multi_reduction <add>, %63, %cst_17 [2] : vector<8x8x8xf32> to vector<8x8xf32>
    %65 = vector.shape_cast %64 : vector<8x8xf32> to vector<8x8x1xf32>
    %66 = tpu.reciprocal %65 {approx = true} : vector<8x8x1xf32> -> vector<8x8x1xf32>
    %67 = vector.broadcast %66 : vector<8x8x1xf32> to vector<8x8x8xf32>
    %68 = arith.mulf %63, %67 : vector<8x8x8xf32>
    "tpu.trace_start"() <{level = 10 : i32, message = "bqk,bkd->bqd"}> : () -> ()
    %cst_18 = arith.constant dense<0.000000e+00> : vector<8x8x8xf32>
    %69 = tpu.matmul %68, %54, %cst_18 {dimension_numbers = #tpu.dot_dimension_numbers<[2], [1], [1], [2], [0, 0, 0, 1, 1, 2], [0], [0]>} : vector<8x8x8xf32>, vector<8x8x8xf32>, vector<8x8x8xf32> -> vector<8x8x8xf32>
    "tpu.trace_stop"() : () -> ()
    %70 = vector.shape_cast %69 : vector<8x8x8xf32> to vector<2x4x8x8xf32>
    %71 = vector.extract_strided_slice %70 {offsets = [0, 0, 0, 0], sizes = [2, 1, 8, 8], strides = [1, 1, 1, 1]} : vector<2x4x8x8xf32> to vector<2x1x8x8xf32>
    %72 = vector.shape_cast %71 : vector<2x1x8x8xf32> to vector<2x8x8xf32>
    %73 = vector.extract_strided_slice %70 {offsets = [0, 1, 0, 0], sizes = [2, 1, 8, 8], strides = [1, 1, 1, 1]} : vector<2x4x8x8xf32> to vector<2x1x8x8xf32>
    %74 = vector.shape_cast %73 : vector<2x1x8x8xf32> to vector<2x8x8xf32>
    %75 = vector.extract_strided_slice %70 {offsets = [0, 2, 0, 0], sizes = [2, 1, 8, 8], strides = [1, 1, 1, 1]} : vector<2x4x8x8xf32> to vector<2x1x8x8xf32>
    %76 = vector.shape_cast %75 : vector<2x1x8x8xf32> to vector<2x8x8xf32>
    %77 = vector.extract_strided_slice %70 {offsets = [0, 3, 0, 0], sizes = [2, 1, 8, 8], strides = [1, 1, 1, 1]} : vector<2x4x8x8xf32> to vector<2x1x8x8xf32>
    %78 = vector.shape_cast %77 : vector<2x1x8x8xf32> to vector<2x8x8xf32>
    %79 = tpu.concatenate %72, %74, %76, %78 in 2 : vector<2x8x8xf32>, vector<2x8x8xf32>, vector<2x8x8xf32>, vector<2x8x8xf32> -> vector<2x8x32xf32>
    %80 = vector.shape_cast %79 : vector<2x8x32xf32> to vector<16x32xf32>
    %c0_19 = arith.constant 0 : index
    %c0_20 = arith.constant 0 : index
    %c384 = arith.constant 384 : index
    %81 = vector.load %arg2[%c0_19, %c0_20, %c384] : memref<4x80x768xf32, #tpu.memory_space<vmem>>, vector<1x32x32xf32>
    %82 = vector.shape_cast %81 : vector<1x32x32xf32> to vector<32x32xf32>
    %cst_21 = arith.constant dense<0.000000e+00> : vector<16x32xf32>
    %83 = tpu.matmul %80, %82, %cst_21 {dimension_numbers = #tpu.dot_dimension_numbers<[1], [0], [0], [1], [0, 0, 1, 1], [], []>} : vector<16x32xf32>, vector<32x32xf32>, vector<16x32xf32> -> vector<16x32xf32>
    %c0_22 = arith.constant 0 : index
    %c67 = arith.constant 67 : index
    %c0_23 = arith.constant 0 : index
    %84 = vector.load %arg2[%c0_22, %c67, %c0_23] : memref<4x80x768xf32, #tpu.memory_space<vmem>>, vector<1x1x32xf32>
    %85 = vector.shape_cast %84 : vector<1x1x32xf32> to vector<1x32xf32>
    %86 = vector.broadcast %85 : vector<1x32xf32> to vector<16x32xf32>
    %87 = arith.addf %83, %86 : vector<16x32xf32>
    %88 = arith.addf %2, %87 : vector<16x32xf32>
    %cst_24 = arith.constant dense<0.000000e+00> : vector<16xf32>
    %89 = vector.multi_reduction <add>, %88, %cst_24 [1] : vector<16x32xf32> to vector<16xf32>
    %90 = vector.shape_cast %89 : vector<16xf32> to vector<16x1xf32>
    %cst_25 = arith.constant 3.200000e+01 : f32
    %91 = vector.broadcast %cst_25 : f32 to vector<16x1xf32>
    %92 = arith.divf %90, %91 : vector<16x1xf32>
    %93 = arith.mulf %88, %88 : vector<16x32xf32>
    %cst_26 = arith.constant dense<0.000000e+00> : vector<16xf32>
    %94 = vector.multi_reduction <add>, %93, %cst_26 [1] : vector<16x32xf32> to vector<16xf32>
    %95 = vector.shape_cast %94 : vector<16xf32> to vector<16x1xf32>
    %cst_27 = arith.constant 3.200000e+01 : f32
    %96 = vector.broadcast %cst_27 : f32 to vector<16x1xf32>
    %97 = arith.divf %95, %96 : vector<16x1xf32>
    %98 = vector.broadcast %92 : vector<16x1xf32> to vector<16x32xf32>
    %99 = arith.subf %88, %98 : vector<16x32xf32>
    %100 = arith.mulf %92, %92 : vector<16x1xf32>
    %101 = arith.subf %97, %100 : vector<16x1xf32>
    %cst_28 = arith.constant 9.99999996E-13 : f32
    %102 = vector.broadcast %cst_28 : f32 to vector<16x1xf32>
    %103 = arith.addf %101, %102 : vector<16x1xf32>
    %104 = math.rsqrt %103 : vector<16x1xf32>
    %105 = vector.broadcast %104 : vector<16x1xf32> to vector<16x32xf32>
    %106 = arith.mulf %99, %105 : vector<16x32xf32>
    %c0_29 = arith.constant 0 : index
    %c68 = arith.constant 68 : index
    %c0_30 = arith.constant 0 : index
    %107 = vector.load %arg2[%c0_29, %c68, %c0_30] : memref<4x80x768xf32, #tpu.memory_space<vmem>>, vector<1x1x32xf32>
    %108 = vector.shape_cast %107 : vector<1x1x32xf32> to vector<1x32xf32>
    %109 = vector.broadcast %108 : vector<1x32xf32> to vector<16x32xf32>
    %110 = arith.mulf %106, %109 : vector<16x32xf32>
    %c0_31 = arith.constant 0 : index
    %c69 = arith.constant 69 : index
    %c0_32 = arith.constant 0 : index
    %111 = vector.load %arg2[%c0_31, %c69, %c0_32] : memref<4x80x768xf32, #tpu.memory_space<vmem>>, vector<1x1x32xf32>
    %112 = vector.shape_cast %111 : vector<1x1x32xf32> to vector<1x32xf32>
    %113 = vector.broadcast %112 : vector<1x32xf32> to vector<16x32xf32>
    %114 = arith.addf %110, %113 : vector<16x32xf32>
    %c0_33 = arith.constant 0 : index
    %c0_34 = arith.constant 0 : index
    %c512 = arith.constant 512 : index
    %115 = vector.load %arg2[%c0_33, %c0_34, %c512] : memref<4x80x768xf32, #tpu.memory_space<vmem>>, vector<1x32x64xf32>
    %116 = vector.shape_cast %115 : vector<1x32x64xf32> to vector<32x64xf32>
    %c0_35 = arith.constant 0 : index
    %c0_36 = arith.constant 0 : index
    %c640 = arith.constant 640 : index
    %117 = vector.load %arg2[%c0_35, %c0_36, %c640] : memref<4x80x768xf32, #tpu.memory_space<vmem>>, vector<1x64x32xf32>
    %118 = vector.shape_cast %117 : vector<1x64x32xf32> to vector<64x32xf32>
    %cst_37 = arith.constant dense<0.000000e+00> : vector<16x64xf32>
    %119 = tpu.matmul %114, %116, %cst_37 {dimension_numbers = #tpu.dot_dimension_numbers<[1], [0], [0], [1], [0, 0, 1, 1], [], []>} : vector<16x32xf32>, vector<32x64xf32>, vector<16x64xf32> -> vector<16x64xf32>
    %c0_38 = arith.constant 0 : index
    %c70 = arith.constant 70 : index
    %c0_39 = arith.constant 0 : index
    %120 = vector.load %arg2[%c0_38, %c70, %c0_39] : memref<4x80x768xf32, #tpu.memory_space<vmem>>, vector<1x1x64xf32>
    %121 = vector.shape_cast %120 : vector<1x1x64xf32> to vector<1x64xf32>
    %122 = vector.broadcast %121 : vector<1x64xf32> to vector<16x64xf32>
    %123 = arith.addf %119, %122 : vector<16x64xf32>
    %124 = arith.mulf %123, %123 : vector<16x64xf32>
    %125 = arith.mulf %123, %124 : vector<16x64xf32>
    %cst_40 = arith.constant 4.471500e-02 : f32
    %126 = vector.broadcast %cst_40 : f32 to vector<16x64xf32>
    %127 = arith.mulf %126, %125 : vector<16x64xf32>
    %128 = arith.addf %123, %127 : vector<16x64xf32>
    %cst_41 = arith.constant 0.797884583 : f32
    %129 = vector.broadcast %cst_41 : f32 to vector<16x64xf32>
    %130 = arith.mulf %129, %128 : vector<16x64xf32>
    %131 = math.tanh %130 : vector<16x64xf32>
    %cst_42 = arith.constant 1.000000e+00 : f32
    %132 = vector.broadcast %cst_42 : f32 to vector<16x64xf32>
    %133 = arith.addf %132, %131 : vector<16x64xf32>
    %cst_43 = arith.constant 5.000000e-01 : f32
    %134 = vector.broadcast %cst_43 : f32 to vector<16x64xf32>
    %135 = arith.mulf %134, %133 : vector<16x64xf32>
    %136 = arith.mulf %123, %135 : vector<16x64xf32>
    %cst_44 = arith.constant dense<0.000000e+00> : vector<16x32xf32>
    %137 = tpu.matmul %136, %118, %cst_44 {dimension_numbers = #tpu.dot_dimension_numbers<[1], [0], [0], [1], [0, 0, 1, 1], [], []>} : vector<16x64xf32>, vector<64x32xf32>, vector<16x32xf32> -> vector<16x32xf32>
    %c0_45 = arith.constant 0 : index
    %c71 = arith.constant 71 : index
    %c0_46 = arith.constant 0 : index
    %138 = vector.load %arg2[%c0_45, %c71, %c0_46] : memref<4x80x768xf32, #tpu.memory_space<vmem>>, vector<1x1x32xf32>
    %139 = vector.shape_cast %138 : vector<1x1x32xf32> to vector<1x32xf32>
    %140 = vector.broadcast %139 : vector<1x32xf32> to vector<16x32xf32>
    %141 = arith.addf %137, %140 : vector<16x32xf32>
    %142 = arith.addf %114, %141 : vector<16x32xf32>
    %cst_47 = arith.constant dense<0.000000e+00> : vector<16xf32>
    %143 = vector.multi_reduction <add>, %142, %cst_47 [1] : vector<16x32xf32> to vector<16xf32>
    %144 = vector.shape_cast %143 : vector<16xf32> to vector<16x1xf32>
    %cst_48 = arith.constant 3.200000e+01 : f32
    %145 = vector.broadcast %cst_48 : f32 to vector<16x1xf32>
    %146 = arith.divf %144, %145 : vector<16x1xf32>
    %147 = arith.mulf %142, %142 : vector<16x32xf32>
    %cst_49 = arith.constant dense<0.000000e+00> : vector<16xf32>
    %148 = vector.multi_reduction <add>, %147, %cst_49 [1] : vector<16x32xf32> to vector<16xf32>
    %149 = vector.shape_cast %148 : vector<16xf32> to vector<16x1xf32>
    %cst_50 = arith.constant 3.200000e+01 : f32
    %150 = vector.broadcast %cst_50 : f32 to vector<16x1xf32>
    %151 = arith.divf %149, %150 : vector<16x1xf32>
    %152 = vector.broadcast %146 : vector<16x1xf32> to vector<16x32xf32>
    %153 = arith.subf %142, %152 : vector<16x32xf32>
    %154 = arith.mulf %146, %146 : vector<16x1xf32>
    %155 = arith.subf %151, %154 : vector<16x1xf32>
    %cst_51 = arith.constant 9.99999996E-13 : f32
    %156 = vector.broadcast %cst_51 : f32 to vector<16x1xf32>
    %157 = arith.addf %155, %156 : vector<16x1xf32>
    %158 = math.rsqrt %157 : vector<16x1xf32>
    %159 = vector.broadcast %158 : vector<16x1xf32> to vector<16x32xf32>
    %160 = arith.mulf %153, %159 : vector<16x32xf32>
    %c0_52 = arith.constant 0 : index
    %c72 = arith.constant 72 : index
    %c0_53 = arith.constant 0 : index
    %161 = vector.load %arg2[%c0_52, %c72, %c0_53] : memref<4x80x768xf32, #tpu.memory_space<vmem>>, vector<1x1x32xf32>
    %162 = vector.shape_cast %161 : vector<1x1x32xf32> to vector<1x32xf32>
    %163 = vector.broadcast %162 : vector<1x32xf32> to vector<16x32xf32>
    %164 = arith.mulf %160, %163 : vector<16x32xf32>
    %c0_54 = arith.constant 0 : index
    %c73 = arith.constant 73 : index
    %c0_55 = arith.constant 0 : index
    %165 = vector.load %arg2[%c0_54, %c73, %c0_55] : memref<4x80x768xf32, #tpu.memory_space<vmem>>, vector<1x1x32xf32>
    %166 = vector.shape_cast %165 : vector<1x1x32xf32> to vector<1x32xf32>
    %167 = vector.broadcast %166 : vector<1x32xf32> to vector<16x32xf32>
    %168 = arith.addf %164, %167 : vector<16x32xf32>
    %169 = vector.shape_cast %168 : vector<16x32xf32> to vector<2x8x32xf32>
    %170 = vector.extract_strided_slice %169 {offsets = [0, 0, 0], sizes = [2, 1, 32], strides = [1, 1, 1]} : vector<2x8x32xf32> to vector<2x1x32xf32>
    %171 = vector.shape_cast %170 : vector<2x1x32xf32> to vector<2x32xf32>
    %c1 = arith.constant 1 : index
    %c0_56 = arith.constant 0 : index
    %c0_57 = arith.constant 0 : index
    %172 = vector.load %arg2[%c1, %c0_56, %c0_57] : memref<4x80x768xf32, #tpu.memory_space<vmem>>, vector<1x32x384xf32>
    %173 = vector.shape_cast %172 : vector<1x32x384xf32> to vector<32x384xf32>
    %cst_58 = arith.constant dense<0.000000e+00> : vector<16x384xf32>
    %174 = tpu.matmul %168, %173, %cst_58 {dimension_numbers = #tpu.dot_dimension_numbers<[1], [0], [0], [1], [0, 0, 1, 1], [], []>} : vector<16x32xf32>, vector<32x384xf32>, vector<16x384xf32> -> vector<16x384xf32>
    %175 = vector.extract_strided_slice %174 {offsets = [0, 0], sizes = [16, 32], strides = [1, 1]} : vector<16x384xf32> to vector<16x32xf32>
    %c1_59 = arith.constant 1 : index
    %c64_60 = arith.constant 64 : index
    %c0_61 = arith.constant 0 : index
    %176 = vector.load %arg2[%c1_59, %c64_60, %c0_61] : memref<4x80x768xf32, #tpu.memory_space<vmem>>, vector<1x1x32xf32>
    %177 = vector.shape_cast %176 : vector<1x1x32xf32> to vector<1x32xf32>
    %178 = vector.broadcast %177 : vector<1x32xf32> to vector<16x32xf32>
    %179 = arith.addf %175, %178 : vector<16x32xf32>
    %180 = vector.extract_strided_slice %174 {offsets = [0, 128], sizes = [16, 32], strides = [1, 1]} : vector<16x384xf32> to vector<16x32xf32>
    %c1_62 = arith.constant 1 : index
    %c65_63 = arith.constant 65 : index
    %c0_64 = arith.constant 0 : index
    %181 = vector.load %arg2[%c1_62, %c65_63, %c0_64] : memref<4x80x768xf32, #tpu.memory_space<vmem>>, vector<1x1x32xf32>
    %182 = vector.shape_cast %181 : vector<1x1x32xf32> to vector<1x32xf32>
    %183 = vector.broadcast %182 : vector<1x32xf32> to vector<16x32xf32>
    %184 = arith.addf %180, %183 : vector<16x32xf32>
    %185 = vector.extract_strided_slice %174 {offsets = [0, 256], sizes = [16, 32], strides = [1, 1]} : vector<16x384xf32> to vector<16x32xf32>
    %c1_65 = arith.constant 1 : index
    %c66_66 = arith.constant 66 : index
    %c0_67 = arith.constant 0 : index
    %186 = vector.load %arg2[%c1_65, %c66_66, %c0_67] : memref<4x80x768xf32, #tpu.memory_space<vmem>>, vector<1x1x32xf32>
    %187 = vector.shape_cast %186 : vector<1x1x32xf32> to vector<1x32xf32>
    %188 = vector.broadcast %187 : vector<1x32xf32> to vector<16x32xf32>
    %189 = arith.addf %185, %188 : vector<16x32xf32>
    %190 = vector.shape_cast %179 : vector<16x32xf32> to vector<2x8x32xf32>
    %191 = vector.extract_strided_slice %190 {offsets = [0, 0, 0], sizes = [2, 8, 8], strides = [1, 1, 1]} : vector<2x8x32xf32> to vector<2x8x8xf32>
    %192 = vector.extract_strided_slice %190 {offsets = [0, 0, 8], sizes = [2, 8, 8], strides = [1, 1, 1]} : vector<2x8x32xf32> to vector<2x8x8xf32>
    %193 = vector.extract_strided_slice %190 {offsets = [0, 0, 16], sizes = [2, 8, 8], strides = [1, 1, 1]} : vector<2x8x32xf32> to vector<2x8x8xf32>
    %194 = vector.extract_strided_slice %190 {offsets = [0, 0, 24], sizes = [2, 8, 8], strides = [1, 1, 1]} : vector<2x8x32xf32> to vector<2x8x8xf32>
    %195 = vector.shape_cast %191 : vector<2x8x8xf32> to vector<2x1x8x8xf32>
    %196 = vector.shape_cast %192 : vector<2x8x8xf32> to vector<2x1x8x8xf32>
    %197 = vector.shape_cast %193 : vector<2x8x8xf32> to vector<2x1x8x8xf32>
    %198 = vector.shape_cast %194 : vector<2x8x8xf32> to vector<2x1x8x8xf32>
    %199 = tpu.concatenate %195, %196, %197, %198 in 1 : vector<2x1x8x8xf32>, vector<2x1x8x8xf32>, vector<2x1x8x8xf32>, vector<2x1x8x8xf32> -> vector<2x4x8x8xf32>
    %200 = vector.shape_cast %199 : vector<2x4x8x8xf32> to vector<8x8x8xf32>
    %201 = vector.shape_cast %184 : vector<16x32xf32> to vector<2x8x32xf32>
    %202 = vector.extract_strided_slice %201 {offsets = [0, 0, 0], sizes = [2, 8, 8], strides = [1, 1, 1]} : vector<2x8x32xf32> to vector<2x8x8xf32>
    %203 = vector.extract_strided_slice %201 {offsets = [0, 0, 8], sizes = [2, 8, 8], strides = [1, 1, 1]} : vector<2x8x32xf32> to vector<2x8x8xf32>
    %204 = vector.extract_strided_slice %201 {offsets = [0, 0, 16], sizes = [2, 8, 8], strides = [1, 1, 1]} : vector<2x8x32xf32> to vector<2x8x8xf32>
    %205 = vector.extract_strided_slice %201 {offsets = [0, 0, 24], sizes = [2, 8, 8], strides = [1, 1, 1]} : vector<2x8x32xf32> to vector<2x8x8xf32>
    %206 = vector.shape_cast %202 : vector<2x8x8xf32> to vector<2x1x8x8xf32>
    %207 = vector.shape_cast %203 : vector<2x8x8xf32> to vector<2x1x8x8xf32>
    %208 = vector.shape_cast %204 : vector<2x8x8xf32> to vector<2x1x8x8xf32>
    %209 = vector.shape_cast %205 : vector<2x8x8xf32> to vector<2x1x8x8xf32>
    %210 = tpu.concatenate %206, %207, %208, %209 in 1 : vector<2x1x8x8xf32>, vector<2x1x8x8xf32>, vector<2x1x8x8xf32>, vector<2x1x8x8xf32> -> vector<2x4x8x8xf32>
    %211 = vector.shape_cast %210 : vector<2x4x8x8xf32> to vector<8x8x8xf32>
    %212 = vector.shape_cast %189 : vector<16x32xf32> to vector<2x8x32xf32>
    %213 = vector.extract_strided_slice %212 {offsets = [0, 0, 0], sizes = [2, 8, 8], strides = [1, 1, 1]} : vector<2x8x32xf32> to vector<2x8x8xf32>
    %214 = vector.extract_strided_slice %212 {offsets = [0, 0, 8], sizes = [2, 8, 8], strides = [1, 1, 1]} : vector<2x8x32xf32> to vector<2x8x8xf32>
    %215 = vector.extract_strided_slice %212 {offsets = [0, 0, 16], sizes = [2, 8, 8], strides = [1, 1, 1]} : vector<2x8x32xf32> to vector<2x8x8xf32>
    %216 = vector.extract_strided_slice %212 {offsets = [0, 0, 24], sizes = [2, 8, 8], strides = [1, 1, 1]} : vector<2x8x32xf32> to vector<2x8x8xf32>
    %217 = vector.shape_cast %213 : vector<2x8x8xf32> to vector<2x1x8x8xf32>
    %218 = vector.shape_cast %214 : vector<2x8x8xf32> to vector<2x1x8x8xf32>
    %219 = vector.shape_cast %215 : vector<2x8x8xf32> to vector<2x1x8x8xf32>
    %220 = vector.shape_cast %216 : vector<2x8x8xf32> to vector<2x1x8x8xf32>
    %221 = tpu.concatenate %217, %218, %219, %220 in 1 : vector<2x1x8x8xf32>, vector<2x1x8x8xf32>, vector<2x1x8x8xf32>, vector<2x1x8x8xf32> -> vector<2x4x8x8xf32>
    %222 = vector.shape_cast %221 : vector<2x4x8x8xf32> to vector<8x8x8xf32>
    "tpu.trace_start"() <{level = 10 : i32, message = "bqd,bkd->bqk"}> : () -> ()
    %cst_68 = arith.constant dense<0.000000e+00> : vector<8x8x8xf32>
    %223 = tpu.matmul %200, %211, %cst_68 {dimension_numbers = #tpu.dot_dimension_numbers<[2], [2], [1], [1], [0, 0, 0, 1, 1, 1], [0], [0]>} : vector<8x8x8xf32>, vector<8x8x8xf32>, vector<8x8x8xf32> -> vector<8x8x8xf32>
    "tpu.trace_stop"() : () -> ()
    %224 = vector.broadcast %1 : f32 to vector<8x8x8xf32>
    %225 = arith.mulf %223, %224 : vector<8x8x8xf32>
    %226 = arith.addf %225, %3 : vector<8x8x8xf32>
    %cst_69 = arith.constant dense<0xFF800000> : vector<8x8xf32>
    %227 = vector.multi_reduction <maximumf>, %226, %cst_69 [2] : vector<8x8x8xf32> to vector<8x8xf32>
    %228 = vector.shape_cast %227 : vector<8x8xf32> to vector<8x8x1xf32>
    %229 = vector.broadcast %228 : vector<8x8x1xf32> to vector<8x8x8xf32>
    %230 = arith.subf %226, %229 : vector<8x8x8xf32>
    %231 = math.exp %230 : vector<8x8x8xf32>
    %cst_70 = arith.constant dense<0.000000e+00> : vector<8x8xf32>
    %232 = vector.multi_reduction <add>, %231, %cst_70 [2] : vector<8x8x8xf32> to vector<8x8xf32>
    %233 = vector.shape_cast %232 : vector<8x8xf32> to vector<8x8x1xf32>
    %234 = tpu.reciprocal %233 {approx = true} : vector<8x8x1xf32> -> vector<8x8x1xf32>
    %235 = vector.broadcast %234 : vector<8x8x1xf32> to vector<8x8x8xf32>
    %236 = arith.mulf %231, %235 : vector<8x8x8xf32>
    "tpu.trace_start"() <{level = 10 : i32, message = "bqk,bkd->bqd"}> : () -> ()
    %cst_71 = arith.constant dense<0.000000e+00> : vector<8x8x8xf32>
    %237 = tpu.matmul %236, %222, %cst_71 {dimension_numbers = #tpu.dot_dimension_numbers<[2], [1], [1], [2], [0, 0, 0, 1, 1, 2], [0], [0]>} : vector<8x8x8xf32>, vector<8x8x8xf32>, vector<8x8x8xf32> -> vector<8x8x8xf32>
    "tpu.trace_stop"() : () -> ()
    %238 = vector.shape_cast %237 : vector<8x8x8xf32> to vector<2x4x8x8xf32>
    %239 = vector.extract_strided_slice %238 {offsets = [0, 0, 0, 0], sizes = [2, 1, 8, 8], strides = [1, 1, 1, 1]} : vector<2x4x8x8xf32> to vector<2x1x8x8xf32>
    %240 = vector.shape_cast %239 : vector<2x1x8x8xf32> to vector<2x8x8xf32>
    %241 = vector.extract_strided_slice %238 {offsets = [0, 1, 0, 0], sizes = [2, 1, 8, 8], strides = [1, 1, 1, 1]} : vector<2x4x8x8xf32> to vector<2x1x8x8xf32>
    %242 = vector.shape_cast %241 : vector<2x1x8x8xf32> to vector<2x8x8xf32>
    %243 = vector.extract_strided_slice %238 {offsets = [0, 2, 0, 0], sizes = [2, 1, 8, 8], strides = [1, 1, 1, 1]} : vector<2x4x8x8xf32> to vector<2x1x8x8xf32>
    %244 = vector.shape_cast %243 : vector<2x1x8x8xf32> to vector<2x8x8xf32>
    %245 = vector.extract_strided_slice %238 {offsets = [0, 3, 0, 0], sizes = [2, 1, 8, 8], strides = [1, 1, 1, 1]} : vector<2x4x8x8xf32> to vector<2x1x8x8xf32>
    %246 = vector.shape_cast %245 : vector<2x1x8x8xf32> to vector<2x8x8xf32>
    %247 = tpu.concatenate %240, %242, %244, %246 in 2 : vector<2x8x8xf32>, vector<2x8x8xf32>, vector<2x8x8xf32>, vector<2x8x8xf32> -> vector<2x8x32xf32>
    %248 = vector.shape_cast %247 : vector<2x8x32xf32> to vector<16x32xf32>
    %c1_72 = arith.constant 1 : index
    %c0_73 = arith.constant 0 : index
    %c384_74 = arith.constant 384 : index
    %249 = vector.load %arg2[%c1_72, %c0_73, %c384_74] : memref<4x80x768xf32, #tpu.memory_space<vmem>>, vector<1x32x32xf32>
    %250 = vector.shape_cast %249 : vector<1x32x32xf32> to vector<32x32xf32>
    %cst_75 = arith.constant dense<0.000000e+00> : vector<16x32xf32>
    %251 = tpu.matmul %248, %250, %cst_75 {dimension_numbers = #tpu.dot_dimension_numbers<[1], [0], [0], [1], [0, 0, 1, 1], [], []>} : vector<16x32xf32>, vector<32x32xf32>, vector<16x32xf32> -> vector<16x32xf32>
    %c1_76 = arith.constant 1 : index
    %c67_77 = arith.constant 67 : index
    %c0_78 = arith.constant 0 : index
    %252 = vector.load %arg2[%c1_76, %c67_77, %c0_78] : memref<4x80x768xf32, #tpu.memory_space<vmem>>, vector<1x1x32xf32>
    %253 = vector.shape_cast %252 : vector<1x1x32xf32> to vector<1x32xf32>
    %254 = vector.broadcast %253 : vector<1x32xf32> to vector<16x32xf32>
    %255 = arith.addf %251, %254 : vector<16x32xf32>
    %256 = arith.addf %168, %255 : vector<16x32xf32>
    %cst_79 = arith.constant dense<0.000000e+00> : vector<16xf32>
    %257 = vector.multi_reduction <add>, %256, %cst_79 [1] : vector<16x32xf32> to vector<16xf32>
    %258 = vector.shape_cast %257 : vector<16xf32> to vector<16x1xf32>
    %cst_80 = arith.constant 3.200000e+01 : f32
    %259 = vector.broadcast %cst_80 : f32 to vector<16x1xf32>
    %260 = arith.divf %258, %259 : vector<16x1xf32>
    %261 = arith.mulf %256, %256 : vector<16x32xf32>
    %cst_81 = arith.constant dense<0.000000e+00> : vector<16xf32>
    %262 = vector.multi_reduction <add>, %261, %cst_81 [1] : vector<16x32xf32> to vector<16xf32>
    %263 = vector.shape_cast %262 : vector<16xf32> to vector<16x1xf32>
    %cst_82 = arith.constant 3.200000e+01 : f32
    %264 = vector.broadcast %cst_82 : f32 to vector<16x1xf32>
    %265 = arith.divf %263, %264 : vector<16x1xf32>
    %266 = vector.broadcast %260 : vector<16x1xf32> to vector<16x32xf32>
    %267 = arith.subf %256, %266 : vector<16x32xf32>
    %268 = arith.mulf %260, %260 : vector<16x1xf32>
    %269 = arith.subf %265, %268 : vector<16x1xf32>
    %cst_83 = arith.constant 9.99999996E-13 : f32
    %270 = vector.broadcast %cst_83 : f32 to vector<16x1xf32>
    %271 = arith.addf %269, %270 : vector<16x1xf32>
    %272 = math.rsqrt %271 : vector<16x1xf32>
    %273 = vector.broadcast %272 : vector<16x1xf32> to vector<16x32xf32>
    %274 = arith.mulf %267, %273 : vector<16x32xf32>
    %c1_84 = arith.constant 1 : index
    %c68_85 = arith.constant 68 : index
    %c0_86 = arith.constant 0 : index
    %275 = vector.load %arg2[%c1_84, %c68_85, %c0_86] : memref<4x80x768xf32, #tpu.memory_space<vmem>>, vector<1x1x32xf32>
    %276 = vector.shape_cast %275 : vector<1x1x32xf32> to vector<1x32xf32>
    %277 = vector.broadcast %276 : vector<1x32xf32> to vector<16x32xf32>
    %278 = arith.mulf %274, %277 : vector<16x32xf32>
    %c1_87 = arith.constant 1 : index
    %c69_88 = arith.constant 69 : index
    %c0_89 = arith.constant 0 : index
    %279 = vector.load %arg2[%c1_87, %c69_88, %c0_89] : memref<4x80x768xf32, #tpu.memory_space<vmem>>, vector<1x1x32xf32>
    %280 = vector.shape_cast %279 : vector<1x1x32xf32> to vector<1x32xf32>
    %281 = vector.broadcast %280 : vector<1x32xf32> to vector<16x32xf32>
    %282 = arith.addf %278, %281 : vector<16x32xf32>
    %c1_90 = arith.constant 1 : index
    %c0_91 = arith.constant 0 : index
    %c512_92 = arith.constant 512 : index
    %283 = vector.load %arg2[%c1_90, %c0_91, %c512_92] : memref<4x80x768xf32, #tpu.memory_space<vmem>>, vector<1x32x64xf32>
    %284 = vector.shape_cast %283 : vector<1x32x64xf32> to vector<32x64xf32>
    %c1_93 = arith.constant 1 : index
    %c0_94 = arith.constant 0 : index
    %c640_95 = arith.constant 640 : index
    %285 = vector.load %arg2[%c1_93, %c0_94, %c640_95] : memref<4x80x768xf32, #tpu.memory_space<vmem>>, vector<1x64x32xf32>
    %286 = vector.shape_cast %285 : vector<1x64x32xf32> to vector<64x32xf32>
    %cst_96 = arith.constant dense<0.000000e+00> : vector<16x64xf32>
    %287 = tpu.matmul %282, %284, %cst_96 {dimension_numbers = #tpu.dot_dimension_numbers<[1], [0], [0], [1], [0, 0, 1, 1], [], []>} : vector<16x32xf32>, vector<32x64xf32>, vector<16x64xf32> -> vector<16x64xf32>
    %c1_97 = arith.constant 1 : index
    %c70_98 = arith.constant 70 : index
    %c0_99 = arith.constant 0 : index
    %288 = vector.load %arg2[%c1_97, %c70_98, %c0_99] : memref<4x80x768xf32, #tpu.memory_space<vmem>>, vector<1x1x64xf32>
    %289 = vector.shape_cast %288 : vector<1x1x64xf32> to vector<1x64xf32>
    %290 = vector.broadcast %289 : vector<1x64xf32> to vector<16x64xf32>
    %291 = arith.addf %287, %290 : vector<16x64xf32>
    %292 = arith.mulf %291, %291 : vector<16x64xf32>
    %293 = arith.mulf %291, %292 : vector<16x64xf32>
    %cst_100 = arith.constant 4.471500e-02 : f32
    %294 = vector.broadcast %cst_100 : f32 to vector<16x64xf32>
    %295 = arith.mulf %294, %293 : vector<16x64xf32>
    %296 = arith.addf %291, %295 : vector<16x64xf32>
    %cst_101 = arith.constant 0.797884583 : f32
    %297 = vector.broadcast %cst_101 : f32 to vector<16x64xf32>
    %298 = arith.mulf %297, %296 : vector<16x64xf32>
    %299 = math.tanh %298 : vector<16x64xf32>
    %cst_102 = arith.constant 1.000000e+00 : f32
    %300 = vector.broadcast %cst_102 : f32 to vector<16x64xf32>
    %301 = arith.addf %300, %299 : vector<16x64xf32>
    %cst_103 = arith.constant 5.000000e-01 : f32
    %302 = vector.broadcast %cst_103 : f32 to vector<16x64xf32>
    %303 = arith.mulf %302, %301 : vector<16x64xf32>
    %304 = arith.mulf %291, %303 : vector<16x64xf32>
    %cst_104 = arith.constant dense<0.000000e+00> : vector<16x32xf32>
    %305 = tpu.matmul %304, %286, %cst_104 {dimension_numbers = #tpu.dot_dimension_numbers<[1], [0], [0], [1], [0, 0, 1, 1], [], []>} : vector<16x64xf32>, vector<64x32xf32>, vector<16x32xf32> -> vector<16x32xf32>
    %c1_105 = arith.constant 1 : index
    %c71_106 = arith.constant 71 : index
    %c0_107 = arith.constant 0 : index
    %306 = vector.load %arg2[%c1_105, %c71_106, %c0_107] : memref<4x80x768xf32, #tpu.memory_space<vmem>>, vector<1x1x32xf32>
    %307 = vector.shape_cast %306 : vector<1x1x32xf32> to vector<1x32xf32>
    %308 = vector.broadcast %307 : vector<1x32xf32> to vector<16x32xf32>
    %309 = arith.addf %305, %308 : vector<16x32xf32>
    %310 = arith.addf %282, %309 : vector<16x32xf32>
    %cst_108 = arith.constant dense<0.000000e+00> : vector<16xf32>
    %311 = vector.multi_reduction <add>, %310, %cst_108 [1] : vector<16x32xf32> to vector<16xf32>
    %312 = vector.shape_cast %311 : vector<16xf32> to vector<16x1xf32>
    %cst_109 = arith.constant 3.200000e+01 : f32
    %313 = vector.broadcast %cst_109 : f32 to vector<16x1xf32>
    %314 = arith.divf %312, %313 : vector<16x1xf32>
    %315 = arith.mulf %310, %310 : vector<16x32xf32>
    %cst_110 = arith.constant dense<0.000000e+00> : vector<16xf32>
    %316 = vector.multi_reduction <add>, %315, %cst_110 [1] : vector<16x32xf32> to vector<16xf32>
    %317 = vector.shape_cast %316 : vector<16xf32> to vector<16x1xf32>
    %cst_111 = arith.constant 3.200000e+01 : f32
    %318 = vector.broadcast %cst_111 : f32 to vector<16x1xf32>
    %319 = arith.divf %317, %318 : vector<16x1xf32>
    %320 = vector.broadcast %314 : vector<16x1xf32> to vector<16x32xf32>
    %321 = arith.subf %310, %320 : vector<16x32xf32>
    %322 = arith.mulf %314, %314 : vector<16x1xf32>
    %323 = arith.subf %319, %322 : vector<16x1xf32>
    %cst_112 = arith.constant 9.99999996E-13 : f32
    %324 = vector.broadcast %cst_112 : f32 to vector<16x1xf32>
    %325 = arith.addf %323, %324 : vector<16x1xf32>
    %326 = math.rsqrt %325 : vector<16x1xf32>
    %327 = vector.broadcast %326 : vector<16x1xf32> to vector<16x32xf32>
    %328 = arith.mulf %321, %327 : vector<16x32xf32>
    %c1_113 = arith.constant 1 : index
    %c72_114 = arith.constant 72 : index
    %c0_115 = arith.constant 0 : index
    %329 = vector.load %arg2[%c1_113, %c72_114, %c0_115] : memref<4x80x768xf32, #tpu.memory_space<vmem>>, vector<1x1x32xf32>
    %330 = vector.shape_cast %329 : vector<1x1x32xf32> to vector<1x32xf32>
    %331 = vector.broadcast %330 : vector<1x32xf32> to vector<16x32xf32>
    %332 = arith.mulf %328, %331 : vector<16x32xf32>
    %c1_116 = arith.constant 1 : index
    %c73_117 = arith.constant 73 : index
    %c0_118 = arith.constant 0 : index
    %333 = vector.load %arg2[%c1_116, %c73_117, %c0_118] : memref<4x80x768xf32, #tpu.memory_space<vmem>>, vector<1x1x32xf32>
    %334 = vector.shape_cast %333 : vector<1x1x32xf32> to vector<1x32xf32>
    %335 = vector.broadcast %334 : vector<1x32xf32> to vector<16x32xf32>
    %336 = arith.addf %332, %335 : vector<16x32xf32>
    %337 = vector.shape_cast %336 : vector<16x32xf32> to vector<2x8x32xf32>
    %338 = vector.extract_strided_slice %337 {offsets = [0, 0, 0], sizes = [2, 1, 32], strides = [1, 1, 1]} : vector<2x8x32xf32> to vector<2x1x32xf32>
    %339 = vector.shape_cast %338 : vector<2x1x32xf32> to vector<2x32xf32>
    %c2 = arith.constant 2 : index
    %c0_119 = arith.constant 0 : index
    %c0_120 = arith.constant 0 : index
    %340 = vector.load %arg2[%c2, %c0_119, %c0_120] : memref<4x80x768xf32, #tpu.memory_space<vmem>>, vector<1x32x384xf32>
    %341 = vector.shape_cast %340 : vector<1x32x384xf32> to vector<32x384xf32>
    %cst_121 = arith.constant dense<0.000000e+00> : vector<16x384xf32>
    %342 = tpu.matmul %336, %341, %cst_121 {dimension_numbers = #tpu.dot_dimension_numbers<[1], [0], [0], [1], [0, 0, 1, 1], [], []>} : vector<16x32xf32>, vector<32x384xf32>, vector<16x384xf32> -> vector<16x384xf32>
    %343 = vector.extract_strided_slice %342 {offsets = [0, 0], sizes = [16, 32], strides = [1, 1]} : vector<16x384xf32> to vector<16x32xf32>
    %c2_122 = arith.constant 2 : index
    %c64_123 = arith.constant 64 : index
    %c0_124 = arith.constant 0 : index
    %344 = vector.load %arg2[%c2_122, %c64_123, %c0_124] : memref<4x80x768xf32, #tpu.memory_space<vmem>>, vector<1x1x32xf32>
    %345 = vector.shape_cast %344 : vector<1x1x32xf32> to vector<1x32xf32>
    %346 = vector.broadcast %345 : vector<1x32xf32> to vector<16x32xf32>
    %347 = arith.addf %343, %346 : vector<16x32xf32>
    %348 = vector.extract_strided_slice %342 {offsets = [0, 128], sizes = [16, 32], strides = [1, 1]} : vector<16x384xf32> to vector<16x32xf32>
    %c2_125 = arith.constant 2 : index
    %c65_126 = arith.constant 65 : index
    %c0_127 = arith.constant 0 : index
    %349 = vector.load %arg2[%c2_125, %c65_126, %c0_127] : memref<4x80x768xf32, #tpu.memory_space<vmem>>, vector<1x1x32xf32>
    %350 = vector.shape_cast %349 : vector<1x1x32xf32> to vector<1x32xf32>
    %351 = vector.broadcast %350 : vector<1x32xf32> to vector<16x32xf32>
    %352 = arith.addf %348, %351 : vector<16x32xf32>
    %353 = vector.extract_strided_slice %342 {offsets = [0, 256], sizes = [16, 32], strides = [1, 1]} : vector<16x384xf32> to vector<16x32xf32>
    %c2_128 = arith.constant 2 : index
    %c66_129 = arith.constant 66 : index
    %c0_130 = arith.constant 0 : index
    %354 = vector.load %arg2[%c2_128, %c66_129, %c0_130] : memref<4x80x768xf32, #tpu.memory_space<vmem>>, vector<1x1x32xf32>
    %355 = vector.shape_cast %354 : vector<1x1x32xf32> to vector<1x32xf32>
    %356 = vector.broadcast %355 : vector<1x32xf32> to vector<16x32xf32>
    %357 = arith.addf %353, %356 : vector<16x32xf32>
    %358 = vector.shape_cast %347 : vector<16x32xf32> to vector<2x8x32xf32>
    %359 = vector.extract_strided_slice %358 {offsets = [0, 0, 0], sizes = [2, 8, 8], strides = [1, 1, 1]} : vector<2x8x32xf32> to vector<2x8x8xf32>
    %360 = vector.extract_strided_slice %358 {offsets = [0, 0, 8], sizes = [2, 8, 8], strides = [1, 1, 1]} : vector<2x8x32xf32> to vector<2x8x8xf32>
    %361 = vector.extract_strided_slice %358 {offsets = [0, 0, 16], sizes = [2, 8, 8], strides = [1, 1, 1]} : vector<2x8x32xf32> to vector<2x8x8xf32>
    %362 = vector.extract_strided_slice %358 {offsets = [0, 0, 24], sizes = [2, 8, 8], strides = [1, 1, 1]} : vector<2x8x32xf32> to vector<2x8x8xf32>
    %363 = vector.shape_cast %359 : vector<2x8x8xf32> to vector<2x1x8x8xf32>
    %364 = vector.shape_cast %360 : vector<2x8x8xf32> to vector<2x1x8x8xf32>
    %365 = vector.shape_cast %361 : vector<2x8x8xf32> to vector<2x1x8x8xf32>
    %366 = vector.shape_cast %362 : vector<2x8x8xf32> to vector<2x1x8x8xf32>
    %367 = tpu.concatenate %363, %364, %365, %366 in 1 : vector<2x1x8x8xf32>, vector<2x1x8x8xf32>, vector<2x1x8x8xf32>, vector<2x1x8x8xf32> -> vector<2x4x8x8xf32>
    %368 = vector.shape_cast %367 : vector<2x4x8x8xf32> to vector<8x8x8xf32>
    %369 = vector.shape_cast %352 : vector<16x32xf32> to vector<2x8x32xf32>
    %370 = vector.extract_strided_slice %369 {offsets = [0, 0, 0], sizes = [2, 8, 8], strides = [1, 1, 1]} : vector<2x8x32xf32> to vector<2x8x8xf32>
    %371 = vector.extract_strided_slice %369 {offsets = [0, 0, 8], sizes = [2, 8, 8], strides = [1, 1, 1]} : vector<2x8x32xf32> to vector<2x8x8xf32>
    %372 = vector.extract_strided_slice %369 {offsets = [0, 0, 16], sizes = [2, 8, 8], strides = [1, 1, 1]} : vector<2x8x32xf32> to vector<2x8x8xf32>
    %373 = vector.extract_strided_slice %369 {offsets = [0, 0, 24], sizes = [2, 8, 8], strides = [1, 1, 1]} : vector<2x8x32xf32> to vector<2x8x8xf32>
    %374 = vector.shape_cast %370 : vector<2x8x8xf32> to vector<2x1x8x8xf32>
    %375 = vector.shape_cast %371 : vector<2x8x8xf32> to vector<2x1x8x8xf32>
    %376 = vector.shape_cast %372 : vector<2x8x8xf32> to vector<2x1x8x8xf32>
    %377 = vector.shape_cast %373 : vector<2x8x8xf32> to vector<2x1x8x8xf32>
    %378 = tpu.concatenate %374, %375, %376, %377 in 1 : vector<2x1x8x8xf32>, vector<2x1x8x8xf32>, vector<2x1x8x8xf32>, vector<2x1x8x8xf32> -> vector<2x4x8x8xf32>
    %379 = vector.shape_cast %378 : vector<2x4x8x8xf32> to vector<8x8x8xf32>
    %380 = vector.shape_cast %357 : vector<16x32xf32> to vector<2x8x32xf32>
    %381 = vector.extract_strided_slice %380 {offsets = [0, 0, 0], sizes = [2, 8, 8], strides = [1, 1, 1]} : vector<2x8x32xf32> to vector<2x8x8xf32>
    %382 = vector.extract_strided_slice %380 {offsets = [0, 0, 8], sizes = [2, 8, 8], strides = [1, 1, 1]} : vector<2x8x32xf32> to vector<2x8x8xf32>
    %383 = vector.extract_strided_slice %380 {offsets = [0, 0, 16], sizes = [2, 8, 8], strides = [1, 1, 1]} : vector<2x8x32xf32> to vector<2x8x8xf32>
    %384 = vector.extract_strided_slice %380 {offsets = [0, 0, 24], sizes = [2, 8, 8], strides = [1, 1, 1]} : vector<2x8x32xf32> to vector<2x8x8xf32>
    %385 = vector.shape_cast %381 : vector<2x8x8xf32> to vector<2x1x8x8xf32>
    %386 = vector.shape_cast %382 : vector<2x8x8xf32> to vector<2x1x8x8xf32>
    %387 = vector.shape_cast %383 : vector<2x8x8xf32> to vector<2x1x8x8xf32>
    %388 = vector.shape_cast %384 : vector<2x8x8xf32> to vector<2x1x8x8xf32>
    %389 = tpu.concatenate %385, %386, %387, %388 in 1 : vector<2x1x8x8xf32>, vector<2x1x8x8xf32>, vector<2x1x8x8xf32>, vector<2x1x8x8xf32> -> vector<2x4x8x8xf32>
    %390 = vector.shape_cast %389 : vector<2x4x8x8xf32> to vector<8x8x8xf32>
    "tpu.trace_start"() <{level = 10 : i32, message = "bqd,bkd->bqk"}> : () -> ()
    %cst_131 = arith.constant dense<0.000000e+00> : vector<8x8x8xf32>
    %391 = tpu.matmul %368, %379, %cst_131 {dimension_numbers = #tpu.dot_dimension_numbers<[2], [2], [1], [1], [0, 0, 0, 1, 1, 1], [0], [0]>} : vector<8x8x8xf32>, vector<8x8x8xf32>, vector<8x8x8xf32> -> vector<8x8x8xf32>
    "tpu.trace_stop"() : () -> ()
    %392 = vector.broadcast %1 : f32 to vector<8x8x8xf32>
    %393 = arith.mulf %391, %392 : vector<8x8x8xf32>
    %394 = arith.addf %393, %3 : vector<8x8x8xf32>
    %cst_132 = arith.constant dense<0xFF800000> : vector<8x8xf32>
    %395 = vector.multi_reduction <maximumf>, %394, %cst_132 [2] : vector<8x8x8xf32> to vector<8x8xf32>
    %396 = vector.shape_cast %395 : vector<8x8xf32> to vector<8x8x1xf32>
    %397 = vector.broadcast %396 : vector<8x8x1xf32> to vector<8x8x8xf32>
    %398 = arith.subf %394, %397 : vector<8x8x8xf32>
    %399 = math.exp %398 : vector<8x8x8xf32>
    %cst_133 = arith.constant dense<0.000000e+00> : vector<8x8xf32>
    %400 = vector.multi_reduction <add>, %399, %cst_133 [2] : vector<8x8x8xf32> to vector<8x8xf32>
    %401 = vector.shape_cast %400 : vector<8x8xf32> to vector<8x8x1xf32>
    %402 = tpu.reciprocal %401 {approx = true} : vector<8x8x1xf32> -> vector<8x8x1xf32>
    %403 = vector.broadcast %402 : vector<8x8x1xf32> to vector<8x8x8xf32>
    %404 = arith.mulf %399, %403 : vector<8x8x8xf32>
    "tpu.trace_start"() <{level = 10 : i32, message = "bqk,bkd->bqd"}> : () -> ()
    %cst_134 = arith.constant dense<0.000000e+00> : vector<8x8x8xf32>
    %405 = tpu.matmul %404, %390, %cst_134 {dimension_numbers = #tpu.dot_dimension_numbers<[2], [1], [1], [2], [0, 0, 0, 1, 1, 2], [0], [0]>} : vector<8x8x8xf32>, vector<8x8x8xf32>, vector<8x8x8xf32> -> vector<8x8x8xf32>
    "tpu.trace_stop"() : () -> ()
    %406 = vector.shape_cast %405 : vector<8x8x8xf32> to vector<2x4x8x8xf32>
    %407 = vector.extract_strided_slice %406 {offsets = [0, 0, 0, 0], sizes = [2, 1, 8, 8], strides = [1, 1, 1, 1]} : vector<2x4x8x8xf32> to vector<2x1x8x8xf32>
    %408 = vector.shape_cast %407 : vector<2x1x8x8xf32> to vector<2x8x8xf32>
    %409 = vector.extract_strided_slice %406 {offsets = [0, 1, 0, 0], sizes = [2, 1, 8, 8], strides = [1, 1, 1, 1]} : vector<2x4x8x8xf32> to vector<2x1x8x8xf32>
    %410 = vector.shape_cast %409 : vector<2x1x8x8xf32> to vector<2x8x8xf32>
    %411 = vector.extract_strided_slice %406 {offsets = [0, 2, 0, 0], sizes = [2, 1, 8, 8], strides = [1, 1, 1, 1]} : vector<2x4x8x8xf32> to vector<2x1x8x8xf32>
    %412 = vector.shape_cast %411 : vector<2x1x8x8xf32> to vector<2x8x8xf32>
    %413 = vector.extract_strided_slice %406 {offsets = [0, 3, 0, 0], sizes = [2, 1, 8, 8], strides = [1, 1, 1, 1]} : vector<2x4x8x8xf32> to vector<2x1x8x8xf32>
    %414 = vector.shape_cast %413 : vector<2x1x8x8xf32> to vector<2x8x8xf32>
    %415 = tpu.concatenate %408, %410, %412, %414 in 2 : vector<2x8x8xf32>, vector<2x8x8xf32>, vector<2x8x8xf32>, vector<2x8x8xf32> -> vector<2x8x32xf32>
    %416 = vector.shape_cast %415 : vector<2x8x32xf32> to vector<16x32xf32>
    %c2_135 = arith.constant 2 : index
    %c0_136 = arith.constant 0 : index
    %c384_137 = arith.constant 384 : index
    %417 = vector.load %arg2[%c2_135, %c0_136, %c384_137] : memref<4x80x768xf32, #tpu.memory_space<vmem>>, vector<1x32x32xf32>
    %418 = vector.shape_cast %417 : vector<1x32x32xf32> to vector<32x32xf32>
    %cst_138 = arith.constant dense<0.000000e+00> : vector<16x32xf32>
    %419 = tpu.matmul %416, %418, %cst_138 {dimension_numbers = #tpu.dot_dimension_numbers<[1], [0], [0], [1], [0, 0, 1, 1], [], []>} : vector<16x32xf32>, vector<32x32xf32>, vector<16x32xf32> -> vector<16x32xf32>
    %c2_139 = arith.constant 2 : index
    %c67_140 = arith.constant 67 : index
    %c0_141 = arith.constant 0 : index
    %420 = vector.load %arg2[%c2_139, %c67_140, %c0_141] : memref<4x80x768xf32, #tpu.memory_space<vmem>>, vector<1x1x32xf32>
    %421 = vector.shape_cast %420 : vector<1x1x32xf32> to vector<1x32xf32>
    %422 = vector.broadcast %421 : vector<1x32xf32> to vector<16x32xf32>
    %423 = arith.addf %419, %422 : vector<16x32xf32>
    %424 = arith.addf %336, %423 : vector<16x32xf32>
    %cst_142 = arith.constant dense<0.000000e+00> : vector<16xf32>
    %425 = vector.multi_reduction <add>, %424, %cst_142 [1] : vector<16x32xf32> to vector<16xf32>
    %426 = vector.shape_cast %425 : vector<16xf32> to vector<16x1xf32>
    %cst_143 = arith.constant 3.200000e+01 : f32
    %427 = vector.broadcast %cst_143 : f32 to vector<16x1xf32>
    %428 = arith.divf %426, %427 : vector<16x1xf32>
    %429 = arith.mulf %424, %424 : vector<16x32xf32>
    %cst_144 = arith.constant dense<0.000000e+00> : vector<16xf32>
    %430 = vector.multi_reduction <add>, %429, %cst_144 [1] : vector<16x32xf32> to vector<16xf32>
    %431 = vector.shape_cast %430 : vector<16xf32> to vector<16x1xf32>
    %cst_145 = arith.constant 3.200000e+01 : f32
    %432 = vector.broadcast %cst_145 : f32 to vector<16x1xf32>
    %433 = arith.divf %431, %432 : vector<16x1xf32>
    %434 = vector.broadcast %428 : vector<16x1xf32> to vector<16x32xf32>
    %435 = arith.subf %424, %434 : vector<16x32xf32>
    %436 = arith.mulf %428, %428 : vector<16x1xf32>
    %437 = arith.subf %433, %436 : vector<16x1xf32>
    %cst_146 = arith.constant 9.99999996E-13 : f32
    %438 = vector.broadcast %cst_146 : f32 to vector<16x1xf32>
    %439 = arith.addf %437, %438 : vector<16x1xf32>
    %440 = math.rsqrt %439 : vector<16x1xf32>
    %441 = vector.broadcast %440 : vector<16x1xf32> to vector<16x32xf32>
    %442 = arith.mulf %435, %441 : vector<16x32xf32>
    %c2_147 = arith.constant 2 : index
    %c68_148 = arith.constant 68 : index
    %c0_149 = arith.constant 0 : index
    %443 = vector.load %arg2[%c2_147, %c68_148, %c0_149] : memref<4x80x768xf32, #tpu.memory_space<vmem>>, vector<1x1x32xf32>
    %444 = vector.shape_cast %443 : vector<1x1x32xf32> to vector<1x32xf32>
    %445 = vector.broadcast %444 : vector<1x32xf32> to vector<16x32xf32>
    %446 = arith.mulf %442, %445 : vector<16x32xf32>
    %c2_150 = arith.constant 2 : index
    %c69_151 = arith.constant 69 : index
    %c0_152 = arith.constant 0 : index
    %447 = vector.load %arg2[%c2_150, %c69_151, %c0_152] : memref<4x80x768xf32, #tpu.memory_space<vmem>>, vector<1x1x32xf32>
    %448 = vector.shape_cast %447 : vector<1x1x32xf32> to vector<1x32xf32>
    %449 = vector.broadcast %448 : vector<1x32xf32> to vector<16x32xf32>
    %450 = arith.addf %446, %449 : vector<16x32xf32>
    %c2_153 = arith.constant 2 : index
    %c0_154 = arith.constant 0 : index
    %c512_155 = arith.constant 512 : index
    %451 = vector.load %arg2[%c2_153, %c0_154, %c512_155] : memref<4x80x768xf32, #tpu.memory_space<vmem>>, vector<1x32x64xf32>
    %452 = vector.shape_cast %451 : vector<1x32x64xf32> to vector<32x64xf32>
    %c2_156 = arith.constant 2 : index
    %c0_157 = arith.constant 0 : index
    %c640_158 = arith.constant 640 : index
    %453 = vector.load %arg2[%c2_156, %c0_157, %c640_158] : memref<4x80x768xf32, #tpu.memory_space<vmem>>, vector<1x64x32xf32>
    %454 = vector.shape_cast %453 : vector<1x64x32xf32> to vector<64x32xf32>
    %cst_159 = arith.constant dense<0.000000e+00> : vector<16x64xf32>
    %455 = tpu.matmul %450, %452, %cst_159 {dimension_numbers = #tpu.dot_dimension_numbers<[1], [0], [0], [1], [0, 0, 1, 1], [], []>} : vector<16x32xf32>, vector<32x64xf32>, vector<16x64xf32> -> vector<16x64xf32>
    %c2_160 = arith.constant 2 : index
    %c70_161 = arith.constant 70 : index
    %c0_162 = arith.constant 0 : index
    %456 = vector.load %arg2[%c2_160, %c70_161, %c0_162] : memref<4x80x768xf32, #tpu.memory_space<vmem>>, vector<1x1x64xf32>
    %457 = vector.shape_cast %456 : vector<1x1x64xf32> to vector<1x64xf32>
    %458 = vector.broadcast %457 : vector<1x64xf32> to vector<16x64xf32>
    %459 = arith.addf %455, %458 : vector<16x64xf32>
    %460 = arith.mulf %459, %459 : vector<16x64xf32>
    %461 = arith.mulf %459, %460 : vector<16x64xf32>
    %cst_163 = arith.constant 4.471500e-02 : f32
    %462 = vector.broadcast %cst_163 : f32 to vector<16x64xf32>
    %463 = arith.mulf %462, %461 : vector<16x64xf32>
    %464 = arith.addf %459, %463 : vector<16x64xf32>
    %cst_164 = arith.constant 0.797884583 : f32
    %465 = vector.broadcast %cst_164 : f32 to vector<16x64xf32>
    %466 = arith.mulf %465, %464 : vector<16x64xf32>
    %467 = math.tanh %466 : vector<16x64xf32>
    %cst_165 = arith.constant 1.000000e+00 : f32
    %468 = vector.broadcast %cst_165 : f32 to vector<16x64xf32>
    %469 = arith.addf %468, %467 : vector<16x64xf32>
    %cst_166 = arith.constant 5.000000e-01 : f32
    %470 = vector.broadcast %cst_166 : f32 to vector<16x64xf32>
    %471 = arith.mulf %470, %469 : vector<16x64xf32>
    %472 = arith.mulf %459, %471 : vector<16x64xf32>
    %cst_167 = arith.constant dense<0.000000e+00> : vector<16x32xf32>
    %473 = tpu.matmul %472, %454, %cst_167 {dimension_numbers = #tpu.dot_dimension_numbers<[1], [0], [0], [1], [0, 0, 1, 1], [], []>} : vector<16x64xf32>, vector<64x32xf32>, vector<16x32xf32> -> vector<16x32xf32>
    %c2_168 = arith.constant 2 : index
    %c71_169 = arith.constant 71 : index
    %c0_170 = arith.constant 0 : index
    %474 = vector.load %arg2[%c2_168, %c71_169, %c0_170] : memref<4x80x768xf32, #tpu.memory_space<vmem>>, vector<1x1x32xf32>
    %475 = vector.shape_cast %474 : vector<1x1x32xf32> to vector<1x32xf32>
    %476 = vector.broadcast %475 : vector<1x32xf32> to vector<16x32xf32>
    %477 = arith.addf %473, %476 : vector<16x32xf32>
    %478 = arith.addf %450, %477 : vector<16x32xf32>
    %cst_171 = arith.constant dense<0.000000e+00> : vector<16xf32>
    %479 = vector.multi_reduction <add>, %478, %cst_171 [1] : vector<16x32xf32> to vector<16xf32>
    %480 = vector.shape_cast %479 : vector<16xf32> to vector<16x1xf32>
    %cst_172 = arith.constant 3.200000e+01 : f32
    %481 = vector.broadcast %cst_172 : f32 to vector<16x1xf32>
    %482 = arith.divf %480, %481 : vector<16x1xf32>
    %483 = arith.mulf %478, %478 : vector<16x32xf32>
    %cst_173 = arith.constant dense<0.000000e+00> : vector<16xf32>
    %484 = vector.multi_reduction <add>, %483, %cst_173 [1] : vector<16x32xf32> to vector<16xf32>
    %485 = vector.shape_cast %484 : vector<16xf32> to vector<16x1xf32>
    %cst_174 = arith.constant 3.200000e+01 : f32
    %486 = vector.broadcast %cst_174 : f32 to vector<16x1xf32>
    %487 = arith.divf %485, %486 : vector<16x1xf32>
    %488 = vector.broadcast %482 : vector<16x1xf32> to vector<16x32xf32>
    %489 = arith.subf %478, %488 : vector<16x32xf32>
    %490 = arith.mulf %482, %482 : vector<16x1xf32>
    %491 = arith.subf %487, %490 : vector<16x1xf32>
    %cst_175 = arith.constant 9.99999996E-13 : f32
    %492 = vector.broadcast %cst_175 : f32 to vector<16x1xf32>
    %493 = arith.addf %491, %492 : vector<16x1xf32>
    %494 = math.rsqrt %493 : vector<16x1xf32>
    %495 = vector.broadcast %494 : vector<16x1xf32> to vector<16x32xf32>
    %496 = arith.mulf %489, %495 : vector<16x32xf32>
    %c2_176 = arith.constant 2 : index
    %c72_177 = arith.constant 72 : index
    %c0_178 = arith.constant 0 : index
    %497 = vector.load %arg2[%c2_176, %c72_177, %c0_178] : memref<4x80x768xf32, #tpu.memory_space<vmem>>, vector<1x1x32xf32>
    %498 = vector.shape_cast %497 : vector<1x1x32xf32> to vector<1x32xf32>
    %499 = vector.broadcast %498 : vector<1x32xf32> to vector<16x32xf32>
    %500 = arith.mulf %496, %499 : vector<16x32xf32>
    %c2_179 = arith.constant 2 : index
    %c73_180 = arith.constant 73 : index
    %c0_181 = arith.constant 0 : index
    %501 = vector.load %arg2[%c2_179, %c73_180, %c0_181] : memref<4x80x768xf32, #tpu.memory_space<vmem>>, vector<1x1x32xf32>
    %502 = vector.shape_cast %501 : vector<1x1x32xf32> to vector<1x32xf32>
    %503 = vector.broadcast %502 : vector<1x32xf32> to vector<16x32xf32>
    %504 = arith.addf %500, %503 : vector<16x32xf32>
    %505 = vector.shape_cast %504 : vector<16x32xf32> to vector<2x8x32xf32>
    %506 = vector.extract_strided_slice %505 {offsets = [0, 0, 0], sizes = [2, 1, 32], strides = [1, 1, 1]} : vector<2x8x32xf32> to vector<2x1x32xf32>
    %507 = vector.shape_cast %506 : vector<2x1x32xf32> to vector<2x32xf32>
    %c3 = arith.constant 3 : index
    %c0_182 = arith.constant 0 : index
    %c0_183 = arith.constant 0 : index
    %508 = vector.load %arg2[%c3, %c0_182, %c0_183] : memref<4x80x768xf32, #tpu.memory_space<vmem>>, vector<1x32x384xf32>
    %509 = vector.shape_cast %508 : vector<1x32x384xf32> to vector<32x384xf32>
    %cst_184 = arith.constant dense<0.000000e+00> : vector<16x384xf32>
    %510 = tpu.matmul %504, %509, %cst_184 {dimension_numbers = #tpu.dot_dimension_numbers<[1], [0], [0], [1], [0, 0, 1, 1], [], []>} : vector<16x32xf32>, vector<32x384xf32>, vector<16x384xf32> -> vector<16x384xf32>
    %511 = vector.extract_strided_slice %510 {offsets = [0, 0], sizes = [16, 32], strides = [1, 1]} : vector<16x384xf32> to vector<16x32xf32>
    %c3_185 = arith.constant 3 : index
    %c64_186 = arith.constant 64 : index
    %c0_187 = arith.constant 0 : index
    %512 = vector.load %arg2[%c3_185, %c64_186, %c0_187] : memref<4x80x768xf32, #tpu.memory_space<vmem>>, vector<1x1x32xf32>
    %513 = vector.shape_cast %512 : vector<1x1x32xf32> to vector<1x32xf32>
    %514 = vector.broadcast %513 : vector<1x32xf32> to vector<16x32xf32>
    %515 = arith.addf %511, %514 : vector<16x32xf32>
    %516 = vector.extract_strided_slice %510 {offsets = [0, 128], sizes = [16, 32], strides = [1, 1]} : vector<16x384xf32> to vector<16x32xf32>
    %c3_188 = arith.constant 3 : index
    %c65_189 = arith.constant 65 : index
    %c0_190 = arith.constant 0 : index
    %517 = vector.load %arg2[%c3_188, %c65_189, %c0_190] : memref<4x80x768xf32, #tpu.memory_space<vmem>>, vector<1x1x32xf32>
    %518 = vector.shape_cast %517 : vector<1x1x32xf32> to vector<1x32xf32>
    %519 = vector.broadcast %518 : vector<1x32xf32> to vector<16x32xf32>
    %520 = arith.addf %516, %519 : vector<16x32xf32>
    %521 = vector.extract_strided_slice %510 {offsets = [0, 256], sizes = [16, 32], strides = [1, 1]} : vector<16x384xf32> to vector<16x32xf32>
    %c3_191 = arith.constant 3 : index
    %c66_192 = arith.constant 66 : index
    %c0_193 = arith.constant 0 : index
    %522 = vector.load %arg2[%c3_191, %c66_192, %c0_193] : memref<4x80x768xf32, #tpu.memory_space<vmem>>, vector<1x1x32xf32>
    %523 = vector.shape_cast %522 : vector<1x1x32xf32> to vector<1x32xf32>
    %524 = vector.broadcast %523 : vector<1x32xf32> to vector<16x32xf32>
    %525 = arith.addf %521, %524 : vector<16x32xf32>
    %526 = vector.shape_cast %515 : vector<16x32xf32> to vector<2x8x32xf32>
    %527 = vector.extract_strided_slice %526 {offsets = [0, 0, 0], sizes = [2, 8, 8], strides = [1, 1, 1]} : vector<2x8x32xf32> to vector<2x8x8xf32>
    %528 = vector.extract_strided_slice %526 {offsets = [0, 0, 8], sizes = [2, 8, 8], strides = [1, 1, 1]} : vector<2x8x32xf32> to vector<2x8x8xf32>
    %529 = vector.extract_strided_slice %526 {offsets = [0, 0, 16], sizes = [2, 8, 8], strides = [1, 1, 1]} : vector<2x8x32xf32> to vector<2x8x8xf32>
    %530 = vector.extract_strided_slice %526 {offsets = [0, 0, 24], sizes = [2, 8, 8], strides = [1, 1, 1]} : vector<2x8x32xf32> to vector<2x8x8xf32>
    %531 = vector.shape_cast %527 : vector<2x8x8xf32> to vector<2x1x8x8xf32>
    %532 = vector.shape_cast %528 : vector<2x8x8xf32> to vector<2x1x8x8xf32>
    %533 = vector.shape_cast %529 : vector<2x8x8xf32> to vector<2x1x8x8xf32>
    %534 = vector.shape_cast %530 : vector<2x8x8xf32> to vector<2x1x8x8xf32>
    %535 = tpu.concatenate %531, %532, %533, %534 in 1 : vector<2x1x8x8xf32>, vector<2x1x8x8xf32>, vector<2x1x8x8xf32>, vector<2x1x8x8xf32> -> vector<2x4x8x8xf32>
    %536 = vector.shape_cast %535 : vector<2x4x8x8xf32> to vector<8x8x8xf32>
    %537 = vector.shape_cast %520 : vector<16x32xf32> to vector<2x8x32xf32>
    %538 = vector.extract_strided_slice %537 {offsets = [0, 0, 0], sizes = [2, 8, 8], strides = [1, 1, 1]} : vector<2x8x32xf32> to vector<2x8x8xf32>
    %539 = vector.extract_strided_slice %537 {offsets = [0, 0, 8], sizes = [2, 8, 8], strides = [1, 1, 1]} : vector<2x8x32xf32> to vector<2x8x8xf32>
    %540 = vector.extract_strided_slice %537 {offsets = [0, 0, 16], sizes = [2, 8, 8], strides = [1, 1, 1]} : vector<2x8x32xf32> to vector<2x8x8xf32>
    %541 = vector.extract_strided_slice %537 {offsets = [0, 0, 24], sizes = [2, 8, 8], strides = [1, 1, 1]} : vector<2x8x32xf32> to vector<2x8x8xf32>
    %542 = vector.shape_cast %538 : vector<2x8x8xf32> to vector<2x1x8x8xf32>
    %543 = vector.shape_cast %539 : vector<2x8x8xf32> to vector<2x1x8x8xf32>
    %544 = vector.shape_cast %540 : vector<2x8x8xf32> to vector<2x1x8x8xf32>
    %545 = vector.shape_cast %541 : vector<2x8x8xf32> to vector<2x1x8x8xf32>
    %546 = tpu.concatenate %542, %543, %544, %545 in 1 : vector<2x1x8x8xf32>, vector<2x1x8x8xf32>, vector<2x1x8x8xf32>, vector<2x1x8x8xf32> -> vector<2x4x8x8xf32>
    %547 = vector.shape_cast %546 : vector<2x4x8x8xf32> to vector<8x8x8xf32>
    %548 = vector.shape_cast %525 : vector<16x32xf32> to vector<2x8x32xf32>
    %549 = vector.extract_strided_slice %548 {offsets = [0, 0, 0], sizes = [2, 8, 8], strides = [1, 1, 1]} : vector<2x8x32xf32> to vector<2x8x8xf32>
    %550 = vector.extract_strided_slice %548 {offsets = [0, 0, 8], sizes = [2, 8, 8], strides = [1, 1, 1]} : vector<2x8x32xf32> to vector<2x8x8xf32>
    %551 = vector.extract_strided_slice %548 {offsets = [0, 0, 16], sizes = [2, 8, 8], strides = [1, 1, 1]} : vector<2x8x32xf32> to vector<2x8x8xf32>
    %552 = vector.extract_strided_slice %548 {offsets = [0, 0, 24], sizes = [2, 8, 8], strides = [1, 1, 1]} : vector<2x8x32xf32> to vector<2x8x8xf32>
    %553 = vector.shape_cast %549 : vector<2x8x8xf32> to vector<2x1x8x8xf32>
    %554 = vector.shape_cast %550 : vector<2x8x8xf32> to vector<2x1x8x8xf32>
    %555 = vector.shape_cast %551 : vector<2x8x8xf32> to vector<2x1x8x8xf32>
    %556 = vector.shape_cast %552 : vector<2x8x8xf32> to vector<2x1x8x8xf32>
    %557 = tpu.concatenate %553, %554, %555, %556 in 1 : vector<2x1x8x8xf32>, vector<2x1x8x8xf32>, vector<2x1x8x8xf32>, vector<2x1x8x8xf32> -> vector<2x4x8x8xf32>
    %558 = vector.shape_cast %557 : vector<2x4x8x8xf32> to vector<8x8x8xf32>
    "tpu.trace_start"() <{level = 10 : i32, message = "bqd,bkd->bqk"}> : () -> ()
    %cst_194 = arith.constant dense<0.000000e+00> : vector<8x8x8xf32>
    %559 = tpu.matmul %536, %547, %cst_194 {dimension_numbers = #tpu.dot_dimension_numbers<[2], [2], [1], [1], [0, 0, 0, 1, 1, 1], [0], [0]>} : vector<8x8x8xf32>, vector<8x8x8xf32>, vector<8x8x8xf32> -> vector<8x8x8xf32>
    "tpu.trace_stop"() : () -> ()
    %560 = vector.broadcast %1 : f32 to vector<8x8x8xf32>
    %561 = arith.mulf %559, %560 : vector<8x8x8xf32>
    %562 = arith.addf %561, %3 : vector<8x8x8xf32>
    %cst_195 = arith.constant dense<0xFF800000> : vector<8x8xf32>
    %563 = vector.multi_reduction <maximumf>, %562, %cst_195 [2] : vector<8x8x8xf32> to vector<8x8xf32>
    %564 = vector.shape_cast %563 : vector<8x8xf32> to vector<8x8x1xf32>
    %565 = vector.broadcast %564 : vector<8x8x1xf32> to vector<8x8x8xf32>
    %566 = arith.subf %562, %565 : vector<8x8x8xf32>
    %567 = math.exp %566 : vector<8x8x8xf32>
    %cst_196 = arith.constant dense<0.000000e+00> : vector<8x8xf32>
    %568 = vector.multi_reduction <add>, %567, %cst_196 [2] : vector<8x8x8xf32> to vector<8x8xf32>
    %569 = vector.shape_cast %568 : vector<8x8xf32> to vector<8x8x1xf32>
    %570 = tpu.reciprocal %569 {approx = true} : vector<8x8x1xf32> -> vector<8x8x1xf32>
    %571 = vector.broadcast %570 : vector<8x8x1xf32> to vector<8x8x8xf32>
    %572 = arith.mulf %567, %571 : vector<8x8x8xf32>
    "tpu.trace_start"() <{level = 10 : i32, message = "bqk,bkd->bqd"}> : () -> ()
    %cst_197 = arith.constant dense<0.000000e+00> : vector<8x8x8xf32>
    %573 = tpu.matmul %572, %558, %cst_197 {dimension_numbers = #tpu.dot_dimension_numbers<[2], [1], [1], [2], [0, 0, 0, 1, 1, 2], [0], [0]>} : vector<8x8x8xf32>, vector<8x8x8xf32>, vector<8x8x8xf32> -> vector<8x8x8xf32>
    "tpu.trace_stop"() : () -> ()
    %574 = vector.shape_cast %573 : vector<8x8x8xf32> to vector<2x4x8x8xf32>
    %575 = vector.extract_strided_slice %574 {offsets = [0, 0, 0, 0], sizes = [2, 1, 8, 8], strides = [1, 1, 1, 1]} : vector<2x4x8x8xf32> to vector<2x1x8x8xf32>
    %576 = vector.shape_cast %575 : vector<2x1x8x8xf32> to vector<2x8x8xf32>
    %577 = vector.extract_strided_slice %574 {offsets = [0, 1, 0, 0], sizes = [2, 1, 8, 8], strides = [1, 1, 1, 1]} : vector<2x4x8x8xf32> to vector<2x1x8x8xf32>
    %578 = vector.shape_cast %577 : vector<2x1x8x8xf32> to vector<2x8x8xf32>
    %579 = vector.extract_strided_slice %574 {offsets = [0, 2, 0, 0], sizes = [2, 1, 8, 8], strides = [1, 1, 1, 1]} : vector<2x4x8x8xf32> to vector<2x1x8x8xf32>
    %580 = vector.shape_cast %579 : vector<2x1x8x8xf32> to vector<2x8x8xf32>
    %581 = vector.extract_strided_slice %574 {offsets = [0, 3, 0, 0], sizes = [2, 1, 8, 8], strides = [1, 1, 1, 1]} : vector<2x4x8x8xf32> to vector<2x1x8x8xf32>
    %582 = vector.shape_cast %581 : vector<2x1x8x8xf32> to vector<2x8x8xf32>
    %583 = tpu.concatenate %576, %578, %580, %582 in 2 : vector<2x8x8xf32>, vector<2x8x8xf32>, vector<2x8x8xf32>, vector<2x8x8xf32> -> vector<2x8x32xf32>
    %584 = vector.shape_cast %583 : vector<2x8x32xf32> to vector<16x32xf32>
    %c3_198 = arith.constant 3 : index
    %c0_199 = arith.constant 0 : index
    %c384_200 = arith.constant 384 : index
    %585 = vector.load %arg2[%c3_198, %c0_199, %c384_200] : memref<4x80x768xf32, #tpu.memory_space<vmem>>, vector<1x32x32xf32>
    %586 = vector.shape_cast %585 : vector<1x32x32xf32> to vector<32x32xf32>
    %cst_201 = arith.constant dense<0.000000e+00> : vector<16x32xf32>
    %587 = tpu.matmul %584, %586, %cst_201 {dimension_numbers = #tpu.dot_dimension_numbers<[1], [0], [0], [1], [0, 0, 1, 1], [], []>} : vector<16x32xf32>, vector<32x32xf32>, vector<16x32xf32> -> vector<16x32xf32>
    %c3_202 = arith.constant 3 : index
    %c67_203 = arith.constant 67 : index
    %c0_204 = arith.constant 0 : index
    %588 = vector.load %arg2[%c3_202, %c67_203, %c0_204] : memref<4x80x768xf32, #tpu.memory_space<vmem>>, vector<1x1x32xf32>
    %589 = vector.shape_cast %588 : vector<1x1x32xf32> to vector<1x32xf32>
    %590 = vector.broadcast %589 : vector<1x32xf32> to vector<16x32xf32>
    %591 = arith.addf %587, %590 : vector<16x32xf32>
    %592 = arith.addf %504, %591 : vector<16x32xf32>
    %cst_205 = arith.constant dense<0.000000e+00> : vector<16xf32>
    %593 = vector.multi_reduction <add>, %592, %cst_205 [1] : vector<16x32xf32> to vector<16xf32>
    %594 = vector.shape_cast %593 : vector<16xf32> to vector<16x1xf32>
    %cst_206 = arith.constant 3.200000e+01 : f32
    %595 = vector.broadcast %cst_206 : f32 to vector<16x1xf32>
    %596 = arith.divf %594, %595 : vector<16x1xf32>
    %597 = arith.mulf %592, %592 : vector<16x32xf32>
    %cst_207 = arith.constant dense<0.000000e+00> : vector<16xf32>
    %598 = vector.multi_reduction <add>, %597, %cst_207 [1] : vector<16x32xf32> to vector<16xf32>
    %599 = vector.shape_cast %598 : vector<16xf32> to vector<16x1xf32>
    %cst_208 = arith.constant 3.200000e+01 : f32
    %600 = vector.broadcast %cst_208 : f32 to vector<16x1xf32>
    %601 = arith.divf %599, %600 : vector<16x1xf32>
    %602 = vector.broadcast %596 : vector<16x1xf32> to vector<16x32xf32>
    %603 = arith.subf %592, %602 : vector<16x32xf32>
    %604 = arith.mulf %596, %596 : vector<16x1xf32>
    %605 = arith.subf %601, %604 : vector<16x1xf32>
    %cst_209 = arith.constant 9.99999996E-13 : f32
    %606 = vector.broadcast %cst_209 : f32 to vector<16x1xf32>
    %607 = arith.addf %605, %606 : vector<16x1xf32>
    %608 = math.rsqrt %607 : vector<16x1xf32>
    %609 = vector.broadcast %608 : vector<16x1xf32> to vector<16x32xf32>
    %610 = arith.mulf %603, %609 : vector<16x32xf32>
    %c3_210 = arith.constant 3 : index
    %c68_211 = arith.constant 68 : index
    %c0_212 = arith.constant 0 : index
    %611 = vector.load %arg2[%c3_210, %c68_211, %c0_212] : memref<4x80x768xf32, #tpu.memory_space<vmem>>, vector<1x1x32xf32>
    %612 = vector.shape_cast %611 : vector<1x1x32xf32> to vector<1x32xf32>
    %613 = vector.broadcast %612 : vector<1x32xf32> to vector<16x32xf32>
    %614 = arith.mulf %610, %613 : vector<16x32xf32>
    %c3_213 = arith.constant 3 : index
    %c69_214 = arith.constant 69 : index
    %c0_215 = arith.constant 0 : index
    %615 = vector.load %arg2[%c3_213, %c69_214, %c0_215] : memref<4x80x768xf32, #tpu.memory_space<vmem>>, vector<1x1x32xf32>
    %616 = vector.shape_cast %615 : vector<1x1x32xf32> to vector<1x32xf32>
    %617 = vector.broadcast %616 : vector<1x32xf32> to vector<16x32xf32>
    %618 = arith.addf %614, %617 : vector<16x32xf32>
    %c3_216 = arith.constant 3 : index
    %c0_217 = arith.constant 0 : index
    %c512_218 = arith.constant 512 : index
    %619 = vector.load %arg2[%c3_216, %c0_217, %c512_218] : memref<4x80x768xf32, #tpu.memory_space<vmem>>, vector<1x32x64xf32>
    %620 = vector.shape_cast %619 : vector<1x32x64xf32> to vector<32x64xf32>
    %c3_219 = arith.constant 3 : index
    %c0_220 = arith.constant 0 : index
    %c640_221 = arith.constant 640 : index
    %621 = vector.load %arg2[%c3_219, %c0_220, %c640_221] : memref<4x80x768xf32, #tpu.memory_space<vmem>>, vector<1x64x32xf32>
    %622 = vector.shape_cast %621 : vector<1x64x32xf32> to vector<64x32xf32>
    %cst_222 = arith.constant dense<0.000000e+00> : vector<16x64xf32>
    %623 = tpu.matmul %618, %620, %cst_222 {dimension_numbers = #tpu.dot_dimension_numbers<[1], [0], [0], [1], [0, 0, 1, 1], [], []>} : vector<16x32xf32>, vector<32x64xf32>, vector<16x64xf32> -> vector<16x64xf32>
    %c3_223 = arith.constant 3 : index
    %c70_224 = arith.constant 70 : index
    %c0_225 = arith.constant 0 : index
    %624 = vector.load %arg2[%c3_223, %c70_224, %c0_225] : memref<4x80x768xf32, #tpu.memory_space<vmem>>, vector<1x1x64xf32>
    %625 = vector.shape_cast %624 : vector<1x1x64xf32> to vector<1x64xf32>
    %626 = vector.broadcast %625 : vector<1x64xf32> to vector<16x64xf32>
    %627 = arith.addf %623, %626 : vector<16x64xf32>
    %628 = arith.mulf %627, %627 : vector<16x64xf32>
    %629 = arith.mulf %627, %628 : vector<16x64xf32>
    %cst_226 = arith.constant 4.471500e-02 : f32
    %630 = vector.broadcast %cst_226 : f32 to vector<16x64xf32>
    %631 = arith.mulf %630, %629 : vector<16x64xf32>
    %632 = arith.addf %627, %631 : vector<16x64xf32>
    %cst_227 = arith.constant 0.797884583 : f32
    %633 = vector.broadcast %cst_227 : f32 to vector<16x64xf32>
    %634 = arith.mulf %633, %632 : vector<16x64xf32>
    %635 = math.tanh %634 : vector<16x64xf32>
    %cst_228 = arith.constant 1.000000e+00 : f32
    %636 = vector.broadcast %cst_228 : f32 to vector<16x64xf32>
    %637 = arith.addf %636, %635 : vector<16x64xf32>
    %cst_229 = arith.constant 5.000000e-01 : f32
    %638 = vector.broadcast %cst_229 : f32 to vector<16x64xf32>
    %639 = arith.mulf %638, %637 : vector<16x64xf32>
    %640 = arith.mulf %627, %639 : vector<16x64xf32>
    %cst_230 = arith.constant dense<0.000000e+00> : vector<16x32xf32>
    %641 = tpu.matmul %640, %622, %cst_230 {dimension_numbers = #tpu.dot_dimension_numbers<[1], [0], [0], [1], [0, 0, 1, 1], [], []>} : vector<16x64xf32>, vector<64x32xf32>, vector<16x32xf32> -> vector<16x32xf32>
    %c3_231 = arith.constant 3 : index
    %c71_232 = arith.constant 71 : index
    %c0_233 = arith.constant 0 : index
    %642 = vector.load %arg2[%c3_231, %c71_232, %c0_233] : memref<4x80x768xf32, #tpu.memory_space<vmem>>, vector<1x1x32xf32>
    %643 = vector.shape_cast %642 : vector<1x1x32xf32> to vector<1x32xf32>
    %644 = vector.broadcast %643 : vector<1x32xf32> to vector<16x32xf32>
    %645 = arith.addf %641, %644 : vector<16x32xf32>
    %646 = arith.addf %618, %645 : vector<16x32xf32>
    %cst_234 = arith.constant dense<0.000000e+00> : vector<16xf32>
    %647 = vector.multi_reduction <add>, %646, %cst_234 [1] : vector<16x32xf32> to vector<16xf32>
    %648 = vector.shape_cast %647 : vector<16xf32> to vector<16x1xf32>
    %cst_235 = arith.constant 3.200000e+01 : f32
    %649 = vector.broadcast %cst_235 : f32 to vector<16x1xf32>
    %650 = arith.divf %648, %649 : vector<16x1xf32>
    %651 = arith.mulf %646, %646 : vector<16x32xf32>
    %cst_236 = arith.constant dense<0.000000e+00> : vector<16xf32>
    %652 = vector.multi_reduction <add>, %651, %cst_236 [1] : vector<16x32xf32> to vector<16xf32>
    %653 = vector.shape_cast %652 : vector<16xf32> to vector<16x1xf32>
    %cst_237 = arith.constant 3.200000e+01 : f32
    %654 = vector.broadcast %cst_237 : f32 to vector<16x1xf32>
    %655 = arith.divf %653, %654 : vector<16x1xf32>
    %656 = vector.broadcast %650 : vector<16x1xf32> to vector<16x32xf32>
    %657 = arith.subf %646, %656 : vector<16x32xf32>
    %658 = arith.mulf %650, %650 : vector<16x1xf32>
    %659 = arith.subf %655, %658 : vector<16x1xf32>
    %cst_238 = arith.constant 9.99999996E-13 : f32
    %660 = vector.broadcast %cst_238 : f32 to vector<16x1xf32>
    %661 = arith.addf %659, %660 : vector<16x1xf32>
    %662 = math.rsqrt %661 : vector<16x1xf32>
    %663 = vector.broadcast %662 : vector<16x1xf32> to vector<16x32xf32>
    %664 = arith.mulf %657, %663 : vector<16x32xf32>
    %c3_239 = arith.constant 3 : index
    %c72_240 = arith.constant 72 : index
    %c0_241 = arith.constant 0 : index
    %665 = vector.load %arg2[%c3_239, %c72_240, %c0_241] : memref<4x80x768xf32, #tpu.memory_space<vmem>>, vector<1x1x32xf32>
    %666 = vector.shape_cast %665 : vector<1x1x32xf32> to vector<1x32xf32>
    %667 = vector.broadcast %666 : vector<1x32xf32> to vector<16x32xf32>
    %668 = arith.mulf %664, %667 : vector<16x32xf32>
    %c3_242 = arith.constant 3 : index
    %c73_243 = arith.constant 73 : index
    %c0_244 = arith.constant 0 : index
    %669 = vector.load %arg2[%c3_242, %c73_243, %c0_244] : memref<4x80x768xf32, #tpu.memory_space<vmem>>, vector<1x1x32xf32>
    %670 = vector.shape_cast %669 : vector<1x1x32xf32> to vector<1x32xf32>
    %671 = vector.broadcast %670 : vector<1x32xf32> to vector<16x32xf32>
    %672 = arith.addf %668, %671 : vector<16x32xf32>
    %673 = vector.shape_cast %672 : vector<16x32xf32> to vector<2x8x32xf32>
    %674 = vector.extract_strided_slice %673 {offsets = [0, 0, 0], sizes = [2, 1, 32], strides = [1, 1, 1]} : vector<2x8x32xf32> to vector<2x1x32xf32>
    %675 = vector.shape_cast %674 : vector<2x1x32xf32> to vector<2x32xf32>
    %676 = tpu.concatenate %675, %507, %339, %171 in 1 : vector<2x32xf32>, vector<2x32xf32>, vector<2x32xf32>, vector<2x32xf32> -> vector<2x128xf32>
    %c0_245 = arith.constant 0 : index
    %c0_246 = arith.constant 0 : index
    %677 = vector.load %arg3[%c0_245, %c0_246] : memref<136x128xf32, #tpu.memory_space<vmem>>, vector<128x128xf32>
    %c128 = arith.constant 128 : index
    %c0_247 = arith.constant 0 : index
    %678 = vector.load %arg3[%c128, %c0_247] : memref<136x128xf32, #tpu.memory_space<vmem>>, vector<1x128xf32>
    %cst_248 = arith.constant dense<0.000000e+00> : vector<2x128xf32>
    %679 = tpu.matmul %676, %677, %cst_248 {dimension_numbers = #tpu.dot_dimension_numbers<[1], [0], [0], [1], [0, 0, 1, 1], [], []>} : vector<2x128xf32>, vector<128x128xf32>, vector<2x128xf32> -> vector<2x128xf32>
    %680 = vector.broadcast %678 : vector<1x128xf32> to vector<2x128xf32>
    %681 = arith.addf %679, %680 : vector<2x128xf32>
    %682 = tpu.iota {dimensions = array<i32: 1>} : vector<2x128xi32>
    %c6_i32 = arith.constant 6 : i32
    %683 = vector.broadcast %c6_i32 : i32 to vector<2x128xi32>
    %684 = arith.cmpi slt, %682, %683 : vector<2x128xi32>
    %685 = arith.negf %681 : vector<2x128xf32>
    %686 = math.exp %685 : vector<2x128xf32>
    %cst_249 = arith.constant 1.000000e+00 : f32
    %687 = vector.broadcast %cst_249 : f32 to vector<2x128xf32>
    %688 = arith.addf %687, %686 : vector<2x128xf32>
    %689 = arith.divf %687, %688 : vector<2x128xf32>
    %690 = arith.select %684, %689, %681 : vector<2x128xi1>, vector<2x128xf32>
    %cst_250 = arith.constant 0.000000e+00 : f32
    %691 = vector.broadcast %cst_250 : f32 to vector<6x128xf32>
    %692 = tpu.concatenate %690, %691 in 0 : vector<2x128xf32>, vector<6x128xf32> -> vector<8x128xf32>
    %c0_251 = arith.constant 0 : index
    %c0_252 = arith.constant 0 : index
    %693 = vector.load %arg4[%c0_251, %c0_252] : memref<8x128xf32, #tpu.memory_space<vmem>>, vector<8x128xf32>
    tpu.vector_store %arg4[%c0_251, %c0_252], %692 {strides = array<i32>} : memref<8x128xf32, #tpu.memory_space<vmem>>, vector<8x128xf32>,
    return
  }
}

</mosaic_0001>

<llo_original>
// kernel: forward.1
$region0: #{forward.1}
  #allocation0 [shape = 'u32[]', space=smem, size = 0x4, offset = 0x4, fixed_abs, tag = 'smem constant byte address 0x4 - core index']
  #allocation1 [shape = 'u32[144,128]{1,0:T(1,128)}', space=vmem, size = 0x12000, scoped, tag = 'internal scratch']
  %s0 = inlined_call_operand.vmem [shape: f32[16,32], index: 0, kind: input, shape index: {}]
  %s1 = inlined_call_operand.vmem [shape: f32[8,8,8], index: 1, kind: input, shape index: {}]
  %s2 = inlined_call_operand.hbm [shape: f32[4,80,768], index: 2, kind: input, shape index: {}]
  %s3 = inlined_call_operand.vmem [shape: f32[136,128], index: 3, kind: input, shape index: {}]
  %s4 = inlined_call_operand.vmem [shape: f32[8,128], index: 4, kind: output, shape index: {}]
  %s5 = sld [smem:[#allocation0]]
  $region30: #{forward.1} parent=0
    _
  %s7 = ssub.s32 1, %s5
  %s8 = scalar_select 0, %s7, %s5
  $region1: #{forward.1} parent=0
    #allocation2 [shape = 'u8[983040]{0}', space=vmem, size = 0xf0000, scoped, tag = 'input window, operand 2, single buffered']
    #allocation3 [shape = 's32[1]{0}', space=sflag, size = 0x4, scoped, tag = 'scoped memory for forward.1']
    %9 = vsyncpa [#allocation3], 0
    // Predicated region
    $region2: #{forward.1} parent=1 // pred_check
      _
    $region3: #{forward.1} parent=1 // pred_check_branch
      %11 = sbr.rel (0) target = $region5
    $region4: #{forward.1} parent=1 // pred_region
      _
    $region5: #{forward.1} parent=1 // pred_fallthru
      _
    // Predicated region
    $region6: #{forward.1} parent=1 // pred_check
      _
    $region7: #{forward.1} parent=1 // pred_check_branch
      %13 = sbr.rel (0) target = $region9
    $region8: #{forward.1} parent=1 // pred_region
      _
    $region9: #{forward.1} parent=1 // pred_fallthru
      _
    // Predicated region
    $region10: #{forward.1} parent=1 // pred_check
      _
    $region11: #{forward.1} parent=1 // pred_check_branch
      %15 = sbr.rel (0) target = $region13
    $region12: #{forward.1} parent=1 // pred_region
      %s17 = ssub.s32 30720, 30720
      %18 = vsyncadd [#allocation3], %s17
      %s19 = sshll.u32 [#allocation2], 4
      %s20 = int_to_ptr.vmem [resolvable:$true] %s19
      %25 = dma.hbm_to_vmem [thread:$0]  %s2, 30720, %s20, [#allocation3], 768, 768, 48
    $region13: #{forward.1} parent=1 // pred_fallthru
      _
    // Predicated region
    $region14: #{forward.1} parent=1 // pred_check
      _
    $region15: #{forward.1} parent=1 // pred_check_branch
      %27 = sbr.rel (0) target = $region17
    $region16: #{forward.1} parent=1 // pred_region
      _
    $region17: #{forward.1} parent=1 // pred_fallthru
      _
    // Predicated region
    $region18: #{forward.1} parent=1 // pred_check
      _
    $region19: #{forward.1} parent=1 // pred_check_branch
      %29 = sbr.rel (0) target = $region21
    $region20: #{forward.1} parent=1 // pred_region
      %30 = dma.done [#allocation3], 30720
    $region21: #{forward.1} parent=1 // pred_fallthru
      _
    %v31 = vld [vmem:[%s0] sm:$0xff]
    %v32 = vld [vmem:[%s0 + $0x8] sm:$0xff]
    %v33 = vld [vmem:[%s1] sm:$0xff]
    %v34 = vld [vmem:[%s1 + $0x8] sm:$0xff]
    %v35 = vld [vmem:[%s1 + $0x10] sm:$0xff]
    %v36 = vld [vmem:[%s1 + $0x18] sm:$0xff]
    %v37 = vld [vmem:[%s1 + $0x20] sm:$0xff]
    %v38 = vld [vmem:[%s1 + $0x28] sm:$0xff]
    %v39 = vld [vmem:[%s1 + $0x30] sm:$0xff]
    %v40 = vld [vmem:[%s1 + $0x38] sm:$0xff]
    %v41 = vld [vmem:[#allocation2] sm:$0xff]
    %v42 = vld [vmem:[#allocation2 + $0x8] sm:$0xff]
    %v43 = vld [vmem:[#allocation2 + $0x10] sm:$0xff]
    %v44 = vld [vmem:[#allocation2 + $0x30] sm:$0xff]
    %v45 = vld [vmem:[#allocation2 + $0x38] sm:$0xff]
    %v46 = vld [vmem:[#allocation2 + $0x40] sm:$0xff]
    %v47 = vld [vmem:[#allocation2 + $0x60] sm:$0xff]
    %v48 = vld [vmem:[#allocation2 + $0x68] sm:$0xff]
    %v49 = vld [vmem:[#allocation2 + $0x70] sm:$0xff]
    %v50 = vld [vmem:[#allocation2 + $0x90] sm:$0xff]
    %v51 = vld [vmem:[#allocation2 + $0x98] sm:$0xff]
    %v52 = vld [vmem:[#allocation2 + $0xa0] sm:$0xff]
    %vm53 = vcmask 261120
    %v55 = vsel %vm53, %v31, 0
    %v58 = vsel %vm53, %v32, 0
    %60 = vmatprep.subr.mxu0 %v42
    %61 = vmatpush1.msra.mxu0 %v41
    %62 = vmatprep.subr.mxu0 %v45
    %63 = vmatpush1.msra.mxu0 %v44
    %64 = vmatprep.subr.mxu0 %v48
    %65 = vmatpush1.msra.mxu0 %v47
    %66 = vmatprep.subr.mxu0 %v51
    %67 = vmatpush1.msra.mxu0 %v50
    %68 = vmatprep.subr.mxu0 0.0
    %69 = vmatpush1.msra.mxu0 0.0
    %70 = vmatprep.subr.mxu0 0.0
    %71 = vmatpush1.msra.mxu0 0.0
    %72 = vmatprep.subr.mxu0 0.0
    %73 = vmatpush1.msra.mxu0 0.0
    %74 = vmatprep.subr.mxu0 0.0
    %75 = vmatpush1.msra.mxu0 0.0
    %76 = vmatprep.subr.mxu0 0.0
    %77 = vmatpush1.msra.mxu0 0.0
    %78 = vmatprep.subr.mxu0 0.0
    %79 = vmatpush1.msra.mxu0 0.0
    %80 = vmatprep.subr.mxu0 0.0
    %81 = vmatpush1.msra.mxu0 0.0
    %82 = vmatprep.subr.mxu0 0.0
    %83 = vmatpush1.msra.mxu0 0.0
    %84 = vmatprep.subr.mxu0 0.0
    %85 = vmatpush1.msra.mxu0 0.0
    %86 = vmatprep.subr.mxu0 0.0
    %87 = vmatpush1.msra.mxu0 0.0
    %88 = vmatprep.subr.mxu0 0.0
    %89 = vmatpush1.msra.mxu0 0.0
    %90 = vmatprep.subr.mxu0 0.0
    %91 = vmatpush1.msra.mxu0 0.0
    %92 = vmatprep.subr.mxu0 0.0
    %93 = vmatpush1.msra.mxu0 0.0
    %94 = vmatprep.subr.mxu0 0.0
    %95 = vmatpush1.msra.mxu0 0.0
    %96 = vmatprep.subr.mxu0 0.0
    %97 = vmatpush1.msra.mxu0 0.0
    %98 = vmatprep.subr.mxu0 0.0
    %99 = vmatpush1.msra.mxu0 0.0
    %100 = vmatprep.subr.mxu0 0.0
    %101 = vmatpush1.msra.mxu0 0.0
    %102 = vmatprep.subr.mxu0 0.0
    %103 = vmatpush1.msra.mxu0 0.0
    %104 = vmatprep.subr.mxu0 0.0
    %105 = vmatpush1.msra.mxu0 0.0
    %106 = vmatprep.subr.mxu0 0.0
    %107 = vmatpush1.msra.mxu0 0.0
    %108 = vmatprep.subr.mxu0 0.0
    %109 = vmatpush1.msra.mxu0 0.0
    %110 = vmatprep.subr.mxu0 0.0
    %111 = vmatpush1.msra.mxu0 0.0
    %112 = vmatprep.subr.mxu0 0.0
    %113 = vmatpush1.msra.mxu0 0.0
    %114 = vmatprep.subr.mxu0 0.0
    %115 = vmatpush1.msra.mxu0 0.0
    %116 = vmatprep.subr.mxu0 0.0
    %117 = vmatpush1.msra.mxu0 0.0
    %118 = vmatprep.subr.mxu0 0.0
    %119 = vmatpush1.msra.mxu0 0.0
    %120 = vmatprep.subr.mxu0 0.0
    %121 = vmatpush1.msra.mxu0 0.0
    %122 = vmatprep.subr.mxu0 0.0
    %123 = vmatpush1.msra.mxu0 0.0
    %124 = vmatprep.mubr.f32.mxu0 0.0
    %125 = vmatmul.mubr.f32.gmra.mrb[0].mxu0 %v55
    %v126 = vpop.f32.mrb[0].mxu0
    %v127 = vadd.f32 0.0, %v126
    %v128 = vpop.f32.mrb[0].mxu0
    %v129 = vadd.f32 0.0, %v128
    %130 = vmatprep.mubr.f32.mxu0 0.0
    %131 = vmatmul.mubr.f32.gmra.mrb[0].mxu0 %v58
    %v132 = vpop.f32.mrb[0].mxu0
    %v133 = vadd.f32 0.0, %v132
    %v134 = vpop.f32.mrb[0].mxu0
    %v135 = vadd.f32 0.0, %v134
    %136 = vdwg.mxu0
    %137 = vmatprep.subr.mxu0 0.0
    %138 = vmatpush1.msra.mxu0 %v43
    %139 = vmatprep.subr.mxu0 0.0
    %140 = vmatpush1.msra.mxu0 %v46
    %141 = vmatprep.subr.mxu0 0.0
    %142 = vmatpush1.msra.mxu0 %v49
    %143 = vmatprep.subr.mxu0 0.0
    %144 = vmatpush1.msra.mxu0 %v52
    %145 = vmatprep.subr.mxu0 0.0
    %146 = vmatpush1.msra.mxu0 0.0
    %147 = vmatprep.subr.mxu0 0.0
    %148 = vmatpush1.msra.mxu0 0.0
    %149 = vmatprep.subr.mxu0 0.0
    %150 = vmatpush1.msra.mxu0 0.0
    %151 = vmatprep.subr.mxu0 0.0
    %152 = vmatpush1.msra.mxu0 0.0
    %153 = vmatprep.subr.mxu0 0.0
    %154 = vmatpush1.msra.mxu0 0.0
    %155 = vmatprep.subr.mxu0 0.0
    %156 = vmatpush1.msra.mxu0 0.0
    %157 = vmatprep.subr.mxu0 0.0
    %158 = vmatpush1.msra.mxu0 0.0
    %159 = vmatprep.subr.mxu0 0.0
    %160 = vmatpush1.msra.mxu0 0.0
    %161 = vmatprep.subr.mxu0 0.0
    %162 = vmatpush1.msra.mxu0 0.0
    %163 = vmatprep.subr.mxu0 0.0
    %164 = vmatpush1.msra.mxu0 0.0
    %165 = vmatprep.subr.mxu0 0.0
    %166 = vmatpush1.msra.mxu0 0.0
    %167 = vmatprep.subr.mxu0 0.0
    %168 = vmatpush1.msra.mxu0 0.0
    %169 = vmatprep.subr.mxu0 0.0
    %170 = vmatpush1.msra.mxu0 0.0
    %171 = vmatprep.subr.mxu0 0.0
    %172 = vmatpush1.msra.mxu0 0.0
    %173 = vmatprep.subr.mxu0 0.0
    %174 = vmatpush1.msra.mxu0 0.0
    %175 = vmatprep.subr.mxu0 0.0
    %176 = vmatpush1.msra.mxu0 0.0
    %177 = vmatprep.subr.mxu0 0.0
    %178 = vmatpush1.msra.mxu0 0.0
    %179 = vmatprep.subr.mxu0 0.0
    %180 = vmatpush1.msra.mxu0 0.0
    %181 = vmatprep.subr.mxu0 0.0
    %182 = vmatpush1.msra.mxu0 0.0
    %183 = vmatprep.subr.mxu0 0.0
    %184 = vmatpush1.msra.mxu0 0.0
    %185 = vmatprep.subr.mxu0 0.0
    %186 = vmatpush1.msra.mxu0 0.0
    %187 = vmatprep.subr.mxu0 0.0
    %188 = vmatpush1.msra.mxu0 0.0
    %189 = vmatprep.subr.mxu0 0.0
    %190 = vmatpush1.msra.mxu0 0.0
    %191 = vmatprep.subr.mxu0 0.0
    %192 = vmatpush1.msra.mxu0 0.0
    %193 = vmatprep.subr.mxu0 0.0
    %194 = vmatpush1.msra.mxu0 0.0
    %195 = vmatprep.subr.mxu0 0.0
    %196 = vmatpush1.msra.mxu0 0.0
    %197 = vmatprep.subr.mxu0 0.0
    %198 = vmatpush1.msra.mxu0 0.0
    %199 = vmatprep.subr.mxu0 0.0
    %200 = vmatpush1.msra.mxu0 0.0
    %201 = vmatprep.mubr.f32.mxu0 0.0
    %202 = vmatmul.mubr.f32.gmra.mrb[0].mxu0 %v55
    %v203 = vpop.f32.mrb[0].mxu0
    %v204 = vadd.f32 0.0, %v203
    %v205 = vpop.f32.mrb[0].mxu0
    %206 = vmatprep.mubr.f32.mxu0 0.0
    %207 = vmatmul.mubr.f32.gmra.mrb[0].mxu0 %v58
    %v208 = vpop.f32.mrb[0].mxu0
    %v209 = vadd.f32 0.0, %v208
    %v210 = vpop.f32.mrb[0].mxu0
    %211 = vdwg.mxu0
    %v212 = vld [vmem:[#allocation2 + $0x180] ss:$0 sm:$0xff]
    %v213 = vadd.f32 %v127, %v212
    %v214 = vadd.f32 %v133, %v212
    %v215 = vld [vmem:[#allocation2 + $0x181] ss:$0 sm:$0xff]
    %v216 = vadd.f32 %v129, %v215
    %v217 = vadd.f32 %v135, %v215
    %v218 = vld [vmem:[#allocation2 + $0x182] ss:$0 sm:$0xff]
    %v219 = vadd.f32 %v204, %v218
    %v220 = vadd.f32 %v209, %v218
    %223 = vrot.lane.b32.xlu0 %v213, 120
    %v224 = vpop.permute.xlu0 %223
    %225 = vrot.lane.b32.xlu0 %v214, 120
    %v226 = vpop.permute.xlu0 %225
    %227 = vrot.lane.b32.xlu0 %v213, 112
    %v228 = vpop.permute.xlu0 %227
    %229 = vrot.lane.b32.xlu0 %v214, 112
    %v230 = vpop.permute.xlu0 %229
    %231 = vrot.lane.b32.xlu0 %v213, 104
    %v232 = vpop.permute.xlu0 %231
    %233 = vrot.lane.b32.xlu0 %v214, 104
    %v234 = vpop.permute.xlu0 %233
    %237 = vrot.lane.b32.xlu0 %v216, 120
    %v238 = vpop.permute.xlu0 %237
    %239 = vrot.lane.b32.xlu0 %v217, 120
    %v240 = vpop.permute.xlu0 %239
    %241 = vrot.lane.b32.xlu0 %v216, 112
    %v242 = vpop.permute.xlu0 %241
    %243 = vrot.lane.b32.xlu0 %v217, 112
    %v244 = vpop.permute.xlu0 %243
    %245 = vrot.lane.b32.xlu0 %v216, 104
    %v246 = vpop.permute.xlu0 %245
    %247 = vrot.lane.b32.xlu0 %v217, 104
    %v248 = vpop.permute.xlu0 %247
    %251 = vrot.lane.b32.xlu0 %v219, 120
    %v252 = vpop.permute.xlu0 %251
    %253 = vrot.lane.b32.xlu0 %v220, 120
    %v254 = vpop.permute.xlu0 %253
    %257 = vrot.lane.b32.xlu0 %v219, 112
    %v258 = vpop.permute.xlu0 %257
    %259 = vrot.lane.b32.xlu0 %v220, 112
    %v260 = vpop.permute.xlu0 %259
    %263 = vrot.lane.b32.xlu0 %v219, 104
    %v264 = vpop.permute.xlu0 %263
    %265 = vrot.lane.b32.xlu0 %v220, 104
    %v266 = vpop.permute.xlu0 %265
    %vm269 = vcmask 64512
    %v270 = vsel %vm269, %v213, 0
    %v272 = vsel %vm269, %v216, 0
    %274 = vmatprep.subr.mxu0 0.0
    %275 = vmatpush1.xpose.msra.mxu0 %v272
    %276 = vmatprep.subr.mxu0 0.0
    %277 = vmatpush1.xpose.msra.mxu0 0.0
    %278 = vmatprep.subr.mxu0 0.0
    %279 = vmatpush1.xpose.msra.mxu0 0.0
    %280 = vmatprep.subr.mxu0 0.0
    %281 = vmatpush1.xpose.msra.mxu0 0.0
    %282 = vmatprep.subr.mxu0 0.0
    %283 = vmatpush1.xpose.msra.mxu0 0.0
    %284 = vmatprep.subr.mxu0 0.0
    %285 = vmatpush1.xpose.msra.mxu0 0.0
    %286 = vmatprep.subr.mxu0 0.0
    %287 = vmatpush1.xpose.msra.mxu0 0.0
    %288 = vmatprep.subr.mxu0 0.0
    %289 = vmatpush1.xpose.msra.mxu0 0.0
    %290 = vmatprep.subr.mxu0 0.0
    %291 = vmatpush1.xpose.msra.mxu0 0.0
    %292 = vmatprep.subr.mxu0 0.0
    %293 = vmatpush1.xpose.msra.mxu0 0.0
    %294 = vmatprep.subr.mxu0 0.0
    %295 = vmatpush1.xpose.msra.mxu0 0.0
    %296 = vmatprep.subr.mxu0 0.0
    %297 = vmatpush1.xpose.msra.mxu0 0.0
    %298 = vmatprep.subr.mxu0 0.0
    %299 = vmatpush1.xpose.msra.mxu0 0.0
    %300 = vmatprep.subr.mxu0 0.0
    %301 = vmatpush1.xpose.msra.mxu0 0.0
    %302 = vmatprep.subr.mxu0 0.0
    %303 = vmatpush1.xpose.msra.mxu0 0.0
    %304 = vmatprep.subr.mxu0 0.0
    %305 = vmatpush1.xpose.msra.mxu0 0.0
    %306 = vmatprep.subr.mxu0 0.0
    %307 = vmatpush1.xpose.msra.mxu0 0.0
    %308 = vmatprep.subr.mxu0 0.0
    %309 = vmatpush1.xpose.msra.mxu0 0.0
    %310 = vmatprep.subr.mxu0 0.0
    %311 = vmatpush1.xpose.msra.mxu0 0.0
    %312 = vmatprep.subr.mxu0 0.0
    %313 = vmatpush1.xpose.msra.mxu0 0.0
    %314 = vmatprep.subr.mxu0 0.0
    %315 = vmatpush1.xpose.msra.mxu0 0.0
    %316 = vmatprep.subr.mxu0 0.0
    %317 = vmatpush1.xpose.msra.mxu0 0.0
    %318 = vmatprep.subr.mxu0 0.0
    %319 = vmatpush1.xpose.msra.mxu0 0.0
    %320 = vmatprep.subr.mxu0 0.0
    %321 = vmatpush1.xpose.msra.mxu0 0.0
    %322 = vmatprep.subr.mxu0 0.0
    %323 = vmatpush1.xpose.msra.mxu0 0.0
    %324 = vmatprep.subr.mxu0 0.0
    %325 = vmatpush1.xpose.msra.mxu0 0.0
    %326 = vmatprep.subr.mxu0 0.0
    %327 = vmatpush1.xpose.msra.mxu0 0.0
    %328 = vmatprep.subr.mxu0 0.0
    %329 = vmatpush1.xpose.msra.mxu0 0.0
    %330 = vmatprep.subr.mxu0 0.0
    %331 = vmatpush1.xpose.msra.mxu0 0.0
    %332 = vmatprep.subr.mxu0 0.0
    %333 = vmatpush1.xpose.msra.mxu0 0.0
    %334 = vmatprep.subr.mxu0 0.0
    %335 = vmatpush1.xpose.msra.mxu0 0.0
    %336 = vmatprep.subr.mxu0 0.0
    %337 = vmatpush1.xpose.msra.mxu0 0.0
    %338 = vmatprep.mubr.f32.mxu0 0.0
    %339 = vmatmul.mubr.f32.gmra.mrb[0].mxu0 %v270
    %v340 = vpop.f32.mrb[0].mxu0
    %v341 = vadd.f32 0.0, %v340
    %v342 = vpop.f32.mrb[0].mxu0
    %343 = vdwg.mxu0
    %v344 = vsel %vm269, %v224, 0
    %v346 = vsel %vm269, %v238, 0
    %348 = vmatprep.subr.mxu0 0.0
    %349 = vmatpush1.xpose.msra.mxu0 %v346
    %350 = vmatprep.subr.mxu0 0.0
    %351 = vmatpush1.xpose.msra.mxu0 0.0
    %352 = vmatprep.subr.mxu0 0.0
    %353 = vmatpush1.xpose.msra.mxu0 0.0
    %354 = vmatprep.subr.mxu0 0.0
    %355 = vmatpush1.xpose.msra.mxu0 0.0
    %356 = vmatprep.subr.mxu0 0.0
    %357 = vmatpush1.xpose.msra.mxu0 0.0
    %358 = vmatprep.subr.mxu0 0.0
    %359 = vmatpush1.xpose.msra.mxu0 0.0
    %360 = vmatprep.subr.mxu0 0.0
    %361 = vmatpush1.xpose.msra.mxu0 0.0
    %362 = vmatprep.subr.mxu0 0.0
    %363 = vmatpush1.xpose.msra.mxu0 0.0
    %364 = vmatprep.subr.mxu0 0.0
    %365 = vmatpush1.xpose.msra.mxu0 0.0
    %366 = vmatprep.subr.mxu0 0.0
    %367 = vmatpush1.xpose.msra.mxu0 0.0
    %368 = vmatprep.subr.mxu0 0.0
    %369 = vmatpush1.xpose.msra.mxu0 0.0
    %370 = vmatprep.subr.mxu0 0.0
    %371 = vmatpush1.xpose.msra.mxu0 0.0
    %372 = vmatprep.subr.mxu0 0.0
    %373 = vmatpush1.xpose.msra.mxu0 0.0
    %374 = vmatprep.subr.mxu0 0.0
    %375 = vmatpush1.xpose.msra.mxu0 0.0
    %376 = vmatprep.subr.mxu0 0.0
    %377 = vmatpush1.xpose.msra.mxu0 0.0
    %378 = vmatprep.subr.mxu0 0.0
    %379 = vmatpush1.xpose.msra.mxu0 0.0
    %380 = vmatprep.subr.mxu0 0.0
    %381 = vmatpush1.xpose.msra.mxu0 0.0
    %382 = vmatprep.subr.mxu0 0.0
    %383 = vmatpush1.xpose.msra.mxu0 0.0
    %384 = vmatprep.subr.mxu0 0.0
    %385 = vmatpush1.xpose.msra.mxu0 0.0
    %386 = vmatprep.subr.mxu0 0.0
    %387 = vmatpush1.xpose.msra.mxu0 0.0
    %388 = vmatprep.subr.mxu0 0.0
    %389 = vmatpush1.xpose.msra.mxu0 0.0
    %390 = vmatprep.subr.mxu0 0.0
    %391 = vmatpush1.xpose.msra.mxu0 0.0
    %392 = vmatprep.subr.mxu0 0.0
    %393 = vmatpush1.xpose.msra.mxu0 0.0
    %394 = vmatprep.subr.mxu0 0.0
    %395 = vmatpush1.xpose.msra.mxu0 0.0
    %396 = vmatprep.subr.mxu0 0.0
    %397 = vmatpush1.xpose.msra.mxu0 0.0
    %398 = vmatprep.subr.mxu0 0.0
    %399 = vmatpush1.xpose.msra.mxu0 0.0
    %400 = vmatprep.subr.mxu0 0.0
    %401 = vmatpush1.xpose.msra.mxu0 0.0
    %402 = vmatprep.subr.mxu0 0.0
    %403 = vmatpush1.xpose.msra.mxu0 0.0
    %404 = vmatprep.subr.mxu0 0.0
    %405 = vmatpush1.xpose.msra.mxu0 0.0
    %406 = vmatprep.subr.mxu0 0.0
    %407 = vmatpush1.xpose.msra.mxu0 0.0
    %408 = vmatprep.subr.mxu0 0.0
    %409 = vmatpush1.xpose.msra.mxu0 0.0
    %410 = vmatprep.subr.mxu0 0.0
    %411 = vmatpush1.xpose.msra.mxu0 0.0
    %412 = vmatprep.mubr.f32.mxu0 0.0
    %413 = vmatmul.mubr.f32.gmra.mrb[0].mxu0 %v344
    %v414 = vpop.f32.mrb[0].mxu0
    %v415 = vadd.f32 0.0, %v414
    %v416 = vpop.f32.mrb[0].mxu0
    %417 = vdwg.mxu0
    %v418 = vsel %vm269, %v228, 0
    %v420 = vsel %vm269, %v242, 0
    %422 = vmatprep.subr.mxu0 0.0
    %423 = vmatpush1.xpose.msra.mxu0 %v420
    %424 = vmatprep.subr.mxu0 0.0
    %425 = vmatpush1.xpose.msra.mxu0 0.0
    %426 = vmatprep.subr.mxu0 0.0
    %427 = vmatpush1.xpose.msra.mxu0 0.0
    %428 = vmatprep.subr.mxu0 0.0
    %429 = vmatpush1.xpose.msra.mxu0 0.0
    %430 = vmatprep.subr.mxu0 0.0
    %431 = vmatpush1.xpose.msra.mxu0 0.0
    %432 = vmatprep.subr.mxu0 0.0
    %433 = vmatpush1.xpose.msra.mxu0 0.0
    %434 = vmatprep.subr.mxu0 0.0
    %435 = vmatpush1.xpose.msra.mxu0 0.0
    %436 = vmatprep.subr.mxu0 0.0
    %437 = vmatpush1.xpose.msra.mxu0 0.0
    %438 = vmatprep.subr.mxu0 0.0
    %439 = vmatpush1.xpose.msra.mxu0 0.0
    %440 = vmatprep.subr.mxu0 0.0
    %441 = vmatpush1.xpose.msra.mxu0 0.0
    %442 = vmatprep.subr.mxu0 0.0
    %443 = vmatpush1.xpose.msra.mxu0 0.0
    %444 = vmatprep.subr.mxu0 0.0
    %445 = vmatpush1.xpose.msra.mxu0 0.0
    %446 = vmatprep.subr.mxu0 0.0
    %447 = vmatpush1.xpose.msra.mxu0 0.0
    %448 = vmatprep.subr.mxu0 0.0
    %449 = vmatpush1.xpose.msra.mxu0 0.0
    %450 = vmatprep.subr.mxu0 0.0
    %451 = vmatpush1.xpose.msra.mxu0 0.0
    %452 = vmatprep.subr.mxu0 0.0
    %453 = vmatpush1.xpose.msra.mxu0 0.0
    %454 = vmatprep.subr.mxu0 0.0
    %455 = vmatpush1.xpose.msra.mxu0 0.0
    %456 = vmatprep.subr.mxu0 0.0
    %457 = vmatpush1.xpose.msra.mxu0 0.0
    %458 = vmatprep.subr.mxu0 0.0
    %459 = vmatpush1.xpose.msra.mxu0 0.0
    %460 = vmatprep.subr.mxu0 0.0
    %461 = vmatpush1.xpose.msra.mxu0 0.0
    %462 = vmatprep.subr.mxu0 0.0
    %463 = vmatpush1.xpose.msra.mxu0 0.0
    %464 = vmatprep.subr.mxu0 0.0
    %465 = vmatpush1.xpose.msra.mxu0 0.0
    %466 = vmatprep.subr.mxu0 0.0
    %467 = vmatpush1.xpose.msra.mxu0 0.0
    %468 = vmatprep.subr.mxu0 0.0
    %469 = vmatpush1.xpose.msra.mxu0 0.0
    %470 = vmatprep.subr.mxu0 0.0
    %471 = vmatpush1.xpose.msra.mxu0 0.0
    %472 = vmatprep.subr.mxu0 0.0
    %473 = vmatpush1.xpose.msra.mxu0 0.0
    %474 = vmatprep.subr.mxu0 0.0
    %475 = vmatpush1.xpose.msra.mxu0 0.0
    %476 = vmatprep.subr.mxu0 0.0
    %477 = vmatpush1.xpose.msra.mxu0 0.0
    %478 = vmatprep.subr.mxu0 0.0
    %479 = vmatpush1.xpose.msra.mxu0 0.0
    %480 = vmatprep.subr.mxu0 0.0
    %481 = vmatpush1.xpose.msra.mxu0 0.0
    %482 = vmatprep.subr.mxu0 0.0
    %483 = vmatpush1.xpose.msra.mxu0 0.0
    %484 = vmatprep.subr.mxu0 0.0
    %485 = vmatpush1.xpose.msra.mxu0 0.0
    %486 = vmatprep.mubr.f32.mxu0 0.0
    %487 = vmatmul.mubr.f32.gmra.mrb[0].mxu0 %v418
    %v488 = vpop.f32.mrb[0].mxu0
    %v489 = vadd.f32 0.0, %v488
    %v490 = vpop.f32.mrb[0].mxu0
    %491 = vdwg.mxu0
    %v492 = vsel %vm269, %v232, 0
    %v494 = vsel %vm269, %v246, 0
    %496 = vmatprep.subr.mxu0 0.0
    %497 = vmatpush1.xpose.msra.mxu0 %v494
    %498 = vmatprep.subr.mxu0 0.0
    %499 = vmatpush1.xpose.msra.mxu0 0.0
    %500 = vmatprep.subr.mxu0 0.0
    %501 = vmatpush1.xpose.msra.mxu0 0.0
    %502 = vmatprep.subr.mxu0 0.0
    %503 = vmatpush1.xpose.msra.mxu0 0.0
    %504 = vmatprep.subr.mxu0 0.0
    %505 = vmatpush1.xpose.msra.mxu0 0.0
    %506 = vmatprep.subr.mxu0 0.0
    %507 = vmatpush1.xpose.msra.mxu0 0.0
    %508 = vmatprep.subr.mxu0 0.0
    %509 = vmatpush1.xpose.msra.mxu0 0.0
    %510 = vmatprep.subr.mxu0 0.0
    %511 = vmatpush1.xpose.msra.mxu0 0.0
    %512 = vmatprep.subr.mxu0 0.0
    %513 = vmatpush1.xpose.msra.mxu0 0.0
    %514 = vmatprep.subr.mxu0 0.0
    %515 = vmatpush1.xpose.msra.mxu0 0.0
    %516 = vmatprep.subr.mxu0 0.0
    %517 = vmatpush1.xpose.msra.mxu0 0.0
    %518 = vmatprep.subr.mxu0 0.0
    %519 = vmatpush1.xpose.msra.mxu0 0.0
    %520 = vmatprep.subr.mxu0 0.0
    %521 = vmatpush1.xpose.msra.mxu0 0.0
    %522 = vmatprep.subr.mxu0 0.0
    %523 = vmatpush1.xpose.msra.mxu0 0.0
    %524 = vmatprep.subr.mxu0 0.0
    %525 = vmatpush1.xpose.msra.mxu0 0.0
    %526 = vmatprep.subr.mxu0 0.0
    %527 = vmatpush1.xpose.msra.mxu0 0.0
    %528 = vmatprep.subr.mxu0 0.0
    %529 = vmatpush1.xpose.msra.mxu0 0.0
    %530 = vmatprep.subr.mxu0 0.0
    %531 = vmatpush1.xpose.msra.mxu0 0.0
    %532 = vmatprep.subr.mxu0 0.0
    %533 = vmatpush1.xpose.msra.mxu0 0.0
    %534 = vmatprep.subr.mxu0 0.0
    %535 = vmatpush1.xpose.msra.mxu0 0.0
    %536 = vmatprep.subr.mxu0 0.0
    %537 = vmatpush1.xpose.msra.mxu0 0.0
    %538 = vmatprep.subr.mxu0 0.0
    %539 = vmatpush1.xpose.msra.mxu0 0.0
    %540 = vmatprep.subr.mxu0 0.0
    %541 = vmatpush1.xpose.msra.mxu0 0.0
    %542 = vmatprep.subr.mxu0 0.0
    %543 = vmatpush1.xpose.msra.mxu0 0.0
    %544 = vmatprep.subr.mxu0 0.0
    %545 = vmatpush1.xpose.msra.mxu0 0.0
    %546 = vmatprep.subr.mxu0 0.0
    %547 = vmatpush1.xpose.msra.mxu0 0.0
    %548 = vmatprep.subr.mxu0 0.0
    %549 = vmatpush1.xpose.msra.mxu0 0.0
    %550 = vmatprep.subr.mxu0 0.0
    %551 = vmatpush1.xpose.msra.mxu0 0.0
    %552 = vmatprep.subr.mxu0 0.0
    %553 = vmatpush1.xpose.msra.mxu0 0.0
    %554 = vmatprep.subr.mxu0 0.0
    %555 = vmatpush1.xpose.msra.mxu0 0.0
    %556 = vmatprep.subr.mxu0 0.0
    %557 = vmatpush1.xpose.msra.mxu0 0.0
    %558 = vmatprep.subr.mxu0 0.0
    %559 = vmatpush1.xpose.msra.mxu0 0.0
    %560 = vmatprep.mubr.f32.mxu0 0.0
    %561 = vmatmul.mubr.f32.gmra.mrb[0].mxu0 %v492
    %v562 = vpop.f32.mrb[0].mxu0
    %v563 = vadd.f32 0.0, %v562
    %v564 = vpop.f32.mrb[0].mxu0
    %565 = vdwg.mxu0
    %v566 = vsel %vm269, %v214, 0
    %v568 = vsel %vm269, %v217, 0
    %570 = vmatprep.subr.mxu0 0.0
    %571 = vmatpush1.xpose.msra.mxu0 %v568
    %572 = vmatprep.subr.mxu0 0.0
    %573 = vmatpush1.xpose.msra.mxu0 0.0
    %574 = vmatprep.subr.mxu0 0.0
    %575 = vmatpush1.xpose.msra.mxu0 0.0
    %576 = vmatprep.subr.mxu0 0.0
    %577 = vmatpush1.xpose.msra.mxu0 0.0
    %578 = vmatprep.subr.mxu0 0.0
    %579 = vmatpush1.xpose.msra.mxu0 0.0
    %580 = vmatprep.subr.mxu0 0.0
    %581 = vmatpush1.xpose.msra.mxu0 0.0
    %582 = vmatprep.subr.mxu0 0.0
    %583 = vmatpush1.xpose.msra.mxu0 0.0
    %584 = vmatprep.subr.mxu0 0.0
    %585 = vmatpush1.xpose.msra.mxu0 0.0
    %586 = vmatprep.subr.mxu0 0.0
    %587 = vmatpush1.xpose.msra.mxu0 0.0
    %588 = vmatprep.subr.mxu0 0.0
    %589 = vmatpush1.xpose.msra.mxu0 0.0
    %590 = vmatprep.subr.mxu0 0.0
    %591 = vmatpush1.xpose.msra.mxu0 0.0
    %592 = vmatprep.subr.mxu0 0.0
    %593 = vmatpush1.xpose.msra.mxu0 0.0
    %594 = vmatprep.subr.mxu0 0.0
    %595 = vmatpush1.xpose.msra.mxu0 0.0
    %596 = vmatprep.subr.mxu0 0.0
    %597 = vmatpush1.xpose.msra.mxu0 0.0
    %598 = vmatprep.subr.mxu0 0.0
    %599 = vmatpush1.xpose.msra.mxu0 0.0
    %600 = vmatprep.subr.mxu0 0.0
    %601 = vmatpush1.xpose.msra.mxu0 0.0
    %602 = vmatprep.subr.mxu0 0.0
    %603 = vmatpush1.xpose.msra.mxu0 0.0
    %604 = vmatprep.subr.mxu0 0.0
    %605 = vmatpush1.xpose.msra.mxu0 0.0
    %606 = vmatprep.subr.mxu0 0.0
    %607 = vmatpush1.xpose.msra.mxu0 0.0
    %608 = vmatprep.subr.mxu0 0.0
    %609 = vmatpush1.xpose.msra.mxu0 0.0
    %610 = vmatprep.subr.mxu0 0.0
    %611 = vmatpush1.xpose.msra.mxu0 0.0
    %612 = vmatprep.subr.mxu0 0.0
    %613 = vmatpush1.xpose.msra.mxu0 0.0
    %614 = vmatprep.subr.mxu0 0.0
    %615 = vmatpush1.xpose.msra.mxu0 0.0
    %616 = vmatprep.subr.mxu0 0.0
    %617 = vmatpush1.xpose.msra.mxu0 0.0
    %618 = vmatprep.subr.mxu0 0.0
    %619 = vmatpush1.xpose.msra.mxu0 0.0
    %620 = vmatprep.subr.mxu0 0.0
    %621 = vmatpush1.xpose.msra.mxu0 0.0
    %622 = vmatprep.subr.mxu0 0.0
    %623 = vmatpush1.xpose.msra.mxu0 0.0
    %624 = vmatprep.subr.mxu0 0.0
    %625 = vmatpush1.xpose.msra.mxu0 0.0
    %626 = vmatprep.subr.mxu0 0.0
    %627 = vmatpush1.xpose.msra.mxu0 0.0
    %628 = vmatprep.subr.mxu0 0.0
    %629 = vmatpush1.xpose.msra.mxu0 0.0
    %630 = vmatprep.subr.mxu0 0.0
    %631 = vmatpush1.xpose.msra.mxu0 0.0
    %632 = vmatprep.subr.mxu0 0.0
    %633 = vmatpush1.xpose.msra.mxu0 0.0
    %634 = vmatprep.mubr.f32.mxu0 0.0
    %635 = vmatmul.mubr.f32.gmra.mrb[0].mxu0 %v566
    %v636 = vpop.f32.mrb[0].mxu0
    %v637 = vadd.f32 0.0, %v636
    %v638 = vpop.f32.mrb[0].mxu0
    %639 = vdwg.mxu0
    %v640 = vsel %vm269, %v226, 0
    %v642 = vsel %vm269, %v240, 0
    %644 = vmatprep.subr.mxu0 0.0
    %645 = vmatpush1.xpose.msra.mxu0 %v642
    %646 = vmatprep.subr.mxu0 0.0
    %647 = vmatpush1.xpose.msra.mxu0 0.0
    %648 = vmatprep.subr.mxu0 0.0
    %649 = vmatpush1.xpose.msra.mxu0 0.0
    %650 = vmatprep.subr.mxu0 0.0
    %651 = vmatpush1.xpose.msra.mxu0 0.0
    %652 = vmatprep.subr.mxu0 0.0
    %653 = vmatpush1.xpose.msra.mxu0 0.0
    %654 = vmatprep.subr.mxu0 0.0
    %655 = vmatpush1.xpose.msra.mxu0 0.0
    %656 = vmatprep.subr.mxu0 0.0
    %657 = vmatpush1.xpose.msra.mxu0 0.0
    %658 = vmatprep.subr.mxu0 0.0
    %659 = vmatpush1.xpose.msra.mxu0 0.0
    %660 = vmatprep.subr.mxu0 0.0
    %661 = vmatpush1.xpose.msra.mxu0 0.0
    %662 = vmatprep.subr.mxu0 0.0
    %663 = vmatpush1.xpose.msra.mxu0 0.0
    %664 = vmatprep.subr.mxu0 0.0
    %665 = vmatpush1.xpose.msra.mxu0 0.0
    %666 = vmatprep.subr.mxu0 0.0
    %667 = vmatpush1.xpose.msra.mxu0 0.0
    %668 = vmatprep.subr.mxu0 0.0
    %669 = vmatpush1.xpose.msra.mxu0 0.0
    %670 = vmatprep.subr.mxu0 0.0
    %671 = vmatpush1.xpose.msra.mxu0 0.0
    %672 = vmatprep.subr.mxu0 0.0
    %673 = vmatpush1.xpose.msra.mxu0 0.0
    %674 = vmatprep.subr.mxu0 0.0
    %675 = vmatpush1.xpose.msra.mxu0 0.0
    %676 = vmatprep.subr.mxu0 0.0
    %677 = vmatpush1.xpose.msra.mxu0 0.0
    %678 = vmatprep.subr.mxu0 0.0
    %679 = vmatpush1.xpose.msra.mxu0 0.0
    %680 = vmatprep.subr.mxu0 0.0
    %681 = vmatpush1.xpose.msra.mxu0 0.0
    %682 = vmatprep.subr.mxu0 0.0
    %683 = vmatpush1.xpose.msra.mxu0 0.0
    %684 = vmatprep.subr.mxu0 0.0
    %685 = vmatpush1.xpose.msra.mxu0 0.0
    %686 = vmatprep.subr.mxu0 0.0
    %687 = vmatpush1.xpose.msra.mxu0 0.0
    %688 = vmatprep.subr.mxu0 0.0
    %689 = vmatpush1.xpose.msra.mxu0 0.0
    %690 = vmatprep.subr.mxu0 0.0
    %691 = vmatpush1.xpose.msra.mxu0 0.0
    %692 = vmatprep.subr.mxu0 0.0
    %693 = vmatpush1.xpose.msra.mxu0 0.0
    %694 = vmatprep.subr.mxu0 0.0
    %695 = vmatpush1.xpose.msra.mxu0 0.0
    %696 = vmatprep.subr.mxu0 0.0
    %697 = vmatpush1.xpose.msra.mxu0 0.0
    %698 = vmatprep.subr.mxu0 0.0
    %699 = vmatpush1.xpose.msra.mxu0 0.0
    %700 = vmatprep.subr.mxu0 0.0
    %701 = vmatpush1.xpose.msra.mxu0 0.0
    %702 = vmatprep.subr.mxu0 0.0
    %703 = vmatpush1.xpose.msra.mxu0 0.0
    %704 = vmatprep.subr.mxu0 0.0
    %705 = vmatpush1.xpose.msra.mxu0 0.0
    %706 = vmatprep.subr.mxu0 0.0
    %707 = vmatpush1.xpose.msra.mxu0 0.0
    %708 = vmatprep.mubr.f32.mxu0 0.0
    %709 = vmatmul.mubr.f32.gmra.mrb[0].mxu0 %v640
    %v710 = vpop.f32.mrb[0].mxu0
    %v711 = vadd.f32 0.0, %v710
    %v712 = vpop.f32.mrb[0].mxu0
    %713 = vdwg.mxu0
    %v714 = vsel %vm269, %v230, 0
    %v716 = vsel %vm269, %v244, 0
    %718 = vmatprep.subr.mxu0 0.0
    %719 = vmatpush1.xpose.msra.mxu0 %v716
    %720 = vmatprep.subr.mxu0 0.0
    %721 = vmatpush1.xpose.msra.mxu0 0.0
    %722 = vmatprep.subr.mxu0 0.0
    %723 = vmatpush1.xpose.msra.mxu0 0.0
    %724 = vmatprep.subr.mxu0 0.0
    %725 = vmatpush1.xpose.msra.mxu0 0.0
    %726 = vmatprep.subr.mxu0 0.0
    %727 = vmatpush1.xpose.msra.mxu0 0.0
    %728 = vmatprep.subr.mxu0 0.0
    %729 = vmatpush1.xpose.msra.mxu0 0.0
    %730 = vmatprep.subr.mxu0 0.0
    %731 = vmatpush1.xpose.msra.mxu0 0.0
    %732 = vmatprep.subr.mxu0 0.0
    %733 = vmatpush1.xpose.msra.mxu0 0.0
    %734 = vmatprep.subr.mxu0 0.0
    %735 = vmatpush1.xpose.msra.mxu0 0.0
    %736 = vmatprep.subr.mxu0 0.0
    %737 = vmatpush1.xpose.msra.mxu0 0.0
    %738 = vmatprep.subr.mxu0 0.0
    %739 = vmatpush1.xpose.msra.mxu0 0.0
    %740 = vmatprep.subr.mxu0 0.0
    %741 = vmatpush1.xpose.msra.mxu0 0.0
    %742 = vmatprep.subr.mxu0 0.0
    %743 = vmatpush1.xpose.msra.mxu0 0.0
    %744 = vmatprep.subr.mxu0 0.0
    %745 = vmatpush1.xpose.msra.mxu0 0.0
    %746 = vmatprep.subr.mxu0 0.0
    %747 = vmatpush1.xpose.msra.mxu0 0.0
    %748 = vmatprep.subr.mxu0 0.0
    %749 = vmatpush1.xpose.msra.mxu0 0.0
    %750 = vmatprep.subr.mxu0 0.0
    %751 = vmatpush1.xpose.msra.mxu0 0.0
    %752 = vmatprep.subr.mxu0 0.0
    %753 = vmatpush1.xpose.msra.mxu0 0.0
    %754 = vmatprep.subr.mxu0 0.0
    %755 = vmatpush1.xpose.msra.mxu0 0.0
    %756 = vmatprep.subr.mxu0 0.0
    %757 = vmatpush1.xpose.msra.mxu0 0.0
    %758 = vmatprep.subr.mxu0 0.0
    %759 = vmatpush1.xpose.msra.mxu0 0.0
    %760 = vmatprep.subr.mxu0 0.0
    %761 = vmatpush1.xpose.msra.mxu0 0.0
    %762 = vmatprep.subr.mxu0 0.0
    %763 = vmatpush1.xpose.msra.mxu0 0.0
    %764 = vmatprep.subr.mxu0 0.0
    %765 = vmatpush1.xpose.msra.mxu0 0.0
    %766 = vmatprep.subr.mxu0 0.0
    %767 = vmatpush1.xpose.msra.mxu0 0.0
    %768 = vmatprep.subr.mxu0 0.0
    %769 = vmatpush1.xpose.msra.mxu0 0.0
    %770 = vmatprep.subr.mxu0 0.0
    %771 = vmatpush1.xpose.msra.mxu0 0.0
    %772 = vmatprep.subr.mxu0 0.0
    %773 = vmatpush1.xpose.msra.mxu0 0.0
    %774 = vmatprep.subr.mxu0 0.0
    %775 = vmatpush1.xpose.msra.mxu0 0.0
    %776 = vmatprep.subr.mxu0 0.0
    %777 = vmatpush1.xpose.msra.mxu0 0.0
    %778 = vmatprep.subr.mxu0 0.0
    %779 = vmatpush1.xpose.msra.mxu0 0.0
    %780 = vmatprep.subr.mxu0 0.0
    %781 = vmatpush1.xpose.msra.mxu0 0.0
    %782 = vmatprep.mubr.f32.mxu0 0.0
    %783 = vmatmul.mubr.f32.gmra.mrb[0].mxu0 %v714
    %v784 = vpop.f32.mrb[0].mxu0
    %v785 = vadd.f32 0.0, %v784
    %v786 = vpop.f32.mrb[0].mxu0
    %787 = vdwg.mxu0
    %v788 = vsel %vm269, %v234, 0
    %v790 = vsel %vm269, %v248, 0
    %792 = vmatprep.subr.mxu0 0.0
    %793 = vmatpush1.xpose.msra.mxu0 %v790
    %794 = vmatprep.subr.mxu0 0.0
    %795 = vmatpush1.xpose.msra.mxu0 0.0
    %796 = vmatprep.subr.mxu0 0.0
    %797 = vmatpush1.xpose.msra.mxu0 0.0
    %798 = vmatprep.subr.mxu0 0.0
    %799 = vmatpush1.xpose.msra.mxu0 0.0
    %800 = vmatprep.subr.mxu0 0.0
    %801 = vmatpush1.xpose.msra.mxu0 0.0
    %802 = vmatprep.subr.mxu0 0.0
    %803 = vmatpush1.xpose.msra.mxu0 0.0
    %804 = vmatprep.subr.mxu0 0.0
    %805 = vmatpush1.xpose.msra.mxu0 0.0
    %806 = vmatprep.subr.mxu0 0.0
    %807 = vmatpush1.xpose.msra.mxu0 0.0
    %808 = vmatprep.subr.mxu0 0.0
    %809 = vmatpush1.xpose.msra.mxu0 0.0
    %810 = vmatprep.subr.mxu0 0.0
    %811 = vmatpush1.xpose.msra.mxu0 0.0
    %812 = vmatprep.subr.mxu0 0.0
    %813 = vmatpush1.xpose.msra.mxu0 0.0
    %814 = vmatprep.subr.mxu0 0.0
    %815 = vmatpush1.xpose.msra.mxu0 0.0
    %816 = vmatprep.subr.mxu0 0.0
    %817 = vmatpush1.xpose.msra.mxu0 0.0
    %818 = vmatprep.subr.mxu0 0.0
    %819 = vmatpush1.xpose.msra.mxu0 0.0
    %820 = vmatprep.subr.mxu0 0.0
    %821 = vmatpush1.xpose.msra.mxu0 0.0
    %822 = vmatprep.subr.mxu0 0.0
    %823 = vmatpush1.xpose.msra.mxu0 0.0
    %824 = vmatprep.subr.mxu0 0.0
    %825 = vmatpush1.xpose.msra.mxu0 0.0
    %826 = vmatprep.subr.mxu0 0.0
    %827 = vmatpush1.xpose.msra.mxu0 0.0
    %828 = vmatprep.subr.mxu0 0.0
    %829 = vmatpush1.xpose.msra.mxu0 0.0
    %830 = vmatprep.subr.mxu0 0.0
    %831 = vmatpush1.xpose.msra.mxu0 0.0
    %832 = vmatprep.subr.mxu0 0.0
    %833 = vmatpush1.xpose.msra.mxu0 0.0
    %834 = vmatprep.subr.mxu0 0.0
    %835 = vmatpush1.xpose.msra.mxu0 0.0
    %836 = vmatprep.subr.mxu0 0.0
    %837 = vmatpush1.xpose.msra.mxu0 0.0
    %838 = vmatprep.subr.mxu0 0.0
    %839 = vmatpush1.xpose.msra.mxu0 0.0
    %840 = vmatprep.subr.mxu0 0.0
    %841 = vmatpush1.xpose.msra.mxu0 0.0
    %842 = vmatprep.subr.mxu0 0.0
    %843 = vmatpush1.xpose.msra.mxu0 0.0
    %844 = vmatprep.subr.mxu0 0.0
    %845 = vmatpush1.xpose.msra.mxu0 0.0
    %846 = vmatprep.subr.mxu0 0.0
    %847 = vmatpush1.xpose.msra.mxu0 0.0
    %848 = vmatprep.subr.mxu0 0.0
    %849 = vmatpush1.xpose.msra.mxu0 0.0
    %850 = vmatprep.subr.mxu0 0.0
    %851 = vmatpush1.xpose.msra.mxu0 0.0
    %852 = vmatprep.subr.mxu0 0.0
    %853 = vmatpush1.xpose.msra.mxu0 0.0
    %854 = vmatprep.subr.mxu0 0.0
    %855 = vmatpush1.xpose.msra.mxu0 0.0
    %856 = vmatprep.mubr.f32.mxu0 0.0
    %857 = vmatmul.mubr.f32.gmra.mrb[0].mxu0 %v788
    %v858 = vpop.f32.mrb[0].mxu0
    %v859 = vadd.f32 0.0, %v858
    %v860 = vpop.f32.mrb[0].mxu0
    %861 = vdwg.mxu0
    %v862 = vmul.f32 %v341, 0.35355338
    %v863 = vmul.f32 %v415, 0.35355338
    %v864 = vmul.f32 %v489, 0.35355338
    %v865 = vmul.f32 %v563, 0.35355338
    %v866 = vmul.f32 %v637, 0.35355338
    %v867 = vmul.f32 %v711, 0.35355338
    %v868 = vmul.f32 %v785, 0.35355338
    %v869 = vmul.f32 %v859, 0.35355338
    %v870 = vadd.f32 %v862, %v33
    %v871 = vadd.f32 %v863, %v34
    %v872 = vadd.f32 %v864, %v35
    %v873 = vadd.f32 %v865, %v36
    %v874 = vadd.f32 %v866, %v37
    %v875 = vadd.f32 %v867, %v38
    %v876 = vadd.f32 %v868, %v39
    %v877 = vadd.f32 %v869, %v40
    %v878 = vsel %vm269, %v870, -inf
    %879 = vmax.xlane.f32.xlu0 %v878
    %v880 = vpop.xlane.xlu0 %879
    %v881 = vsel %vm269, %v871, -inf
    %882 = vmax.xlane.f32.xlu0 %v881
    %v883 = vpop.xlane.xlu0 %882
    %v884 = vsel %vm269, %v872, -inf
    %885 = vmax.xlane.f32.xlu0 %v884
    %v886 = vpop.xlane.xlu0 %885
    %v887 = vsel %vm269, %v873, -inf
    %888 = vmax.xlane.f32.xlu0 %v887
    %v889 = vpop.xlane.xlu0 %888
    %v890 = vsel %vm269, %v874, -inf
    %891 = vmax.xlane.f32.xlu0 %v890
    %v892 = vpop.xlane.xlu0 %891
    %v893 = vsel %vm269, %v875, -inf
    %894 = vmax.xlane.f32.xlu0 %v893
    %v895 = vpop.xlane.xlu0 %894
    %v896 = vsel %vm269, %v876, -inf
    %897 = vmax.xlane.f32.xlu0 %v896
    %v898 = vpop.xlane.xlu0 %897
    %v899 = vsel %vm269, %v877, -inf
    %900 = vmax.xlane.f32.xlu0 %v899
    %v901 = vpop.xlane.xlu0 %900
    %v902 = vsub.f32 %v870, %v880
    %v903 = vsub.f32 %v871, %v883
    %v904 = vsub.f32 %v872, %v886
    %v905 = vsub.f32 %v873, %v889
    %v906 = vsub.f32 %v874, %v892
    %v907 = vsub.f32 %v875, %v895
    %v908 = vsub.f32 %v876, %v898
    %v909 = vsub.f32 %v877, %v901
    %v910 = vmul.f32 %v902, 1.442695
    %v911 = vpow.pop %v910
    %v912 = vmul.f32 %v903, 1.442695
    %v913 = vpow.pop %v912
    %v914 = vmul.f32 %v904, 1.442695
    %v915 = vpow.pop %v914
    %v916 = vmul.f32 %v905, 1.442695
    %v917 = vpow.pop %v916
    %v918 = vmul.f32 %v906, 1.442695
    %v919 = vpow.pop %v918
    %v920 = vmul.f32 %v907, 1.442695
    %v921 = vpow.pop %v920
    %v922 = vmul.f32 %v908, 1.442695
    %v923 = vpow.pop %v922
    %v924 = vmul.f32 %v909, 1.442695
    %v925 = vpow.pop %v924
    %v926 = vsel %vm269, %v911, 0.0
    %927 = vadd.xlane.f32.xlu0 %v926
    %v928 = vpop.xlane.xlu0 %927
    %v929 = vsel %vm269, %v913, 0.0
    %930 = vadd.xlane.f32.xlu0 %v929
    %v931 = vpop.xlane.xlu0 %930
    %v932 = vsel %vm269, %v915, 0.0
    %933 = vadd.xlane.f32.xlu0 %v932
    %v934 = vpop.xlane.xlu0 %933
    %v935 = vsel %vm269, %v917, 0.0
    %936 = vadd.xlane.f32.xlu0 %v935
    %v937 = vpop.xlane.xlu0 %936
    %v938 = vsel %vm269, %v919, 0.0
    %939 = vadd.xlane.f32.xlu0 %v938
    %v940 = vpop.xlane.xlu0 %939
    %v941 = vsel %vm269, %v921, 0.0
    %942 = vadd.xlane.f32.xlu0 %v941
    %v943 = vpop.xlane.xlu0 %942
    %v944 = vsel %vm269, %v923, 0.0
    %945 = vadd.xlane.f32.xlu0 %v944
    %v946 = vpop.xlane.xlu0 %945
    %v947 = vsel %vm269, %v925, 0.0
    %948 = vadd.xlane.f32.xlu0 %v947
    %v949 = vpop.xlane.xlu0 %948
    %v950 = vrcp.pop %v928
    %v951 = vrcp.pop %v931
    %v952 = vrcp.pop %v934
    %v953 = vrcp.pop %v937
    %v954 = vrcp.pop %v940
    %v955 = vrcp.pop %v943
    %v956 = vrcp.pop %v946
    %v957 = vrcp.pop %v949
    %v958 = vmul.f32 %v911, %v950
    %v959 = vmul.f32 %v913, %v951
    %v960 = vmul.f32 %v915, %v952
    %v961 = vmul.f32 %v917, %v953
    %v962 = vmul.f32 %v919, %v954
    %v963 = vmul.f32 %v921, %v955
    %v964 = vmul.f32 %v923, %v956
    %v965 = vmul.f32 %v925, %v957
    %v967 = vsel %vm269, %v958, 0
    %969 = vmatprep.subr.mxu0 0.0
    %970 = vmatpush1.msra.mxu0 %v219
    %971 = vmatprep.subr.mxu0 0.0
    %972 = vmatpush1.msra.mxu0 0.0
    %973 = vmatprep.subr.mxu0 0.0
    %974 = vmatpush1.msra.mxu0 0.0
    %975 = vmatprep.subr.mxu0 0.0
    %976 = vmatpush1.msra.mxu0 0.0
    %977 = vmatprep.subr.mxu0 0.0
    %978 = vmatpush1.msra.mxu0 0.0
    %979 = vmatprep.subr.mxu0 0.0
    %980 = vmatpush1.msra.mxu0 0.0
    %981 = vmatprep.subr.mxu0 0.0
    %982 = vmatpush1.msra.mxu0 0.0
    %983 = vmatprep.subr.mxu0 0.0
    %984 = vmatpush1.msra.mxu0 0.0
    %985 = vmatprep.subr.mxu0 0.0
    %986 = vmatpush1.msra.mxu0 0.0
    %987 = vmatprep.subr.mxu0 0.0
    %988 = vmatpush1.msra.mxu0 0.0
    %989 = vmatprep.subr.mxu0 0.0
    %990 = vmatpush1.msra.mxu0 0.0
    %991 = vmatprep.subr.mxu0 0.0
    %992 = vmatpush1.msra.mxu0 0.0
    %993 = vmatprep.subr.mxu0 0.0
    %994 = vmatpush1.msra.mxu0 0.0
    %995 = vmatprep.subr.mxu0 0.0
    %996 = vmatpush1.msra.mxu0 0.0
    %997 = vmatprep.subr.mxu0 0.0
    %998 = vmatpush1.msra.mxu0 0.0
    %999 = vmatprep.subr.mxu0 0.0
    %1000 = vmatpush1.msra.mxu0 0.0
    %1001 = vmatprep.subr.mxu0 0.0
    %1002 = vmatpush1.msra.mxu0 0.0
    %1003 = vmatprep.subr.mxu0 0.0
    %1004 = vmatpush1.msra.mxu0 0.0
    %1005 = vmatprep.subr.mxu0 0.0
    %1006 = vmatpush1.msra.mxu0 0.0
    %1007 = vmatprep.subr.mxu0 0.0
    %1008 = vmatpush1.msra.mxu0 0.0
    %1009 = vmatprep.subr.mxu0 0.0
    %1010 = vmatpush1.msra.mxu0 0.0
    %1011 = vmatprep.subr.mxu0 0.0
    %1012 = vmatpush1.msra.mxu0 0.0
    %1013 = vmatprep.subr.mxu0 0.0
    %1014 = vmatpush1.msra.mxu0 0.0
    %1015 = vmatprep.subr.mxu0 0.0
    %1016 = vmatpush1.msra.mxu0 0.0
    %1017 = vmatprep.subr.mxu0 0.0
    %1018 = vmatpush1.msra.mxu0 0.0
    %1019 = vmatprep.subr.mxu0 0.0
    %1020 = vmatpush1.msra.mxu0 0.0
    %1021 = vmatprep.subr.mxu0 0.0
    %1022 = vmatpush1.msra.mxu0 0.0
    %1023 = vmatprep.subr.mxu0 0.0
    %1024 = vmatpush1.msra.mxu0 0.0
    %1025 = vmatprep.subr.mxu0 0.0
    %1026 = vmatpush1.msra.mxu0 0.0
    %1027 = vmatprep.subr.mxu0 0.0
    %1028 = vmatpush1.msra.mxu0 0.0
    %1029 = vmatprep.subr.mxu0 0.0
    %1030 = vmatpush1.msra.mxu0 0.0
    %1031 = vmatprep.subr.mxu0 0.0
    %1032 = vmatpush1.msra.mxu0 0.0
    %1033 = vmatprep.mubr.f32.mxu0 0.0
    %1034 = vmatmul.mubr.f32.gmra.mrb[0].mxu0 %v967
    %v1035 = vpop.f32.mrb[0].mxu0
    %v1036 = vadd.f32 0.0, %v1035
    %v1037 = vpop.f32.mrb[0].mxu0
    %1038 = vdwg.mxu0
    %v1040 = vsel %vm269, %v959, 0
    %1042 = vmatprep.subr.mxu0 0.0
    %1043 = vmatpush1.msra.mxu0 %v252
    %1044 = vmatprep.subr.mxu0 0.0
    %1045 = vmatpush1.msra.mxu0 0.0
    %1046 = vmatprep.subr.mxu0 0.0
    %1047 = vmatpush1.msra.mxu0 0.0
    %1048 = vmatprep.subr.mxu0 0.0
    %1049 = vmatpush1.msra.mxu0 0.0
    %1050 = vmatprep.subr.mxu0 0.0
    %1051 = vmatpush1.msra.mxu0 0.0
    %1052 = vmatprep.subr.mxu0 0.0
    %1053 = vmatpush1.msra.mxu0 0.0
    %1054 = vmatprep.subr.mxu0 0.0
    %1055 = vmatpush1.msra.mxu0 0.0
    %1056 = vmatprep.subr.mxu0 0.0
    %1057 = vmatpush1.msra.mxu0 0.0
    %1058 = vmatprep.subr.mxu0 0.0
    %1059 = vmatpush1.msra.mxu0 0.0
    %1060 = vmatprep.subr.mxu0 0.0
    %1061 = vmatpush1.msra.mxu0 0.0
    %1062 = vmatprep.subr.mxu0 0.0
    %1063 = vmatpush1.msra.mxu0 0.0
    %1064 = vmatprep.subr.mxu0 0.0
    %1065 = vmatpush1.msra.mxu0 0.0
    %1066 = vmatprep.subr.mxu0 0.0
    %1067 = vmatpush1.msra.mxu0 0.0
    %1068 = vmatprep.subr.mxu0 0.0
    %1069 = vmatpush1.msra.mxu0 0.0
    %1070 = vmatprep.subr.mxu0 0.0
    %1071 = vmatpush1.msra.mxu0 0.0
    %1072 = vmatprep.subr.mxu0 0.0
    %1073 = vmatpush1.msra.mxu0 0.0
    %1074 = vmatprep.subr.mxu0 0.0
    %1075 = vmatpush1.msra.mxu0 0.0
    %1076 = vmatprep.subr.mxu0 0.0
    %1077 = vmatpush1.msra.mxu0 0.0
    %1078 = vmatprep.subr.mxu0 0.0
    %1079 = vmatpush1.msra.mxu0 0.0
    %1080 = vmatprep.subr.mxu0 0.0
    %1081 = vmatpush1.msra.mxu0 0.0
    %1082 = vmatprep.subr.mxu0 0.0
    %1083 = vmatpush1.msra.mxu0 0.0
    %1084 = vmatprep.subr.mxu0 0.0
    %1085 = vmatpush1.msra.mxu0 0.0
    %1086 = vmatprep.subr.mxu0 0.0
    %1087 = vmatpush1.msra.mxu0 0.0
    %1088 = vmatprep.subr.mxu0 0.0
    %1089 = vmatpush1.msra.mxu0 0.0
    %1090 = vmatprep.subr.mxu0 0.0
    %1091 = vmatpush1.msra.mxu0 0.0
    %1092 = vmatprep.subr.mxu0 0.0
    %1093 = vmatpush1.msra.mxu0 0.0
    %1094 = vmatprep.subr.mxu0 0.0
    %1095 = vmatpush1.msra.mxu0 0.0
    %1096 = vmatprep.subr.mxu0 0.0
    %1097 = vmatpush1.msra.mxu0 0.0
    %1098 = vmatprep.subr.mxu0 0.0
    %1099 = vmatpush1.msra.mxu0 0.0
    %1100 = vmatprep.subr.mxu0 0.0
    %1101 = vmatpush1.msra.mxu0 0.0
    %1102 = vmatprep.subr.mxu0 0.0
    %1103 = vmatpush1.msra.mxu0 0.0
    %1104 = vmatprep.subr.mxu0 0.0
    %1105 = vmatpush1.msra.mxu0 0.0
    %1106 = vmatprep.mubr.f32.mxu0 0.0
    %1107 = vmatmul.mubr.f32.gmra.mrb[0].mxu0 %v1040
    %v1108 = vpop.f32.mrb[0].mxu0
    %v1109 = vadd.f32 0.0, %v1108
    %v1110 = vpop.f32.mrb[0].mxu0
    %1111 = vdwg.mxu0
    %v1113 = vsel %vm269, %v960, 0
    %1115 = vmatprep.subr.mxu0 0.0
    %1116 = vmatpush1.msra.mxu0 %v258
    %1117 = vmatprep.subr.mxu0 0.0
    %1118 = vmatpush1.msra.mxu0 0.0
    %1119 = vmatprep.subr.mxu0 0.0
    %1120 = vmatpush1.msra.mxu0 0.0
    %1121 = vmatprep.subr.mxu0 0.0
    %1122 = vmatpush1.msra.mxu0 0.0
    %1123 = vmatprep.subr.mxu0 0.0
    %1124 = vmatpush1.msra.mxu0 0.0
    %1125 = vmatprep.subr.mxu0 0.0
    %1126 = vmatpush1.msra.mxu0 0.0
    %1127 = vmatprep.subr.mxu0 0.0
    %1128 = vmatpush1.msra.mxu0 0.0
    %1129 = vmatprep.subr.mxu0 0.0
    %1130 = vmatpush1.msra.mxu0 0.0
    %1131 = vmatprep.subr.mxu0 0.0
    %1132 = vmatpush1.msra.mxu0 0.0
    %1133 = vmatprep.subr.mxu0 0.0
    %1134 = vmatpush1.msra.mxu0 0.0
    %1135 = vmatprep.subr.mxu0 0.0
    %1136 = vmatpush1.msra.mxu0 0.0
    %1137 = vmatprep.subr.mxu0 0.0
    %1138 = vmatpush1.msra.mxu0 0.0
    %1139 = vmatprep.subr.mxu0 0.0
    %1140 = vmatpush1.msra.mxu0 0.0
    %1141 = vmatprep.subr.mxu0 0.0
    %1142 = vmatpush1.msra.mxu0 0.0
    %1143 = vmatprep.subr.mxu0 0.0
    %1144 = vmatpush1.msra.mxu0 0.0
    %1145 = vmatprep.subr.mxu0 0.0
    %1146 = vmatpush1.msra.mxu0 0.0
    %1147 = vmatprep.subr.mxu0 0.0
    %1148 = vmatpush1.msra.mxu0 0.0
    %1149 = vmatprep.subr.mxu0 0.0
    %1150 = vmatpush1.msra.mxu0 0.0
    %1151 = vmatprep.subr.mxu0 0.0
    %1152 = vmatpush1.msra.mxu0 0.0
    %1153 = vmatprep.subr.mxu0 0.0
    %1154 = vmatpush1.msra.mxu0 0.0
    %1155 = vmatprep.subr.mxu0 0.0
    %1156 = vmatpush1.msra.mxu0 0.0
    %1157 = vmatprep.subr.mxu0 0.0
    %1158 = vmatpush1.msra.mxu0 0.0
    %1159 = vmatprep.subr.mxu0 0.0
    %1160 = vmatpush1.msra.mxu0 0.0
    %1161 = vmatprep.subr.mxu0 0.0
    %1162 = vmatpush1.msra.mxu0 0.0
    %1163 = vmatprep.subr.mxu0 0.0
    %1164 = vmatpush1.msra.mxu0 0.0
    %1165 = vmatprep.subr.mxu0 0.0
    %1166 = vmatpush1.msra.mxu0 0.0
    %1167 = vmatprep.subr.mxu0 0.0
    %1168 = vmatpush1.msra.mxu0 0.0
    %1169 = vmatprep.subr.mxu0 0.0
    %1170 = vmatpush1.msra.mxu0 0.0
    %1171 = vmatprep.subr.mxu0 0.0
    %1172 = vmatpush1.msra.mxu0 0.0
    %1173 = vmatprep.subr.mxu0 0.0
    %1174 = vmatpush1.msra.mxu0 0.0
    %1175 = vmatprep.subr.mxu0 0.0
    %1176 = vmatpush1.msra.mxu0 0.0
    %1177 = vmatprep.subr.mxu0 0.0
    %1178 = vmatpush1.msra.mxu0 0.0
    %1179 = vmatprep.mubr.f32.mxu0 0.0
    %1180 = vmatmul.mubr.f32.gmra.mrb[0].mxu0 %v1113
    %v1181 = vpop.f32.mrb[0].mxu0
    %v1182 = vadd.f32 0.0, %v1181
    %v1183 = vpop.f32.mrb[0].mxu0
    %1184 = vdwg.mxu0
    %v1186 = vsel %vm269, %v961, 0
    %1188 = vmatprep.subr.mxu0 0.0
    %1189 = vmatpush1.msra.mxu0 %v264
    %1190 = vmatprep.subr.mxu0 0.0
    %1191 = vmatpush1.msra.mxu0 0.0
    %1192 = vmatprep.subr.mxu0 0.0
    %1193 = vmatpush1.msra.mxu0 0.0
    %1194 = vmatprep.subr.mxu0 0.0
    %1195 = vmatpush1.msra.mxu0 0.0
    %1196 = vmatprep.subr.mxu0 0.0
    %1197 = vmatpush1.msra.mxu0 0.0
    %1198 = vmatprep.subr.mxu0 0.0
    %1199 = vmatpush1.msra.mxu0 0.0
    %1200 = vmatprep.subr.mxu0 0.0
    %1201 = vmatpush1.msra.mxu0 0.0
    %1202 = vmatprep.subr.mxu0 0.0
    %1203 = vmatpush1.msra.mxu0 0.0
    %1204 = vmatprep.subr.mxu0 0.0
    %1205 = vmatpush1.msra.mxu0 0.0
    %1206 = vmatprep.subr.mxu0 0.0
    %1207 = vmatpush1.msra.mxu0 0.0
    %1208 = vmatprep.subr.mxu0 0.0
    %1209 = vmatpush1.msra.mxu0 0.0
    %1210 = vmatprep.subr.mxu0 0.0
    %1211 = vmatpush1.msra.mxu0 0.0
    %1212 = vmatprep.subr.mxu0 0.0
    %1213 = vmatpush1.msra.mxu0 0.0
    %1214 = vmatprep.subr.mxu0 0.0
    %1215 = vmatpush1.msra.mxu0 0.0
    %1216 = vmatprep.subr.mxu0 0.0
    %1217 = vmatpush1.msra.mxu0 0.0
    %1218 = vmatprep.subr.mxu0 0.0
    %1219 = vmatpush1.msra.mxu0 0.0
    %1220 = vmatprep.subr.mxu0 0.0
    %1221 = vmatpush1.msra.mxu0 0.0
    %1222 = vmatprep.subr.mxu0 0.0
    %1223 = vmatpush1.msra.mxu0 0.0
    %1224 = vmatprep.subr.mxu0 0.0
    %1225 = vmatpush1.msra.mxu0 0.0
    %1226 = vmatprep.subr.mxu0 0.0
    %1227 = vmatpush1.msra.mxu0 0.0
    %1228 = vmatprep.subr.mxu0 0.0
    %1229 = vmatpush1.msra.mxu0 0.0
    %1230 = vmatprep.subr.mxu0 0.0
    %1231 = vmatpush1.msra.mxu0 0.0
    %1232 = vmatprep.subr.mxu0 0.0
    %1233 = vmatpush1.msra.mxu0 0.0
    %1234 = vmatprep.subr.mxu0 0.0
    %1235 = vmatpush1.msra.mxu0 0.0
    %1236 = vmatprep.subr.mxu0 0.0
    %1237 = vmatpush1.msra.mxu0 0.0
    %1238 = vmatprep.subr.mxu0 0.0
    %1239 = vmatpush1.msra.mxu0 0.0
    %1240 = vmatprep.subr.mxu0 0.0
    %1241 = vmatpush1.msra.mxu0 0.0
    %1242 = vmatprep.subr.mxu0 0.0
    %1243 = vmatpush1.msra.mxu0 0.0
    %1244 = vmatprep.subr.mxu0 0.0
    %1245 = vmatpush1.msra.mxu0 0.0
    %1246 = vmatprep.subr.mxu0 0.0
    %1247 = vmatpush1.msra.mxu0 0.0
    %1248 = vmatprep.subr.mxu0 0.0
    %1249 = vmatpush1.msra.mxu0 0.0
    %1250 = vmatprep.subr.mxu0 0.0
    %1251 = vmatpush1.msra.mxu0 0.0
    %1252 = vmatprep.mubr.f32.mxu0 0.0
    %1253 = vmatmul.mubr.f32.gmra.mrb[0].mxu0 %v1186
    %v1254 = vpop.f32.mrb[0].mxu0
    %v1255 = vadd.f32 0.0, %v1254
    %v1256 = vpop.f32.mrb[0].mxu0
    %1257 = vdwg.mxu0
    %v1259 = vsel %vm269, %v962, 0
    %1261 = vmatprep.subr.mxu0 0.0
    %1262 = vmatpush1.msra.mxu0 %v220
    %1263 = vmatprep.subr.mxu0 0.0
    %1264 = vmatpush1.msra.mxu0 0.0
    %1265 = vmatprep.subr.mxu0 0.0
    %1266 = vmatpush1.msra.mxu0 0.0
    %1267 = vmatprep.subr.mxu0 0.0
    %1268 = vmatpush1.msra.mxu0 0.0
    %1269 = vmatprep.subr.mxu0 0.0
    %1270 = vmatpush1.msra.mxu0 0.0
    %1271 = vmatprep.subr.mxu0 0.0
    %1272 = vmatpush1.msra.mxu0 0.0
    %1273 = vmatprep.subr.mxu0 0.0
    %1274 = vmatpush1.msra.mxu0 0.0
    %1275 = vmatprep.subr.mxu0 0.0
    %1276 = vmatpush1.msra.mxu0 0.0
    %1277 = vmatprep.subr.mxu0 0.0
    %1278 = vmatpush1.msra.mxu0 0.0
    %1279 = vmatprep.subr.mxu0 0.0
    %1280 = vmatpush1.msra.mxu0 0.0
    %1281 = vmatprep.subr.mxu0 0.0
    %1282 = vmatpush1.msra.mxu0 0.0
    %1283 = vmatprep.subr.mxu0 0.0
    %1284 = vmatpush1.msra.mxu0 0.0
    %1285 = vmatprep.subr.mxu0 0.0
    %1286 = vmatpush1.msra.mxu0 0.0
    %1287 = vmatprep.subr.mxu0 0.0
    %1288 = vmatpush1.msra.mxu0 0.0
    %1289 = vmatprep.subr.mxu0 0.0
    %1290 = vmatpush1.msra.mxu0 0.0
    %1291 = vmatprep.subr.mxu0 0.0
    %1292 = vmatpush1.msra.mxu0 0.0
    %1293 = vmatprep.subr.mxu0 0.0
    %1294 = vmatpush1.msra.mxu0 0.0
    %1295 = vmatprep.subr.mxu0 0.0
    %1296 = vmatpush1.msra.mxu0 0.0
    %1297 = vmatprep.subr.mxu0 0.0
    %1298 = vmatpush1.msra.mxu0 0.0
    %1299 = vmatprep.subr.mxu0 0.0
    %1300 = vmatpush1.msra.mxu0 0.0
    %1301 = vmatprep.subr.mxu0 0.0
    %1302 = vmatpush1.msra.mxu0 0.0
    %1303 = vmatprep.subr.mxu0 0.0
    %1304 = vmatpush1.msra.mxu0 0.0
    %1305 = vmatprep.subr.mxu0 0.0
    %1306 = vmatpush1.msra.mxu0 0.0
    %1307 = vmatprep.subr.mxu0 0.0
    %1308 = vmatpush1.msra.mxu0 0.0
    %1309 = vmatprep.subr.mxu0 0.0
    %1310 = vmatpush1.msra.mxu0 0.0
    %1311 = vmatprep.subr.mxu0 0.0
    %1312 = vmatpush1.msra.mxu0 0.0
    %1313 = vmatprep.subr.mxu0 0.0
    %1314 = vmatpush1.msra.mxu0 0.0
    %1315 = vmatprep.subr.mxu0 0.0
    %1316 = vmatpush1.msra.mxu0 0.0
    %1317 = vmatprep.subr.mxu0 0.0
    %1318 = vmatpush1.msra.mxu0 0.0
    %1319 = vmatprep.subr.mxu0 0.0
    %1320 = vmatpush1.msra.mxu0 0.0
    %1321 = vmatprep.subr.mxu0 0.0
    %1322 = vmatpush1.msra.mxu0 0.0
    %1323 = vmatprep.subr.mxu0 0.0
    %1324 = vmatpush1.msra.mxu0 0.0
    %1325 = vmatprep.mubr.f32.mxu0 0.0
    %1326 = vmatmul.mubr.f32.gmra.mrb[0].mxu0 %v1259
    %v1327 = vpop.f32.mrb[0].mxu0
    %v1328 = vadd.f32 0.0, %v1327
    %v1329 = vpop.f32.mrb[0].mxu0
    %1330 = vdwg.mxu0
    %v1332 = vsel %vm269, %v963, 0
    %1334 = vmatprep.subr.mxu0 0.0
    %1335 = vmatpush1.msra.mxu0 %v254
    %1336 = vmatprep.subr.mxu0 0.0
    %1337 = vmatpush1.msra.mxu0 0.0
    %1338 = vmatprep.subr.mxu0 0.0
    %1339 = vmatpush1.msra.mxu0 0.0
    %1340 = vmatprep.subr.mxu0 0.0
    %1341 = vmatpush1.msra.mxu0 0.0
    %1342 = vmatprep.subr.mxu0 0.0
    %1343 = vmatpush1.msra.mxu0 0.0
    %1344 = vmatprep.subr.mxu0 0.0
    %1345 = vmatpush1.msra.mxu0 0.0
    %1346 = vmatprep.subr.mxu0 0.0
    %1347 = vmatpush1.msra.mxu0 0.0
    %1348 = vmatprep.subr.mxu0 0.0
    %1349 = vmatpush1.msra.mxu0 0.0
    %1350 = vmatprep.subr.mxu0 0.0
    %1351 = vmatpush1.msra.mxu0 0.0
    %1352 = vmatprep.subr.mxu0 0.0
    %1353 = vmatpush1.msra.mxu0 0.0
    %1354 = vmatprep.subr.mxu0 0.0
    %1355 = vmatpush1.msra.mxu0 0.0
    %1356 = vmatprep.subr.mxu0 0.0
    %1357 = vmatpush1.msra.mxu0 0.0
    %1358 = vmatprep.subr.mxu0 0.0
    %1359 = vmatpush1.msra.mxu0 0.0
    %1360 = vmatprep.subr.mxu0 0.0
    %1361 = vmatpush1.msra.mxu0 0.0
    %1362 = vmatprep.subr.mxu0 0.0
    %1363 = vmatpush1.msra.mxu0 0.0
    %1364 = vmatprep.subr.mxu0 0.0
    %1365 = vmatpush1.msra.mxu0 0.0
    %1366 = vmatprep.subr.mxu0 0.0
    %1367 = vmatpush1.msra.mxu0 0.0
    %1368 = vmatprep.subr.mxu0 0.0
    %1369 = vmatpush1.msra.mxu0 0.0
    %1370 = vmatprep.subr.mxu0 0.0
    %1371 = vmatpush1.msra.mxu0 0.0
    %1372 = vmatprep.subr.mxu0 0.0
    %1373 = vmatpush1.msra.mxu0 0.0
    %1374 = vmatprep.subr.mxu0 0.0
    %1375 = vmatpush1.msra.mxu0 0.0
    %1376 = vmatprep.subr.mxu0 0.0
    %1377 = vmatpush1.msra.mxu0 0.0
    %1378 = vmatprep.subr.mxu0 0.0
    %1379 = vmatpush1.msra.mxu0 0.0
    %1380 = vmatprep.subr.mxu0 0.0
    %1381 = vmatpush1.msra.mxu0 0.0
    %1382 = vmatprep.subr.mxu0 0.0
    %1383 = vmatpush1.msra.mxu0 0.0
    %1384 = vmatprep.subr.mxu0 0.0
    %1385 = vmatpush1.msra.mxu0 0.0
    %1386 = vmatprep.subr.mxu0 0.0
    %1387 = vmatpush1.msra.mxu0 0.0
    %1388 = vmatprep.subr.mxu0 0.0
    %1389 = vmatpush1.msra.mxu0 0.0
    %1390 = vmatprep.subr.mxu0 0.0
    %1391 = vmatpush1.msra.mxu0 0.0
    %1392 = vmatprep.subr.mxu0 0.0
    %1393 = vmatpush1.msra.mxu0 0.0
    %1394 = vmatprep.subr.mxu0 0.0
    %1395 = vmatpush1.msra.mxu0 0.0
    %1396 = vmatprep.subr.mxu0 0.0
    %1397 = vmatpush1.msra.mxu0 0.0
    %1398 = vmatprep.mubr.f32.mxu0 0.0
    %1399 = vmatmul.mubr.f32.gmra.mrb[0].mxu0 %v1332
    %v1400 = vpop.f32.mrb[0].mxu0
    %v1401 = vadd.f32 0.0, %v1400
    %v1402 = vpop.f32.mrb[0].mxu0
    %1403 = vdwg.mxu0
    %v1405 = vsel %vm269, %v964, 0
    %1407 = vmatprep.subr.mxu0 0.0
    %1408 = vmatpush1.msra.mxu0 %v260
    %1409 = vmatprep.subr.mxu0 0.0
    %1410 = vmatpush1.msra.mxu0 0.0
    %1411 = vmatprep.subr.mxu0 0.0
    %1412 = vmatpush1.msra.mxu0 0.0
    %1413 = vmatprep.subr.mxu0 0.0
    %1414 = vmatpush1.msra.mxu0 0.0
    %1415 = vmatprep.subr.mxu0 0.0
    %1416 = vmatpush1.msra.mxu0 0.0
    %1417 = vmatprep.subr.mxu0 0.0
    %1418 = vmatpush1.msra.mxu0 0.0
    %1419 = vmatprep.subr.mxu0 0.0
    %1420 = vmatpush1.msra.mxu0 0.0
    %1421 = vmatprep.subr.mxu0 0.0
    %1422 = vmatpush1.msra.mxu0 0.0
    %1423 = vmatprep.subr.mxu0 0.0
    %1424 = vmatpush1.msra.mxu0 0.0
    %1425 = vmatprep.subr.mxu0 0.0
    %1426 = vmatpush1.msra.mxu0 0.0
    %1427 = vmatprep.subr.mxu0 0.0
    %1428 = vmatpush1.msra.mxu0 0.0
    %1429 = vmatprep.subr.mxu0 0.0
    %1430 = vmatpush1.msra.mxu0 0.0
    %1431 = vmatprep.subr.mxu0 0.0
    %1432 = vmatpush1.msra.mxu0 0.0
    %1433 = vmatprep.subr.mxu0 0.0
    %1434 = vmatpush1.msra.mxu0 0.0
    %1435 = vmatprep.subr.mxu0 0.0
    %1436 = vmatpush1.msra.mxu0 0.0
    %1437 = vmatprep.subr.mxu0 0.0
    %1438 = vmatpush1.msra.mxu0 0.0
    %1439 = vmatprep.subr.mxu0 0.0
    %1440 = vmatpush1.msra.mxu0 0.0
    %1441 = vmatprep.subr.mxu0 0.0
    %1442 = vmatpush1.msra.mxu0 0.0
    %1443 = vmatprep.subr.mxu0 0.0
    %1444 = vmatpush1.msra.mxu0 0.0
    %1445 = vmatprep.subr.mxu0 0.0
    %1446 = vmatpush1.msra.mxu0 0.0
    %1447 = vmatprep.subr.mxu0 0.0
    %1448 = vmatpush1.msra.mxu0 0.0
    %1449 = vmatprep.subr.mxu0 0.0
    %1450 = vmatpush1.msra.mxu0 0.0
    %1451 = vmatprep.subr.mxu0 0.0
    %1452 = vmatpush1.msra.mxu0 0.0
    %1453 = vmatprep.subr.mxu0 0.0
    %1454 = vmatpush1.msra.mxu0 0.0
    %1455 = vmatprep.subr.mxu0 0.0
    %1456 = vmatpush1.msra.mxu0 0.0
    %1457 = vmatprep.subr.mxu0 0.0
    %1458 = vmatpush1.msra.mxu0 0.0
    %1459 = vmatprep.subr.mxu0 0.0
    %1460 = vmatpush1.msra.mxu0 0.0
    %1461 = vmatprep.subr.mxu0 0.0
    %1462 = vmatpush1.msra.mxu0 0.0
    %1463 = vmatprep.subr.mxu0 0.0
    %1464 = vmatpush1.msra.mxu0 0.0
    %1465 = vmatprep.subr.mxu0 0.0
    %1466 = vmatpush1.msra.mxu0 0.0
    %1467 = vmatprep.subr.mxu0 0.0
    %1468 = vmatpush1.msra.mxu0 0.0
    %1469 = vmatprep.subr.mxu0 0.0
    %1470 = vmatpush1.msra.mxu0 0.0
    %1471 = vmatprep.mubr.f32.mxu0 0.0
    %1472 = vmatmul.mubr.f32.gmra.mrb[0].mxu0 %v1405
    %v1473 = vpop.f32.mrb[0].mxu0
    %v1474 = vadd.f32 0.0, %v1473
    %v1475 = vpop.f32.mrb[0].mxu0
    %1476 = vdwg.mxu0
    %v1478 = vsel %vm269, %v965, 0
    %1480 = vmatprep.subr.mxu0 0.0
    %1481 = vmatpush1.msra.mxu0 %v266
    %1482 = vmatprep.subr.mxu0 0.0
    %1483 = vmatpush1.msra.mxu0 0.0
    %1484 = vmatprep.subr.mxu0 0.0
    %1485 = vmatpush1.msra.mxu0 0.0
    %1486 = vmatprep.subr.mxu0 0.0
    %1487 = vmatpush1.msra.mxu0 0.0
    %1488 = vmatprep.subr.mxu0 0.0
    %1489 = vmatpush1.msra.mxu0 0.0
    %1490 = vmatprep.subr.mxu0 0.0
    %1491 = vmatpush1.msra.mxu0 0.0
    %1492 = vmatprep.subr.mxu0 0.0
    %1493 = vmatpush1.msra.mxu0 0.0
    %1494 = vmatprep.subr.mxu0 0.0
    %1495 = vmatpush1.msra.mxu0 0.0
    %1496 = vmatprep.subr.mxu0 0.0
    %1497 = vmatpush1.msra.mxu0 0.0
    %1498 = vmatprep.subr.mxu0 0.0
    %1499 = vmatpush1.msra.mxu0 0.0
    %1500 = vmatprep.subr.mxu0 0.0
    %1501 = vmatpush1.msra.mxu0 0.0
    %1502 = vmatprep.subr.mxu0 0.0
    %1503 = vmatpush1.msra.mxu0 0.0
    %1504 = vmatprep.subr.mxu0 0.0
    %1505 = vmatpush1.msra.mxu0 0.0
    %1506 = vmatprep.subr.mxu0 0.0
    %1507 = vmatpush1.msra.mxu0 0.0
    %1508 = vmatprep.subr.mxu0 0.0
    %1509 = vmatpush1.msra.mxu0 0.0
    %1510 = vmatprep.subr.mxu0 0.0
    %1511 = vmatpush1.msra.mxu0 0.0
    %1512 = vmatprep.subr.mxu0 0.0
    %1513 = vmatpush1.msra.mxu0 0.0
    %1514 = vmatprep.subr.mxu0 0.0
    %1515 = vmatpush1.msra.mxu0 0.0
    %1516 = vmatprep.subr.mxu0 0.0
    %1517 = vmatpush1.msra.mxu0 0.0
    %1518 = vmatprep.subr.mxu0 0.0
    %1519 = vmatpush1.msra.mxu0 0.0
    %1520 = vmatprep.subr.mxu0 0.0
    %1521 = vmatpush1.msra.mxu0 0.0
    %1522 = vmatprep.subr.mxu0 0.0
    %1523 = vmatpush1.msra.mxu0 0.0
    %1524 = vmatprep.subr.mxu0 0.0
    %1525 = vmatpush1.msra.mxu0 0.0
    %1526 = vmatprep.subr.mxu0 0.0
    %1527 = vmatpush1.msra.mxu0 0.0
    %1528 = vmatprep.subr.mxu0 0.0
    %1529 = vmatpush1.msra.mxu0 0.0
    %1530 = vmatprep.subr.mxu0 0.0
    %1531 = vmatpush1.msra.mxu0 0.0
    %1532 = vmatprep.subr.mxu0 0.0
    %1533 = vmatpush1.msra.mxu0 0.0
    %1534 = vmatprep.subr.mxu0 0.0
    %1535 = vmatpush1.msra.mxu0 0.0
    %1536 = vmatprep.subr.mxu0 0.0
    %1537 = vmatpush1.msra.mxu0 0.0
    %1538 = vmatprep.subr.mxu0 0.0
    %1539 = vmatpush1.msra.mxu0 0.0
    %1540 = vmatprep.subr.mxu0 0.0
    %1541 = vmatpush1.msra.mxu0 0.0
    %1542 = vmatprep.subr.mxu0 0.0
    %1543 = vmatpush1.msra.mxu0 0.0
    %1544 = vmatprep.mubr.f32.mxu0 0.0
    %1545 = vmatmul.mubr.f32.gmra.mrb[0].mxu0 %v1478
    %v1546 = vpop.f32.mrb[0].mxu0
    %v1547 = vadd.f32 0.0, %v1546
    %v1548 = vpop.f32.mrb[0].mxu0
    %1549 = vdwg.mxu0
    %1552 = vrot.lane.b32.xlu0 %v1109, 8
    %v1553 = vpop.permute.xlu0 %1552
    %1554 = vrot.lane.b32.xlu0 %v1401, 8
    %v1555 = vpop.permute.xlu0 %1554
    %1560 = vrot.lane.b32.xlu0 %v1182, 16
    %v1561 = vpop.permute.xlu0 %1560
    %1562 = vrot.lane.b32.xlu0 %v1474, 16
    %v1563 = vpop.permute.xlu0 %1562
    %1568 = vrot.lane.b32.xlu0 %v1255, 24
    %v1569 = vpop.permute.xlu0 %1568
    %1570 = vrot.lane.b32.xlu0 %v1547, 24
    %v1571 = vpop.permute.xlu0 %1570
    %v1574 = vsel %vm269, %v1036, %v1553
    %v1575 = vsel %vm269, %v1328, %v1555
    %vm1576 = vcmask 130048
    %v1577 = vsel %vm1576, %v1574, %v1561
    %v1578 = vsel %vm1576, %v1575, %v1563
    %vm1579 = vcmask 195584
    %v1580 = vsel %vm1579, %v1577, %v1569
    %v1581 = vsel %vm1579, %v1578, %v1571
    %v1582 = vld [vmem:[#allocation2 + $0x18] sm:$0xff]
    %v1583 = vld [vmem:[#allocation2 + $0x48] sm:$0xff]
    %v1584 = vld [vmem:[#allocation2 + $0x78] sm:$0xff]
    %v1585 = vld [vmem:[#allocation2 + $0xa8] sm:$0xff]
    %v1586 = vld [vmem:[#allocation2 + $0x183] ss:$0 sm:$0xff]
    %v1588 = vsel %vm53, %v1580, 0
    %v1591 = vsel %vm53, %v1581, 0
    %1593 = vmatprep.subr.mxu0 0.0
    %1594 = vmatpush1.msra.mxu0 %v1582
    %1595 = vmatprep.subr.mxu0 0.0
    %1596 = vmatpush1.msra.mxu0 %v1583
    %1597 = vmatprep.subr.mxu0 0.0
    %1598 = vmatpush1.msra.mxu0 %v1584
    %1599 = vmatprep.subr.mxu0 0.0
    %1600 = vmatpush1.msra.mxu0 %v1585
    %1601 = vmatprep.subr.mxu0 0.0
    %1602 = vmatpush1.msra.mxu0 0.0
    %1603 = vmatprep.subr.mxu0 0.0
    %1604 = vmatpush1.msra.mxu0 0.0
    %1605 = vmatprep.subr.mxu0 0.0
    %1606 = vmatpush1.msra.mxu0 0.0
    %1607 = vmatprep.subr.mxu0 0.0
    %1608 = vmatpush1.msra.mxu0 0.0
    %1609 = vmatprep.subr.mxu0 0.0
    %1610 = vmatpush1.msra.mxu0 0.0
    %1611 = vmatprep.subr.mxu0 0.0
    %1612 = vmatpush1.msra.mxu0 0.0
    %1613 = vmatprep.subr.mxu0 0.0
    %1614 = vmatpush1.msra.mxu0 0.0
    %1615 = vmatprep.subr.mxu0 0.0
    %1616 = vmatpush1.msra.mxu0 0.0
    %1617 = vmatprep.subr.mxu0 0.0
    %1618 = vmatpush1.msra.mxu0 0.0
    %1619 = vmatprep.subr.mxu0 0.0
    %1620 = vmatpush1.msra.mxu0 0.0
    %1621 = vmatprep.subr.mxu0 0.0
    %1622 = vmatpush1.msra.mxu0 0.0
    %1623 = vmatprep.subr.mxu0 0.0
    %1624 = vmatpush1.msra.mxu0 0.0
    %1625 = vmatprep.subr.mxu0 0.0
    %1626 = vmatpush1.msra.mxu0 0.0
    %1627 = vmatprep.subr.mxu0 0.0
    %1628 = vmatpush1.msra.mxu0 0.0
    %1629 = vmatprep.subr.mxu0 0.0
    %1630 = vmatpush1.msra.mxu0 0.0
    %1631 = vmatprep.subr.mxu0 0.0
    %1632 = vmatpush1.msra.mxu0 0.0
    %1633 = vmatprep.subr.mxu0 0.0
    %1634 = vmatpush1.msra.mxu0 0.0
    %1635 = vmatprep.subr.mxu0 0.0
    %1636 = vmatpush1.msra.mxu0 0.0
    %1637 = vmatprep.subr.mxu0 0.0
    %1638 = vmatpush1.msra.mxu0 0.0
    %1639 = vmatprep.subr.mxu0 0.0
    %1640 = vmatpush1.msra.mxu0 0.0
    %1641 = vmatprep.subr.mxu0 0.0
    %1642 = vmatpush1.msra.mxu0 0.0
    %1643 = vmatprep.subr.mxu0 0.0
    %1644 = vmatpush1.msra.mxu0 0.0
    %1645 = vmatprep.subr.mxu0 0.0
    %1646 = vmatpush1.msra.mxu0 0.0
    %1647 = vmatprep.subr.mxu0 0.0
    %1648 = vmatpush1.msra.mxu0 0.0
    %1649 = vmatprep.subr.mxu0 0.0
    %1650 = vmatpush1.msra.mxu0 0.0
    %1651 = vmatprep.subr.mxu0 0.0
    %1652 = vmatpush1.msra.mxu0 0.0
    %1653 = vmatprep.subr.mxu0 0.0
    %1654 = vmatpush1.msra.mxu0 0.0
    %1655 = vmatprep.subr.mxu0 0.0
    %1656 = vmatpush1.msra.mxu0 0.0
    %1657 = vmatprep.mubr.f32.mxu0 0.0
    %1658 = vmatmul.mubr.f32.gmra.mrb[0].mxu0 %v1588
    %v1659 = vpop.f32.mrb[0].mxu0
    %v1660 = vadd.f32 %v1586, %v1659
    %v1661 = vpop.f32.mrb[0].mxu0
    %1662 = vmatprep.mubr.f32.mxu0 0.0
    %1663 = vmatmul.mubr.f32.gmra.mrb[0].mxu0 %v1591
    %v1664 = vpop.f32.mrb[0].mxu0
    %v1665 = vadd.f32 %v1586, %v1664
    %v1666 = vpop.f32.mrb[0].mxu0
    %1667 = vdwg.mxu0
    %v1668 = vadd.f32 %v31, %v1660
    %v1669 = vadd.f32 %v32, %v1665
    %v1670 = vsel %vm53, %v1668, 0.0
    %1671 = vadd.xlane.f32.xlu0 %v1670
    %v1672 = vpop.xlane.xlu0 %1671
    %v1673 = vsel %vm53, %v1669, 0.0
    %1674 = vadd.xlane.f32.xlu0 %v1673
    %v1675 = vpop.xlane.xlu0 %1674
    %v1676 = vrcp.pop 32.0
    %v1677 = vmul.f32 %v1672, %v1676
    %v1678 = vmul.f32 %v1675, %v1676
    %v1679 = vmul.f32 %v1668, %v1668
    %v1680 = vmul.f32 %v1669, %v1669
    %v1681 = vsel %vm53, %v1679, 0.0
    %1682 = vadd.xlane.f32.xlu0 %v1681
    %v1683 = vpop.xlane.xlu0 %1682
    %v1684 = vsel %vm53, %v1680, 0.0
    %1685 = vadd.xlane.f32.xlu0 %v1684
    %v1686 = vpop.xlane.xlu0 %1685
    %v1687 = vmul.f32 %v1683, %v1676
    %v1688 = vmul.f32 %v1686, %v1676
    %v1689 = vsub.f32 %v1668, %v1677
    %v1690 = vsub.f32 %v1669, %v1678
    %v1691 = vmul.f32 %v1677, %v1677
    %v1692 = vmul.f32 %v1678, %v1678
    %v1693 = vsub.f32 %v1687, %v1691
    %v1694 = vsub.f32 %v1688, %v1692
    %v1695 = vadd.f32 %v1693, 1e-12
    %v1696 = vadd.f32 %v1694, 1e-12
    %v1697 = vrsqrt.pop %v1695
    %v1698 = vrsqrt.pop %v1696
    %v1699 = vmul.f32 %v1689, %v1697
    %v1700 = vmul.f32 %v1690, %v1698
    %v1701 = vld [vmem:[#allocation2 + $0x184] ss:$0 sm:$0xff]
    %v1702 = vmul.f32 %v1699, %v1701
    %v1703 = vmul.f32 %v1700, %v1701
    %v1704 = vld [vmem:[#allocation2 + $0x185] ss:$0 sm:$0xff]
    %v1705 = vadd.f32 %v1702, %v1704
    %v1706 = vadd.f32 %v1703, %v1704
    %v1707 = vld [vmem:[#allocation2 + $0x20] sm:$0xff]
    %v1708 = vld [vmem:[#allocation2 + $0x50] sm:$0xff]
    %v1709 = vld [vmem:[#allocation2 + $0x80] sm:$0xff]
    %v1710 = vld [vmem:[#allocation2 + $0xb0] sm:$0xff]
    %v1711 = vld [vmem:[#allocation2 + $0x28] sm:$0xff]
    %v1712 = vld [vmem:[#allocation2 + $0x58] sm:$0xff]
    %v1713 = vld [vmem:[#allocation2 + $0x88] sm:$0xff]
    %v1714 = vld [vmem:[#allocation2 + $0xb8] sm:$0xff]
    %v1715 = vld [vmem:[#allocation2 + $0xe8] sm:$0xff]
    %v1716 = vld [vmem:[#allocation2 + $0x118] sm:$0xff]
    %v1717 = vld [vmem:[#allocation2 + $0x148] sm:$0xff]
    %v1718 = vld [vmem:[#allocation2 + $0x178] sm:$0xff]
    %v1719 = vld [vmem:[#allocation2 + $0x186] ss:$0 sm:$0xff]
    %v1721 = vsel %vm53, %v1705, 0
    %v1724 = vsel %vm53, %v1706, 0
    %1726 = vmatprep.subr.mxu0 0.0
    %1727 = vmatpush1.msra.mxu0 %v1707
    %1728 = vmatprep.subr.mxu0 0.0
    %1729 = vmatpush1.msra.mxu0 %v1708
    %1730 = vmatprep.subr.mxu0 0.0
    %1731 = vmatpush1.msra.mxu0 %v1709
    %1732 = vmatprep.subr.mxu0 0.0
    %1733 = vmatpush1.msra.mxu0 %v1710
    %1734 = vmatprep.subr.mxu0 0.0
    %1735 = vmatpush1.msra.mxu0 0.0
    %1736 = vmatprep.subr.mxu0 0.0
    %1737 = vmatpush1.msra.mxu0 0.0
    %1738 = vmatprep.subr.mxu0 0.0
    %1739 = vmatpush1.msra.mxu0 0.0
    %1740 = vmatprep.subr.mxu0 0.0
    %1741 = vmatpush1.msra.mxu0 0.0
    %1742 = vmatprep.subr.mxu0 0.0
    %1743 = vmatpush1.msra.mxu0 0.0
    %1744 = vmatprep.subr.mxu0 0.0
    %1745 = vmatpush1.msra.mxu0 0.0
    %1746 = vmatprep.subr.mxu0 0.0
    %1747 = vmatpush1.msra.mxu0 0.0
    %1748 = vmatprep.subr.mxu0 0.0
    %1749 = vmatpush1.msra.mxu0 0.0
    %1750 = vmatprep.subr.mxu0 0.0
    %1751 = vmatpush1.msra.mxu0 0.0
    %1752 = vmatprep.subr.mxu0 0.0
    %1753 = vmatpush1.msra.mxu0 0.0
    %1754 = vmatprep.subr.mxu0 0.0
    %1755 = vmatpush1.msra.mxu0 0.0
    %1756 = vmatprep.subr.mxu0 0.0
    %1757 = vmatpush1.msra.mxu0 0.0
    %1758 = vmatprep.subr.mxu0 0.0
    %1759 = vmatpush1.msra.mxu0 0.0
    %1760 = vmatprep.subr.mxu0 0.0
    %1761 = vmatpush1.msra.mxu0 0.0
    %1762 = vmatprep.subr.mxu0 0.0
    %1763 = vmatpush1.msra.mxu0 0.0
    %1764 = vmatprep.subr.mxu0 0.0
    %1765 = vmatpush1.msra.mxu0 0.0
    %1766 = vmatprep.subr.mxu0 0.0
    %1767 = vmatpush1.msra.mxu0 0.0
    %1768 = vmatprep.subr.mxu0 0.0
    %1769 = vmatpush1.msra.mxu0 0.0
    %1770 = vmatprep.subr.mxu0 0.0
    %1771 = vmatpush1.msra.mxu0 0.0
    %1772 = vmatprep.subr.mxu0 0.0
    %1773 = vmatpush1.msra.mxu0 0.0
    %1774 = vmatprep.subr.mxu0 0.0
    %1775 = vmatpush1.msra.mxu0 0.0
    %1776 = vmatprep.subr.mxu0 0.0
    %1777 = vmatpush1.msra.mxu0 0.0
    %1778 = vmatprep.subr.mxu0 0.0
    %1779 = vmatpush1.msra.mxu0 0.0
    %1780 = vmatprep.subr.mxu0 0.0
    %1781 = vmatpush1.msra.mxu0 0.0
    %1782 = vmatprep.subr.mxu0 0.0
    %1783 = vmatpush1.msra.mxu0 0.0
    %1784 = vmatprep.subr.mxu0 0.0
    %1785 = vmatpush1.msra.mxu0 0.0
    %1786 = vmatprep.subr.mxu0 0.0
    %1787 = vmatpush1.msra.mxu0 0.0
    %1788 = vmatprep.subr.mxu0 0.0
    %1789 = vmatpush1.msra.mxu0 0.0
    %1790 = vmatprep.mubr.f32.mxu0 0.0
    %1791 = vmatmul.mubr.f32.gmra.mrb[0].mxu0 %v1721
    %v1792 = vpop.f32.mrb[0].mxu0
    %v1793 = vadd.f32 %v1719, %v1792
    %v1794 = vpop.f32.mrb[0].mxu0
    %1795 = vmatprep.mubr.f32.mxu0 0.0
    %1796 = vmatmul.mubr.f32.gmra.mrb[0].mxu0 %v1724
    %v1797 = vpop.f32.mrb[0].mxu0
    %v1798 = vadd.f32 %v1719, %v1797
    %v1799 = vpop.f32.mrb[0].mxu0
    %1800 = vdwg.mxu0
    %v1801 = vmul.f32 %v1793, %v1793
    %v1802 = vmul.f32 %v1798, %v1798
    %v1803 = vmul.f32 %v1793, %v1801
    %v1804 = vmul.f32 %v1798, %v1802
    %v1805 = vmul.f32 %v1803, 0.044715
    %v1806 = vmul.f32 %v1804, 0.044715
    %v1807 = vadd.f32 %v1793, %v1805
    %v1808 = vadd.f32 %v1798, %v1806
    %v1809 = vmul.f32 %v1807, 0.7978846
    %v1810 = vmul.f32 %v1808, 0.7978846
    %v1811 = vtanh.pop %v1809
    %v1812 = vtanh.pop %v1810
    %v1813 = vadd.f32 %v1811, 1.0
    %v1814 = vadd.f32 %v1812, 1.0
    %v1815 = vmul.f32 %v1813, 0.5
    %v1816 = vmul.f32 %v1814, 0.5
    %v1817 = vmul.f32 %v1793, %v1815
    %v1818 = vmul.f32 %v1798, %v1816
    %v1819 = vld [vmem:[#allocation2 + $0x187] ss:$0 sm:$0xff]
    %vm1820 = vcmask 523264
    %v1822 = vsel %vm1820, %v1817, 0
    %v1825 = vsel %vm1820, %v1818, 0
    %1827 = vmatprep.subr.mxu0 0.0
    %1828 = vmatpush1.msra.mxu0 %v1711
    %1829 = vmatprep.subr.mxu0 0.0
    %1830 = vmatpush1.msra.mxu0 %v1712
    %1831 = vmatprep.subr.mxu0 0.0
    %1832 = vmatpush1.msra.mxu0 %v1713
    %1833 = vmatprep.subr.mxu0 0.0
    %1834 = vmatpush1.msra.mxu0 %v1714
    %1835 = vmatprep.subr.mxu0 0.0
    %1836 = vmatpush1.msra.mxu0 %v1715
    %1837 = vmatprep.subr.mxu0 0.0
    %1838 = vmatpush1.msra.mxu0 %v1716
    %1839 = vmatprep.subr.mxu0 0.0
    %1840 = vmatpush1.msra.mxu0 %v1717
    %1841 = vmatprep.subr.mxu0 0.0
    %1842 = vmatpush1.msra.mxu0 %v1718
    %1843 = vmatprep.subr.mxu0 0.0
    %1844 = vmatpush1.msra.mxu0 0.0
    %1845 = vmatprep.subr.mxu0 0.0
    %1846 = vmatpush1.msra.mxu0 0.0
    %1847 = vmatprep.subr.mxu0 0.0
    %1848 = vmatpush1.msra.mxu0 0.0
    %1849 = vmatprep.subr.mxu0 0.0
    %1850 = vmatpush1.msra.mxu0 0.0
    %1851 = vmatprep.subr.mxu0 0.0
    %1852 = vmatpush1.msra.mxu0 0.0
    %1853 = vmatprep.subr.mxu0 0.0
    %1854 = vmatpush1.msra.mxu0 0.0
    %1855 = vmatprep.subr.mxu0 0.0
    %1856 = vmatpush1.msra.mxu0 0.0
    %1857 = vmatprep.subr.mxu0 0.0
    %1858 = vmatpush1.msra.mxu0 0.0
    %1859 = vmatprep.subr.mxu0 0.0
    %1860 = vmatpush1.msra.mxu0 0.0
    %1861 = vmatprep.subr.mxu0 0.0
    %1862 = vmatpush1.msra.mxu0 0.0
    %1863 = vmatprep.subr.mxu0 0.0
    %1864 = vmatpush1.msra.mxu0 0.0
    %1865 = vmatprep.subr.mxu0 0.0
    %1866 = vmatpush1.msra.mxu0 0.0
    %1867 = vmatprep.subr.mxu0 0.0
    %1868 = vmatpush1.msra.mxu0 0.0
    %1869 = vmatprep.subr.mxu0 0.0
    %1870 = vmatpush1.msra.mxu0 0.0
    %1871 = vmatprep.subr.mxu0 0.0
    %1872 = vmatpush1.msra.mxu0 0.0
    %1873 = vmatprep.subr.mxu0 0.0
    %1874 = vmatpush1.msra.mxu0 0.0
    %1875 = vmatprep.subr.mxu0 0.0
    %1876 = vmatpush1.msra.mxu0 0.0
    %1877 = vmatprep.subr.mxu0 0.0
    %1878 = vmatpush1.msra.mxu0 0.0
    %1879 = vmatprep.subr.mxu0 0.0
    %1880 = vmatpush1.msra.mxu0 0.0
    %1881 = vmatprep.subr.mxu0 0.0
    %1882 = vmatpush1.msra.mxu0 0.0
    %1883 = vmatprep.subr.mxu0 0.0
    %1884 = vmatpush1.msra.mxu0 0.0
    %1885 = vmatprep.subr.mxu0 0.0
    %1886 = vmatpush1.msra.mxu0 0.0
    %1887 = vmatprep.subr.mxu0 0.0
    %1888 = vmatpush1.msra.mxu0 0.0
    %1889 = vmatprep.subr.mxu0 0.0
    %1890 = vmatpush1.msra.mxu0 0.0
    %1891 = vmatprep.mubr.f32.mxu0 0.0
    %1892 = vmatmul.mubr.f32.gmra.mrb[0].mxu0 %v1822
    %v1893 = vpop.f32.mrb[0].mxu0
    %v1894 = vadd.f32 %v1819, %v1893
    %v1895 = vpop.f32.mrb[0].mxu0
    %1896 = vmatprep.mubr.f32.mxu0 0.0
    %1897 = vmatmul.mubr.f32.gmra.mrb[0].mxu0 %v1825
    %v1898 = vpop.f32.mrb[0].mxu0
    %v1899 = vadd.f32 %v1819, %v1898
    %v1900 = vpop.f32.mrb[0].mxu0
    %1901 = vdwg.mxu0
    %v1902 = vadd.f32 %v1705, %v1894
    %v1903 = vadd.f32 %v1706, %v1899
    %v1904 = vsel %vm53, %v1902, 0.0
    %1905 = vadd.xlane.f32.xlu0 %v1904
    %v1906 = vpop.xlane.xlu0 %1905
    %v1907 = vsel %vm53, %v1903, 0.0
    %1908 = vadd.xlane.f32.xlu0 %v1907
    %v1909 = vpop.xlane.xlu0 %1908
    %v1910 = vmul.f32 %v1906, %v1676
    %v1911 = vmul.f32 %v1909, %v1676
    %v1912 = vmul.f32 %v1902, %v1902
    %v1913 = vmul.f32 %v1903, %v1903
    %v1914 = vsel %vm53, %v1912, 0.0
    %1915 = vadd.xlane.f32.xlu0 %v1914
    %v1916 = vpop.xlane.xlu0 %1915
    %v1917 = vsel %vm53, %v1913, 0.0
    %1918 = vadd.xlane.f32.xlu0 %v1917
    %v1919 = vpop.xlane.xlu0 %1918
    %v1920 = vmul.f32 %v1916, %v1676
    %v1921 = vmul.f32 %v1919, %v1676
    %v1922 = vsub.f32 %v1902, %v1910
    %v1923 = vsub.f32 %v1903, %v1911
    %v1924 = vmul.f32 %v1910, %v1910
    %v1925 = vmul.f32 %v1911, %v1911
    %v1926 = vsub.f32 %v1920, %v1924
    %v1927 = vsub.f32 %v1921, %v1925
    %v1928 = vadd.f32 %v1926, 1e-12
    %v1929 = vadd.f32 %v1927, 1e-12
    %v1930 = vrsqrt.pop %v1928
    %v1931 = vrsqrt.pop %v1929
    %v1932 = vmul.f32 %v1922, %v1930
    %v1933 = vmul.f32 %v1923, %v1931
    %v1934 = vld [vmem:[#allocation2 + $0x1b0] ss:$0 sm:$0xff]
    %v1935 = vmul.f32 %v1932, %v1934
    %v1936 = vmul.f32 %v1933, %v1934
    %v1937 = vld [vmem:[#allocation2 + $0x1b1] ss:$0 sm:$0xff]
    %v1938 = vadd.f32 %v1935, %v1937
    %v1939 = vadd.f32 %v1936, %v1937
    %s1940 = scalar_lea.vmem [#allocation2], 480
    %v1941 = vld [vmem:[%s1940] sm:$0xff]
    %v1942 = vld [vmem:[%s1940 + $0x8] sm:$0xff]
    %v1943 = vld [vmem:[%s1940 + $0x10] sm:$0xff]
    %v1944 = vld [vmem:[%s1940 + $0x30] sm:$0xff]
    %v1945 = vld [vmem:[%s1940 + $0x38] sm:$0xff]
    %v1946 = vld [vmem:[%s1940 + $0x40] sm:$0xff]
    %v1947 = vld [vmem:[%s1940 + $0x60] sm:$0xff]
    %v1948 = vld [vmem:[%s1940 + $0x68] sm:$0xff]
    %v1949 = vld [vmem:[%s1940 + $0x70] sm:$0xff]
    %v1950 = vld [vmem:[%s1940 + $0x90] sm:$0xff]
    %v1951 = vld [vmem:[%s1940 + $0x98] sm:$0xff]
    %v1952 = vld [vmem:[%s1940 + $0xa0] sm:$0xff]
    %v1954 = vsel %vm53, %v1938, 0
    %v1957 = vsel %vm53, %v1939, 0
    %1959 = vmatprep.subr.mxu0 %v1942
    %1960 = vmatpush1.msra.mxu0 %v1941
    %1961 = vmatprep.subr.mxu0 %v1945
    %1962 = vmatpush1.msra.mxu0 %v1944
    %1963 = vmatprep.subr.mxu0 %v1948
    %1964 = vmatpush1.msra.mxu0 %v1947
    %1965 = vmatprep.subr.mxu0 %v1951
    %1966 = vmatpush1.msra.mxu0 %v1950
    %1967 = vmatprep.subr.mxu0 0.0
    %1968 = vmatpush1.msra.mxu0 0.0
    %1969 = vmatprep.subr.mxu0 0.0
    %1970 = vmatpush1.msra.mxu0 0.0
    %1971 = vmatprep.subr.mxu0 0.0
    %1972 = vmatpush1.msra.mxu0 0.0
    %1973 = vmatprep.subr.mxu0 0.0
    %1974 = vmatpush1.msra.mxu0 0.0
    %1975 = vmatprep.subr.mxu0 0.0
    %1976 = vmatpush1.msra.mxu0 0.0
    %1977 = vmatprep.subr.mxu0 0.0
    %1978 = vmatpush1.msra.mxu0 0.0
    %1979 = vmatprep.subr.mxu0 0.0
    %1980 = vmatpush1.msra.mxu0 0.0
    %1981 = vmatprep.subr.mxu0 0.0
    %1982 = vmatpush1.msra.mxu0 0.0
    %1983 = vmatprep.subr.mxu0 0.0
    %1984 = vmatpush1.msra.mxu0 0.0
    %1985 = vmatprep.subr.mxu0 0.0
    %1986 = vmatpush1.msra.mxu0 0.0
    %1987 = vmatprep.subr.mxu0 0.0
    %1988 = vmatpush1.msra.mxu0 0.0
    %1989 = vmatprep.subr.mxu0 0.0
    %1990 = vmatpush1.msra.mxu0 0.0
    %1991 = vmatprep.subr.mxu0 0.0
    %1992 = vmatpush1.msra.mxu0 0.0
    %1993 = vmatprep.subr.mxu0 0.0
    %1994 = vmatpush1.msra.mxu0 0.0
    %1995 = vmatprep.subr.mxu0 0.0
    %1996 = vmatpush1.msra.mxu0 0.0
    %1997 = vmatprep.subr.mxu0 0.0
    %1998 = vmatpush1.msra.mxu0 0.0
    %1999 = vmatprep.subr.mxu0 0.0
    %2000 = vmatpush1.msra.mxu0 0.0
    %2001 = vmatprep.subr.mxu0 0.0
    %2002 = vmatpush1.msra.mxu0 0.0
    %2003 = vmatprep.subr.mxu0 0.0
    %2004 = vmatpush1.msra.mxu0 0.0
    %2005 = vmatprep.subr.mxu0 0.0
    %2006 = vmatpush1.msra.mxu0 0.0
    %2007 = vmatprep.subr.mxu0 0.0
    %2008 = vmatpush1.msra.mxu0 0.0
    %2009 = vmatprep.subr.mxu0 0.0
    %2010 = vmatpush1.msra.mxu0 0.0
    %2011 = vmatprep.subr.mxu0 0.0
    %2012 = vmatpush1.msra.mxu0 0.0
    %2013 = vmatprep.subr.mxu0 0.0
    %2014 = vmatpush1.msra.mxu0 0.0
    %2015 = vmatprep.subr.mxu0 0.0
    %2016 = vmatpush1.msra.mxu0 0.0
    %2017 = vmatprep.subr.mxu0 0.0
    %2018 = vmatpush1.msra.mxu0 0.0
    %2019 = vmatprep.subr.mxu0 0.0
    %2020 = vmatpush1.msra.mxu0 0.0
    %2021 = vmatprep.subr.mxu0 0.0
    %2022 = vmatpush1.msra.mxu0 0.0
    %2023 = vmatprep.mubr.f32.mxu0 0.0
    %2024 = vmatmul.mubr.f32.gmra.mrb[0].mxu0 %v1954
    %v2025 = vpop.f32.mrb[0].mxu0
    %v2026 = vadd.f32 0.0, %v2025
    %v2027 = vpop.f32.mrb[0].mxu0
    %v2028 = vadd.f32 0.0, %v2027
    %2029 = vmatprep.mubr.f32.mxu0 0.0
    %2030 = vmatmul.mubr.f32.gmra.mrb[0].mxu0 %v1957
    %v2031 = vpop.f32.mrb[0].mxu0
    %v2032 = vadd.f32 0.0, %v2031
    %v2033 = vpop.f32.mrb[0].mxu0
    %v2034 = vadd.f32 0.0, %v2033
    %2035 = vdwg.mxu0
    %2036 = vmatprep.subr.mxu0 0.0
    %2037 = vmatpush1.msra.mxu0 %v1943
    %2038 = vmatprep.subr.mxu0 0.0
    %2039 = vmatpush1.msra.mxu0 %v1946
    %2040 = vmatprep.subr.mxu0 0.0
    %2041 = vmatpush1.msra.mxu0 %v1949
    %2042 = vmatprep.subr.mxu0 0.0
    %2043 = vmatpush1.msra.mxu0 %v1952
    %2044 = vmatprep.subr.mxu0 0.0
    %2045 = vmatpush1.msra.mxu0 0.0
    %2046 = vmatprep.subr.mxu0 0.0
    %2047 = vmatpush1.msra.mxu0 0.0
    %2048 = vmatprep.subr.mxu0 0.0
    %2049 = vmatpush1.msra.mxu0 0.0
    %2050 = vmatprep.subr.mxu0 0.0
    %2051 = vmatpush1.msra.mxu0 0.0
    %2052 = vmatprep.subr.mxu0 0.0
    %2053 = vmatpush1.msra.mxu0 0.0
    %2054 = vmatprep.subr.mxu0 0.0
    %2055 = vmatpush1.msra.mxu0 0.0
    %2056 = vmatprep.subr.mxu0 0.0
    %2057 = vmatpush1.msra.mxu0 0.0
    %2058 = vmatprep.subr.mxu0 0.0
    %2059 = vmatpush1.msra.mxu0 0.0
    %2060 = vmatprep.subr.mxu0 0.0
    %2061 = vmatpush1.msra.mxu0 0.0
    %2062 = vmatprep.subr.mxu0 0.0
    %2063 = vmatpush1.msra.mxu0 0.0
    %2064 = vmatprep.subr.mxu0 0.0
    %2065 = vmatpush1.msra.mxu0 0.0
    %2066 = vmatprep.subr.mxu0 0.0
    %2067 = vmatpush1.msra.mxu0 0.0
    %2068 = vmatprep.subr.mxu0 0.0
    %2069 = vmatpush1.msra.mxu0 0.0
    %2070 = vmatprep.subr.mxu0 0.0
    %2071 = vmatpush1.msra.mxu0 0.0
    %2072 = vmatprep.subr.mxu0 0.0
    %2073 = vmatpush1.msra.mxu0 0.0
    %2074 = vmatprep.subr.mxu0 0.0
    %2075 = vmatpush1.msra.mxu0 0.0
    %2076 = vmatprep.subr.mxu0 0.0
    %2077 = vmatpush1.msra.mxu0 0.0
    %2078 = vmatprep.subr.mxu0 0.0
    %2079 = vmatpush1.msra.mxu0 0.0
    %2080 = vmatprep.subr.mxu0 0.0
    %2081 = vmatpush1.msra.mxu0 0.0
    %2082 = vmatprep.subr.mxu0 0.0
    %2083 = vmatpush1.msra.mxu0 0.0
    %2084 = vmatprep.subr.mxu0 0.0
    %2085 = vmatpush1.msra.mxu0 0.0
    %2086 = vmatprep.subr.mxu0 0.0
    %2087 = vmatpush1.msra.mxu0 0.0
    %2088 = vmatprep.subr.mxu0 0.0
    %2089 = vmatpush1.msra.mxu0 0.0
    %2090 = vmatprep.subr.mxu0 0.0
    %2091 = vmatpush1.msra.mxu0 0.0
    %2092 = vmatprep.subr.mxu0 0.0
    %2093 = vmatpush1.msra.mxu0 0.0
    %2094 = vmatprep.subr.mxu0 0.0
    %2095 = vmatpush1.msra.mxu0 0.0
    %2096 = vmatprep.subr.mxu0 0.0
    %2097 = vmatpush1.msra.mxu0 0.0
    %2098 = vmatprep.subr.mxu0 0.0
    %2099 = vmatpush1.msra.mxu0 0.0
    %2100 = vmatprep.mubr.f32.mxu0 0.0
    %2101 = vmatmul.mubr.f32.gmra.mrb[0].mxu0 %v1954
    %v2102 = vpop.f32.mrb[0].mxu0
    %v2103 = vadd.f32 0.0, %v2102
    %v2104 = vpop.f32.mrb[0].mxu0
    %2105 = vmatprep.mubr.f32.mxu0 0.0
    %2106 = vmatmul.mubr.f32.gmra.mrb[0].mxu0 %v1957
    %v2107 = vpop.f32.mrb[0].mxu0
    %v2108 = vadd.f32 0.0, %v2107
    %v2109 = vpop.f32.mrb[0].mxu0
    %2110 = vdwg.mxu0
    %v2111 = vld [vmem:[%s1940 + $0x180] ss:$0 sm:$0xff]
    %v2112 = vadd.f32 %v2026, %v2111
    %v2113 = vadd.f32 %v2032, %v2111
    %v2114 = vld [vmem:[%s1940 + $0x181] ss:$0 sm:$0xff]
    %v2115 = vadd.f32 %v2028, %v2114
    %v2116 = vadd.f32 %v2034, %v2114
    %v2117 = vld [vmem:[%s1940 + $0x182] ss:$0 sm:$0xff]
    %v2118 = vadd.f32 %v2103, %v2117
    %v2119 = vadd.f32 %v2108, %v2117
    %2122 = vrot.lane.b32.xlu0 %v2112, 120
    %v2123 = vpop.permute.xlu0 %2122
    %2124 = vrot.lane.b32.xlu0 %v2113, 120
    %v2125 = vpop.permute.xlu0 %2124
    %2126 = vrot.lane.b32.xlu0 %v2112, 112
    %v2127 = vpop.permute.xlu0 %2126
    %2128 = vrot.lane.b32.xlu0 %v2113, 112
    %v2129 = vpop.permute.xlu0 %2128
    %2130 = vrot.lane.b32.xlu0 %v2112, 104
    %v2131 = vpop.permute.xlu0 %2130
    %2132 = vrot.lane.b32.xlu0 %v2113, 104
    %v2133 = vpop.permute.xlu0 %2132
    %2136 = vrot.lane.b32.xlu0 %v2115, 120
    %v2137 = vpop.permute.xlu0 %2136
    %2138 = vrot.lane.b32.xlu0 %v2116, 120
    %v2139 = vpop.permute.xlu0 %2138
    %2140 = vrot.lane.b32.xlu0 %v2115, 112
    %v2141 = vpop.permute.xlu0 %2140
    %2142 = vrot.lane.b32.xlu0 %v2116, 112
    %v2143 = vpop.permute.xlu0 %2142
    %2144 = vrot.lane.b32.xlu0 %v2115, 104
    %v2145 = vpop.permute.xlu0 %2144
    %2146 = vrot.lane.b32.xlu0 %v2116, 104
    %v2147 = vpop.permute.xlu0 %2146
    %2150 = vrot.lane.b32.xlu0 %v2118, 120
    %v2151 = vpop.permute.xlu0 %2150
    %2152 = vrot.lane.b32.xlu0 %v2119, 120
    %v2153 = vpop.permute.xlu0 %2152
    %2156 = vrot.lane.b32.xlu0 %v2118, 112
    %v2157 = vpop.permute.xlu0 %2156
    %2158 = vrot.lane.b32.xlu0 %v2119, 112
    %v2159 = vpop.permute.xlu0 %2158
    %2162 = vrot.lane.b32.xlu0 %v2118, 104
    %v2163 = vpop.permute.xlu0 %2162
    %2164 = vrot.lane.b32.xlu0 %v2119, 104
    %v2165 = vpop.permute.xlu0 %2164
    %v2168 = vsel %vm269, %v2112, 0
    %v2170 = vsel %vm269, %v2115, 0
    %2172 = vmatprep.subr.mxu0 0.0
    %2173 = vmatpush1.xpose.msra.mxu0 %v2170
    %2174 = vmatprep.subr.mxu0 0.0
    %2175 = vmatpush1.xpose.msra.mxu0 0.0
    %2176 = vmatprep.subr.mxu0 0.0
    %2177 = vmatpush1.xpose.msra.mxu0 0.0
    %2178 = vmatprep.subr.mxu0 0.0
    %2179 = vmatpush1.xpose.msra.mxu0 0.0
    %2180 = vmatprep.subr.mxu0 0.0
    %2181 = vmatpush1.xpose.msra.mxu0 0.0
    %2182 = vmatprep.subr.mxu0 0.0
    %2183 = vmatpush1.xpose.msra.mxu0 0.0
    %2184 = vmatprep.subr.mxu0 0.0
    %2185 = vmatpush1.xpose.msra.mxu0 0.0
    %2186 = vmatprep.subr.mxu0 0.0
    %2187 = vmatpush1.xpose.msra.mxu0 0.0
    %2188 = vmatprep.subr.mxu0 0.0
    %2189 = vmatpush1.xpose.msra.mxu0 0.0
    %2190 = vmatprep.subr.mxu0 0.0
    %2191 = vmatpush1.xpose.msra.mxu0 0.0
    %2192 = vmatprep.subr.mxu0 0.0
    %2193 = vmatpush1.xpose.msra.mxu0 0.0
    %2194 = vmatprep.subr.mxu0 0.0
    %2195 = vmatpush1.xpose.msra.mxu0 0.0
    %2196 = vmatprep.subr.mxu0 0.0
    %2197 = vmatpush1.xpose.msra.mxu0 0.0
    %2198 = vmatprep.subr.mxu0 0.0
    %2199 = vmatpush1.xpose.msra.mxu0 0.0
    %2200 = vmatprep.subr.mxu0 0.0
    %2201 = vmatpush1.xpose.msra.mxu0 0.0
    %2202 = vmatprep.subr.mxu0 0.0
    %2203 = vmatpush1.xpose.msra.mxu0 0.0
    %2204 = vmatprep.subr.mxu0 0.0
    %2205 = vmatpush1.xpose.msra.mxu0 0.0
    %2206 = vmatprep.subr.mxu0 0.0
    %2207 = vmatpush1.xpose.msra.mxu0 0.0
    %2208 = vmatprep.subr.mxu0 0.0
    %2209 = vmatpush1.xpose.msra.mxu0 0.0
    %2210 = vmatprep.subr.mxu0 0.0
    %2211 = vmatpush1.xpose.msra.mxu0 0.0
    %2212 = vmatprep.subr.mxu0 0.0
    %2213 = vmatpush1.xpose.msra.mxu0 0.0
    %2214 = vmatprep.subr.mxu0 0.0
    %2215 = vmatpush1.xpose.msra.mxu0 0.0
    %2216 = vmatprep.subr.mxu0 0.0
    %2217 = vmatpush1.xpose.msra.mxu0 0.0
    %2218 = vmatprep.subr.mxu0 0.0
    %2219 = vmatpush1.xpose.msra.mxu0 0.0
    %2220 = vmatprep.subr.mxu0 0.0
    %2221 = vmatpush1.xpose.msra.mxu0 0.0
    %2222 = vmatprep.subr.mxu0 0.0
    %2223 = vmatpush1.xpose.msra.mxu0 0.0
    %2224 = vmatprep.subr.mxu0 0.0
    %2225 = vmatpush1.xpose.msra.mxu0 0.0
    %2226 = vmatprep.subr.mxu0 0.0
    %2227 = vmatpush1.xpose.msra.mxu0 0.0
    %2228 = vmatprep.subr.mxu0 0.0
    %2229 = vmatpush1.xpose.msra.mxu0 0.0
    %2230 = vmatprep.subr.mxu0 0.0
    %2231 = vmatpush1.xpose.msra.mxu0 0.0
    %2232 = vmatprep.subr.mxu0 0.0
    %2233 = vmatpush1.xpose.msra.mxu0 0.0
    %2234 = vmatprep.subr.mxu0 0.0
    %2235 = vmatpush1.xpose.msra.mxu0 0.0
    %2236 = vmatprep.mubr.f32.mxu0 0.0
    %2237 = vmatmul.mubr.f32.gmra.mrb[0].mxu0 %v2168
    %v2238 = vpop.f32.mrb[0].mxu0
    %v2239 = vadd.f32 0.0, %v2238
    %v2240 = vpop.f32.mrb[0].mxu0
    %2241 = vdwg.mxu0
    %v2242 = vsel %vm269, %v2123, 0
    %v2244 = vsel %vm269, %v2137, 0
    %2246 = vmatprep.subr.mxu0 0.0
    %2247 = vmatpush1.xpose.msra.mxu0 %v2244
    %2248 = vmatprep.subr.mxu0 0.0
    %2249 = vmatpush1.xpose.msra.mxu0 0.0
    %2250 = vmatprep.subr.mxu0 0.0
    %2251 = vmatpush1.xpose.msra.mxu0 0.0
    %2252 = vmatprep.subr.mxu0 0.0
    %2253 = vmatpush1.xpose.msra.mxu0 0.0
    %2254 = vmatprep.subr.mxu0 0.0
    %2255 = vmatpush1.xpose.msra.mxu0 0.0
    %2256 = vmatprep.subr.mxu0 0.0
    %2257 = vmatpush1.xpose.msra.mxu0 0.0
    %2258 = vmatprep.subr.mxu0 0.0
    %2259 = vmatpush1.xpose.msra.mxu0 0.0
    %2260 = vmatprep.subr.mxu0 0.0
    %2261 = vmatpush1.xpose.msra.mxu0 0.0
    %2262 = vmatprep.subr.mxu0 0.0
    %2263 = vmatpush1.xpose.msra.mxu0 0.0
    %2264 = vmatprep.subr.mxu0 0.0
    %2265 = vmatpush1.xpose.msra.mxu0 0.0
    %2266 = vmatprep.subr.mxu0 0.0
    %2267 = vmatpush1.xpose.msra.mxu0 0.0
    %2268 = vmatprep.subr.mxu0 0.0
    %2269 = vmatpush1.xpose.msra.mxu0 0.0
    %2270 = vmatprep.subr.mxu0 0.0
    %2271 = vmatpush1.xpose.msra.mxu0 0.0
    %2272 = vmatprep.subr.mxu0 0.0
    %2273 = vmatpush1.xpose.msra.mxu0 0.0
    %2274 = vmatprep.subr.mxu0 0.0
    %2275 = vmatpush1.xpose.msra.mxu0 0.0
    %2276 = vmatprep.subr.mxu0 0.0
    %2277 = vmatpush1.xpose.msra.mxu0 0.0
    %2278 = vmatprep.subr.mxu0 0.0
    %2279 = vmatpush1.xpose.msra.mxu0 0.0
    %2280 = vmatprep.subr.mxu0 0.0
    %2281 = vmatpush1.xpose.msra.mxu0 0.0
    %2282 = vmatprep.subr.mxu0 0.0
    %2283 = vmatpush1.xpose.msra.mxu0 0.0
    %2284 = vmatprep.subr.mxu0 0.0
    %2285 = vmatpush1.xpose.msra.mxu0 0.0
    %2286 = vmatprep.subr.mxu0 0.0
    %2287 = vmatpush1.xpose.msra.mxu0 0.0
    %2288 = vmatprep.subr.mxu0 0.0
    %2289 = vmatpush1.xpose.msra.mxu0 0.0
    %2290 = vmatprep.subr.mxu0 0.0
    %2291 = vmatpush1.xpose.msra.mxu0 0.0
    %2292 = vmatprep.subr.mxu0 0.0
    %2293 = vmatpush1.xpose.msra.mxu0 0.0
    %2294 = vmatprep.subr.mxu0 0.0
    %2295 = vmatpush1.xpose.msra.mxu0 0.0
    %2296 = vmatprep.subr.mxu0 0.0
    %2297 = vmatpush1.xpose.msra.mxu0 0.0
    %2298 = vmatprep.subr.mxu0 0.0
    %2299 = vmatpush1.xpose.msra.mxu0 0.0
    %2300 = vmatprep.subr.mxu0 0.0
    %2301 = vmatpush1.xpose.msra.mxu0 0.0
    %2302 = vmatprep.subr.mxu0 0.0
    %2303 = vmatpush1.xpose.msra.mxu0 0.0
    %2304 = vmatprep.subr.mxu0 0.0
    %2305 = vmatpush1.xpose.msra.mxu0 0.0
    %2306 = vmatprep.subr.mxu0 0.0
    %2307 = vmatpush1.xpose.msra.mxu0 0.0
    %2308 = vmatprep.subr.mxu0 0.0
    %2309 = vmatpush1.xpose.msra.mxu0 0.0
    %2310 = vmatprep.mubr.f32.mxu0 0.0
    %2311 = vmatmul.mubr.f32.gmra.mrb[0].mxu0 %v2242
    %v2312 = vpop.f32.mrb[0].mxu0
    %v2313 = vadd.f32 0.0, %v2312
    %v2314 = vpop.f32.mrb[0].mxu0
    %2315 = vdwg.mxu0
    %v2316 = vsel %vm269, %v2127, 0
    %v2318 = vsel %vm269, %v2141, 0
    %2320 = vmatprep.subr.mxu0 0.0
    %2321 = vmatpush1.xpose.msra.mxu0 %v2318
    %2322 = vmatprep.subr.mxu0 0.0
    %2323 = vmatpush1.xpose.msra.mxu0 0.0
    %2324 = vmatprep.subr.mxu0 0.0
    %2325 = vmatpush1.xpose.msra.mxu0 0.0
    %2326 = vmatprep.subr.mxu0 0.0
    %2327 = vmatpush1.xpose.msra.mxu0 0.0
    %2328 = vmatprep.subr.mxu0 0.0
    %2329 = vmatpush1.xpose.msra.mxu0 0.0
    %2330 = vmatprep.subr.mxu0 0.0
    %2331 = vmatpush1.xpose.msra.mxu0 0.0
    %2332 = vmatprep.subr.mxu0 0.0
    %2333 = vmatpush1.xpose.msra.mxu0 0.0
    %2334 = vmatprep.subr.mxu0 0.0
    %2335 = vmatpush1.xpose.msra.mxu0 0.0
    %2336 = vmatprep.subr.mxu0 0.0
    %2337 = vmatpush1.xpose.msra.mxu0 0.0
    %2338 = vmatprep.subr.mxu0 0.0
    %2339 = vmatpush1.xpose.msra.mxu0 0.0
    %2340 = vmatprep.subr.mxu0 0.0
    %2341 = vmatpush1.xpose.msra.mxu0 0.0
    %2342 = vmatprep.subr.mxu0 0.0
    %2343 = vmatpush1.xpose.msra.mxu0 0.0
    %2344 = vmatprep.subr.mxu0 0.0
    %2345 = vmatpush1.xpose.msra.mxu0 0.0
    %2346 = vmatprep.subr.mxu0 0.0
    %2347 = vmatpush1.xpose.msra.mxu0 0.0
    %2348 = vmatprep.subr.mxu0 0.0
    %2349 = vmatpush1.xpose.msra.mxu0 0.0
    %2350 = vmatprep.subr.mxu0 0.0
    %2351 = vmatpush1.xpose.msra.mxu0 0.0
    %2352 = vmatprep.subr.mxu0 0.0
    %2353 = vmatpush1.xpose.msra.mxu0 0.0
    %2354 = vmatprep.subr.mxu0 0.0
    %2355 = vmatpush1.xpose.msra.mxu0 0.0
    %2356 = vmatprep.subr.mxu0 0.0
    %2357 = vmatpush1.xpose.msra.mxu0 0.0
    %2358 = vmatprep.subr.mxu0 0.0
    %2359 = vmatpush1.xpose.msra.mxu0 0.0
    %2360 = vmatprep.subr.mxu0 0.0
    %2361 = vmatpush1.xpose.msra.mxu0 0.0
    %2362 = vmatprep.subr.mxu0 0.0
    %2363 = vmatpush1.xpose.msra.mxu0 0.0
    %2364 = vmatprep.subr.mxu0 0.0
    %2365 = vmatpush1.xpose.msra.mxu0 0.0
    %2366 = vmatprep.subr.mxu0 0.0
    %2367 = vmatpush1.xpose.msra.mxu0 0.0
    %2368 = vmatprep.subr.mxu0 0.0
    %2369 = vmatpush1.xpose.msra.mxu0 0.0
    %2370 = vmatprep.subr.mxu0 0.0
    %2371 = vmatpush1.xpose.msra.mxu0 0.0
    %2372 = vmatprep.subr.mxu0 0.0
    %2373 = vmatpush1.xpose.msra.mxu0 0.0
    %2374 = vmatprep.subr.mxu0 0.0
    %2375 = vmatpush1.xpose.msra.mxu0 0.0
    %2376 = vmatprep.subr.mxu0 0.0
    %2377 = vmatpush1.xpose.msra.mxu0 0.0
    %2378 = vmatprep.subr.mxu0 0.0
    %2379 = vmatpush1.xpose.msra.mxu0 0.0
    %2380 = vmatprep.subr.mxu0 0.0
    %2381 = vmatpush1.xpose.msra.mxu0 0.0
    %2382 = vmatprep.subr.mxu0 0.0
    %2383 = vmatpush1.xpose.msra.mxu0 0.0
    %2384 = vmatprep.mubr.f32.mxu0 0.0
    %2385 = vmatmul.mubr.f32.gmra.mrb[0].mxu0 %v2316
    %v2386 = vpop.f32.mrb[0].mxu0
    %v2387 = vadd.f32 0.0, %v2386
    %v2388 = vpop.f32.mrb[0].mxu0
    %2389 = vdwg.mxu0
    %v2390 = vsel %vm269, %v2131, 0
    %v2392 = vsel %vm269, %v2145, 0
    %2394 = vmatprep.subr.mxu0 0.0
    %2395 = vmatpush1.xpose.msra.mxu0 %v2392
    %2396 = vmatprep.subr.mxu0 0.0
    %2397 = vmatpush1.xpose.msra.mxu0 0.0
    %2398 = vmatprep.subr.mxu0 0.0
    %2399 = vmatpush1.xpose.msra.mxu0 0.0
    %2400 = vmatprep.subr.mxu0 0.0
    %2401 = vmatpush1.xpose.msra.mxu0 0.0
    %2402 = vmatprep.subr.mxu0 0.0
    %2403 = vmatpush1.xpose.msra.mxu0 0.0
    %2404 = vmatprep.subr.mxu0 0.0
    %2405 = vmatpush1.xpose.msra.mxu0 0.0
    %2406 = vmatprep.subr.mxu0 0.0
    %2407 = vmatpush1.xpose.msra.mxu0 0.0
    %2408 = vmatprep.subr.mxu0 0.0
    %2409 = vmatpush1.xpose.msra.mxu0 0.0
    %2410 = vmatprep.subr.mxu0 0.0
    %2411 = vmatpush1.xpose.msra.mxu0 0.0
    %2412 = vmatprep.subr.mxu0 0.0
    %2413 = vmatpush1.xpose.msra.mxu0 0.0
    %2414 = vmatprep.subr.mxu0 0.0
    %2415 = vmatpush1.xpose.msra.mxu0 0.0
    %2416 = vmatprep.subr.mxu0 0.0
    %2417 = vmatpush1.xpose.msra.mxu0 0.0
    %2418 = vmatprep.subr.mxu0 0.0
    %2419 = vmatpush1.xpose.msra.mxu0 0.0
    %2420 = vmatprep.subr.mxu0 0.0
    %2421 = vmatpush1.xpose.msra.mxu0 0.0
    %2422 = vmatprep.subr.mxu0 0.0
    %2423 = vmatpush1.xpose.msra.mxu0 0.0
    %2424 = vmatprep.subr.mxu0 0.0
    %2425 = vmatpush1.xpose.msra.mxu0 0.0
    %2426 = vmatprep.subr.mxu0 0.0
    %2427 = vmatpush1.xpose.msra.mxu0 0.0
    %2428 = vmatprep.subr.mxu0 0.0
    %2429 = vmatpush1.xpose.msra.mxu0 0.0
    %2430 = vmatprep.subr.mxu0 0.0
    %2431 = vmatpush1.xpose.msra.mxu0 0.0
    %2432 = vmatprep.subr.mxu0 0.0
    %2433 = vmatpush1.xpose.msra.mxu0 0.0
    %2434 = vmatprep.subr.mxu0 0.0
    %2435 = vmatpush1.xpose.msra.mxu0 0.0
    %2436 = vmatprep.subr.mxu0 0.0
    %2437 = vmatpush1.xpose.msra.mxu0 0.0
    %2438 = vmatprep.subr.mxu0 0.0
    %2439 = vmatpush1.xpose.msra.mxu0 0.0
    %2440 = vmatprep.subr.mxu0 0.0
    %2441 = vmatpush1.xpose.msra.mxu0 0.0
    %2442 = vmatprep.subr.mxu0 0.0
    %2443 = vmatpush1.xpose.msra.mxu0 0.0
    %2444 = vmatprep.subr.mxu0 0.0
    %2445 = vmatpush1.xpose.msra.mxu0 0.0
    %2446 = vmatprep.subr.mxu0 0.0
    %2447 = vmatpush1.xpose.msra.mxu0 0.0
    %2448 = vmatprep.subr.mxu0 0.0
    %2449 = vmatpush1.xpose.msra.mxu0 0.0
    %2450 = vmatprep.subr.mxu0 0.0
    %2451 = vmatpush1.xpose.msra.mxu0 0.0
    %2452 = vmatprep.subr.mxu0 0.0
    %2453 = vmatpush1.xpose.msra.mxu0 0.0
    %2454 = vmatprep.subr.mxu0 0.0
    %2455 = vmatpush1.xpose.msra.mxu0 0.0
    %2456 = vmatprep.subr.mxu0 0.0
    %2457 = vmatpush1.xpose.msra.mxu0 0.0
    %2458 = vmatprep.mubr.f32.mxu0 0.0
    %2459 = vmatmul.mubr.f32.gmra.mrb[0].mxu0 %v2390
    %v2460 = vpop.f32.mrb[0].mxu0
    %v2461 = vadd.f32 0.0, %v2460
    %v2462 = vpop.f32.mrb[0].mxu0
    %2463 = vdwg.mxu0
    %v2464 = vsel %vm269, %v2113, 0
    %v2466 = vsel %vm269, %v2116, 0
    %2468 = vmatprep.subr.mxu0 0.0
    %2469 = vmatpush1.xpose.msra.mxu0 %v2466
    %2470 = vmatprep.subr.mxu0 0.0
    %2471 = vmatpush1.xpose.msra.mxu0 0.0
    %2472 = vmatprep.subr.mxu0 0.0
    %2473 = vmatpush1.xpose.msra.mxu0 0.0
    %2474 = vmatprep.subr.mxu0 0.0
    %2475 = vmatpush1.xpose.msra.mxu0 0.0
    %2476 = vmatprep.subr.mxu0 0.0
    %2477 = vmatpush1.xpose.msra.mxu0 0.0
    %2478 = vmatprep.subr.mxu0 0.0
    %2479 = vmatpush1.xpose.msra.mxu0 0.0
    %2480 = vmatprep.subr.mxu0 0.0
    %2481 = vmatpush1.xpose.msra.mxu0 0.0
    %2482 = vmatprep.subr.mxu0 0.0
    %2483 = vmatpush1.xpose.msra.mxu0 0.0
    %2484 = vmatprep.subr.mxu0 0.0
    %2485 = vmatpush1.xpose.msra.mxu0 0.0
    %2486 = vmatprep.subr.mxu0 0.0
    %2487 = vmatpush1.xpose.msra.mxu0 0.0
    %2488 = vmatprep.subr.mxu0 0.0
    %2489 = vmatpush1.xpose.msra.mxu0 0.0
    %2490 = vmatprep.subr.mxu0 0.0
    %2491 = vmatpush1.xpose.msra.mxu0 0.0
    %2492 = vmatprep.subr.mxu0 0.0
    %2493 = vmatpush1.xpose.msra.mxu0 0.0
    %2494 = vmatprep.subr.mxu0 0.0
    %2495 = vmatpush1.xpose.msra.mxu0 0.0
    %2496 = vmatprep.subr.mxu0 0.0
    %2497 = vmatpush1.xpose.msra.mxu0 0.0
    %2498 = vmatprep.subr.mxu0 0.0
    %2499 = vmatpush1.xpose.msra.mxu0 0.0
    %2500 = vmatprep.subr.mxu0 0.0
    %2501 = vmatpush1.xpose.msra.mxu0 0.0
    %2502 = vmatprep.subr.mxu0 0.0
    %2503 = vmatpush1.xpose.msra.mxu0 0.0
    %2504 = vmatprep.subr.mxu0 0.0
    %2505 = vmatpush1.xpose.msra.mxu0 0.0
    %2506 = vmatprep.subr.mxu0 0.0
    %2507 = vmatpush1.xpose.msra.mxu0 0.0
    %2508 = vmatprep.subr.mxu0 0.0
    %2509 = vmatpush1.xpose.msra.mxu0 0.0
    %2510 = vmatprep.subr.mxu0 0.0
    %2511 = vmatpush1.xpose.msra.mxu0 0.0
    %2512 = vmatprep.subr.mxu0 0.0
    %2513 = vmatpush1.xpose.msra.mxu0 0.0
    %2514 = vmatprep.subr.mxu0 0.0
    %2515 = vmatpush1.xpose.msra.mxu0 0.0
    %2516 = vmatprep.subr.mxu0 0.0
    %2517 = vmatpush1.xpose.msra.mxu0 0.0
    %2518 = vmatprep.subr.mxu0 0.0
    %2519 = vmatpush1.xpose.msra.mxu0 0.0
    %2520 = vmatprep.subr.mxu0 0.0
    %2521 = vmatpush1.xpose.msra.mxu0 0.0
    %2522 = vmatprep.subr.mxu0 0.0
    %2523 = vmatpush1.xpose.msra.mxu0 0.0
    %2524 = vmatprep.subr.mxu0 0.0
    %2525 = vmatpush1.xpose.msra.mxu0 0.0
    %2526 = vmatprep.subr.mxu0 0.0
    %2527 = vmatpush1.xpose.msra.mxu0 0.0
    %2528 = vmatprep.subr.mxu0 0.0
    %2529 = vmatpush1.xpose.msra.mxu0 0.0
    %2530 = vmatprep.subr.mxu0 0.0
    %2531 = vmatpush1.xpose.msra.mxu0 0.0
    %2532 = vmatprep.mubr.f32.mxu0 0.0
    %2533 = vmatmul.mubr.f32.gmra.mrb[0].mxu0 %v2464
    %v2534 = vpop.f32.mrb[0].mxu0
    %v2535 = vadd.f32 0.0, %v2534
    %v2536 = vpop.f32.mrb[0].mxu0
    %2537 = vdwg.mxu0
    %v2538 = vsel %vm269, %v2125, 0
    %v2540 = vsel %vm269, %v2139, 0
    %2542 = vmatprep.subr.mxu0 0.0
    %2543 = vmatpush1.xpose.msra.mxu0 %v2540
    %2544 = vmatprep.subr.mxu0 0.0
    %2545 = vmatpush1.xpose.msra.mxu0 0.0
    %2546 = vmatprep.subr.mxu0 0.0
    %2547 = vmatpush1.xpose.msra.mxu0 0.0
    %2548 = vmatprep.subr.mxu0 0.0
    %2549 = vmatpush1.xpose.msra.mxu0 0.0
    %2550 = vmatprep.subr.mxu0 0.0
    %2551 = vmatpush1.xpose.msra.mxu0 0.0
    %2552 = vmatprep.subr.mxu0 0.0
    %2553 = vmatpush1.xpose.msra.mxu0 0.0
    %2554 = vmatprep.subr.mxu0 0.0
    %2555 = vmatpush1.xpose.msra.mxu0 0.0
    %2556 = vmatprep.subr.mxu0 0.0
    %2557 = vmatpush1.xpose.msra.mxu0 0.0
    %2558 = vmatprep.subr.mxu0 0.0
    %2559 = vmatpush1.xpose.msra.mxu0 0.0
    %2560 = vmatprep.subr.mxu0 0.0
    %2561 = vmatpush1.xpose.msra.mxu0 0.0
    %2562 = vmatprep.subr.mxu0 0.0
    %2563 = vmatpush1.xpose.msra.mxu0 0.0
    %2564 = vmatprep.subr.mxu0 0.0
    %2565 = vmatpush1.xpose.msra.mxu0 0.0
    %2566 = vmatprep.subr.mxu0 0.0
    %2567 = vmatpush1.xpose.msra.mxu0 0.0
    %2568 = vmatprep.subr.mxu0 0.0
    %2569 = vmatpush1.xpose.msra.mxu0 0.0
    %2570 = vmatprep.subr.mxu0 0.0
    %2571 = vmatpush1.xpose.msra.mxu0 0.0
    %2572 = vmatprep.subr.mxu0 0.0
    %2573 = vmatpush1.xpose.msra.mxu0 0.0
    %2574 = vmatprep.subr.mxu0 0.0
    %2575 = vmatpush1.xpose.msra.mxu0 0.0
    %2576 = vmatprep.subr.mxu0 0.0
    %2577 = vmatpush1.xpose.msra.mxu0 0.0
    %2578 = vmatprep.subr.mxu0 0.0
    %2579 = vmatpush1.xpose.msra.mxu0 0.0
    %2580 = vmatprep.subr.mxu0 0.0
    %2581 = vmatpush1.xpose.msra.mxu0 0.0
    %2582 = vmatprep.subr.mxu0 0.0
    %2583 = vmatpush1.xpose.msra.mxu0 0.0
    %2584 = vmatprep.subr.mxu0 0.0
    %2585 = vmatpush1.xpose.msra.mxu0 0.0
    %2586 = vmatprep.subr.mxu0 0.0
    %2587 = vmatpush1.xpose.msra.mxu0 0.0
    %2588 = vmatprep.subr.mxu0 0.0
    %2589 = vmatpush1.xpose.msra.mxu0 0.0
    %2590 = vmatprep.subr.mxu0 0.0
    %2591 = vmatpush1.xpose.msra.mxu0 0.0
    %2592 = vmatprep.subr.mxu0 0.0
    %2593 = vmatpush1.xpose.msra.mxu0 0.0
    %2594 = vmatprep.subr.mxu0 0.0
    %2595 = vmatpush1.xpose.msra.mxu0 0.0
    %2596 = vmatprep.subr.mxu0 0.0
    %2597 = vmatpush1.xpose.msra.mxu0 0.0
    %2598 = vmatprep.subr.mxu0 0.0
    %2599 = vmatpush1.xpose.msra.mxu0 0.0
    %2600 = vmatprep.subr.mxu0 0.0
    %2601 = vmatpush1.xpose.msra.mxu0 0.0
    %2602 = vmatprep.subr.mxu0 0.0
    %2603 = vmatpush1.xpose.msra.mxu0 0.0
    %2604 = vmatprep.subr.mxu0 0.0
    %2605 = vmatpush1.xpose.msra.mxu0 0.0
    %2606 = vmatprep.mubr.f32.mxu0 0.0
    %2607 = vmatmul.mubr.f32.gmra.mrb[0].mxu0 %v2538
    %v2608 = vpop.f32.mrb[0].mxu0
    %v2609 = vadd.f32 0.0, %v2608
    %v2610 = vpop.f32.mrb[0].mxu0
    %2611 = vdwg.mxu0
    %v2612 = vsel %vm269, %v2129, 0
    %v2614 = vsel %vm269, %v2143, 0
    %2616 = vmatprep.subr.mxu0 0.0
    %2617 = vmatpush1.xpose.msra.mxu0 %v2614
    %2618 = vmatprep.subr.mxu0 0.0
    %2619 = vmatpush1.xpose.msra.mxu0 0.0
    %2620 = vmatprep.subr.mxu0 0.0
    %2621 = vmatpush1.xpose.msra.mxu0 0.0
    %2622 = vmatprep.subr.mxu0 0.0
    %2623 = vmatpush1.xpose.msra.mxu0 0.0
    %2624 = vmatprep.subr.mxu0 0.0
    %2625 = vmatpush1.xpose.msra.mxu0 0.0
    %2626 = vmatprep.subr.mxu0 0.0
    %2627 = vmatpush1.xpose.msra.mxu0 0.0
    %2628 = vmatprep.subr.mxu0 0.0
    %2629 = vmatpush1.xpose.msra.mxu0 0.0
    %2630 = vmatprep.subr.mxu0 0.0
    %2631 = vmatpush1.xpose.msra.mxu0 0.0
    %2632 = vmatprep.subr.mxu0 0.0
    %2633 = vmatpush1.xpose.msra.mxu0 0.0
    %2634 = vmatprep.subr.mxu0 0.0
    %2635 = vmatpush1.xpose.msra.mxu0 0.0
    %2636 = vmatprep.subr.mxu0 0.0
    %2637 = vmatpush1.xpose.msra.mxu0 0.0
    %2638 = vmatprep.subr.mxu0 0.0
    %2639 = vmatpush1.xpose.msra.mxu0 0.0
    %2640 = vmatprep.subr.mxu0 0.0
    %2641 = vmatpush1.xpose.msra.mxu0 0.0
    %2642 = vmatprep.subr.mxu0 0.0
    %2643 = vmatpush1.xpose.msra.mxu0 0.0
    %2644 = vmatprep.subr.mxu0 0.0
    %2645 = vmatpush1.xpose.msra.mxu0 0.0
    %2646 = vmatprep.subr.mxu0 0.0
    %2647 = vmatpush1.xpose.msra.mxu0 0.0
    %2648 = vmatprep.subr.mxu0 0.0
    %2649 = vmatpush1.xpose.msra.mxu0 0.0
    %2650 = vmatprep.subr.mxu0 0.0
    %2651 = vmatpush1.xpose.msra.mxu0 0.0
    %2652 = vmatprep.subr.mxu0 0.0
    %2653 = vmatpush1.xpose.msra.mxu0 0.0
    %2654 = vmatprep.subr.mxu0 0.0
    %2655 = vmatpush1.xpose.msra.mxu0 0.0
    %2656 = vmatprep.subr.mxu0 0.0
    %2657 = vmatpush1.xpose.msra.mxu0 0.0
    %2658 = vmatprep.subr.mxu0 0.0
    %2659 = vmatpush1.xpose.msra.mxu0 0.0
    %2660 = vmatprep.subr.mxu0 0.0
    %2661 = vmatpush1.xpose.msra.mxu0 0.0
    %2662 = vmatprep.subr.mxu0 0.0
    %2663 = vmatpush1.xpose.msra.mxu0 0.0
    %2664 = vmatprep.subr.mxu0 0.0
    %2665 = vmatpush1.xpose.msra.mxu0 0.0
    %2666 = vmatprep.subr.mxu0 0.0
    %2667 = vmatpush1.xpose.msra.mxu0 0.0
    %2668 = vmatprep.subr.mxu0 0.0
    %2669 = vmatpush1.xpose.msra.mxu0 0.0
    %2670 = vmatprep.subr.mxu0 0.0
    %2671 = vmatpush1.xpose.msra.mxu0 0.0
    %2672 = vmatprep.subr.mxu0 0.0
    %2673 = vmatpush1.xpose.msra.mxu0 0.0
    %2674 = vmatprep.subr.mxu0 0.0
    %2675 = vmatpush1.xpose.msra.mxu0 0.0
    %2676 = vmatprep.subr.mxu0 0.0
    %2677 = vmatpush1.xpose.msra.mxu0 0.0
    %2678 = vmatprep.subr.mxu0 0.0
    %2679 = vmatpush1.xpose.msra.mxu0 0.0
    %2680 = vmatprep.mubr.f32.mxu0 0.0
    %2681 = vmatmul.mubr.f32.gmra.mrb[0].mxu0 %v2612
    %v2682 = vpop.f32.mrb[0].mxu0
    %v2683 = vadd.f32 0.0, %v2682
    %v2684 = vpop.f32.mrb[0].mxu0
    %2685 = vdwg.mxu0
    %v2686 = vsel %vm269, %v2133, 0
    %v2688 = vsel %vm269, %v2147, 0
    %2690 = vmatprep.subr.mxu0 0.0
    %2691 = vmatpush1.xpose.msra.mxu0 %v2688
    %2692 = vmatprep.subr.mxu0 0.0
    %2693 = vmatpush1.xpose.msra.mxu0 0.0
    %2694 = vmatprep.subr.mxu0 0.0
    %2695 = vmatpush1.xpose.msra.mxu0 0.0
    %2696 = vmatprep.subr.mxu0 0.0
    %2697 = vmatpush1.xpose.msra.mxu0 0.0
    %2698 = vmatprep.subr.mxu0 0.0
    %2699 = vmatpush1.xpose.msra.mxu0 0.0
    %2700 = vmatprep.subr.mxu0 0.0
    %2701 = vmatpush1.xpose.msra.mxu0 0.0
    %2702 = vmatprep.subr.mxu0 0.0
    %2703 = vmatpush1.xpose.msra.mxu0 0.0
    %2704 = vmatprep.subr.mxu0 0.0
    %2705 = vmatpush1.xpose.msra.mxu0 0.0
    %2706 = vmatprep.subr.mxu0 0.0
    %2707 = vmatpush1.xpose.msra.mxu0 0.0
    %2708 = vmatprep.subr.mxu0 0.0
    %2709 = vmatpush1.xpose.msra.mxu0 0.0
    %2710 = vmatprep.subr.mxu0 0.0
    %2711 = vmatpush1.xpose.msra.mxu0 0.0
    %2712 = vmatprep.subr.mxu0 0.0
    %2713 = vmatpush1.xpose.msra.mxu0 0.0
    %2714 = vmatprep.subr.mxu0 0.0
    %2715 = vmatpush1.xpose.msra.mxu0 0.0
    %2716 = vmatprep.subr.mxu0 0.0
    %2717 = vmatpush1.xpose.msra.mxu0 0.0
    %2718 = vmatprep.subr.mxu0 0.0
    %2719 = vmatpush1.xpose.msra.mxu0 0.0
    %2720 = vmatprep.subr.mxu0 0.0
    %2721 = vmatpush1.xpose.msra.mxu0 0.0
    %2722 = vmatprep.subr.mxu0 0.0
    %2723 = vmatpush1.xpose.msra.mxu0 0.0
    %2724 = vmatprep.subr.mxu0 0.0
    %2725 = vmatpush1.xpose.msra.mxu0 0.0
    %2726 = vmatprep.subr.mxu0 0.0
    %2727 = vmatpush1.xpose.msra.mxu0 0.0
    %2728 = vmatprep.subr.mxu0 0.0
    %2729 = vmatpush1.xpose.msra.mxu0 0.0
    %2730 = vmatprep.subr.mxu0 0.0
    %2731 = vmatpush1.xpose.msra.mxu0 0.0
    %2732 = vmatprep.subr.mxu0 0.0
    %2733 = vmatpush1.xpose.msra.mxu0 0.0
    %2734 = vmatprep.subr.mxu0 0.0
    %2735 = vmatpush1.xpose.msra.mxu0 0.0
    %2736 = vmatprep.subr.mxu0 0.0
    %2737 = vmatpush1.xpose.msra.mxu0 0.0
    %2738 = vmatprep.subr.mxu0 0.0
    %2739 = vmatpush1.xpose.msra.mxu0 0.0
    %2740 = vmatprep.subr.mxu0 0.0
    %2741 = vmatpush1.xpose.msra.mxu0 0.0
    %2742 = vmatprep.subr.mxu0 0.0
    %2743 = vmatpush1.xpose.msra.mxu0 0.0
    %2744 = vmatprep.subr.mxu0 0.0
    %2745 = vmatpush1.xpose.msra.mxu0 0.0
    %2746 = vmatprep.subr.mxu0 0.0
    %2747 = vmatpush1.xpose.msra.mxu0 0.0
    %2748 = vmatprep.subr.mxu0 0.0
    %2749 = vmatpush1.xpose.msra.mxu0 0.0
    %2750 = vmatprep.subr.mxu0 0.0
    %2751 = vmatpush1.xpose.msra.mxu0 0.0
    %2752 = vmatprep.subr.mxu0 0.0
    %2753 = vmatpush1.xpose.msra.mxu0 0.0
    %2754 = vmatprep.mubr.f32.mxu0 0.0
    %2755 = vmatmul.mubr.f32.gmra.mrb[0].mxu0 %v2686
    %v2756 = vpop.f32.mrb[0].mxu0
    %v2757 = vadd.f32 0.0, %v2756
    %v2758 = vpop.f32.mrb[0].mxu0
    %2759 = vdwg.mxu0
    %v2760 = vmul.f32 %v2239, 0.35355338
    %v2761 = vmul.f32 %v2313, 0.35355338
    %v2762 = vmul.f32 %v2387, 0.35355338
    %v2763 = vmul.f32 %v2461, 0.35355338
    %v2764 = vmul.f32 %v2535, 0.35355338
    %v2765 = vmul.f32 %v2609, 0.35355338
    %v2766 = vmul.f32 %v2683, 0.35355338
    %v2767 = vmul.f32 %v2757, 0.35355338
    %v2768 = vadd.f32 %v2760, %v33
    %v2769 = vadd.f32 %v2761, %v34
    %v2770 = vadd.f32 %v2762, %v35
    %v2771 = vadd.f32 %v2763, %v36
    %v2772 = vadd.f32 %v2764, %v37
    %v2773 = vadd.f32 %v2765, %v38
    %v2774 = vadd.f32 %v2766, %v39
    %v2775 = vadd.f32 %v2767, %v40
    %v2776 = vsel %vm269, %v2768, -inf
    %2777 = vmax.xlane.f32.xlu0 %v2776
    %v2778 = vpop.xlane.xlu0 %2777
    %v2779 = vsel %vm269, %v2769, -inf
    %2780 = vmax.xlane.f32.xlu0 %v2779
    %v2781 = vpop.xlane.xlu0 %2780
    %v2782 = vsel %vm269, %v2770, -inf
    %2783 = vmax.xlane.f32.xlu0 %v2782
    %v2784 = vpop.xlane.xlu0 %2783
    %v2785 = vsel %vm269, %v2771, -inf
    %2786 = vmax.xlane.f32.xlu0 %v2785
    %v2787 = vpop.xlane.xlu0 %2786
    %v2788 = vsel %vm269, %v2772, -inf
    %2789 = vmax.xlane.f32.xlu0 %v2788
    %v2790 = vpop.xlane.xlu0 %2789
    %v2791 = vsel %vm269, %v2773, -inf
    %2792 = vmax.xlane.f32.xlu0 %v2791
    %v2793 = vpop.xlane.xlu0 %2792
    %v2794 = vsel %vm269, %v2774, -inf
    %2795 = vmax.xlane.f32.xlu0 %v2794
    %v2796 = vpop.xlane.xlu0 %2795
    %v2797 = vsel %vm269, %v2775, -inf
    %2798 = vmax.xlane.f32.xlu0 %v2797
    %v2799 = vpop.xlane.xlu0 %2798
    %v2800 = vsub.f32 %v2768, %v2778
    %v2801 = vsub.f32 %v2769, %v2781
    %v2802 = vsub.f32 %v2770, %v2784
    %v2803 = vsub.f32 %v2771, %v2787
    %v2804 = vsub.f32 %v2772, %v2790
    %v2805 = vsub.f32 %v2773, %v2793
    %v2806 = vsub.f32 %v2774, %v2796
    %v2807 = vsub.f32 %v2775, %v2799
    %v2808 = vmul.f32 %v2800, 1.442695
    %v2809 = vpow.pop %v2808
    %v2810 = vmul.f32 %v2801, 1.442695
    %v2811 = vpow.pop %v2810
    %v2812 = vmul.f32 %v2802, 1.442695
    %v2813 = vpow.pop %v2812
    %v2814 = vmul.f32 %v2803, 1.442695
    %v2815 = vpow.pop %v2814
    %v2816 = vmul.f32 %v2804, 1.442695
    %v2817 = vpow.pop %v2816
    %v2818 = vmul.f32 %v2805, 1.442695
    %v2819 = vpow.pop %v2818
    %v2820 = vmul.f32 %v2806, 1.442695
    %v2821 = vpow.pop %v2820
    %v2822 = vmul.f32 %v2807, 1.442695
    %v2823 = vpow.pop %v2822
    %v2824 = vsel %vm269, %v2809, 0.0
    %2825 = vadd.xlane.f32.xlu0 %v2824
    %v2826 = vpop.xlane.xlu0 %2825
    %v2827 = vsel %vm269, %v2811, 0.0
    %2828 = vadd.xlane.f32.xlu0 %v2827
    %v2829 = vpop.xlane.xlu0 %2828
    %v2830 = vsel %vm269, %v2813, 0.0
    %2831 = vadd.xlane.f32.xlu0 %v2830
    %v2832 = vpop.xlane.xlu0 %2831
    %v2833 = vsel %vm269, %v2815, 0.0
    %2834 = vadd.xlane.f32.xlu0 %v2833
    %v2835 = vpop.xlane.xlu0 %2834
    %v2836 = vsel %vm269, %v2817, 0.0
    %2837 = vadd.xlane.f32.xlu0 %v2836
    %v2838 = vpop.xlane.xlu0 %2837
    %v2839 = vsel %vm269, %v2819, 0.0
    %2840 = vadd.xlane.f32.xlu0 %v2839
    %v2841 = vpop.xlane.xlu0 %2840
    %v2842 = vsel %vm269, %v2821, 0.0
    %2843 = vadd.xlane.f32.xlu0 %v2842
    %v2844 = vpop.xlane.xlu0 %2843
    %v2845 = vsel %vm269, %v2823, 0.0
    %2846 = vadd.xlane.f32.xlu0 %v2845
    %v2847 = vpop.xlane.xlu0 %2846
    %v2848 = vrcp.pop %v2826
    %v2849 = vrcp.pop %v2829
    %v2850 = vrcp.pop %v2832
    %v2851 = vrcp.pop %v2835
    %v2852 = vrcp.pop %v2838
    %v2853 = vrcp.pop %v2841
    %v2854 = vrcp.pop %v2844
    %v2855 = vrcp.pop %v2847
    %v2856 = vmul.f32 %v2809, %v2848
    %v2857 = vmul.f32 %v2811, %v2849
    %v2858 = vmul.f32 %v2813, %v2850
    %v2859 = vmul.f32 %v2815, %v2851
    %v2860 = vmul.f32 %v2817, %v2852
    %v2861 = vmul.f32 %v2819, %v2853
    %v2862 = vmul.f32 %v2821, %v2854
    %v2863 = vmul.f32 %v2823, %v2855
    %v2865 = vsel %vm269, %v2856, 0
    %2867 = vmatprep.subr.mxu0 0.0
    %2868 = vmatpush1.msra.mxu0 %v2118
    %2869 = vmatprep.subr.mxu0 0.0
    %2870 = vmatpush1.msra.mxu0 0.0
    %2871 = vmatprep.subr.mxu0 0.0
    %2872 = vmatpush1.msra.mxu0 0.0
    %2873 = vmatprep.subr.mxu0 0.0
    %2874 = vmatpush1.msra.mxu0 0.0
    %2875 = vmatprep.subr.mxu0 0.0
    %2876 = vmatpush1.msra.mxu0 0.0
    %2877 = vmatprep.subr.mxu0 0.0
    %2878 = vmatpush1.msra.mxu0 0.0
    %2879 = vmatprep.subr.mxu0 0.0
    %2880 = vmatpush1.msra.mxu0 0.0
    %2881 = vmatprep.subr.mxu0 0.0
    %2882 = vmatpush1.msra.mxu0 0.0
    %2883 = vmatprep.subr.mxu0 0.0
    %2884 = vmatpush1.msra.mxu0 0.0
    %2885 = vmatprep.subr.mxu0 0.0
    %2886 = vmatpush1.msra.mxu0 0.0
    %2887 = vmatprep.subr.mxu0 0.0
    %2888 = vmatpush1.msra.mxu0 0.0
    %2889 = vmatprep.subr.mxu0 0.0
    %2890 = vmatpush1.msra.mxu0 0.0
    %2891 = vmatprep.subr.mxu0 0.0
    %2892 = vmatpush1.msra.mxu0 0.0
    %2893 = vmatprep.subr.mxu0 0.0
    %2894 = vmatpush1.msra.mxu0 0.0
    %2895 = vmatprep.subr.mxu0 0.0
    %2896 = vmatpush1.msra.mxu0 0.0
    %2897 = vmatprep.subr.mxu0 0.0
    %2898 = vmatpush1.msra.mxu0 0.0
    %2899 = vmatprep.subr.mxu0 0.0
    %2900 = vmatpush1.msra.mxu0 0.0
    %2901 = vmatprep.subr.mxu0 0.0
    %2902 = vmatpush1.msra.mxu0 0.0
    %2903 = vmatprep.subr.mxu0 0.0
    %2904 = vmatpush1.msra.mxu0 0.0
    %2905 = vmatprep.subr.mxu0 0.0
    %2906 = vmatpush1.msra.mxu0 0.0
    %2907 = vmatprep.subr.mxu0 0.0
    %2908 = vmatpush1.msra.mxu0 0.0
    %2909 = vmatprep.subr.mxu0 0.0
    %2910 = vmatpush1.msra.mxu0 0.0
    %2911 = vmatprep.subr.mxu0 0.0
    %2912 = vmatpush1.msra.mxu0 0.0
    %2913 = vmatprep.subr.mxu0 0.0
    %2914 = vmatpush1.msra.mxu0 0.0
    %2915 = vmatprep.subr.mxu0 0.0
    %2916 = vmatpush1.msra.mxu0 0.0
    %2917 = vmatprep.subr.mxu0 0.0
    %2918 = vmatpush1.msra.mxu0 0.0
    %2919 = vmatprep.subr.mxu0 0.0
    %2920 = vmatpush1.msra.mxu0 0.0
    %2921 = vmatprep.subr.mxu0 0.0
    %2922 = vmatpush1.msra.mxu0 0.0
    %2923 = vmatprep.subr.mxu0 0.0
    %2924 = vmatpush1.msra.mxu0 0.0
    %2925 = vmatprep.subr.mxu0 0.0
    %2926 = vmatpush1.msra.mxu0 0.0
    %2927 = vmatprep.subr.mxu0 0.0
    %2928 = vmatpush1.msra.mxu0 0.0
    %2929 = vmatprep.subr.mxu0 0.0
    %2930 = vmatpush1.msra.mxu0 0.0
    %2931 = vmatprep.mubr.f32.mxu0 0.0
    %2932 = vmatmul.mubr.f32.gmra.mrb[0].mxu0 %v2865
    %v2933 = vpop.f32.mrb[0].mxu0
    %v2934 = vadd.f32 0.0, %v2933
    %v2935 = vpop.f32.mrb[0].mxu0
    %2936 = vdwg.mxu0
    %v2938 = vsel %vm269, %v2857, 0
    %2940 = vmatprep.subr.mxu0 0.0
    %2941 = vmatpush1.msra.mxu0 %v2151
    %2942 = vmatprep.subr.mxu0 0.0
    %2943 = vmatpush1.msra.mxu0 0.0
    %2944 = vmatprep.subr.mxu0 0.0
    %2945 = vmatpush1.msra.mxu0 0.0
    %2946 = vmatprep.subr.mxu0 0.0
    %2947 = vmatpush1.msra.mxu0 0.0
    %2948 = vmatprep.subr.mxu0 0.0
    %2949 = vmatpush1.msra.mxu0 0.0
    %2950 = vmatprep.subr.mxu0 0.0
    %2951 = vmatpush1.msra.mxu0 0.0
    %2952 = vmatprep.subr.mxu0 0.0
    %2953 = vmatpush1.msra.mxu0 0.0
    %2954 = vmatprep.subr.mxu0 0.0
    %2955 = vmatpush1.msra.mxu0 0.0
    %2956 = vmatprep.subr.mxu0 0.0
    %2957 = vmatpush1.msra.mxu0 0.0
    %2958 = vmatprep.subr.mxu0 0.0
    %2959 = vmatpush1.msra.mxu0 0.0
    %2960 = vmatprep.subr.mxu0 0.0
    %2961 = vmatpush1.msra.mxu0 0.0
    %2962 = vmatprep.subr.mxu0 0.0
    %2963 = vmatpush1.msra.mxu0 0.0
    %2964 = vmatprep.subr.mxu0 0.0
    %2965 = vmatpush1.msra.mxu0 0.0
    %2966 = vmatprep.subr.mxu0 0.0
    %2967 = vmatpush1.msra.mxu0 0.0
    %2968 = vmatprep.subr.mxu0 0.0
    %2969 = vmatpush1.msra.mxu0 0.0
    %2970 = vmatprep.subr.mxu0 0.0
    %2971 = vmatpush1.msra.mxu0 0.0
    %2972 = vmatprep.subr.mxu0 0.0
    %2973 = vmatpush1.msra.mxu0 0.0
    %2974 = vmatprep.subr.mxu0 0.0
    %2975 = vmatpush1.msra.mxu0 0.0
    %2976 = vmatprep.subr.mxu0 0.0
    %2977 = vmatpush1.msra.mxu0 0.0
    %2978 = vmatprep.subr.mxu0 0.0
    %2979 = vmatpush1.msra.mxu0 0.0
    %2980 = vmatprep.subr.mxu0 0.0
    %2981 = vmatpush1.msra.mxu0 0.0
    %2982 = vmatprep.subr.mxu0 0.0
    %2983 = vmatpush1.msra.mxu0 0.0
    %2984 = vmatprep.subr.mxu0 0.0
    %2985 = vmatpush1.msra.mxu0 0.0
    %2986 = vmatprep.subr.mxu0 0.0
    %2987 = vmatpush1.msra.mxu0 0.0
    %2988 = vmatprep.subr.mxu0 0.0
    %2989 = vmatpush1.msra.mxu0 0.0
    %2990 = vmatprep.subr.mxu0 0.0
    %2991 = vmatpush1.msra.mxu0 0.0
    %2992 = vmatprep.subr.mxu0 0.0
    %2993 = vmatpush1.msra.mxu0 0.0
    %2994 = vmatprep.subr.mxu0 0.0
    %2995 = vmatpush1.msra.mxu0 0.0
    %2996 = vmatprep.subr.mxu0 0.0
    %2997 = vmatpush1.msra.mxu0 0.0
    %2998 = vmatprep.subr.mxu0 0.0
    %2999 = vmatpush1.msra.mxu0 0.0
    %3000 = vmatprep.subr.mxu0 0.0
    %3001 = vmatpush1.msra.mxu0 0.0
    %3002 = vmatprep.subr.mxu0 0.0
    %3003 = vmatpush1.msra.mxu0 0.0
    %3004 = vmatprep.mubr.f32.mxu0 0.0
    %3005 = vmatmul.mubr.f32.gmra.mrb[0].mxu0 %v2938
    %v3006 = vpop.f32.mrb[0].mxu0
    %v3007 = vadd.f32 0.0, %v3006
    %v3008 = vpop.f32.mrb[0].mxu0
    %3009 = vdwg.mxu0
    %v3011 = vsel %vm269, %v2858, 0
    %3013 = vmatprep.subr.mxu0 0.0
    %3014 = vmatpush1.msra.mxu0 %v2157
    %3015 = vmatprep.subr.mxu0 0.0
    %3016 = vmatpush1.msra.mxu0 0.0
    %3017 = vmatprep.subr.mxu0 0.0
    %3018 = vmatpush1.msra.mxu0 0.0
    %3019 = vmatprep.subr.mxu0 0.0
    %3020 = vmatpush1.msra.mxu0 0.0
    %3021 = vmatprep.subr.mxu0 0.0
    %3022 = vmatpush1.msra.mxu0 0.0
    %3023 = vmatprep.subr.mxu0 0.0
    %3024 = vmatpush1.msra.mxu0 0.0
    %3025 = vmatprep.subr.mxu0 0.0
    %3026 = vmatpush1.msra.mxu0 0.0
    %3027 = vmatprep.subr.mxu0 0.0
    %3028 = vmatpush1.msra.mxu0 0.0
    %3029 = vmatprep.subr.mxu0 0.0
    %3030 = vmatpush1.msra.mxu0 0.0
    %3031 = vmatprep.subr.mxu0 0.0
    %3032 = vmatpush1.msra.mxu0 0.0
    %3033 = vmatprep.subr.mxu0 0.0
    %3034 = vmatpush1.msra.mxu0 0.0
    %3035 = vmatprep.subr.mxu0 0.0
    %3036 = vmatpush1.msra.mxu0 0.0
    %3037 = vmatprep.subr.mxu0 0.0
    %3038 = vmatpush1.msra.mxu0 0.0
    %3039 = vmatprep.subr.mxu0 0.0
    %3040 = vmatpush1.msra.mxu0 0.0
    %3041 = vmatprep.subr.mxu0 0.0
    %3042 = vmatpush1.msra.mxu0 0.0
    %3043 = vmatprep.subr.mxu0 0.0
    %3044 = vmatpush1.msra.mxu0 0.0
    %3045 = vmatprep.subr.mxu0 0.0
    %3046 = vmatpush1.msra.mxu0 0.0
    %3047 = vmatprep.subr.mxu0 0.0
    %3048 = vmatpush1.msra.mxu0 0.0
    %3049 = vmatprep.subr.mxu0 0.0
    %3050 = vmatpush1.msra.mxu0 0.0
    %3051 = vmatprep.subr.mxu0 0.0
    %3052 = vmatpush1.msra.mxu0 0.0
    %3053 = vmatprep.subr.mxu0 0.0
    %3054 = vmatpush1.msra.mxu0 0.0
    %3055 = vmatprep.subr.mxu0 0.0
    %3056 = vmatpush1.msra.mxu0 0.0
    %3057 = vmatprep.subr.mxu0 0.0
    %3058 = vmatpush1.msra.mxu0 0.0
    %3059 = vmatprep.subr.mxu0 0.0
    %3060 = vmatpush1.msra.mxu0 0.0
    %3061 = vmatprep.subr.mxu0 0.0
    %3062 = vmatpush1.msra.mxu0 0.0
    %3063 = vmatprep.subr.mxu0 0.0
    %3064 = vmatpush1.msra.mxu0 0.0
    %3065 = vmatprep.subr.mxu0 0.0
    %3066 = vmatpush1.msra.mxu0 0.0
    %3067 = vmatprep.subr.mxu0 0.0
    %3068 = vmatpush1.msra.mxu0 0.0
    %3069 = vmatprep.subr.mxu0 0.0
    %3070 = vmatpush1.msra.mxu0 0.0
    %3071 = vmatprep.subr.mxu0 0.0
    %3072 = vmatpush1.msra.mxu0 0.0
    %3073 = vmatprep.subr.mxu0 0.0
    %3074 = vmatpush1.msra.mxu0 0.0
    %3075 = vmatprep.subr.mxu0 0.0
    %3076 = vmatpush1.msra.mxu0 0.0
    %3077 = vmatprep.mubr.f32.mxu0 0.0
    %3078 = vmatmul.mubr.f32.gmra.mrb[0].mxu0 %v3011
    %v3079 = vpop.f32.mrb[0].mxu0
    %v3080 = vadd.f32 0.0, %v3079
    %v3081 = vpop.f32.mrb[0].mxu0
    %3082 = vdwg.mxu0
    %v3084 = vsel %vm269, %v2859, 0
    %3086 = vmatprep.subr.mxu0 0.0
    %3087 = vmatpush1.msra.mxu0 %v2163
    %3088 = vmatprep.subr.mxu0 0.0
    %3089 = vmatpush1.msra.mxu0 0.0
    %3090 = vmatprep.subr.mxu0 0.0
    %3091 = vmatpush1.msra.mxu0 0.0
    %3092 = vmatprep.subr.mxu0 0.0
    %3093 = vmatpush1.msra.mxu0 0.0
    %3094 = vmatprep.subr.mxu0 0.0
    %3095 = vmatpush1.msra.mxu0 0.0
    %3096 = vmatprep.subr.mxu0 0.0
    %3097 = vmatpush1.msra.mxu0 0.0
    %3098 = vmatprep.subr.mxu0 0.0
    %3099 = vmatpush1.msra.mxu0 0.0
    %3100 = vmatprep.subr.mxu0 0.0
    %3101 = vmatpush1.msra.mxu0 0.0
    %3102 = vmatprep.subr.mxu0 0.0
    %3103 = vmatpush1.msra.mxu0 0.0
    %3104 = vmatprep.subr.mxu0 0.0
    %3105 = vmatpush1.msra.mxu0 0.0
    %3106 = vmatprep.subr.mxu0 0.0
    %3107 = vmatpush1.msra.mxu0 0.0
    %3108 = vmatprep.subr.mxu0 0.0
    %3109 = vmatpush1.msra.mxu0 0.0
    %3110 = vmatprep.subr.mxu0 0.0
    %3111 = vmatpush1.msra.mxu0 0.0
    %3112 = vmatprep.subr.mxu0 0.0
    %3113 = vmatpush1.msra.mxu0 0.0
    %3114 = vmatprep.subr.mxu0 0.0
    %3115 = vmatpush1.msra.mxu0 0.0
    %3116 = vmatprep.subr.mxu0 0.0
    %3117 = vmatpush1.msra.mxu0 0.0
    %3118 = vmatprep.subr.mxu0 0.0
    %3119 = vmatpush1.msra.mxu0 0.0
    %3120 = vmatprep.subr.mxu0 0.0
    %3121 = vmatpush1.msra.mxu0 0.0
    %3122 = vmatprep.subr.mxu0 0.0
    %3123 = vmatpush1.msra.mxu0 0.0
    %3124 = vmatprep.subr.mxu0 0.0
    %3125 = vmatpush1.msra.mxu0 0.0
    %3126 = vmatprep.subr.mxu0 0.0
    %3127 = vmatpush1.msra.mxu0 0.0
    %3128 = vmatprep.subr.mxu0 0.0
    %3129 = vmatpush1.msra.mxu0 0.0
    %3130 = vmatprep.subr.mxu0 0.0
    %3131 = vmatpush1.msra.mxu0 0.0
    %3132 = vmatprep.subr.mxu0 0.0
    %3133 = vmatpush1.msra.mxu0 0.0
    %3134 = vmatprep.subr.mxu0 0.0
    %3135 = vmatpush1.msra.mxu0 0.0
    %3136 = vmatprep.subr.mxu0 0.0
    %3137 = vmatpush1.msra.mxu0 0.0
    %3138 = vmatprep.subr.mxu0 0.0
    %3139 = vmatpush1.msra.mxu0 0.0
    %3140 = vmatprep.subr.mxu0 0.0
    %3141 = vmatpush1.msra.mxu0 0.0
    %3142 = vmatprep.subr.mxu0 0.0
    %3143 = vmatpush1.msra.mxu0 0.0
    %3144 = vmatprep.subr.mxu0 0.0
    %3145 = vmatpush1.msra.mxu0 0.0
    %3146 = vmatprep.subr.mxu0 0.0
    %3147 = vmatpush1.msra.mxu0 0.0
    %3148 = vmatprep.subr.mxu0 0.0
    %3149 = vmatpush1.msra.mxu0 0.0
    %3150 = vmatprep.mubr.f32.mxu0 0.0
    %3151 = vmatmul.mubr.f32.gmra.mrb[0].mxu0 %v3084
    %v3152 = vpop.f32.mrb[0].mxu0
    %v3153 = vadd.f32 0.0, %v3152
    %v3154 = vpop.f32.mrb[0].mxu0
    %3155 = vdwg.mxu0
    %v3157 = vsel %vm269, %v2860, 0
    %3159 = vmatprep.subr.mxu0 0.0
    %3160 = vmatpush1.msra.mxu0 %v2119
    %3161 = vmatprep.subr.mxu0 0.0
    %3162 = vmatpush1.msra.mxu0 0.0
    %3163 = vmatprep.subr.mxu0 0.0
    %3164 = vmatpush1.msra.mxu0 0.0
    %3165 = vmatprep.subr.mxu0 0.0
    %3166 = vmatpush1.msra.mxu0 0.0
    %3167 = vmatprep.subr.mxu0 0.0
    %3168 = vmatpush1.msra.mxu0 0.0
    %3169 = vmatprep.subr.mxu0 0.0
    %3170 = vmatpush1.msra.mxu0 0.0
    %3171 = vmatprep.subr.mxu0 0.0
    %3172 = vmatpush1.msra.mxu0 0.0
    %3173 = vmatprep.subr.mxu0 0.0
    %3174 = vmatpush1.msra.mxu0 0.0
    %3175 = vmatprep.subr.mxu0 0.0
    %3176 = vmatpush1.msra.mxu0 0.0
    %3177 = vmatprep.subr.mxu0 0.0
    %3178 = vmatpush1.msra.mxu0 0.0
    %3179 = vmatprep.subr.mxu0 0.0
    %3180 = vmatpush1.msra.mxu0 0.0
    %3181 = vmatprep.subr.mxu0 0.0
    %3182 = vmatpush1.msra.mxu0 0.0
    %3183 = vmatprep.subr.mxu0 0.0
    %3184 = vmatpush1.msra.mxu0 0.0
    %3185 = vmatprep.subr.mxu0 0.0
    %3186 = vmatpush1.msra.mxu0 0.0
    %3187 = vmatprep.subr.mxu0 0.0
    %3188 = vmatpush1.msra.mxu0 0.0
    %3189 = vmatprep.subr.mxu0 0.0
    %3190 = vmatpush1.msra.mxu0 0.0
    %3191 = vmatprep.subr.mxu0 0.0
    %3192 = vmatpush1.msra.mxu0 0.0
    %3193 = vmatprep.subr.mxu0 0.0
    %3194 = vmatpush1.msra.mxu0 0.0
    %3195 = vmatprep.subr.mxu0 0.0
    %3196 = vmatpush1.msra.mxu0 0.0
    %3197 = vmatprep.subr.mxu0 0.0
    %3198 = vmatpush1.msra.mxu0 0.0
    %3199 = vmatprep.subr.mxu0 0.0
    %3200 = vmatpush1.msra.mxu0 0.0
    %3201 = vmatprep.subr.mxu0 0.0
    %3202 = vmatpush1.msra.mxu0 0.0
    %3203 = vmatprep.subr.mxu0 0.0
    %3204 = vmatpush1.msra.mxu0 0.0
    %3205 = vmatprep.subr.mxu0 0.0
    %3206 = vmatpush1.msra.mxu0 0.0
    %3207 = vmatprep.subr.mxu0 0.0
    %3208 = vmatpush1.msra.mxu0 0.0
    %3209 = vmatprep.subr.mxu0 0.0
    %3210 = vmatpush1.msra.mxu0 0.0
    %3211 = vmatprep.subr.mxu0 0.0
    %3212 = vmatpush1.msra.mxu0 0.0
    %3213 = vmatprep.subr.mxu0 0.0
    %3214 = vmatpush1.msra.mxu0 0.0
    %3215 = vmatprep.subr.mxu0 0.0
    %3216 = vmatpush1.msra.mxu0 0.0
    %3217 = vmatprep.subr.mxu0 0.0
    %3218 = vmatpush1.msra.mxu0 0.0
    %3219 = vmatprep.subr.mxu0 0.0
    %3220 = vmatpush1.msra.mxu0 0.0
    %3221 = vmatprep.subr.mxu0 0.0
    %3222 = vmatpush1.msra.mxu0 0.0
    %3223 = vmatprep.mubr.f32.mxu0 0.0
    %3224 = vmatmul.mubr.f32.gmra.mrb[0].mxu0 %v3157
    %v3225 = vpop.f32.mrb[0].mxu0
    %v3226 = vadd.f32 0.0, %v3225
    %v3227 = vpop.f32.mrb[0].mxu0
    %3228 = vdwg.mxu0
    %v3230 = vsel %vm269, %v2861, 0
    %3232 = vmatprep.subr.mxu0 0.0
    %3233 = vmatpush1.msra.mxu0 %v2153
    %3234 = vmatprep.subr.mxu0 0.0
    %3235 = vmatpush1.msra.mxu0 0.0
    %3236 = vmatprep.subr.mxu0 0.0
    %3237 = vmatpush1.msra.mxu0 0.0
    %3238 = vmatprep.subr.mxu0 0.0
    %3239 = vmatpush1.msra.mxu0 0.0
    %3240 = vmatprep.subr.mxu0 0.0
    %3241 = vmatpush1.msra.mxu0 0.0
    %3242 = vmatprep.subr.mxu0 0.0
    %3243 = vmatpush1.msra.mxu0 0.0
    %3244 = vmatprep.subr.mxu0 0.0
    %3245 = vmatpush1.msra.mxu0 0.0
    %3246 = vmatprep.subr.mxu0 0.0
    %3247 = vmatpush1.msra.mxu0 0.0
    %3248 = vmatprep.subr.mxu0 0.0
    %3249 = vmatpush1.msra.mxu0 0.0
    %3250 = vmatprep.subr.mxu0 0.0
    %3251 = vmatpush1.msra.mxu0 0.0
    %3252 = vmatprep.subr.mxu0 0.0
    %3253 = vmatpush1.msra.mxu0 0.0
    %3254 = vmatprep.subr.mxu0 0.0
    %3255 = vmatpush1.msra.mxu0 0.0
    %3256 = vmatprep.subr.mxu0 0.0
    %3257 = vmatpush1.msra.mxu0 0.0
    %3258 = vmatprep.subr.mxu0 0.0
    %3259 = vmatpush1.msra.mxu0 0.0
    %3260 = vmatprep.subr.mxu0 0.0
    %3261 = vmatpush1.msra.mxu0 0.0
    %3262 = vmatprep.subr.mxu0 0.0
    %3263 = vmatpush1.msra.mxu0 0.0
    %3264 = vmatprep.subr.mxu0 0.0
    %3265 = vmatpush1.msra.mxu0 0.0
    %3266 = vmatprep.subr.mxu0 0.0
    %3267 = vmatpush1.msra.mxu0 0.0
    %3268 = vmatprep.subr.mxu0 0.0
    %3269 = vmatpush1.msra.mxu0 0.0
    %3270 = vmatprep.subr.mxu0 0.0
    %3271 = vmatpush1.msra.mxu0 0.0
    %3272 = vmatprep.subr.mxu0 0.0
    %3273 = vmatpush1.msra.mxu0 0.0
    %3274 = vmatprep.subr.mxu0 0.0
    %3275 = vmatpush1.msra.mxu0 0.0
    %3276 = vmatprep.subr.mxu0 0.0
    %3277 = vmatpush1.msra.mxu0 0.0
    %3278 = vmatprep.subr.mxu0 0.0
    %3279 = vmatpush1.msra.mxu0 0.0
    %3280 = vmatprep.subr.mxu0 0.0
    %3281 = vmatpush1.msra.mxu0 0.0
    %3282 = vmatprep.subr.mxu0 0.0
    %3283 = vmatpush1.msra.mxu0 0.0
    %3284 = vmatprep.subr.mxu0 0.0
    %3285 = vmatpush1.msra.mxu0 0.0
    %3286 = vmatprep.subr.mxu0 0.0
    %3287 = vmatpush1.msra.mxu0 0.0
    %3288 = vmatprep.subr.mxu0 0.0
    %3289 = vmatpush1.msra.mxu0 0.0
    %3290 = vmatprep.subr.mxu0 0.0
    %3291 = vmatpush1.msra.mxu0 0.0
    %3292 = vmatprep.subr.mxu0 0.0
    %3293 = vmatpush1.msra.mxu0 0.0
    %3294 = vmatprep.subr.mxu0 0.0
    %3295 = vmatpush1.msra.mxu0 0.0
    %3296 = vmatprep.mubr.f32.mxu0 0.0
    %3297 = vmatmul.mubr.f32.gmra.mrb[0].mxu0 %v3230
    %v3298 = vpop.f32.mrb[0].mxu0
    %v3299 = vadd.f32 0.0, %v3298
    %v3300 = vpop.f32.mrb[0].mxu0
    %3301 = vdwg.mxu0
    %v3303 = vsel %vm269, %v2862, 0
    %3305 = vmatprep.subr.mxu0 0.0
    %3306 = vmatpush1.msra.mxu0 %v2159
    %3307 = vmatprep.subr.mxu0 0.0
    %3308 = vmatpush1.msra.mxu0 0.0
    %3309 = vmatprep.subr.mxu0 0.0
    %3310 = vmatpush1.msra.mxu0 0.0
    %3311 = vmatprep.subr.mxu0 0.0
    %3312 = vmatpush1.msra.mxu0 0.0
    %3313 = vmatprep.subr.mxu0 0.0
    %3314 = vmatpush1.msra.mxu0 0.0
    %3315 = vmatprep.subr.mxu0 0.0
    %3316 = vmatpush1.msra.mxu0 0.0
    %3317 = vmatprep.subr.mxu0 0.0
    %3318 = vmatpush1.msra.mxu0 0.0
    %3319 = vmatprep.subr.mxu0 0.0
    %3320 = vmatpush1.msra.mxu0 0.0
    %3321 = vmatprep.subr.mxu0 0.0
    %3322 = vmatpush1.msra.mxu0 0.0
    %3323 = vmatprep.subr.mxu0 0.0
    %3324 = vmatpush1.msra.mxu0 0.0
    %3325 = vmatprep.subr.mxu0 0.0
    %3326 = vmatpush1.msra.mxu0 0.0
    %3327 = vmatprep.subr.mxu0 0.0
    %3328 = vmatpush1.msra.mxu0 0.0
    %3329 = vmatprep.subr.mxu0 0.0
    %3330 = vmatpush1.msra.mxu0 0.0
    %3331 = vmatprep.subr.mxu0 0.0
    %3332 = vmatpush1.msra.mxu0 0.0
    %3333 = vmatprep.subr.mxu0 0.0
    %3334 = vmatpush1.msra.mxu0 0.0
    %3335 = vmatprep.subr.mxu0 0.0
    %3336 = vmatpush1.msra.mxu0 0.0
    %3337 = vmatprep.subr.mxu0 0.0
    %3338 = vmatpush1.msra.mxu0 0.0
    %3339 = vmatprep.subr.mxu0 0.0
    %3340 = vmatpush1.msra.mxu0 0.0
    %3341 = vmatprep.subr.mxu0 0.0
    %3342 = vmatpush1.msra.mxu0 0.0
    %3343 = vmatprep.subr.mxu0 0.0
    %3344 = vmatpush1.msra.mxu0 0.0
    %3345 = vmatprep.subr.mxu0 0.0
    %3346 = vmatpush1.msra.mxu0 0.0
    %3347 = vmatprep.subr.mxu0 0.0
    %3348 = vmatpush1.msra.mxu0 0.0
    %3349 = vmatprep.subr.mxu0 0.0
    %3350 = vmatpush1.msra.mxu0 0.0
    %3351 = vmatprep.subr.mxu0 0.0
    %3352 = vmatpush1.msra.mxu0 0.0
    %3353 = vmatprep.subr.mxu0 0.0
    %3354 = vmatpush1.msra.mxu0 0.0
    %3355 = vmatprep.subr.mxu0 0.0
    %3356 = vmatpush1.msra.mxu0 0.0
    %3357 = vmatprep.subr.mxu0 0.0
    %3358 = vmatpush1.msra.mxu0 0.0
    %3359 = vmatprep.subr.mxu0 0.0
    %3360 = vmatpush1.msra.mxu0 0.0
    %3361 = vmatprep.subr.mxu0 0.0
    %3362 = vmatpush1.msra.mxu0 0.0
    %3363 = vmatprep.subr.mxu0 0.0
    %3364 = vmatpush1.msra.mxu0 0.0
    %3365 = vmatprep.subr.mxu0 0.0
    %3366 = vmatpush1.msra.mxu0 0.0
    %3367 = vmatprep.subr.mxu0 0.0
    %3368 = vmatpush1.msra.mxu0 0.0
    %3369 = vmatprep.mubr.f32.mxu0 0.0
    %3370 = vmatmul.mubr.f32.gmra.mrb[0].mxu0 %v3303
    %v3371 = vpop.f32.mrb[0].mxu0
    %v3372 = vadd.f32 0.0, %v3371
    %v3373 = vpop.f32.mrb[0].mxu0
    %3374 = vdwg.mxu0
    %v3376 = vsel %vm269, %v2863, 0
    %3378 = vmatprep.subr.mxu0 0.0
    %3379 = vmatpush1.msra.mxu0 %v2165
    %3380 = vmatprep.subr.mxu0 0.0
    %3381 = vmatpush1.msra.mxu0 0.0
    %3382 = vmatprep.subr.mxu0 0.0
    %3383 = vmatpush1.msra.mxu0 0.0
    %3384 = vmatprep.subr.mxu0 0.0
    %3385 = vmatpush1.msra.mxu0 0.0
    %3386 = vmatprep.subr.mxu0 0.0
    %3387 = vmatpush1.msra.mxu0 0.0
    %3388 = vmatprep.subr.mxu0 0.0
    %3389 = vmatpush1.msra.mxu0 0.0
    %3390 = vmatprep.subr.mxu0 0.0
    %3391 = vmatpush1.msra.mxu0 0.0
    %3392 = vmatprep.subr.mxu0 0.0
    %3393 = vmatpush1.msra.mxu0 0.0
    %3394 = vmatprep.subr.mxu0 0.0
    %3395 = vmatpush1.msra.mxu0 0.0
    %3396 = vmatprep.subr.mxu0 0.0
    %3397 = vmatpush1.msra.mxu0 0.0
    %3398 = vmatprep.subr.mxu0 0.0
    %3399 = vmatpush1.msra.mxu0 0.0
    %3400 = vmatprep.subr.mxu0 0.0
    %3401 = vmatpush1.msra.mxu0 0.0
    %3402 = vmatprep.subr.mxu0 0.0
    %3403 = vmatpush1.msra.mxu0 0.0
    %3404 = vmatprep.subr.mxu0 0.0
    %3405 = vmatpush1.msra.mxu0 0.0
    %3406 = vmatprep.subr.mxu0 0.0
    %3407 = vmatpush1.msra.mxu0 0.0
    %3408 = vmatprep.subr.mxu0 0.0
    %3409 = vmatpush1.msra.mxu0 0.0
    %3410 = vmatprep.subr.mxu0 0.0
    %3411 = vmatpush1.msra.mxu0 0.0
    %3412 = vmatprep.subr.mxu0 0.0
    %3413 = vmatpush1.msra.mxu0 0.0
    %3414 = vmatprep.subr.mxu0 0.0
    %3415 = vmatpush1.msra.mxu0 0.0
    %3416 = vmatprep.subr.mxu0 0.0
    %3417 = vmatpush1.msra.mxu0 0.0
    %3418 = vmatprep.subr.mxu0 0.0
    %3419 = vmatpush1.msra.mxu0 0.0
    %3420 = vmatprep.subr.mxu0 0.0
    %3421 = vmatpush1.msra.mxu0 0.0
    %3422 = vmatprep.subr.mxu0 0.0
    %3423 = vmatpush1.msra.mxu0 0.0
    %3424 = vmatprep.subr.mxu0 0.0
    %3425 = vmatpush1.msra.mxu0 0.0
    %3426 = vmatprep.subr.mxu0 0.0
    %3427 = vmatpush1.msra.mxu0 0.0
    %3428 = vmatprep.subr.mxu0 0.0
    %3429 = vmatpush1.msra.mxu0 0.0
    %3430 = vmatprep.subr.mxu0 0.0
    %3431 = vmatpush1.msra.mxu0 0.0
    %3432 = vmatprep.subr.mxu0 0.0
    %3433 = vmatpush1.msra.mxu0 0.0
    %3434 = vmatprep.subr.mxu0 0.0
    %3435 = vmatpush1.msra.mxu0 0.0
    %3436 = vmatprep.subr.mxu0 0.0
    %3437 = vmatpush1.msra.mxu0 0.0
    %3438 = vmatprep.subr.mxu0 0.0
    %3439 = vmatpush1.msra.mxu0 0.0
    %3440 = vmatprep.subr.mxu0 0.0
    %3441 = vmatpush1.msra.mxu0 0.0
    %3442 = vmatprep.mubr.f32.mxu0 0.0
    %3443 = vmatmul.mubr.f32.gmra.mrb[0].mxu0 %v3376
    %v3444 = vpop.f32.mrb[0].mxu0
    %v3445 = vadd.f32 0.0, %v3444
    %v3446 = vpop.f32.mrb[0].mxu0
    %3447 = vdwg.mxu0
    %3450 = vrot.lane.b32.xlu0 %v3007, 8
    %v3451 = vpop.permute.xlu0 %3450
    %3452 = vrot.lane.b32.xlu0 %v3299, 8
    %v3453 = vpop.permute.xlu0 %3452
    %3458 = vrot.lane.b32.xlu0 %v3080, 16
    %v3459 = vpop.permute.xlu0 %3458
    %3460 = vrot.lane.b32.xlu0 %v3372, 16
    %v3461 = vpop.permute.xlu0 %3460
    %3466 = vrot.lane.b32.xlu0 %v3153, 24
    %v3467 = vpop.permute.xlu0 %3466
    %3468 = vrot.lane.b32.xlu0 %v3445, 24
    %v3469 = vpop.permute.xlu0 %3468
    %v3472 = vsel %vm269, %v2934, %v3451
    %v3473 = vsel %vm269, %v3226, %v3453
    %v3474 = vsel %vm1576, %v3472, %v3459
    %v3475 = vsel %vm1576, %v3473, %v3461
    %v3476 = vsel %vm1579, %v3474, %v3467
    %v3477 = vsel %vm1579, %v3475, %v3469
    %v3478 = vld [vmem:[%s1940 + $0x18] sm:$0xff]
    %v3479 = vld [vmem:[%s1940 + $0x48] sm:$0xff]
    %v3480 = vld [vmem:[%s1940 + $0x78] sm:$0xff]
    %v3481 = vld [vmem:[%s1940 + $0xa8] sm:$0xff]
    %v3482 = vld [vmem:[%s1940 + $0x183] ss:$0 sm:$0xff]
    %v3484 = vsel %vm53, %v3476, 0
    %v3487 = vsel %vm53, %v3477, 0
    %3489 = vmatprep.subr.mxu0 0.0
    %3490 = vmatpush1.msra.mxu0 %v3478
    %3491 = vmatprep.subr.mxu0 0.0
    %3492 = vmatpush1.msra.mxu0 %v3479
    %3493 = vmatprep.subr.mxu0 0.0
    %3494 = vmatpush1.msra.mxu0 %v3480
    %3495 = vmatprep.subr.mxu0 0.0
    %3496 = vmatpush1.msra.mxu0 %v3481
    %3497 = vmatprep.subr.mxu0 0.0
    %3498 = vmatpush1.msra.mxu0 0.0
    %3499 = vmatprep.subr.mxu0 0.0
    %3500 = vmatpush1.msra.mxu0 0.0
    %3501 = vmatprep.subr.mxu0 0.0
    %3502 = vmatpush1.msra.mxu0 0.0
    %3503 = vmatprep.subr.mxu0 0.0
    %3504 = vmatpush1.msra.mxu0 0.0
    %3505 = vmatprep.subr.mxu0 0.0
    %3506 = vmatpush1.msra.mxu0 0.0
    %3507 = vmatprep.subr.mxu0 0.0
    %3508 = vmatpush1.msra.mxu0 0.0
    %3509 = vmatprep.subr.mxu0 0.0
    %3510 = vmatpush1.msra.mxu0 0.0
    %3511 = vmatprep.subr.mxu0 0.0
    %3512 = vmatpush1.msra.mxu0 0.0
    %3513 = vmatprep.subr.mxu0 0.0
    %3514 = vmatpush1.msra.mxu0 0.0
    %3515 = vmatprep.subr.mxu0 0.0
    %3516 = vmatpush1.msra.mxu0 0.0
    %3517 = vmatprep.subr.mxu0 0.0
    %3518 = vmatpush1.msra.mxu0 0.0
    %3519 = vmatprep.subr.mxu0 0.0
    %3520 = vmatpush1.msra.mxu0 0.0
    %3521 = vmatprep.subr.mxu0 0.0
    %3522 = vmatpush1.msra.mxu0 0.0
    %3523 = vmatprep.subr.mxu0 0.0
    %3524 = vmatpush1.msra.mxu0 0.0
    %3525 = vmatprep.subr.mxu0 0.0
    %3526 = vmatpush1.msra.mxu0 0.0
    %3527 = vmatprep.subr.mxu0 0.0
    %3528 = vmatpush1.msra.mxu0 0.0
    %3529 = vmatprep.subr.mxu0 0.0
    %3530 = vmatpush1.msra.mxu0 0.0
    %3531 = vmatprep.subr.mxu0 0.0
    %3532 = vmatpush1.msra.mxu0 0.0
    %3533 = vmatprep.subr.mxu0 0.0
    %3534 = vmatpush1.msra.mxu0 0.0
    %3535 = vmatprep.subr.mxu0 0.0
    %3536 = vmatpush1.msra.mxu0 0.0
    %3537 = vmatprep.subr.mxu0 0.0
    %3538 = vmatpush1.msra.mxu0 0.0
    %3539 = vmatprep.subr.mxu0 0.0
    %3540 = vmatpush1.msra.mxu0 0.0
    %3541 = vmatprep.subr.mxu0 0.0
    %3542 = vmatpush1.msra.mxu0 0.0
    %3543 = vmatprep.subr.mxu0 0.0
    %3544 = vmatpush1.msra.mxu0 0.0
    %3545 = vmatprep.subr.mxu0 0.0
    %3546 = vmatpush1.msra.mxu0 0.0
    %3547 = vmatprep.subr.mxu0 0.0
    %3548 = vmatpush1.msra.mxu0 0.0
    %3549 = vmatprep.subr.mxu0 0.0
    %3550 = vmatpush1.msra.mxu0 0.0
    %3551 = vmatprep.subr.mxu0 0.0
    %3552 = vmatpush1.msra.mxu0 0.0
    %3553 = vmatprep.mubr.f32.mxu0 0.0
    %3554 = vmatmul.mubr.f32.gmra.mrb[0].mxu0 %v3484
    %v3555 = vpop.f32.mrb[0].mxu0
    %v3556 = vadd.f32 %v3482, %v3555
    %v3557 = vpop.f32.mrb[0].mxu0
    %3558 = vmatprep.mubr.f32.mxu0 0.0
    %3559 = vmatmul.mubr.f32.gmra.mrb[0].mxu0 %v3487
    %v3560 = vpop.f32.mrb[0].mxu0
    %v3561 = vadd.f32 %v3482, %v3560
    %v3562 = vpop.f32.mrb[0].mxu0
    %3563 = vdwg.mxu0
    %v3564 = vadd.f32 %v1938, %v3556
    %v3565 = vadd.f32 %v1939, %v3561
    %v3566 = vsel %vm53, %v3564, 0.0
    %3567 = vadd.xlane.f32.xlu0 %v3566
    %v3568 = vpop.xlane.xlu0 %3567
    %v3569 = vsel %vm53, %v3565, 0.0
    %3570 = vadd.xlane.f32.xlu0 %v3569
    %v3571 = vpop.xlane.xlu0 %3570
    %v3572 = vmul.f32 %v3568, %v1676
    %v3573 = vmul.f32 %v3571, %v1676
    %v3574 = vmul.f32 %v3564, %v3564
    %v3575 = vmul.f32 %v3565, %v3565
    %v3576 = vsel %vm53, %v3574, 0.0
    %3577 = vadd.xlane.f32.xlu0 %v3576
    %v3578 = vpop.xlane.xlu0 %3577
    %v3579 = vsel %vm53, %v3575, 0.0
    %3580 = vadd.xlane.f32.xlu0 %v3579
    %v3581 = vpop.xlane.xlu0 %3580
    %v3582 = vmul.f32 %v3578, %v1676
    %v3583 = vmul.f32 %v3581, %v1676
    %v3584 = vsub.f32 %v3564, %v3572
    %v3585 = vsub.f32 %v3565, %v3573
    %v3586 = vmul.f32 %v3572, %v3572
    %v3587 = vmul.f32 %v3573, %v3573
    %v3588 = vsub.f32 %v3582, %v3586
    %v3589 = vsub.f32 %v3583, %v3587
    %v3590 = vadd.f32 %v3588, 1e-12
    %v3591 = vadd.f32 %v3589, 1e-12
    %v3592 = vrsqrt.pop %v3590
    %v3593 = vrsqrt.pop %v3591
    %v3594 = vmul.f32 %v3584, %v3592
    %v3595 = vmul.f32 %v3585, %v3593
    %v3596 = vld [vmem:[%s1940 + $0x184] ss:$0 sm:$0xff]
    %v3597 = vmul.f32 %v3594, %v3596
    %v3598 = vmul.f32 %v3595, %v3596
    %v3599 = vld [vmem:[%s1940 + $0x185] ss:$0 sm:$0xff]
    %v3600 = vadd.f32 %v3597, %v3599
    %v3601 = vadd.f32 %v3598, %v3599
    %v3602 = vld [vmem:[%s1940 + $0x20] sm:$0xff]
    %v3603 = vld [vmem:[%s1940 + $0x50] sm:$0xff]
    %v3604 = vld [vmem:[%s1940 + $0x80] sm:$0xff]
    %v3605 = vld [vmem:[%s1940 + $0xb0] sm:$0xff]
    %v3606 = vld [vmem:[%s1940 + $0x28] sm:$0xff]
    %v3607 = vld [vmem:[%s1940 + $0x58] sm:$0xff]
    %v3608 = vld [vmem:[%s1940 + $0x88] sm:$0xff]
    %v3609 = vld [vmem:[%s1940 + $0xb8] sm:$0xff]
    %v3610 = vld [vmem:[%s1940 + $0xe8] sm:$0xff]
    %v3611 = vld [vmem:[%s1940 + $0x118] sm:$0xff]
    %v3612 = vld [vmem:[%s1940 + $0x148] sm:$0xff]
    %v3613 = vld [vmem:[%s1940 + $0x178] sm:$0xff]
    %v3614 = vld [vmem:[%s1940 + $0x186] ss:$0 sm:$0xff]
    %v3616 = vsel %vm53, %v3600, 0
    %v3619 = vsel %vm53, %v3601, 0
    %3621 = vmatprep.subr.mxu0 0.0
    %3622 = vmatpush1.msra.mxu0 %v3602
    %3623 = vmatprep.subr.mxu0 0.0
    %3624 = vmatpush1.msra.mxu0 %v3603
    %3625 = vmatprep.subr.mxu0 0.0
    %3626 = vmatpush1.msra.mxu0 %v3604
    %3627 = vmatprep.subr.mxu0 0.0
    %3628 = vmatpush1.msra.mxu0 %v3605
    %3629 = vmatprep.subr.mxu0 0.0
    %3630 = vmatpush1.msra.mxu0 0.0
    %3631 = vmatprep.subr.mxu0 0.0
    %3632 = vmatpush1.msra.mxu0 0.0
    %3633 = vmatprep.subr.mxu0 0.0
    %3634 = vmatpush1.msra.mxu0 0.0
    %3635 = vmatprep.subr.mxu0 0.0
    %3636 = vmatpush1.msra.mxu0 0.0
    %3637 = vmatprep.subr.mxu0 0.0
    %3638 = vmatpush1.msra.mxu0 0.0
    %3639 = vmatprep.subr.mxu0 0.0
    %3640 = vmatpush1.msra.mxu0 0.0
    %3641 = vmatprep.subr.mxu0 0.0
    %3642 = vmatpush1.msra.mxu0 0.0
    %3643 = vmatprep.subr.mxu0 0.0
    %3644 = vmatpush1.msra.mxu0 0.0
    %3645 = vmatprep.subr.mxu0 0.0
    %3646 = vmatpush1.msra.mxu0 0.0
    %3647 = vmatprep.subr.mxu0 0.0
    %3648 = vmatpush1.msra.mxu0 0.0
    %3649 = vmatprep.subr.mxu0 0.0
    %3650 = vmatpush1.msra.mxu0 0.0
    %3651 = vmatprep.subr.mxu0 0.0
    %3652 = vmatpush1.msra.mxu0 0.0
    %3653 = vmatprep.subr.mxu0 0.0
    %3654 = vmatpush1.msra.mxu0 0.0
    %3655 = vmatprep.subr.mxu0 0.0
    %3656 = vmatpush1.msra.mxu0 0.0
    %3657 = vmatprep.subr.mxu0 0.0
    %3658 = vmatpush1.msra.mxu0 0.0
    %3659 = vmatprep.subr.mxu0 0.0
    %3660 = vmatpush1.msra.mxu0 0.0
    %3661 = vmatprep.subr.mxu0 0.0
    %3662 = vmatpush1.msra.mxu0 0.0
    %3663 = vmatprep.subr.mxu0 0.0
    %3664 = vmatpush1.msra.mxu0 0.0
    %3665 = vmatprep.subr.mxu0 0.0
    %3666 = vmatpush1.msra.mxu0 0.0
    %3667 = vmatprep.subr.mxu0 0.0
    %3668 = vmatpush1.msra.mxu0 0.0
    %3669 = vmatprep.subr.mxu0 0.0
    %3670 = vmatpush1.msra.mxu0 0.0
    %3671 = vmatprep.subr.mxu0 0.0
    %3672 = vmatpush1.msra.mxu0 0.0
    %3673 = vmatprep.subr.mxu0 0.0
    %3674 = vmatpush1.msra.mxu0 0.0
    %3675 = vmatprep.subr.mxu0 0.0
    %3676 = vmatpush1.msra.mxu0 0.0
    %3677 = vmatprep.subr.mxu0 0.0
    %3678 = vmatpush1.msra.mxu0 0.0
    %3679 = vmatprep.subr.mxu0 0.0
    %3680 = vmatpush1.msra.mxu0 0.0
    %3681 = vmatprep.subr.mxu0 0.0
    %3682 = vmatpush1.msra.mxu0 0.0
    %3683 = vmatprep.subr.mxu0 0.0
    %3684 = vmatpush1.msra.mxu0 0.0
    %3685 = vmatprep.mubr.f32.mxu0 0.0
    %3686 = vmatmul.mubr.f32.gmra.mrb[0].mxu0 %v3616
    %v3687 = vpop.f32.mrb[0].mxu0
    %v3688 = vadd.f32 %v3614, %v3687
    %v3689 = vpop.f32.mrb[0].mxu0
    %3690 = vmatprep.mubr.f32.mxu0 0.0
    %3691 = vmatmul.mubr.f32.gmra.mrb[0].mxu0 %v3619
    %v3692 = vpop.f32.mrb[0].mxu0
    %v3693 = vadd.f32 %v3614, %v3692
    %v3694 = vpop.f32.mrb[0].mxu0
    %3695 = vdwg.mxu0
    %v3696 = vmul.f32 %v3688, %v3688
    %v3697 = vmul.f32 %v3693, %v3693
    %v3698 = vmul.f32 %v3688, %v3696
    %v3699 = vmul.f32 %v3693, %v3697
    %v3700 = vmul.f32 %v3698, 0.044715
    %v3701 = vmul.f32 %v3699, 0.044715
    %v3702 = vadd.f32 %v3688, %v3700
    %v3703 = vadd.f32 %v3693, %v3701
    %v3704 = vmul.f32 %v3702, 0.7978846
    %v3705 = vmul.f32 %v3703, 0.7978846
    %v3706 = vtanh.pop %v3704
    %v3707 = vtanh.pop %v3705
    %v3708 = vadd.f32 %v3706, 1.0
    %v3709 = vadd.f32 %v3707, 1.0
    %v3710 = vmul.f32 %v3708, 0.5
    %v3711 = vmul.f32 %v3709, 0.5
    %v3712 = vmul.f32 %v3688, %v3710
    %v3713 = vmul.f32 %v3693, %v3711
    %v3714 = vld [vmem:[%s1940 + $0x187] ss:$0 sm:$0xff]
    %v3716 = vsel %vm1820, %v3712, 0
    %v3719 = vsel %vm1820, %v3713, 0
    %3721 = vmatprep.subr.mxu0 0.0
    %3722 = vmatpush1.msra.mxu0 %v3606
    %3723 = vmatprep.subr.mxu0 0.0
    %3724 = vmatpush1.msra.mxu0 %v3607
    %3725 = vmatprep.subr.mxu0 0.0
    %3726 = vmatpush1.msra.mxu0 %v3608
    %3727 = vmatprep.subr.mxu0 0.0
    %3728 = vmatpush1.msra.mxu0 %v3609
    %3729 = vmatprep.subr.mxu0 0.0
    %3730 = vmatpush1.msra.mxu0 %v3610
    %3731 = vmatprep.subr.mxu0 0.0
    %3732 = vmatpush1.msra.mxu0 %v3611
    %3733 = vmatprep.subr.mxu0 0.0
    %3734 = vmatpush1.msra.mxu0 %v3612
    %3735 = vmatprep.subr.mxu0 0.0
    %3736 = vmatpush1.msra.mxu0 %v3613
    %3737 = vmatprep.subr.mxu0 0.0
    %3738 = vmatpush1.msra.mxu0 0.0
    %3739 = vmatprep.subr.mxu0 0.0
    %3740 = vmatpush1.msra.mxu0 0.0
    %3741 = vmatprep.subr.mxu0 0.0
    %3742 = vmatpush1.msra.mxu0 0.0
    %3743 = vmatprep.subr.mxu0 0.0
    %3744 = vmatpush1.msra.mxu0 0.0
    %3745 = vmatprep.subr.mxu0 0.0
    %3746 = vmatpush1.msra.mxu0 0.0
    %3747 = vmatprep.subr.mxu0 0.0
    %3748 = vmatpush1.msra.mxu0 0.0
    %3749 = vmatprep.subr.mxu0 0.0
    %3750 = vmatpush1.msra.mxu0 0.0
    %3751 = vmatprep.subr.mxu0 0.0
    %3752 = vmatpush1.msra.mxu0 0.0
    %3753 = vmatprep.subr.mxu0 0.0
    %3754 = vmatpush1.msra.mxu0 0.0
    %3755 = vmatprep.subr.mxu0 0.0
    %3756 = vmatpush1.msra.mxu0 0.0
    %3757 = vmatprep.subr.mxu0 0.0
    %3758 = vmatpush1.msra.mxu0 0.0
    %3759 = vmatprep.subr.mxu0 0.0
    %3760 = vmatpush1.msra.mxu0 0.0
    %3761 = vmatprep.subr.mxu0 0.0
    %3762 = vmatpush1.msra.mxu0 0.0
    %3763 = vmatprep.subr.mxu0 0.0
    %3764 = vmatpush1.msra.mxu0 0.0
    %3765 = vmatprep.subr.mxu0 0.0
    %3766 = vmatpush1.msra.mxu0 0.0
    %3767 = vmatprep.subr.mxu0 0.0
    %3768 = vmatpush1.msra.mxu0 0.0
    %3769 = vmatprep.subr.mxu0 0.0
    %3770 = vmatpush1.msra.mxu0 0.0
    %3771 = vmatprep.subr.mxu0 0.0
    %3772 = vmatpush1.msra.mxu0 0.0
    %3773 = vmatprep.subr.mxu0 0.0
    %3774 = vmatpush1.msra.mxu0 0.0
    %3775 = vmatprep.subr.mxu0 0.0
    %3776 = vmatpush1.msra.mxu0 0.0
    %3777 = vmatprep.subr.mxu0 0.0
    %3778 = vmatpush1.msra.mxu0 0.0
    %3779 = vmatprep.subr.mxu0 0.0
    %3780 = vmatpush1.msra.mxu0 0.0
    %3781 = vmatprep.subr.mxu0 0.0
    %3782 = vmatpush1.msra.mxu0 0.0
    %3783 = vmatprep.subr.mxu0 0.0
    %3784 = vmatpush1.msra.mxu0 0.0
    %3785 = vmatprep.mubr.f32.mxu0 0.0
    %3786 = vmatmul.mubr.f32.gmra.mrb[0].mxu0 %v3716
    %v3787 = vpop.f32.mrb[0].mxu0
    %v3788 = vadd.f32 %v3714, %v3787
    %v3789 = vpop.f32.mrb[0].mxu0
    %3790 = vmatprep.mubr.f32.mxu0 0.0
    %3791 = vmatmul.mubr.f32.gmra.mrb[0].mxu0 %v3719
    %v3792 = vpop.f32.mrb[0].mxu0
    %v3793 = vadd.f32 %v3714, %v3792
    %v3794 = vpop.f32.mrb[0].mxu0
    %3795 = vdwg.mxu0
    %v3796 = vadd.f32 %v3600, %v3788
    %v3797 = vadd.f32 %v3601, %v3793
    %v3798 = vsel %vm53, %v3796, 0.0
    %3799 = vadd.xlane.f32.xlu0 %v3798
    %v3800 = vpop.xlane.xlu0 %3799
    %v3801 = vsel %vm53, %v3797, 0.0
    %3802 = vadd.xlane.f32.xlu0 %v3801
    %v3803 = vpop.xlane.xlu0 %3802
    %v3804 = vmul.f32 %v3800, %v1676
    %v3805 = vmul.f32 %v3803, %v1676
    %v3806 = vmul.f32 %v3796, %v3796
    %v3807 = vmul.f32 %v3797, %v3797
    %v3808 = vsel %vm53, %v3806, 0.0
    %3809 = vadd.xlane.f32.xlu0 %v3808
    %v3810 = vpop.xlane.xlu0 %3809
    %v3811 = vsel %vm53, %v3807, 0.0
    %3812 = vadd.xlane.f32.xlu0 %v3811
    %v3813 = vpop.xlane.xlu0 %3812
    %v3814 = vmul.f32 %v3810, %v1676
    %v3815 = vmul.f32 %v3813, %v1676
    %v3816 = vsub.f32 %v3796, %v3804
    %v3817 = vsub.f32 %v3797, %v3805
    %v3818 = vmul.f32 %v3804, %v3804
    %v3819 = vmul.f32 %v3805, %v3805
    %v3820 = vsub.f32 %v3814, %v3818
    %v3821 = vsub.f32 %v3815, %v3819
    %v3822 = vadd.f32 %v3820, 1e-12
    %v3823 = vadd.f32 %v3821, 1e-12
    %v3824 = vrsqrt.pop %v3822
    %v3825 = vrsqrt.pop %v3823
    %v3826 = vmul.f32 %v3816, %v3824
    %v3827 = vmul.f32 %v3817, %v3825
    %v3828 = vld [vmem:[%s1940 + $0x1b0] ss:$0 sm:$0xff]
    %v3829 = vmul.f32 %v3826, %v3828
    %v3830 = vmul.f32 %v3827, %v3828
    %v3831 = vld [vmem:[%s1940 + $0x1b1] ss:$0 sm:$0xff]
    %v3832 = vadd.f32 %v3829, %v3831
    %v3833 = vadd.f32 %v3830, %v3831
    %s3834 = scalar_lea.vmem [#allocation2], 960
    %v3835 = vld [vmem:[%s3834] sm:$0xff]
    %v3836 = vld [vmem:[%s3834 + $0x8] sm:$0xff]
    %v3837 = vld [vmem:[%s3834 + $0x10] sm:$0xff]
    %v3838 = vld [vmem:[%s3834 + $0x30] sm:$0xff]
    %v3839 = vld [vmem:[%s3834 + $0x38] sm:$0xff]
    %v3840 = vld [vmem:[%s3834 + $0x40] sm:$0xff]
    %v3841 = vld [vmem:[%s3834 + $0x60] sm:$0xff]
    %v3842 = vld [vmem:[%s3834 + $0x68] sm:$0xff]
    %v3843 = vld [vmem:[%s3834 + $0x70] sm:$0xff]
    %v3844 = vld [vmem:[%s3834 + $0x90] sm:$0xff]
    %v3845 = vld [vmem:[%s3834 + $0x98] sm:$0xff]
    %v3846 = vld [vmem:[%s3834 + $0xa0] sm:$0xff]
    %v3848 = vsel %vm53, %v3832, 0
    %v3851 = vsel %vm53, %v3833, 0
    %3853 = vmatprep.subr.mxu0 %v3836
    %3854 = vmatpush1.msra.mxu0 %v3835
    %3855 = vmatprep.subr.mxu0 %v3839
    %3856 = vmatpush1.msra.mxu0 %v3838
    %3857 = vmatprep.subr.mxu0 %v3842
    %3858 = vmatpush1.msra.mxu0 %v3841
    %3859 = vmatprep.subr.mxu0 %v3845
    %3860 = vmatpush1.msra.mxu0 %v3844
    %3861 = vmatprep.subr.mxu0 0.0
    %3862 = vmatpush1.msra.mxu0 0.0
    %3863 = vmatprep.subr.mxu0 0.0
    %3864 = vmatpush1.msra.mxu0 0.0
    %3865 = vmatprep.subr.mxu0 0.0
    %3866 = vmatpush1.msra.mxu0 0.0
    %3867 = vmatprep.subr.mxu0 0.0
    %3868 = vmatpush1.msra.mxu0 0.0
    %3869 = vmatprep.subr.mxu0 0.0
    %3870 = vmatpush1.msra.mxu0 0.0
    %3871 = vmatprep.subr.mxu0 0.0
    %3872 = vmatpush1.msra.mxu0 0.0
    %3873 = vmatprep.subr.mxu0 0.0
    %3874 = vmatpush1.msra.mxu0 0.0
    %3875 = vmatprep.subr.mxu0 0.0
    %3876 = vmatpush1.msra.mxu0 0.0
    %3877 = vmatprep.subr.mxu0 0.0
    %3878 = vmatpush1.msra.mxu0 0.0
    %3879 = vmatprep.subr.mxu0 0.0
    %3880 = vmatpush1.msra.mxu0 0.0
    %3881 = vmatprep.subr.mxu0 0.0
    %3882 = vmatpush1.msra.mxu0 0.0
    %3883 = vmatprep.subr.mxu0 0.0
    %3884 = vmatpush1.msra.mxu0 0.0
    %3885 = vmatprep.subr.mxu0 0.0
    %3886 = vmatpush1.msra.mxu0 0.0
    %3887 = vmatprep.subr.mxu0 0.0
    %3888 = vmatpush1.msra.mxu0 0.0
    %3889 = vmatprep.subr.mxu0 0.0
    %3890 = vmatpush1.msra.mxu0 0.0
    %3891 = vmatprep.subr.mxu0 0.0
    %3892 = vmatpush1.msra.mxu0 0.0
    %3893 = vmatprep.subr.mxu0 0.0
    %3894 = vmatpush1.msra.mxu0 0.0
    %3895 = vmatprep.subr.mxu0 0.0
    %3896 = vmatpush1.msra.mxu0 0.0
    %3897 = vmatprep.subr.mxu0 0.0
    %3898 = vmatpush1.msra.mxu0 0.0
    %3899 = vmatprep.subr.mxu0 0.0
    %3900 = vmatpush1.msra.mxu0 0.0
    %3901 = vmatprep.subr.mxu0 0.0
    %3902 = vmatpush1.msra.mxu0 0.0
    %3903 = vmatprep.subr.mxu0 0.0
    %3904 = vmatpush1.msra.mxu0 0.0
    %3905 = vmatprep.subr.mxu0 0.0
    %3906 = vmatpush1.msra.mxu0 0.0
    %3907 = vmatprep.subr.mxu0 0.0
    %3908 = vmatpush1.msra.mxu0 0.0
    %3909 = vmatprep.subr.mxu0 0.0
    %3910 = vmatpush1.msra.mxu0 0.0
    %3911 = vmatprep.subr.mxu0 0.0
    %3912 = vmatpush1.msra.mxu0 0.0
    %3913 = vmatprep.subr.mxu0 0.0
    %3914 = vmatpush1.msra.mxu0 0.0
    %3915 = vmatprep.subr.mxu0 0.0
    %3916 = vmatpush1.msra.mxu0 0.0
    %3917 = vmatprep.mubr.f32.mxu0 0.0
    %3918 = vmatmul.mubr.f32.gmra.mrb[0].mxu0 %v3848
    %v3919 = vpop.f32.mrb[0].mxu0
    %v3920 = vadd.f32 0.0, %v3919
    %v3921 = vpop.f32.mrb[0].mxu0
    %v3922 = vadd.f32 0.0, %v3921
    %3923 = vmatprep.mubr.f32.mxu0 0.0
    %3924 = vmatmul.mubr.f32.gmra.mrb[0].mxu0 %v3851
    %v3925 = vpop.f32.mrb[0].mxu0
    %v3926 = vadd.f32 0.0, %v3925
    %v3927 = vpop.f32.mrb[0].mxu0
    %v3928 = vadd.f32 0.0, %v3927
    %3929 = vdwg.mxu0
    %3930 = vmatprep.subr.mxu0 0.0
    %3931 = vmatpush1.msra.mxu0 %v3837
    %3932 = vmatprep.subr.mxu0 0.0
    %3933 = vmatpush1.msra.mxu0 %v3840
    %3934 = vmatprep.subr.mxu0 0.0
    %3935 = vmatpush1.msra.mxu0 %v3843
    %3936 = vmatprep.subr.mxu0 0.0
    %3937 = vmatpush1.msra.mxu0 %v3846
    %3938 = vmatprep.subr.mxu0 0.0
    %3939 = vmatpush1.msra.mxu0 0.0
    %3940 = vmatprep.subr.mxu0 0.0
    %3941 = vmatpush1.msra.mxu0 0.0
    %3942 = vmatprep.subr.mxu0 0.0
    %3943 = vmatpush1.msra.mxu0 0.0
    %3944 = vmatprep.subr.mxu0 0.0
    %3945 = vmatpush1.msra.mxu0 0.0
    %3946 = vmatprep.subr.mxu0 0.0
    %3947 = vmatpush1.msra.mxu0 0.0
    %3948 = vmatprep.subr.mxu0 0.0
    %3949 = vmatpush1.msra.mxu0 0.0
    %3950 = vmatprep.subr.mxu0 0.0
    %3951 = vmatpush1.msra.mxu0 0.0
    %3952 = vmatprep.subr.mxu0 0.0
    %3953 = vmatpush1.msra.mxu0 0.0
    %3954 = vmatprep.subr.mxu0 0.0
    %3955 = vmatpush1.msra.mxu0 0.0
    %3956 = vmatprep.subr.mxu0 0.0
    %3957 = vmatpush1.msra.mxu0 0.0
    %3958 = vmatprep.subr.mxu0 0.0
    %3959 = vmatpush1.msra.mxu0 0.0
    %3960 = vmatprep.subr.mxu0 0.0
    %3961 = vmatpush1.msra.mxu0 0.0
    %3962 = vmatprep.subr.mxu0 0.0
    %3963 = vmatpush1.msra.mxu0 0.0
    %3964 = vmatprep.subr.mxu0 0.0
    %3965 = vmatpush1.msra.mxu0 0.0
    %3966 = vmatprep.subr.mxu0 0.0
    %3967 = vmatpush1.msra.mxu0 0.0
    %3968 = vmatprep.subr.mxu0 0.0
    %3969 = vmatpush1.msra.mxu0 0.0
    %3970 = vmatprep.subr.mxu0 0.0
    %3971 = vmatpush1.msra.mxu0 0.0
    %3972 = vmatprep.subr.mxu0 0.0
    %3973 = vmatpush1.msra.mxu0 0.0
    %3974 = vmatprep.subr.mxu0 0.0
    %3975 = vmatpush1.msra.mxu0 0.0
    %3976 = vmatprep.subr.mxu0 0.0
    %3977 = vmatpush1.msra.mxu0 0.0
    %3978 = vmatprep.subr.mxu0 0.0
    %3979 = vmatpush1.msra.mxu0 0.0
    %3980 = vmatprep.subr.mxu0 0.0
    %3981 = vmatpush1.msra.mxu0 0.0
    %3982 = vmatprep.subr.mxu0 0.0
    %3983 = vmatpush1.msra.mxu0 0.0
    %3984 = vmatprep.subr.mxu0 0.0
    %3985 = vmatpush1.msra.mxu0 0.0
    %3986 = vmatprep.subr.mxu0 0.0
    %3987 = vmatpush1.msra.mxu0 0.0
    %3988 = vmatprep.subr.mxu0 0.0
    %3989 = vmatpush1.msra.mxu0 0.0
    %3990 = vmatprep.subr.mxu0 0.0
    %3991 = vmatpush1.msra.mxu0 0.0
    %3992 = vmatprep.subr.mxu0 0.0
    %3993 = vmatpush1.msra.mxu0 0.0
    %3994 = vmatprep.mubr.f32.mxu0 0.0
    %3995 = vmatmul.mubr.f32.gmra.mrb[0].mxu0 %v3848
    %v3996 = vpop.f32.mrb[0].mxu0
    %v3997 = vadd.f32 0.0, %v3996
    %v3998 = vpop.f32.mrb[0].mxu0
    %3999 = vmatprep.mubr.f32.mxu0 0.0
    %4000 = vmatmul.mubr.f32.gmra.mrb[0].mxu0 %v3851
    %v4001 = vpop.f32.mrb[0].mxu0
    %v4002 = vadd.f32 0.0, %v4001
    %v4003 = vpop.f32.mrb[0].mxu0
    %4004 = vdwg.mxu0
    %v4005 = vld [vmem:[%s3834 + $0x180] ss:$0 sm:$0xff]
    %v4006 = vadd.f32 %v3920, %v4005
    %v4007 = vadd.f32 %v3926, %v4005
    %v4008 = vld [vmem:[%s3834 + $0x181] ss:$0 sm:$0xff]
    %v4009 = vadd.f32 %v3922, %v4008
    %v4010 = vadd.f32 %v3928, %v4008
    %v4011 = vld [vmem:[%s3834 + $0x182] ss:$0 sm:$0xff]
    %v4012 = vadd.f32 %v3997, %v4011
    %v4013 = vadd.f32 %v4002, %v4011
    %4016 = vrot.lane.b32.xlu0 %v4006, 120
    %v4017 = vpop.permute.xlu0 %4016
    %4018 = vrot.lane.b32.xlu0 %v4007, 120
    %v4019 = vpop.permute.xlu0 %4018
    %4020 = vrot.lane.b32.xlu0 %v4006, 112
    %v4021 = vpop.permute.xlu0 %4020
    %4022 = vrot.lane.b32.xlu0 %v4007, 112
    %v4023 = vpop.permute.xlu0 %4022
    %4024 = vrot.lane.b32.xlu0 %v4006, 104
    %v4025 = vpop.permute.xlu0 %4024
    %4026 = vrot.lane.b32.xlu0 %v4007, 104
    %v4027 = vpop.permute.xlu0 %4026
    %4030 = vrot.lane.b32.xlu0 %v4009, 120
    %v4031 = vpop.permute.xlu0 %4030
    %4032 = vrot.lane.b32.xlu0 %v4010, 120
    %v4033 = vpop.permute.xlu0 %4032
    %4034 = vrot.lane.b32.xlu0 %v4009, 112
    %v4035 = vpop.permute.xlu0 %4034
    %4036 = vrot.lane.b32.xlu0 %v4010, 112
    %v4037 = vpop.permute.xlu0 %4036
    %4038 = vrot.lane.b32.xlu0 %v4009, 104
    %v4039 = vpop.permute.xlu0 %4038
    %4040 = vrot.lane.b32.xlu0 %v4010, 104
    %v4041 = vpop.permute.xlu0 %4040
    %4044 = vrot.lane.b32.xlu0 %v4012, 120
    %v4045 = vpop.permute.xlu0 %4044
    %4046 = vrot.lane.b32.xlu0 %v4013, 120
    %v4047 = vpop.permute.xlu0 %4046
    %4050 = vrot.lane.b32.xlu0 %v4012, 112
    %v4051 = vpop.permute.xlu0 %4050
    %4052 = vrot.lane.b32.xlu0 %v4013, 112
    %v4053 = vpop.permute.xlu0 %4052
    %4056 = vrot.lane.b32.xlu0 %v4012, 104
    %v4057 = vpop.permute.xlu0 %4056
    %4058 = vrot.lane.b32.xlu0 %v4013, 104
    %v4059 = vpop.permute.xlu0 %4058
    %v4062 = vsel %vm269, %v4006, 0
    %v4064 = vsel %vm269, %v4009, 0
    %4066 = vmatprep.subr.mxu0 0.0
    %4067 = vmatpush1.xpose.msra.mxu0 %v4064
    %4068 = vmatprep.subr.mxu0 0.0
    %4069 = vmatpush1.xpose.msra.mxu0 0.0
    %4070 = vmatprep.subr.mxu0 0.0
    %4071 = vmatpush1.xpose.msra.mxu0 0.0
    %4072 = vmatprep.subr.mxu0 0.0
    %4073 = vmatpush1.xpose.msra.mxu0 0.0
    %4074 = vmatprep.subr.mxu0 0.0
    %4075 = vmatpush1.xpose.msra.mxu0 0.0
    %4076 = vmatprep.subr.mxu0 0.0
    %4077 = vmatpush1.xpose.msra.mxu0 0.0
    %4078 = vmatprep.subr.mxu0 0.0
    %4079 = vmatpush1.xpose.msra.mxu0 0.0
    %4080 = vmatprep.subr.mxu0 0.0
    %4081 = vmatpush1.xpose.msra.mxu0 0.0
    %4082 = vmatprep.subr.mxu0 0.0
    %4083 = vmatpush1.xpose.msra.mxu0 0.0
    %4084 = vmatprep.subr.mxu0 0.0
    %4085 = vmatpush1.xpose.msra.mxu0 0.0
    %4086 = vmatprep.subr.mxu0 0.0
    %4087 = vmatpush1.xpose.msra.mxu0 0.0
    %4088 = vmatprep.subr.mxu0 0.0
    %4089 = vmatpush1.xpose.msra.mxu0 0.0
    %4090 = vmatprep.subr.mxu0 0.0
    %4091 = vmatpush1.xpose.msra.mxu0 0.0
    %4092 = vmatprep.subr.mxu0 0.0
    %4093 = vmatpush1.xpose.msra.mxu0 0.0
    %4094 = vmatprep.subr.mxu0 0.0
    %4095 = vmatpush1.xpose.msra.mxu0 0.0
    %4096 = vmatprep.subr.mxu0 0.0
    %4097 = vmatpush1.xpose.msra.mxu0 0.0
    %4098 = vmatprep.subr.mxu0 0.0
    %4099 = vmatpush1.xpose.msra.mxu0 0.0
    %4100 = vmatprep.subr.mxu0 0.0
    %4101 = vmatpush1.xpose.msra.mxu0 0.0
    %4102 = vmatprep.subr.mxu0 0.0
    %4103 = vmatpush1.xpose.msra.mxu0 0.0
    %4104 = vmatprep.subr.mxu0 0.0
    %4105 = vmatpush1.xpose.msra.mxu0 0.0
    %4106 = vmatprep.subr.mxu0 0.0
    %4107 = vmatpush1.xpose.msra.mxu0 0.0
    %4108 = vmatprep.subr.mxu0 0.0
    %4109 = vmatpush1.xpose.msra.mxu0 0.0
    %4110 = vmatprep.subr.mxu0 0.0
    %4111 = vmatpush1.xpose.msra.mxu0 0.0
    %4112 = vmatprep.subr.mxu0 0.0
    %4113 = vmatpush1.xpose.msra.mxu0 0.0
    %4114 = vmatprep.subr.mxu0 0.0
    %4115 = vmatpush1.xpose.msra.mxu0 0.0
    %4116 = vmatprep.subr.mxu0 0.0
    %4117 = vmatpush1.xpose.msra.mxu0 0.0
    %4118 = vmatprep.subr.mxu0 0.0
    %4119 = vmatpush1.xpose.msra.mxu0 0.0
    %4120 = vmatprep.subr.mxu0 0.0
    %4121 = vmatpush1.xpose.msra.mxu0 0.0
    %4122 = vmatprep.subr.mxu0 0.0
    %4123 = vmatpush1.xpose.msra.mxu0 0.0
    %4124 = vmatprep.subr.mxu0 0.0
    %4125 = vmatpush1.xpose.msra.mxu0 0.0
    %4126 = vmatprep.subr.mxu0 0.0
    %4127 = vmatpush1.xpose.msra.mxu0 0.0
    %4128 = vmatprep.subr.mxu0 0.0
    %4129 = vmatpush1.xpose.msra.mxu0 0.0
    %4130 = vmatprep.mubr.f32.mxu0 0.0
    %4131 = vmatmul.mubr.f32.gmra.mrb[0].mxu0 %v4062
    %v4132 = vpop.f32.mrb[0].mxu0
    %v4133 = vadd.f32 0.0, %v4132
    %v4134 = vpop.f32.mrb[0].mxu0
    %4135 = vdwg.mxu0
    %v4136 = vsel %vm269, %v4017, 0
    %v4138 = vsel %vm269, %v4031, 0
    %4140 = vmatprep.subr.mxu0 0.0
    %4141 = vmatpush1.xpose.msra.mxu0 %v4138
    %4142 = vmatprep.subr.mxu0 0.0
    %4143 = vmatpush1.xpose.msra.mxu0 0.0
    %4144 = vmatprep.subr.mxu0 0.0
    %4145 = vmatpush1.xpose.msra.mxu0 0.0
    %4146 = vmatprep.subr.mxu0 0.0
    %4147 = vmatpush1.xpose.msra.mxu0 0.0
    %4148 = vmatprep.subr.mxu0 0.0
    %4149 = vmatpush1.xpose.msra.mxu0 0.0
    %4150 = vmatprep.subr.mxu0 0.0
    %4151 = vmatpush1.xpose.msra.mxu0 0.0
    %4152 = vmatprep.subr.mxu0 0.0
    %4153 = vmatpush1.xpose.msra.mxu0 0.0
    %4154 = vmatprep.subr.mxu0 0.0
    %4155 = vmatpush1.xpose.msra.mxu0 0.0
    %4156 = vmatprep.subr.mxu0 0.0
    %4157 = vmatpush1.xpose.msra.mxu0 0.0
    %4158 = vmatprep.subr.mxu0 0.0
    %4159 = vmatpush1.xpose.msra.mxu0 0.0
    %4160 = vmatprep.subr.mxu0 0.0
    %4161 = vmatpush1.xpose.msra.mxu0 0.0
    %4162 = vmatprep.subr.mxu0 0.0
    %4163 = vmatpush1.xpose.msra.mxu0 0.0
    %4164 = vmatprep.subr.mxu0 0.0
    %4165 = vmatpush1.xpose.msra.mxu0 0.0
    %4166 = vmatprep.subr.mxu0 0.0
    %4167 = vmatpush1.xpose.msra.mxu0 0.0
    %4168 = vmatprep.subr.mxu0 0.0
    %4169 = vmatpush1.xpose.msra.mxu0 0.0
    %4170 = vmatprep.subr.mxu0 0.0
    %4171 = vmatpush1.xpose.msra.mxu0 0.0
    %4172 = vmatprep.subr.mxu0 0.0
    %4173 = vmatpush1.xpose.msra.mxu0 0.0
    %4174 = vmatprep.subr.mxu0 0.0
    %4175 = vmatpush1.xpose.msra.mxu0 0.0
    %4176 = vmatprep.subr.mxu0 0.0
    %4177 = vmatpush1.xpose.msra.mxu0 0.0
    %4178 = vmatprep.subr.mxu0 0.0
    %4179 = vmatpush1.xpose.msra.mxu0 0.0
    %4180 = vmatprep.subr.mxu0 0.0
    %4181 = vmatpush1.xpose.msra.mxu0 0.0
    %4182 = vmatprep.subr.mxu0 0.0
    %4183 = vmatpush1.xpose.msra.mxu0 0.0
    %4184 = vmatprep.subr.mxu0 0.0
    %4185 = vmatpush1.xpose.msra.mxu0 0.0
    %4186 = vmatprep.subr.mxu0 0.0
    %4187 = vmatpush1.xpose.msra.mxu0 0.0
    %4188 = vmatprep.subr.mxu0 0.0
    %4189 = vmatpush1.xpose.msra.mxu0 0.0
    %4190 = vmatprep.subr.mxu0 0.0
    %4191 = vmatpush1.xpose.msra.mxu0 0.0
    %4192 = vmatprep.subr.mxu0 0.0
    %4193 = vmatpush1.xpose.msra.mxu0 0.0
    %4194 = vmatprep.subr.mxu0 0.0
    %4195 = vmatpush1.xpose.msra.mxu0 0.0
    %4196 = vmatprep.subr.mxu0 0.0
    %4197 = vmatpush1.xpose.msra.mxu0 0.0
    %4198 = vmatprep.subr.mxu0 0.0
    %4199 = vmatpush1.xpose.msra.mxu0 0.0
    %4200 = vmatprep.subr.mxu0 0.0
    %4201 = vmatpush1.xpose.msra.mxu0 0.0
    %4202 = vmatprep.subr.mxu0 0.0
    %4203 = vmatpush1.xpose.msra.mxu0 0.0
    %4204 = vmatprep.mubr.f32.mxu0 0.0
    %4205 = vmatmul.mubr.f32.gmra.mrb[0].mxu0 %v4136
    %v4206 = vpop.f32.mrb[0].mxu0
    %v4207 = vadd.f32 0.0, %v4206
    %v4208 = vpop.f32.mrb[0].mxu0
    %4209 = vdwg.mxu0
    %v4210 = vsel %vm269, %v4021, 0
    %v4212 = vsel %vm269, %v4035, 0
    %4214 = vmatprep.subr.mxu0 0.0
    %4215 = vmatpush1.xpose.msra.mxu0 %v4212
    %4216 = vmatprep.subr.mxu0 0.0
    %4217 = vmatpush1.xpose.msra.mxu0 0.0
    %4218 = vmatprep.subr.mxu0 0.0
    %4219 = vmatpush1.xpose.msra.mxu0 0.0
    %4220 = vmatprep.subr.mxu0 0.0
    %4221 = vmatpush1.xpose.msra.mxu0 0.0
    %4222 = vmatprep.subr.mxu0 0.0
    %4223 = vmatpush1.xpose.msra.mxu0 0.0
    %4224 = vmatprep.subr.mxu0 0.0
    %4225 = vmatpush1.xpose.msra.mxu0 0.0
    %4226 = vmatprep.subr.mxu0 0.0
    %4227 = vmatpush1.xpose.msra.mxu0 0.0
    %4228 = vmatprep.subr.mxu0 0.0
    %4229 = vmatpush1.xpose.msra.mxu0 0.0
    %4230 = vmatprep.subr.mxu0 0.0
    %4231 = vmatpush1.xpose.msra.mxu0 0.0
    %4232 = vmatprep.subr.mxu0 0.0
    %4233 = vmatpush1.xpose.msra.mxu0 0.0
    %4234 = vmatprep.subr.mxu0 0.0
    %4235 = vmatpush1.xpose.msra.mxu0 0.0
    %4236 = vmatprep.subr.mxu0 0.0
    %4237 = vmatpush1.xpose.msra.mxu0 0.0
    %4238 = vmatprep.subr.mxu0 0.0
    %4239 = vmatpush1.xpose.msra.mxu0 0.0
    %4240 = vmatprep.subr.mxu0 0.0
    %4241 = vmatpush1.xpose.msra.mxu0 0.0
    %4242 = vmatprep.subr.mxu0 0.0
    %4243 = vmatpush1.xpose.msra.mxu0 0.0
    %4244 = vmatprep.subr.mxu0 0.0
    %4245 = vmatpush1.xpose.msra.mxu0 0.0
    %4246 = vmatprep.subr.mxu0 0.0
    %4247 = vmatpush1.xpose.msra.mxu0 0.0
    %4248 = vmatprep.subr.mxu0 0.0
    %4249 = vmatpush1.xpose.msra.mxu0 0.0
    %4250 = vmatprep.subr.mxu0 0.0
    %4251 = vmatpush1.xpose.msra.mxu0 0.0
    %4252 = vmatprep.subr.mxu0 0.0
    %4253 = vmatpush1.xpose.msra.mxu0 0.0
    %4254 = vmatprep.subr.mxu0 0.0
    %4255 = vmatpush1.xpose.msra.mxu0 0.0
    %4256 = vmatprep.subr.mxu0 0.0
    %4257 = vmatpush1.xpose.msra.mxu0 0.0
    %4258 = vmatprep.subr.mxu0 0.0
    %4259 = vmatpush1.xpose.msra.mxu0 0.0
    %4260 = vmatprep.subr.mxu0 0.0
    %4261 = vmatpush1.xpose.msra.mxu0 0.0
    %4262 = vmatprep.subr.mxu0 0.0
    %4263 = vmatpush1.xpose.msra.mxu0 0.0
    %4264 = vmatprep.subr.mxu0 0.0
    %4265 = vmatpush1.xpose.msra.mxu0 0.0
    %4266 = vmatprep.subr.mxu0 0.0
    %4267 = vmatpush1.xpose.msra.mxu0 0.0
    %4268 = vmatprep.subr.mxu0 0.0
    %4269 = vmatpush1.xpose.msra.mxu0 0.0
    %4270 = vmatprep.subr.mxu0 0.0
    %4271 = vmatpush1.xpose.msra.mxu0 0.0
    %4272 = vmatprep.subr.mxu0 0.0
    %4273 = vmatpush1.xpose.msra.mxu0 0.0
    %4274 = vmatprep.subr.mxu0 0.0
    %4275 = vmatpush1.xpose.msra.mxu0 0.0
    %4276 = vmatprep.subr.mxu0 0.0
    %4277 = vmatpush1.xpose.msra.mxu0 0.0
    %4278 = vmatprep.mubr.f32.mxu0 0.0
    %4279 = vmatmul.mubr.f32.gmra.mrb[0].mxu0 %v4210
    %v4280 = vpop.f32.mrb[0].mxu0
    %v4281 = vadd.f32 0.0, %v4280
    %v4282 = vpop.f32.mrb[0].mxu0
    %4283 = vdwg.mxu0
    %v4284 = vsel %vm269, %v4025, 0
    %v4286 = vsel %vm269, %v4039, 0
    %4288 = vmatprep.subr.mxu0 0.0
    %4289 = vmatpush1.xpose.msra.mxu0 %v4286
    %4290 = vmatprep.subr.mxu0 0.0
    %4291 = vmatpush1.xpose.msra.mxu0 0.0
    %4292 = vmatprep.subr.mxu0 0.0
    %4293 = vmatpush1.xpose.msra.mxu0 0.0
    %4294 = vmatprep.subr.mxu0 0.0
    %4295 = vmatpush1.xpose.msra.mxu0 0.0
    %4296 = vmatprep.subr.mxu0 0.0
    %4297 = vmatpush1.xpose.msra.mxu0 0.0
    %4298 = vmatprep.subr.mxu0 0.0
    %4299 = vmatpush1.xpose.msra.mxu0 0.0
    %4300 = vmatprep.subr.mxu0 0.0
    %4301 = vmatpush1.xpose.msra.mxu0 0.0
    %4302 = vmatprep.subr.mxu0 0.0
    %4303 = vmatpush1.xpose.msra.mxu0 0.0
    %4304 = vmatprep.subr.mxu0 0.0
    %4305 = vmatpush1.xpose.msra.mxu0 0.0
    %4306 = vmatprep.subr.mxu0 0.0
    %4307 = vmatpush1.xpose.msra.mxu0 0.0
    %4308 = vmatprep.subr.mxu0 0.0
    %4309 = vmatpush1.xpose.msra.mxu0 0.0
    %4310 = vmatprep.subr.mxu0 0.0
    %4311 = vmatpush1.xpose.msra.mxu0 0.0
    %4312 = vmatprep.subr.mxu0 0.0
    %4313 = vmatpush1.xpose.msra.mxu0 0.0
    %4314 = vmatprep.subr.mxu0 0.0
    %4315 = vmatpush1.xpose.msra.mxu0 0.0
    %4316 = vmatprep.subr.mxu0 0.0
    %4317 = vmatpush1.xpose.msra.mxu0 0.0
    %4318 = vmatprep.subr.mxu0 0.0
    %4319 = vmatpush1.xpose.msra.mxu0 0.0
    %4320 = vmatprep.subr.mxu0 0.0
    %4321 = vmatpush1.xpose.msra.mxu0 0.0
    %4322 = vmatprep.subr.mxu0 0.0
    %4323 = vmatpush1.xpose.msra.mxu0 0.0
    %4324 = vmatprep.subr.mxu0 0.0
    %4325 = vmatpush1.xpose.msra.mxu0 0.0
    %4326 = vmatprep.subr.mxu0 0.0
    %4327 = vmatpush1.xpose.msra.mxu0 0.0
    %4328 = vmatprep.subr.mxu0 0.0
    %4329 = vmatpush1.xpose.msra.mxu0 0.0
    %4330 = vmatprep.subr.mxu0 0.0
    %4331 = vmatpush1.xpose.msra.mxu0 0.0
    %4332 = vmatprep.subr.mxu0 0.0
    %4333 = vmatpush1.xpose.msra.mxu0 0.0
    %4334 = vmatprep.subr.mxu0 0.0
    %4335 = vmatpush1.xpose.msra.mxu0 0.0
    %4336 = vmatprep.subr.mxu0 0.0
    %4337 = vmatpush1.xpose.msra.mxu0 0.0
    %4338 = vmatprep.subr.mxu0 0.0
    %4339 = vmatpush1.xpose.msra.mxu0 0.0
    %4340 = vmatprep.subr.mxu0 0.0
    %4341 = vmatpush1.xpose.msra.mxu0 0.0
    %4342 = vmatprep.subr.mxu0 0.0
    %4343 = vmatpush1.xpose.msra.mxu0 0.0
    %4344 = vmatprep.subr.mxu0 0.0
    %4345 = vmatpush1.xpose.msra.mxu0 0.0
    %4346 = vmatprep.subr.mxu0 0.0
    %4347 = vmatpush1.xpose.msra.mxu0 0.0
    %4348 = vmatprep.subr.mxu0 0.0
    %4349 = vmatpush1.xpose.msra.mxu0 0.0
    %4350 = vmatprep.subr.mxu0 0.0
    %4351 = vmatpush1.xpose.msra.mxu0 0.0
    %4352 = vmatprep.mubr.f32.mxu0 0.0
    %4353 = vmatmul.mubr.f32.gmra.mrb[0].mxu0 %v4284
    %v4354 = vpop.f32.mrb[0].mxu0
    %v4355 = vadd.f32 0.0, %v4354
    %v4356 = vpop.f32.mrb[0].mxu0
    %4357 = vdwg.mxu0
    %v4358 = vsel %vm269, %v4007, 0
    %v4360 = vsel %vm269, %v4010, 0
    %4362 = vmatprep.subr.mxu0 0.0
    %4363 = vmatpush1.xpose.msra.mxu0 %v4360
    %4364 = vmatprep.subr.mxu0 0.0
    %4365 = vmatpush1.xpose.msra.mxu0 0.0
    %4366 = vmatprep.subr.mxu0 0.0
    %4367 = vmatpush1.xpose.msra.mxu0 0.0
    %4368 = vmatprep.subr.mxu0 0.0
    %4369 = vmatpush1.xpose.msra.mxu0 0.0
    %4370 = vmatprep.subr.mxu0 0.0
    %4371 = vmatpush1.xpose.msra.mxu0 0.0
    %4372 = vmatprep.subr.mxu0 0.0
    %4373 = vmatpush1.xpose.msra.mxu0 0.0
    %4374 = vmatprep.subr.mxu0 0.0
    %4375 = vmatpush1.xpose.msra.mxu0 0.0
    %4376 = vmatprep.subr.mxu0 0.0
    %4377 = vmatpush1.xpose.msra.mxu0 0.0
    %4378 = vmatprep.subr.mxu0 0.0
    %4379 = vmatpush1.xpose.msra.mxu0 0.0
    %4380 = vmatprep.subr.mxu0 0.0
    %4381 = vmatpush1.xpose.msra.mxu0 0.0
    %4382 = vmatprep.subr.mxu0 0.0
    %4383 = vmatpush1.xpose.msra.mxu0 0.0
    %4384 = vmatprep.subr.mxu0 0.0
    %4385 = vmatpush1.xpose.msra.mxu0 0.0
    %4386 = vmatprep.subr.mxu0 0.0
    %4387 = vmatpush1.xpose.msra.mxu0 0.0
    %4388 = vmatprep.subr.mxu0 0.0
    %4389 = vmatpush1.xpose.msra.mxu0 0.0
    %4390 = vmatprep.subr.mxu0 0.0
    %4391 = vmatpush1.xpose.msra.mxu0 0.0
    %4392 = vmatprep.subr.mxu0 0.0
    %4393 = vmatpush1.xpose.msra.mxu0 0.0
    %4394 = vmatprep.subr.mxu0 0.0
    %4395 = vmatpush1.xpose.msra.mxu0 0.0
    %4396 = vmatprep.subr.mxu0 0.0
    %4397 = vmatpush1.xpose.msra.mxu0 0.0
    %4398 = vmatprep.subr.mxu0 0.0
    %4399 = vmatpush1.xpose.msra.mxu0 0.0
    %4400 = vmatprep.subr.mxu0 0.0
    %4401 = vmatpush1.xpose.msra.mxu0 0.0
    %4402 = vmatprep.subr.mxu0 0.0
    %4403 = vmatpush1.xpose.msra.mxu0 0.0
    %4404 = vmatprep.subr.mxu0 0.0
    %4405 = vmatpush1.xpose.msra.mxu0 0.0
    %4406 = vmatprep.subr.mxu0 0.0
    %4407 = vmatpush1.xpose.msra.mxu0 0.0
    %4408 = vmatprep.subr.mxu0 0.0
    %4409 = vmatpush1.xpose.msra.mxu0 0.0
    %4410 = vmatprep.subr.mxu0 0.0
    %4411 = vmatpush1.xpose.msra.mxu0 0.0
    %4412 = vmatprep.subr.mxu0 0.0
    %4413 = vmatpush1.xpose.msra.mxu0 0.0
    %4414 = vmatprep.subr.mxu0 0.0
    %4415 = vmatpush1.xpose.msra.mxu0 0.0
    %4416 = vmatprep.subr.mxu0 0.0
    %4417 = vmatpush1.xpose.msra.mxu0 0.0
    %4418 = vmatprep.subr.mxu0 0.0
    %4419 = vmatpush1.xpose.msra.mxu0 0.0
    %4420 = vmatprep.subr.mxu0 0.0
    %4421 = vmatpush1.xpose.msra.mxu0 0.0
    %4422 = vmatprep.subr.mxu0 0.0
    %4423 = vmatpush1.xpose.msra.mxu0 0.0
    %4424 = vmatprep.subr.mxu0 0.0
    %4425 = vmatpush1.xpose.msra.mxu0 0.0
    %4426 = vmatprep.mubr.f32.mxu0 0.0
    %4427 = vmatmul.mubr.f32.gmra.mrb[0].mxu0 %v4358
    %v4428 = vpop.f32.mrb[0].mxu0
    %v4429 = vadd.f32 0.0, %v4428
    %v4430 = vpop.f32.mrb[0].mxu0
    %4431 = vdwg.mxu0
    %v4432 = vsel %vm269, %v4019, 0
    %v4434 = vsel %vm269, %v4033, 0
    %4436 = vmatprep.subr.mxu0 0.0
    %4437 = vmatpush1.xpose.msra.mxu0 %v4434
    %4438 = vmatprep.subr.mxu0 0.0
    %4439 = vmatpush1.xpose.msra.mxu0 0.0
    %4440 = vmatprep.subr.mxu0 0.0
    %4441 = vmatpush1.xpose.msra.mxu0 0.0
    %4442 = vmatprep.subr.mxu0 0.0
    %4443 = vmatpush1.xpose.msra.mxu0 0.0
    %4444 = vmatprep.subr.mxu0 0.0
    %4445 = vmatpush1.xpose.msra.mxu0 0.0
    %4446 = vmatprep.subr.mxu0 0.0
    %4447 = vmatpush1.xpose.msra.mxu0 0.0
    %4448 = vmatprep.subr.mxu0 0.0
    %4449 = vmatpush1.xpose.msra.mxu0 0.0
    %4450 = vmatprep.subr.mxu0 0.0
    %4451 = vmatpush1.xpose.msra.mxu0 0.0
    %4452 = vmatprep.subr.mxu0 0.0
    %4453 = vmatpush1.xpose.msra.mxu0 0.0
    %4454 = vmatprep.subr.mxu0 0.0
    %4455 = vmatpush1.xpose.msra.mxu0 0.0
    %4456 = vmatprep.subr.mxu0 0.0
    %4457 = vmatpush1.xpose.msra.mxu0 0.0
    %4458 = vmatprep.subr.mxu0 0.0
    %4459 = vmatpush1.xpose.msra.mxu0 0.0
    %4460 = vmatprep.subr.mxu0 0.0
    %4461 = vmatpush1.xpose.msra.mxu0 0.0
    %4462 = vmatprep.subr.mxu0 0.0
    %4463 = vmatpush1.xpose.msra.mxu0 0.0
    %4464 = vmatprep.subr.mxu0 0.0
    %4465 = vmatpush1.xpose.msra.mxu0 0.0
    %4466 = vmatprep.subr.mxu0 0.0
    %4467 = vmatpush1.xpose.msra.mxu0 0.0
    %4468 = vmatprep.subr.mxu0 0.0
    %4469 = vmatpush1.xpose.msra.mxu0 0.0
    %4470 = vmatprep.subr.mxu0 0.0
    %4471 = vmatpush1.xpose.msra.mxu0 0.0
    %4472 = vmatprep.subr.mxu0 0.0
    %4473 = vmatpush1.xpose.msra.mxu0 0.0
    %4474 = vmatprep.subr.mxu0 0.0
    %4475 = vmatpush1.xpose.msra.mxu0 0.0
    %4476 = vmatprep.subr.mxu0 0.0
    %4477 = vmatpush1.xpose.msra.mxu0 0.0
    %4478 = vmatprep.subr.mxu0 0.0
    %4479 = vmatpush1.xpose.msra.mxu0 0.0
    %4480 = vmatprep.subr.mxu0 0.0
    %4481 = vmatpush1.xpose.msra.mxu0 0.0
    %4482 = vmatprep.subr.mxu0 0.0
    %4483 = vmatpush1.xpose.msra.mxu0 0.0
    %4484 = vmatprep.subr.mxu0 0.0
    %4485 = vmatpush1.xpose.msra.mxu0 0.0
    %4486 = vmatprep.subr.mxu0 0.0
    %4487 = vmatpush1.xpose.msra.mxu0 0.0
    %4488 = vmatprep.subr.mxu0 0.0
    %4489 = vmatpush1.xpose.msra.mxu0 0.0
    %4490 = vmatprep.subr.mxu0 0.0
    %4491 = vmatpush1.xpose.msra.mxu0 0.0
    %4492 = vmatprep.subr.mxu0 0.0
    %4493 = vmatpush1.xpose.msra.mxu0 0.0
    %4494 = vmatprep.subr.mxu0 0.0
    %4495 = vmatpush1.xpose.msra.mxu0 0.0
    %4496 = vmatprep.subr.mxu0 0.0
    %4497 = vmatpush1.xpose.msra.mxu0 0.0
    %4498 = vmatprep.subr.mxu0 0.0
    %4499 = vmatpush1.xpose.msra.mxu0 0.0
    %4500 = vmatprep.mubr.f32.mxu0 0.0
    %4501 = vmatmul.mubr.f32.gmra.mrb[0].mxu0 %v4432
    %v4502 = vpop.f32.mrb[0].mxu0
    %v4503 = vadd.f32 0.0, %v4502
    %v4504 = vpop.f32.mrb[0].mxu0
    %4505 = vdwg.mxu0
    %v4506 = vsel %vm269, %v4023, 0
    %v4508 = vsel %vm269, %v4037, 0
    %4510 = vmatprep.subr.mxu0 0.0
    %4511 = vmatpush1.xpose.msra.mxu0 %v4508
    %4512 = vmatprep.subr.mxu0 0.0
    %4513 = vmatpush1.xpose.msra.mxu0 0.0
    %4514 = vmatprep.subr.mxu0 0.0
    %4515 = vmatpush1.xpose.msra.mxu0 0.0
    %4516 = vmatprep.subr.mxu0 0.0
    %4517 = vmatpush1.xpose.msra.mxu0 0.0
    %4518 = vmatprep.subr.mxu0 0.0
    %4519 = vmatpush1.xpose.msra.mxu0 0.0
    %4520 = vmatprep.subr.mxu0 0.0
    %4521 = vmatpush1.xpose.msra.mxu0 0.0
    %4522 = vmatprep.subr.mxu0 0.0
    %4523 = vmatpush1.xpose.msra.mxu0 0.0
    %4524 = vmatprep.subr.mxu0 0.0
    %4525 = vmatpush1.xpose.msra.mxu0 0.0
    %4526 = vmatprep.subr.mxu0 0.0
    %4527 = vmatpush1.xpose.msra.mxu0 0.0
    %4528 = vmatprep.subr.mxu0 0.0
    %4529 = vmatpush1.xpose.msra.mxu0 0.0
    %4530 = vmatprep.subr.mxu0 0.0
    %4531 = vmatpush1.xpose.msra.mxu0 0.0
    %4532 = vmatprep.subr.mxu0 0.0
    %4533 = vmatpush1.xpose.msra.mxu0 0.0
    %4534 = vmatprep.subr.mxu0 0.0
    %4535 = vmatpush1.xpose.msra.mxu0 0.0
    %4536 = vmatprep.subr.mxu0 0.0
    %4537 = vmatpush1.xpose.msra.mxu0 0.0
    %4538 = vmatprep.subr.mxu0 0.0
    %4539 = vmatpush1.xpose.msra.mxu0 0.0
    %4540 = vmatprep.subr.mxu0 0.0
    %4541 = vmatpush1.xpose.msra.mxu0 0.0
    %4542 = vmatprep.subr.mxu0 0.0
    %4543 = vmatpush1.xpose.msra.mxu0 0.0
    %4544 = vmatprep.subr.mxu0 0.0
    %4545 = vmatpush1.xpose.msra.mxu0 0.0
    %4546 = vmatprep.subr.mxu0 0.0
    %4547 = vmatpush1.xpose.msra.mxu0 0.0
    %4548 = vmatprep.subr.mxu0 0.0
    %4549 = vmatpush1.xpose.msra.mxu0 0.0
    %4550 = vmatprep.subr.mxu0 0.0
    %4551 = vmatpush1.xpose.msra.mxu0 0.0
    %4552 = vmatprep.subr.mxu0 0.0
    %4553 = vmatpush1.xpose.msra.mxu0 0.0
    %4554 = vmatprep.subr.mxu0 0.0
    %4555 = vmatpush1.xpose.msra.mxu0 0.0
    %4556 = vmatprep.subr.mxu0 0.0
    %4557 = vmatpush1.xpose.msra.mxu0 0.0
    %4558 = vmatprep.subr.mxu0 0.0
    %4559 = vmatpush1.xpose.msra.mxu0 0.0
    %4560 = vmatprep.subr.mxu0 0.0
    %4561 = vmatpush1.xpose.msra.mxu0 0.0
    %4562 = vmatprep.subr.mxu0 0.0
    %4563 = vmatpush1.xpose.msra.mxu0 0.0
    %4564 = vmatprep.subr.mxu0 0.0
    %4565 = vmatpush1.xpose.msra.mxu0 0.0
    %4566 = vmatprep.subr.mxu0 0.0
    %4567 = vmatpush1.xpose.msra.mxu0 0.0
    %4568 = vmatprep.subr.mxu0 0.0
    %4569 = vmatpush1.xpose.msra.mxu0 0.0
    %4570 = vmatprep.subr.mxu0 0.0
    %4571 = vmatpush1.xpose.msra.mxu0 0.0
    %4572 = vmatprep.subr.mxu0 0.0
    %4573 = vmatpush1.xpose.msra.mxu0 0.0
    %4574 = vmatprep.mubr.f32.mxu0 0.0
    %4575 = vmatmul.mubr.f32.gmra.mrb[0].mxu0 %v4506
    %v4576 = vpop.f32.mrb[0].mxu0
    %v4577 = vadd.f32 0.0, %v4576
    %v4578 = vpop.f32.mrb[0].mxu0
    %4579 = vdwg.mxu0
    %v4580 = vsel %vm269, %v4027, 0
    %v4582 = vsel %vm269, %v4041, 0
    %4584 = vmatprep.subr.mxu0 0.0
    %4585 = vmatpush1.xpose.msra.mxu0 %v4582
    %4586 = vmatprep.subr.mxu0 0.0
    %4587 = vmatpush1.xpose.msra.mxu0 0.0
    %4588 = vmatprep.subr.mxu0 0.0
    %4589 = vmatpush1.xpose.msra.mxu0 0.0
    %4590 = vmatprep.subr.mxu0 0.0
    %4591 = vmatpush1.xpose.msra.mxu0 0.0
    %4592 = vmatprep.subr.mxu0 0.0
    %4593 = vmatpush1.xpose.msra.mxu0 0.0
    %4594 = vmatprep.subr.mxu0 0.0
    %4595 = vmatpush1.xpose.msra.mxu0 0.0
    %4596 = vmatprep.subr.mxu0 0.0
    %4597 = vmatpush1.xpose.msra.mxu0 0.0
    %4598 = vmatprep.subr.mxu0 0.0
    %4599 = vmatpush1.xpose.msra.mxu0 0.0
    %4600 = vmatprep.subr.mxu0 0.0
    %4601 = vmatpush1.xpose.msra.mxu0 0.0
    %4602 = vmatprep.subr.mxu0 0.0
    %4603 = vmatpush1.xpose.msra.mxu0 0.0
    %4604 = vmatprep.subr.mxu0 0.0
    %4605 = vmatpush1.xpose.msra.mxu0 0.0
    %4606 = vmatprep.subr.mxu0 0.0
    %4607 = vmatpush1.xpose.msra.mxu0 0.0
    %4608 = vmatprep.subr.mxu0 0.0
    %4609 = vmatpush1.xpose.msra.mxu0 0.0
    %4610 = vmatprep.subr.mxu0 0.0
    %4611 = vmatpush1.xpose.msra.mxu0 0.0
    %4612 = vmatprep.subr.mxu0 0.0
    %4613 = vmatpush1.xpose.msra.mxu0 0.0
    %4614 = vmatprep.subr.mxu0 0.0
    %4615 = vmatpush1.xpose.msra.mxu0 0.0
    %4616 = vmatprep.subr.mxu0 0.0
    %4617 = vmatpush1.xpose.msra.mxu0 0.0
    %4618 = vmatprep.subr.mxu0 0.0
    %4619 = vmatpush1.xpose.msra.mxu0 0.0
    %4620 = vmatprep.subr.mxu0 0.0
    %4621 = vmatpush1.xpose.msra.mxu0 0.0
    %4622 = vmatprep.subr.mxu0 0.0
    %4623 = vmatpush1.xpose.msra.mxu0 0.0
    %4624 = vmatprep.subr.mxu0 0.0
    %4625 = vmatpush1.xpose.msra.mxu0 0.0
    %4626 = vmatprep.subr.mxu0 0.0
    %4627 = vmatpush1.xpose.msra.mxu0 0.0
    %4628 = vmatprep.subr.mxu0 0.0
    %4629 = vmatpush1.xpose.msra.mxu0 0.0
    %4630 = vmatprep.subr.mxu0 0.0
    %4631 = vmatpush1.xpose.msra.mxu0 0.0
    %4632 = vmatprep.subr.mxu0 0.0
    %4633 = vmatpush1.xpose.msra.mxu0 0.0
    %4634 = vmatprep.subr.mxu0 0.0
    %4635 = vmatpush1.xpose.msra.mxu0 0.0
    %4636 = vmatprep.subr.mxu0 0.0
    %4637 = vmatpush1.xpose.msra.mxu0 0.0
    %4638 = vmatprep.subr.mxu0 0.0
    %4639 = vmatpush1.xpose.msra.mxu0 0.0
    %4640 = vmatprep.subr.mxu0 0.0
    %4641 = vmatpush1.xpose.msra.mxu0 0.0
    %4642 = vmatprep.subr.mxu0 0.0
    %4643 = vmatpush1.xpose.msra.mxu0 0.0
    %4644 = vmatprep.subr.mxu0 0.0
    %4645 = vmatpush1.xpose.msra.mxu0 0.0
    %4646 = vmatprep.subr.mxu0 0.0
    %4647 = vmatpush1.xpose.msra.mxu0 0.0
    %4648 = vmatprep.mubr.f32.mxu0 0.0
    %4649 = vmatmul.mubr.f32.gmra.mrb[0].mxu0 %v4580
    %v4650 = vpop.f32.mrb[0].mxu0
    %v4651 = vadd.f32 0.0, %v4650
    %v4652 = vpop.f32.mrb[0].mxu0
    %4653 = vdwg.mxu0
    %v4654 = vmul.f32 %v4133, 0.35355338
    %v4655 = vmul.f32 %v4207, 0.35355338
    %v4656 = vmul.f32 %v4281, 0.35355338
    %v4657 = vmul.f32 %v4355, 0.35355338
    %v4658 = vmul.f32 %v4429, 0.35355338
    %v4659 = vmul.f32 %v4503, 0.35355338
    %v4660 = vmul.f32 %v4577, 0.35355338
    %v4661 = vmul.f32 %v4651, 0.35355338
    %v4662 = vadd.f32 %v4654, %v33
    %v4663 = vadd.f32 %v4655, %v34
    %v4664 = vadd.f32 %v4656, %v35
    %v4665 = vadd.f32 %v4657, %v36
    %v4666 = vadd.f32 %v4658, %v37
    %v4667 = vadd.f32 %v4659, %v38
    %v4668 = vadd.f32 %v4660, %v39
    %v4669 = vadd.f32 %v4661, %v40
    %v4670 = vsel %vm269, %v4662, -inf
    %4671 = vmax.xlane.f32.xlu0 %v4670
    %v4672 = vpop.xlane.xlu0 %4671
    %v4673 = vsel %vm269, %v4663, -inf
    %4674 = vmax.xlane.f32.xlu0 %v4673
    %v4675 = vpop.xlane.xlu0 %4674
    %v4676 = vsel %vm269, %v4664, -inf
    %4677 = vmax.xlane.f32.xlu0 %v4676
    %v4678 = vpop.xlane.xlu0 %4677
    %v4679 = vsel %vm269, %v4665, -inf
    %4680 = vmax.xlane.f32.xlu0 %v4679
    %v4681 = vpop.xlane.xlu0 %4680
    %v4682 = vsel %vm269, %v4666, -inf
    %4683 = vmax.xlane.f32.xlu0 %v4682
    %v4684 = vpop.xlane.xlu0 %4683
    %v4685 = vsel %vm269, %v4667, -inf
    %4686 = vmax.xlane.f32.xlu0 %v4685
    %v4687 = vpop.xlane.xlu0 %4686
    %v4688 = vsel %vm269, %v4668, -inf
    %4689 = vmax.xlane.f32.xlu0 %v4688
    %v4690 = vpop.xlane.xlu0 %4689
    %v4691 = vsel %vm269, %v4669, -inf
    %4692 = vmax.xlane.f32.xlu0 %v4691
    %v4693 = vpop.xlane.xlu0 %4692
    %v4694 = vsub.f32 %v4662, %v4672
    %v4695 = vsub.f32 %v4663, %v4675
    %v4696 = vsub.f32 %v4664, %v4678
    %v4697 = vsub.f32 %v4665, %v4681
    %v4698 = vsub.f32 %v4666, %v4684
    %v4699 = vsub.f32 %v4667, %v4687
    %v4700 = vsub.f32 %v4668, %v4690
    %v4701 = vsub.f32 %v4669, %v4693
    %v4702 = vmul.f32 %v4694, 1.442695
    %v4703 = vpow.pop %v4702
    %v4704 = vmul.f32 %v4695, 1.442695
    %v4705 = vpow.pop %v4704
    %v4706 = vmul.f32 %v4696, 1.442695
    %v4707 = vpow.pop %v4706
    %v4708 = vmul.f32 %v4697, 1.442695
    %v4709 = vpow.pop %v4708
    %v4710 = vmul.f32 %v4698, 1.442695
    %v4711 = vpow.pop %v4710
    %v4712 = vmul.f32 %v4699, 1.442695
    %v4713 = vpow.pop %v4712
    %v4714 = vmul.f32 %v4700, 1.442695
    %v4715 = vpow.pop %v4714
    %v4716 = vmul.f32 %v4701, 1.442695
    %v4717 = vpow.pop %v4716
    %v4718 = vsel %vm269, %v4703, 0.0
    %4719 = vadd.xlane.f32.xlu0 %v4718
    %v4720 = vpop.xlane.xlu0 %4719
    %v4721 = vsel %vm269, %v4705, 0.0
    %4722 = vadd.xlane.f32.xlu0 %v4721
    %v4723 = vpop.xlane.xlu0 %4722
    %v4724 = vsel %vm269, %v4707, 0.0
    %4725 = vadd.xlane.f32.xlu0 %v4724
    %v4726 = vpop.xlane.xlu0 %4725
    %v4727 = vsel %vm269, %v4709, 0.0
    %4728 = vadd.xlane.f32.xlu0 %v4727
    %v4729 = vpop.xlane.xlu0 %4728
    %v4730 = vsel %vm269, %v4711, 0.0
    %4731 = vadd.xlane.f32.xlu0 %v4730
    %v4732 = vpop.xlane.xlu0 %4731
    %v4733 = vsel %vm269, %v4713, 0.0
    %4734 = vadd.xlane.f32.xlu0 %v4733
    %v4735 = vpop.xlane.xlu0 %4734
    %v4736 = vsel %vm269, %v4715, 0.0
    %4737 = vadd.xlane.f32.xlu0 %v4736
    %v4738 = vpop.xlane.xlu0 %4737
    %v4739 = vsel %vm269, %v4717, 0.0
    %4740 = vadd.xlane.f32.xlu0 %v4739
    %v4741 = vpop.xlane.xlu0 %4740
    %v4742 = vrcp.pop %v4720
    %v4743 = vrcp.pop %v4723
    %v4744 = vrcp.pop %v4726
    %v4745 = vrcp.pop %v4729
    %v4746 = vrcp.pop %v4732
    %v4747 = vrcp.pop %v4735
    %v4748 = vrcp.pop %v4738
    %v4749 = vrcp.pop %v4741
    %v4750 = vmul.f32 %v4703, %v4742
    %v4751 = vmul.f32 %v4705, %v4743
    %v4752 = vmul.f32 %v4707, %v4744
    %v4753 = vmul.f32 %v4709, %v4745
    %v4754 = vmul.f32 %v4711, %v4746
    %v4755 = vmul.f32 %v4713, %v4747
    %v4756 = vmul.f32 %v4715, %v4748
    %v4757 = vmul.f32 %v4717, %v4749
    %v4759 = vsel %vm269, %v4750, 0
    %4761 = vmatprep.subr.mxu0 0.0
    %4762 = vmatpush1.msra.mxu0 %v4012
    %4763 = vmatprep.subr.mxu0 0.0
    %4764 = vmatpush1.msra.mxu0 0.0
    %4765 = vmatprep.subr.mxu0 0.0
    %4766 = vmatpush1.msra.mxu0 0.0
    %4767 = vmatprep.subr.mxu0 0.0
    %4768 = vmatpush1.msra.mxu0 0.0
    %4769 = vmatprep.subr.mxu0 0.0
    %4770 = vmatpush1.msra.mxu0 0.0
    %4771 = vmatprep.subr.mxu0 0.0
    %4772 = vmatpush1.msra.mxu0 0.0
    %4773 = vmatprep.subr.mxu0 0.0
    %4774 = vmatpush1.msra.mxu0 0.0
    %4775 = vmatprep.subr.mxu0 0.0
    %4776 = vmatpush1.msra.mxu0 0.0
    %4777 = vmatprep.subr.mxu0 0.0
    %4778 = vmatpush1.msra.mxu0 0.0
    %4779 = vmatprep.subr.mxu0 0.0
    %4780 = vmatpush1.msra.mxu0 0.0
    %4781 = vmatprep.subr.mxu0 0.0
    %4782 = vmatpush1.msra.mxu0 0.0
    %4783 = vmatprep.subr.mxu0 0.0
    %4784 = vmatpush1.msra.mxu0 0.0
    %4785 = vmatprep.subr.mxu0 0.0
    %4786 = vmatpush1.msra.mxu0 0.0
    %4787 = vmatprep.subr.mxu0 0.0
    %4788 = vmatpush1.msra.mxu0 0.0
    %4789 = vmatprep.subr.mxu0 0.0
    %4790 = vmatpush1.msra.mxu0 0.0
    %4791 = vmatprep.subr.mxu0 0.0
    %4792 = vmatpush1.msra.mxu0 0.0
    %4793 = vmatprep.subr.mxu0 0.0
    %4794 = vmatpush1.msra.mxu0 0.0
    %4795 = vmatprep.subr.mxu0 0.0
    %4796 = vmatpush1.msra.mxu0 0.0
    %4797 = vmatprep.subr.mxu0 0.0
    %4798 = vmatpush1.msra.mxu0 0.0
    %4799 = vmatprep.subr.mxu0 0.0
    %4800 = vmatpush1.msra.mxu0 0.0
    %4801 = vmatprep.subr.mxu0 0.0
    %4802 = vmatpush1.msra.mxu0 0.0
    %4803 = vmatprep.subr.mxu0 0.0
    %4804 = vmatpush1.msra.mxu0 0.0
    %4805 = vmatprep.subr.mxu0 0.0
    %4806 = vmatpush1.msra.mxu0 0.0
    %4807 = vmatprep.subr.mxu0 0.0
    %4808 = vmatpush1.msra.mxu0 0.0
    %4809 = vmatprep.subr.mxu0 0.0
    %4810 = vmatpush1.msra.mxu0 0.0
    %4811 = vmatprep.subr.mxu0 0.0
    %4812 = vmatpush1.msra.mxu0 0.0
    %4813 = vmatprep.subr.mxu0 0.0
    %4814 = vmatpush1.msra.mxu0 0.0
    %4815 = vmatprep.subr.mxu0 0.0
    %4816 = vmatpush1.msra.mxu0 0.0
    %4817 = vmatprep.subr.mxu0 0.0
    %4818 = vmatpush1.msra.mxu0 0.0
    %4819 = vmatprep.subr.mxu0 0.0
    %4820 = vmatpush1.msra.mxu0 0.0
    %4821 = vmatprep.subr.mxu0 0.0
    %4822 = vmatpush1.msra.mxu0 0.0
    %4823 = vmatprep.subr.mxu0 0.0
    %4824 = vmatpush1.msra.mxu0 0.0
    %4825 = vmatprep.mubr.f32.mxu0 0.0
    %4826 = vmatmul.mubr.f32.gmra.mrb[0].mxu0 %v4759
    %v4827 = vpop.f32.mrb[0].mxu0
    %v4828 = vadd.f32 0.0, %v4827
    %v4829 = vpop.f32.mrb[0].mxu0
    %4830 = vdwg.mxu0
    %v4832 = vsel %vm269, %v4751, 0
    %4834 = vmatprep.subr.mxu0 0.0
    %4835 = vmatpush1.msra.mxu0 %v4045
    %4836 = vmatprep.subr.mxu0 0.0
    %4837 = vmatpush1.msra.mxu0 0.0
    %4838 = vmatprep.subr.mxu0 0.0
    %4839 = vmatpush1.msra.mxu0 0.0
    %4840 = vmatprep.subr.mxu0 0.0
    %4841 = vmatpush1.msra.mxu0 0.0
    %4842 = vmatprep.subr.mxu0 0.0
    %4843 = vmatpush1.msra.mxu0 0.0
    %4844 = vmatprep.subr.mxu0 0.0
    %4845 = vmatpush1.msra.mxu0 0.0
    %4846 = vmatprep.subr.mxu0 0.0
    %4847 = vmatpush1.msra.mxu0 0.0
    %4848 = vmatprep.subr.mxu0 0.0
    %4849 = vmatpush1.msra.mxu0 0.0
    %4850 = vmatprep.subr.mxu0 0.0
    %4851 = vmatpush1.msra.mxu0 0.0
    %4852 = vmatprep.subr.mxu0 0.0
    %4853 = vmatpush1.msra.mxu0 0.0
    %4854 = vmatprep.subr.mxu0 0.0
    %4855 = vmatpush1.msra.mxu0 0.0
    %4856 = vmatprep.subr.mxu0 0.0
    %4857 = vmatpush1.msra.mxu0 0.0
    %4858 = vmatprep.subr.mxu0 0.0
    %4859 = vmatpush1.msra.mxu0 0.0
    %4860 = vmatprep.subr.mxu0 0.0
    %4861 = vmatpush1.msra.mxu0 0.0
    %4862 = vmatprep.subr.mxu0 0.0
    %4863 = vmatpush1.msra.mxu0 0.0
    %4864 = vmatprep.subr.mxu0 0.0
    %4865 = vmatpush1.msra.mxu0 0.0
    %4866 = vmatprep.subr.mxu0 0.0
    %4867 = vmatpush1.msra.mxu0 0.0
    %4868 = vmatprep.subr.mxu0 0.0
    %4869 = vmatpush1.msra.mxu0 0.0
    %4870 = vmatprep.subr.mxu0 0.0
    %4871 = vmatpush1.msra.mxu0 0.0
    %4872 = vmatprep.subr.mxu0 0.0
    %4873 = vmatpush1.msra.mxu0 0.0
    %4874 = vmatprep.subr.mxu0 0.0
    %4875 = vmatpush1.msra.mxu0 0.0
    %4876 = vmatprep.subr.mxu0 0.0
    %4877 = vmatpush1.msra.mxu0 0.0
    %4878 = vmatprep.subr.mxu0 0.0
    %4879 = vmatpush1.msra.mxu0 0.0
    %4880 = vmatprep.subr.mxu0 0.0
    %4881 = vmatpush1.msra.mxu0 0.0
    %4882 = vmatprep.subr.mxu0 0.0
    %4883 = vmatpush1.msra.mxu0 0.0
    %4884 = vmatprep.subr.mxu0 0.0
    %4885 = vmatpush1.msra.mxu0 0.0
    %4886 = vmatprep.subr.mxu0 0.0
    %4887 = vmatpush1.msra.mxu0 0.0
    %4888 = vmatprep.subr.mxu0 0.0
    %4889 = vmatpush1.msra.mxu0 0.0
    %4890 = vmatprep.subr.mxu0 0.0
    %4891 = vmatpush1.msra.mxu0 0.0
    %4892 = vmatprep.subr.mxu0 0.0
    %4893 = vmatpush1.msra.mxu0 0.0
    %4894 = vmatprep.subr.mxu0 0.0
    %4895 = vmatpush1.msra.mxu0 0.0
    %4896 = vmatprep.subr.mxu0 0.0
    %4897 = vmatpush1.msra.mxu0 0.0
    %4898 = vmatprep.mubr.f32.mxu0 0.0
    %4899 = vmatmul.mubr.f32.gmra.mrb[0].mxu0 %v4832
    %v4900 = vpop.f32.mrb[0].mxu0
    %v4901 = vadd.f32 0.0, %v4900
    %v4902 = vpop.f32.mrb[0].mxu0
    %4903 = vdwg.mxu0
    %v4905 = vsel %vm269, %v4752, 0
    %4907 = vmatprep.subr.mxu0 0.0
    %4908 = vmatpush1.msra.mxu0 %v4051
    %4909 = vmatprep.subr.mxu0 0.0
    %4910 = vmatpush1.msra.mxu0 0.0
    %4911 = vmatprep.subr.mxu0 0.0
    %4912 = vmatpush1.msra.mxu0 0.0
    %4913 = vmatprep.subr.mxu0 0.0
    %4914 = vmatpush1.msra.mxu0 0.0
    %4915 = vmatprep.subr.mxu0 0.0
    %4916 = vmatpush1.msra.mxu0 0.0
    %4917 = vmatprep.subr.mxu0 0.0
    %4918 = vmatpush1.msra.mxu0 0.0
    %4919 = vmatprep.subr.mxu0 0.0
    %4920 = vmatpush1.msra.mxu0 0.0
    %4921 = vmatprep.subr.mxu0 0.0
    %4922 = vmatpush1.msra.mxu0 0.0
    %4923 = vmatprep.subr.mxu0 0.0
    %4924 = vmatpush1.msra.mxu0 0.0
    %4925 = vmatprep.subr.mxu0 0.0
    %4926 = vmatpush1.msra.mxu0 0.0
    %4927 = vmatprep.subr.mxu0 0.0
    %4928 = vmatpush1.msra.mxu0 0.0
    %4929 = vmatprep.subr.mxu0 0.0
    %4930 = vmatpush1.msra.mxu0 0.0
    %4931 = vmatprep.subr.mxu0 0.0
    %4932 = vmatpush1.msra.mxu0 0.0
    %4933 = vmatprep.subr.mxu0 0.0
    %4934 = vmatpush1.msra.mxu0 0.0
    %4935 = vmatprep.subr.mxu0 0.0
    %4936 = vmatpush1.msra.mxu0 0.0
    %4937 = vmatprep.subr.mxu0 0.0
    %4938 = vmatpush1.msra.mxu0 0.0
    %4939 = vmatprep.subr.mxu0 0.0
    %4940 = vmatpush1.msra.mxu0 0.0
    %4941 = vmatprep.subr.mxu0 0.0
    %4942 = vmatpush1.msra.mxu0 0.0
    %4943 = vmatprep.subr.mxu0 0.0
    %4944 = vmatpush1.msra.mxu0 0.0
    %4945 = vmatprep.subr.mxu0 0.0
    %4946 = vmatpush1.msra.mxu0 0.0
    %4947 = vmatprep.subr.mxu0 0.0
    %4948 = vmatpush1.msra.mxu0 0.0
    %4949 = vmatprep.subr.mxu0 0.0
    %4950 = vmatpush1.msra.mxu0 0.0
    %4951 = vmatprep.subr.mxu0 0.0
    %4952 = vmatpush1.msra.mxu0 0.0
    %4953 = vmatprep.subr.mxu0 0.0
    %4954 = vmatpush1.msra.mxu0 0.0
    %4955 = vmatprep.subr.mxu0 0.0
    %4956 = vmatpush1.msra.mxu0 0.0
    %4957 = vmatprep.subr.mxu0 0.0
    %4958 = vmatpush1.msra.mxu0 0.0
    %4959 = vmatprep.subr.mxu0 0.0
    %4960 = vmatpush1.msra.mxu0 0.0
    %4961 = vmatprep.subr.mxu0 0.0
    %4962 = vmatpush1.msra.mxu0 0.0
    %4963 = vmatprep.subr.mxu0 0.0
    %4964 = vmatpush1.msra.mxu0 0.0
    %4965 = vmatprep.subr.mxu0 0.0
    %4966 = vmatpush1.msra.mxu0 0.0
    %4967 = vmatprep.subr.mxu0 0.0
    %4968 = vmatpush1.msra.mxu0 0.0
    %4969 = vmatprep.subr.mxu0 0.0
    %4970 = vmatpush1.msra.mxu0 0.0
    %4971 = vmatprep.mubr.f32.mxu0 0.0
    %4972 = vmatmul.mubr.f32.gmra.mrb[0].mxu0 %v4905
    %v4973 = vpop.f32.mrb[0].mxu0
    %v4974 = vadd.f32 0.0, %v4973
    %v4975 = vpop.f32.mrb[0].mxu0
    %4976 = vdwg.mxu0
    %v4978 = vsel %vm269, %v4753, 0
    %4980 = vmatprep.subr.mxu0 0.0
    %4981 = vmatpush1.msra.mxu0 %v4057
    %4982 = vmatprep.subr.mxu0 0.0
    %4983 = vmatpush1.msra.mxu0 0.0
    %4984 = vmatprep.subr.mxu0 0.0
    %4985 = vmatpush1.msra.mxu0 0.0
    %4986 = vmatprep.subr.mxu0 0.0
    %4987 = vmatpush1.msra.mxu0 0.0
    %4988 = vmatprep.subr.mxu0 0.0
    %4989 = vmatpush1.msra.mxu0 0.0
    %4990 = vmatprep.subr.mxu0 0.0
    %4991 = vmatpush1.msra.mxu0 0.0
    %4992 = vmatprep.subr.mxu0 0.0
    %4993 = vmatpush1.msra.mxu0 0.0
    %4994 = vmatprep.subr.mxu0 0.0
    %4995 = vmatpush1.msra.mxu0 0.0
    %4996 = vmatprep.subr.mxu0 0.0
    %4997 = vmatpush1.msra.mxu0 0.0
    %4998 = vmatprep.subr.mxu0 0.0
    %4999 = vmatpush1.msra.mxu0 0.0
    %5000 = vmatprep.subr.mxu0 0.0
    %5001 = vmatpush1.msra.mxu0 0.0
    %5002 = vmatprep.subr.mxu0 0.0
    %5003 = vmatpush1.msra.mxu0 0.0
    %5004 = vmatprep.subr.mxu0 0.0
    %5005 = vmatpush1.msra.mxu0 0.0
    %5006 = vmatprep.subr.mxu0 0.0
    %5007 = vmatpush1.msra.mxu0 0.0
    %5008 = vmatprep.subr.mxu0 0.0
    %5009 = vmatpush1.msra.mxu0 0.0
    %5010 = vmatprep.subr.mxu0 0.0
    %5011 = vmatpush1.msra.mxu0 0.0
    %5012 = vmatprep.subr.mxu0 0.0
    %5013 = vmatpush1.msra.mxu0 0.0
    %5014 = vmatprep.subr.mxu0 0.0
    %5015 = vmatpush1.msra.mxu0 0.0
    %5016 = vmatprep.subr.mxu0 0.0
    %5017 = vmatpush1.msra.mxu0 0.0
    %5018 = vmatprep.subr.mxu0 0.0
    %5019 = vmatpush1.msra.mxu0 0.0
    %5020 = vmatprep.subr.mxu0 0.0
    %5021 = vmatpush1.msra.mxu0 0.0
    %5022 = vmatprep.subr.mxu0 0.0
    %5023 = vmatpush1.msra.mxu0 0.0
    %5024 = vmatprep.subr.mxu0 0.0
    %5025 = vmatpush1.msra.mxu0 0.0
    %5026 = vmatprep.subr.mxu0 0.0
    %5027 = vmatpush1.msra.mxu0 0.0
    %5028 = vmatprep.subr.mxu0 0.0
    %5029 = vmatpush1.msra.mxu0 0.0
    %5030 = vmatprep.subr.mxu0 0.0
    %5031 = vmatpush1.msra.mxu0 0.0
    %5032 = vmatprep.subr.mxu0 0.0
    %5033 = vmatpush1.msra.mxu0 0.0
    %5034 = vmatprep.subr.mxu0 0.0
    %5035 = vmatpush1.msra.mxu0 0.0
    %5036 = vmatprep.subr.mxu0 0.0
    %5037 = vmatpush1.msra.mxu0 0.0
    %5038 = vmatprep.subr.mxu0 0.0
    %5039 = vmatpush1.msra.mxu0 0.0
    %5040 = vmatprep.subr.mxu0 0.0
    %5041 = vmatpush1.msra.mxu0 0.0
    %5042 = vmatprep.subr.mxu0 0.0
    %5043 = vmatpush1.msra.mxu0 0.0
    %5044 = vmatprep.mubr.f32.mxu0 0.0
    %5045 = vmatmul.mubr.f32.gmra.mrb[0].mxu0 %v4978
    %v5046 = vpop.f32.mrb[0].mxu0
    %v5047 = vadd.f32 0.0, %v5046
    %v5048 = vpop.f32.mrb[0].mxu0
    %5049 = vdwg.mxu0
    %v5051 = vsel %vm269, %v4754, 0
    %5053 = vmatprep.subr.mxu0 0.0
    %5054 = vmatpush1.msra.mxu0 %v4013
    %5055 = vmatprep.subr.mxu0 0.0
    %5056 = vmatpush1.msra.mxu0 0.0
    %5057 = vmatprep.subr.mxu0 0.0
    %5058 = vmatpush1.msra.mxu0 0.0
    %5059 = vmatprep.subr.mxu0 0.0
    %5060 = vmatpush1.msra.mxu0 0.0
    %5061 = vmatprep.subr.mxu0 0.0
    %5062 = vmatpush1.msra.mxu0 0.0
    %5063 = vmatprep.subr.mxu0 0.0
    %5064 = vmatpush1.msra.mxu0 0.0
    %5065 = vmatprep.subr.mxu0 0.0
    %5066 = vmatpush1.msra.mxu0 0.0
    %5067 = vmatprep.subr.mxu0 0.0
    %5068 = vmatpush1.msra.mxu0 0.0
    %5069 = vmatprep.subr.mxu0 0.0
    %5070 = vmatpush1.msra.mxu0 0.0
    %5071 = vmatprep.subr.mxu0 0.0
    %5072 = vmatpush1.msra.mxu0 0.0
    %5073 = vmatprep.subr.mxu0 0.0
    %5074 = vmatpush1.msra.mxu0 0.0
    %5075 = vmatprep.subr.mxu0 0.0
    %5076 = vmatpush1.msra.mxu0 0.0
    %5077 = vmatprep.subr.mxu0 0.0
    %5078 = vmatpush1.msra.mxu0 0.0
    %5079 = vmatprep.subr.mxu0 0.0
    %5080 = vmatpush1.msra.mxu0 0.0
    %5081 = vmatprep.subr.mxu0 0.0
    %5082 = vmatpush1.msra.mxu0 0.0
    %5083 = vmatprep.subr.mxu0 0.0
    %5084 = vmatpush1.msra.mxu0 0.0
    %5085 = vmatprep.subr.mxu0 0.0
    %5086 = vmatpush1.msra.mxu0 0.0
    %5087 = vmatprep.subr.mxu0 0.0
    %5088 = vmatpush1.msra.mxu0 0.0
    %5089 = vmatprep.subr.mxu0 0.0
    %5090 = vmatpush1.msra.mxu0 0.0
    %5091 = vmatprep.subr.mxu0 0.0
    %5092 = vmatpush1.msra.mxu0 0.0
    %5093 = vmatprep.subr.mxu0 0.0
    %5094 = vmatpush1.msra.mxu0 0.0
    %5095 = vmatprep.subr.mxu0 0.0
    %5096 = vmatpush1.msra.mxu0 0.0
    %5097 = vmatprep.subr.mxu0 0.0
    %5098 = vmatpush1.msra.mxu0 0.0
    %5099 = vmatprep.subr.mxu0 0.0
    %5100 = vmatpush1.msra.mxu0 0.0
    %5101 = vmatprep.subr.mxu0 0.0
    %5102 = vmatpush1.msra.mxu0 0.0
    %5103 = vmatprep.subr.mxu0 0.0
    %5104 = vmatpush1.msra.mxu0 0.0
    %5105 = vmatprep.subr.mxu0 0.0
    %5106 = vmatpush1.msra.mxu0 0.0
    %5107 = vmatprep.subr.mxu0 0.0
    %5108 = vmatpush1.msra.mxu0 0.0
    %5109 = vmatprep.subr.mxu0 0.0
    %5110 = vmatpush1.msra.mxu0 0.0
    %5111 = vmatprep.subr.mxu0 0.0
    %5112 = vmatpush1.msra.mxu0 0.0
    %5113 = vmatprep.subr.mxu0 0.0
    %5114 = vmatpush1.msra.mxu0 0.0
    %5115 = vmatprep.subr.mxu0 0.0
    %5116 = vmatpush1.msra.mxu0 0.0
    %5117 = vmatprep.mubr.f32.mxu0 0.0
    %5118 = vmatmul.mubr.f32.gmra.mrb[0].mxu0 %v5051
    %v5119 = vpop.f32.mrb[0].mxu0
    %v5120 = vadd.f32 0.0, %v5119
    %v5121 = vpop.f32.mrb[0].mxu0
    %5122 = vdwg.mxu0
    %v5124 = vsel %vm269, %v4755, 0
    %5126 = vmatprep.subr.mxu0 0.0
    %5127 = vmatpush1.msra.mxu0 %v4047
    %5128 = vmatprep.subr.mxu0 0.0
    %5129 = vmatpush1.msra.mxu0 0.0
    %5130 = vmatprep.subr.mxu0 0.0
    %5131 = vmatpush1.msra.mxu0 0.0
    %5132 = vmatprep.subr.mxu0 0.0
    %5133 = vmatpush1.msra.mxu0 0.0
    %5134 = vmatprep.subr.mxu0 0.0
    %5135 = vmatpush1.msra.mxu0 0.0
    %5136 = vmatprep.subr.mxu0 0.0
    %5137 = vmatpush1.msra.mxu0 0.0
    %5138 = vmatprep.subr.mxu0 0.0
    %5139 = vmatpush1.msra.mxu0 0.0
    %5140 = vmatprep.subr.mxu0 0.0
    %5141 = vmatpush1.msra.mxu0 0.0
    %5142 = vmatprep.subr.mxu0 0.0
    %5143 = vmatpush1.msra.mxu0 0.0
    %5144 = vmatprep.subr.mxu0 0.0
    %5145 = vmatpush1.msra.mxu0 0.0
    %5146 = vmatprep.subr.mxu0 0.0
    %5147 = vmatpush1.msra.mxu0 0.0
    %5148 = vmatprep.subr.mxu0 0.0
    %5149 = vmatpush1.msra.mxu0 0.0
    %5150 = vmatprep.subr.mxu0 0.0
    %5151 = vmatpush1.msra.mxu0 0.0
    %5152 = vmatprep.subr.mxu0 0.0
    %5153 = vmatpush1.msra.mxu0 0.0
    %5154 = vmatprep.subr.mxu0 0.0
    %5155 = vmatpush1.msra.mxu0 0.0
    %5156 = vmatprep.subr.mxu0 0.0
    %5157 = vmatpush1.msra.mxu0 0.0
    %5158 = vmatprep.subr.mxu0 0.0
    %5159 = vmatpush1.msra.mxu0 0.0
    %5160 = vmatprep.subr.mxu0 0.0
    %5161 = vmatpush1.msra.mxu0 0.0
    %5162 = vmatprep.subr.mxu0 0.0
    %5163 = vmatpush1.msra.mxu0 0.0
    %5164 = vmatprep.subr.mxu0 0.0
    %5165 = vmatpush1.msra.mxu0 0.0
    %5166 = vmatprep.subr.mxu0 0.0
    %5167 = vmatpush1.msra.mxu0 0.0
    %5168 = vmatprep.subr.mxu0 0.0
    %5169 = vmatpush1.msra.mxu0 0.0
    %5170 = vmatprep.subr.mxu0 0.0
    %5171 = vmatpush1.msra.mxu0 0.0
    %5172 = vmatprep.subr.mxu0 0.0
    %5173 = vmatpush1.msra.mxu0 0.0
    %5174 = vmatprep.subr.mxu0 0.0
    %5175 = vmatpush1.msra.mxu0 0.0
    %5176 = vmatprep.subr.mxu0 0.0
    %5177 = vmatpush1.msra.mxu0 0.0
    %5178 = vmatprep.subr.mxu0 0.0
    %5179 = vmatpush1.msra.mxu0 0.0
    %5180 = vmatprep.subr.mxu0 0.0
    %5181 = vmatpush1.msra.mxu0 0.0
    %5182 = vmatprep.subr.mxu0 0.0
    %5183 = vmatpush1.msra.mxu0 0.0
    %5184 = vmatprep.subr.mxu0 0.0
    %5185 = vmatpush1.msra.mxu0 0.0
    %5186 = vmatprep.subr.mxu0 0.0
    %5187 = vmatpush1.msra.mxu0 0.0
    %5188 = vmatprep.subr.mxu0 0.0
    %5189 = vmatpush1.msra.mxu0 0.0
    %5190 = vmatprep.mubr.f32.mxu0 0.0
    %5191 = vmatmul.mubr.f32.gmra.mrb[0].mxu0 %v5124
    %v5192 = vpop.f32.mrb[0].mxu0
    %v5193 = vadd.f32 0.0, %v5192
    %v5194 = vpop.f32.mrb[0].mxu0
    %5195 = vdwg.mxu0
    %v5197 = vsel %vm269, %v4756, 0
    %5199 = vmatprep.subr.mxu0 0.0
    %5200 = vmatpush1.msra.mxu0 %v4053
    %5201 = vmatprep.subr.mxu0 0.0
    %5202 = vmatpush1.msra.mxu0 0.0
    %5203 = vmatprep.subr.mxu0 0.0
    %5204 = vmatpush1.msra.mxu0 0.0
    %5205 = vmatprep.subr.mxu0 0.0
    %5206 = vmatpush1.msra.mxu0 0.0
    %5207 = vmatprep.subr.mxu0 0.0
    %5208 = vmatpush1.msra.mxu0 0.0
    %5209 = vmatprep.subr.mxu0 0.0
    %5210 = vmatpush1.msra.mxu0 0.0
    %5211 = vmatprep.subr.mxu0 0.0
    %5212 = vmatpush1.msra.mxu0 0.0
    %5213 = vmatprep.subr.mxu0 0.0
    %5214 = vmatpush1.msra.mxu0 0.0
    %5215 = vmatprep.subr.mxu0 0.0
    %5216 = vmatpush1.msra.mxu0 0.0
    %5217 = vmatprep.subr.mxu0 0.0
    %5218 = vmatpush1.msra.mxu0 0.0
    %5219 = vmatprep.subr.mxu0 0.0
    %5220 = vmatpush1.msra.mxu0 0.0
    %5221 = vmatprep.subr.mxu0 0.0
    %5222 = vmatpush1.msra.mxu0 0.0
    %5223 = vmatprep.subr.mxu0 0.0
    %5224 = vmatpush1.msra.mxu0 0.0
    %5225 = vmatprep.subr.mxu0 0.0
    %5226 = vmatpush1.msra.mxu0 0.0
    %5227 = vmatprep.subr.mxu0 0.0
    %5228 = vmatpush1.msra.mxu0 0.0
    %5229 = vmatprep.subr.mxu0 0.0
    %5230 = vmatpush1.msra.mxu0 0.0
    %5231 = vmatprep.subr.mxu0 0.0
    %5232 = vmatpush1.msra.mxu0 0.0
    %5233 = vmatprep.subr.mxu0 0.0
    %5234 = vmatpush1.msra.mxu0 0.0
    %5235 = vmatprep.subr.mxu0 0.0
    %5236 = vmatpush1.msra.mxu0 0.0
    %5237 = vmatprep.subr.mxu0 0.0
    %5238 = vmatpush1.msra.mxu0 0.0
    %5239 = vmatprep.subr.mxu0 0.0
    %5240 = vmatpush1.msra.mxu0 0.0
    %5241 = vmatprep.subr.mxu0 0.0
    %5242 = vmatpush1.msra.mxu0 0.0
    %5243 = vmatprep.subr.mxu0 0.0
    %5244 = vmatpush1.msra.mxu0 0.0
    %5245 = vmatprep.subr.mxu0 0.0
    %5246 = vmatpush1.msra.mxu0 0.0
    %5247 = vmatprep.subr.mxu0 0.0
    %5248 = vmatpush1.msra.mxu0 0.0
    %5249 = vmatprep.subr.mxu0 0.0
    %5250 = vmatpush1.msra.mxu0 0.0
    %5251 = vmatprep.subr.mxu0 0.0
    %5252 = vmatpush1.msra.mxu0 0.0
    %5253 = vmatprep.subr.mxu0 0.0
    %5254 = vmatpush1.msra.mxu0 0.0
    %5255 = vmatprep.subr.mxu0 0.0
    %5256 = vmatpush1.msra.mxu0 0.0
    %5257 = vmatprep.subr.mxu0 0.0
    %5258 = vmatpush1.msra.mxu0 0.0
    %5259 = vmatprep.subr.mxu0 0.0
    %5260 = vmatpush1.msra.mxu0 0.0
    %5261 = vmatprep.subr.mxu0 0.0
    %5262 = vmatpush1.msra.mxu0 0.0
    %5263 = vmatprep.mubr.f32.mxu0 0.0
    %5264 = vmatmul.mubr.f32.gmra.mrb[0].mxu0 %v5197
    %v5265 = vpop.f32.mrb[0].mxu0
    %v5266 = vadd.f32 0.0, %v5265
    %v5267 = vpop.f32.mrb[0].mxu0
    %5268 = vdwg.mxu0
    %v5270 = vsel %vm269, %v4757, 0
    %5272 = vmatprep.subr.mxu0 0.0
    %5273 = vmatpush1.msra.mxu0 %v4059
    %5274 = vmatprep.subr.mxu0 0.0
    %5275 = vmatpush1.msra.mxu0 0.0
    %5276 = vmatprep.subr.mxu0 0.0
    %5277 = vmatpush1.msra.mxu0 0.0
    %5278 = vmatprep.subr.mxu0 0.0
    %5279 = vmatpush1.msra.mxu0 0.0
    %5280 = vmatprep.subr.mxu0 0.0
    %5281 = vmatpush1.msra.mxu0 0.0
    %5282 = vmatprep.subr.mxu0 0.0
    %5283 = vmatpush1.msra.mxu0 0.0
    %5284 = vmatprep.subr.mxu0 0.0
    %5285 = vmatpush1.msra.mxu0 0.0
    %5286 = vmatprep.subr.mxu0 0.0
    %5287 = vmatpush1.msra.mxu0 0.0
    %5288 = vmatprep.subr.mxu0 0.0
    %5289 = vmatpush1.msra.mxu0 0.0
    %5290 = vmatprep.subr.mxu0 0.0
    %5291 = vmatpush1.msra.mxu0 0.0
    %5292 = vmatprep.subr.mxu0 0.0
    %5293 = vmatpush1.msra.mxu0 0.0
    %5294 = vmatprep.subr.mxu0 0.0
    %5295 = vmatpush1.msra.mxu0 0.0
    %5296 = vmatprep.subr.mxu0 0.0
    %5297 = vmatpush1.msra.mxu0 0.0
    %5298 = vmatprep.subr.mxu0 0.0
    %5299 = vmatpush1.msra.mxu0 0.0
    %5300 = vmatprep.subr.mxu0 0.0
    %5301 = vmatpush1.msra.mxu0 0.0
    %5302 = vmatprep.subr.mxu0 0.0
    %5303 = vmatpush1.msra.mxu0 0.0
    %5304 = vmatprep.subr.mxu0 0.0
    %5305 = vmatpush1.msra.mxu0 0.0
    %5306 = vmatprep.subr.mxu0 0.0
    %5307 = vmatpush1.msra.mxu0 0.0
    %5308 = vmatprep.subr.mxu0 0.0
    %5309 = vmatpush1.msra.mxu0 0.0
    %5310 = vmatprep.subr.mxu0 0.0
    %5311 = vmatpush1.msra.mxu0 0.0
    %5312 = vmatprep.subr.mxu0 0.0
    %5313 = vmatpush1.msra.mxu0 0.0
    %5314 = vmatprep.subr.mxu0 0.0
    %5315 = vmatpush1.msra.mxu0 0.0
    %5316 = vmatprep.subr.mxu0 0.0
    %5317 = vmatpush1.msra.mxu0 0.0
    %5318 = vmatprep.subr.mxu0 0.0
    %5319 = vmatpush1.msra.mxu0 0.0
    %5320 = vmatprep.subr.mxu0 0.0
    %5321 = vmatpush1.msra.mxu0 0.0
    %5322 = vmatprep.subr.mxu0 0.0
    %5323 = vmatpush1.msra.mxu0 0.0
    %5324 = vmatprep.subr.mxu0 0.0
    %5325 = vmatpush1.msra.mxu0 0.0
    %5326 = vmatprep.subr.mxu0 0.0
    %5327 = vmatpush1.msra.mxu0 0.0
    %5328 = vmatprep.subr.mxu0 0.0
    %5329 = vmatpush1.msra.mxu0 0.0
    %5330 = vmatprep.subr.mxu0 0.0
    %5331 = vmatpush1.msra.mxu0 0.0
    %5332 = vmatprep.subr.mxu0 0.0
    %5333 = vmatpush1.msra.mxu0 0.0
    %5334 = vmatprep.subr.mxu0 0.0
    %5335 = vmatpush1.msra.mxu0 0.0
    %5336 = vmatprep.mubr.f32.mxu0 0.0
    %5337 = vmatmul.mubr.f32.gmra.mrb[0].mxu0 %v5270
    %v5338 = vpop.f32.mrb[0].mxu0
    %v5339 = vadd.f32 0.0, %v5338
    %v5340 = vpop.f32.mrb[0].mxu0
    %5341 = vdwg.mxu0
    %5344 = vrot.lane.b32.xlu0 %v4901, 8
    %v5345 = vpop.permute.xlu0 %5344
    %5346 = vrot.lane.b32.xlu0 %v5193, 8
    %v5347 = vpop.permute.xlu0 %5346
    %5352 = vrot.lane.b32.xlu0 %v4974, 16
    %v5353 = vpop.permute.xlu0 %5352
    %5354 = vrot.lane.b32.xlu0 %v5266, 16
    %v5355 = vpop.permute.xlu0 %5354
    %5360 = vrot.lane.b32.xlu0 %v5047, 24
    %v5361 = vpop.permute.xlu0 %5360
    %5362 = vrot.lane.b32.xlu0 %v5339, 24
    %v5363 = vpop.permute.xlu0 %5362
    %v5366 = vsel %vm269, %v4828, %v5345
    %v5367 = vsel %vm269, %v5120, %v5347
    %v5368 = vsel %vm1576, %v5366, %v5353
    %v5369 = vsel %vm1576, %v5367, %v5355
    %v5370 = vsel %vm1579, %v5368, %v5361
    %v5371 = vsel %vm1579, %v5369, %v5363
    %v5372 = vld [vmem:[%s3834 + $0x18] sm:$0xff]
    %v5373 = vld [vmem:[%s3834 + $0x48] sm:$0xff]
    %v5374 = vld [vmem:[%s3834 + $0x78] sm:$0xff]
    %v5375 = vld [vmem:[%s3834 + $0xa8] sm:$0xff]
    %v5376 = vld [vmem:[%s3834 + $0x183] ss:$0 sm:$0xff]
    %v5378 = vsel %vm53, %v5370, 0
    %v5381 = vsel %vm53, %v5371, 0
    %5383 = vmatprep.subr.mxu0 0.0
    %5384 = vmatpush1.msra.mxu0 %v5372
    %5385 = vmatprep.subr.mxu0 0.0
    %5386 = vmatpush1.msra.mxu0 %v5373
    %5387 = vmatprep.subr.mxu0 0.0
    %5388 = vmatpush1.msra.mxu0 %v5374
    %5389 = vmatprep.subr.mxu0 0.0
    %5390 = vmatpush1.msra.mxu0 %v5375
    %5391 = vmatprep.subr.mxu0 0.0
    %5392 = vmatpush1.msra.mxu0 0.0
    %5393 = vmatprep.subr.mxu0 0.0
    %5394 = vmatpush1.msra.mxu0 0.0
    %5395 = vmatprep.subr.mxu0 0.0
    %5396 = vmatpush1.msra.mxu0 0.0
    %5397 = vmatprep.subr.mxu0 0.0
    %5398 = vmatpush1.msra.mxu0 0.0
    %5399 = vmatprep.subr.mxu0 0.0
    %5400 = vmatpush1.msra.mxu0 0.0
    %5401 = vmatprep.subr.mxu0 0.0
    %5402 = vmatpush1.msra.mxu0 0.0
    %5403 = vmatprep.subr.mxu0 0.0
    %5404 = vmatpush1.msra.mxu0 0.0
    %5405 = vmatprep.subr.mxu0 0.0
    %5406 = vmatpush1.msra.mxu0 0.0
    %5407 = vmatprep.subr.mxu0 0.0
    %5408 = vmatpush1.msra.mxu0 0.0
    %5409 = vmatprep.subr.mxu0 0.0
    %5410 = vmatpush1.msra.mxu0 0.0
    %5411 = vmatprep.subr.mxu0 0.0
    %5412 = vmatpush1.msra.mxu0 0.0
    %5413 = vmatprep.subr.mxu0 0.0
    %5414 = vmatpush1.msra.mxu0 0.0
    %5415 = vmatprep.subr.mxu0 0.0
    %5416 = vmatpush1.msra.mxu0 0.0
    %5417 = vmatprep.subr.mxu0 0.0
    %5418 = vmatpush1.msra.mxu0 0.0
    %5419 = vmatprep.subr.mxu0 0.0
    %5420 = vmatpush1.msra.mxu0 0.0
    %5421 = vmatprep.subr.mxu0 0.0
    %5422 = vmatpush1.msra.mxu0 0.0
    %5423 = vmatprep.subr.mxu0 0.0
    %5424 = vmatpush1.msra.mxu0 0.0
    %5425 = vmatprep.subr.mxu0 0.0
    %5426 = vmatpush1.msra.mxu0 0.0
    %5427 = vmatprep.subr.mxu0 0.0
    %5428 = vmatpush1.msra.mxu0 0.0
    %5429 = vmatprep.subr.mxu0 0.0
    %5430 = vmatpush1.msra.mxu0 0.0
    %5431 = vmatprep.subr.mxu0 0.0
    %5432 = vmatpush1.msra.mxu0 0.0
    %5433 = vmatprep.subr.mxu0 0.0
    %5434 = vmatpush1.msra.mxu0 0.0
    %5435 = vmatprep.subr.mxu0 0.0
    %5436 = vmatpush1.msra.mxu0 0.0
    %5437 = vmatprep.subr.mxu0 0.0
    %5438 = vmatpush1.msra.mxu0 0.0
    %5439 = vmatprep.subr.mxu0 0.0
    %5440 = vmatpush1.msra.mxu0 0.0
    %5441 = vmatprep.subr.mxu0 0.0
    %5442 = vmatpush1.msra.mxu0 0.0
    %5443 = vmatprep.subr.mxu0 0.0
    %5444 = vmatpush1.msra.mxu0 0.0
    %5445 = vmatprep.subr.mxu0 0.0
    %5446 = vmatpush1.msra.mxu0 0.0
    %5447 = vmatprep.mubr.f32.mxu0 0.0
    %5448 = vmatmul.mubr.f32.gmra.mrb[0].mxu0 %v5378
    %v5449 = vpop.f32.mrb[0].mxu0
    %v5450 = vadd.f32 %v5376, %v5449
    %v5451 = vpop.f32.mrb[0].mxu0
    %5452 = vmatprep.mubr.f32.mxu0 0.0
    %5453 = vmatmul.mubr.f32.gmra.mrb[0].mxu0 %v5381
    %v5454 = vpop.f32.mrb[0].mxu0
    %v5455 = vadd.f32 %v5376, %v5454
    %v5456 = vpop.f32.mrb[0].mxu0
    %5457 = vdwg.mxu0
    %v5458 = vadd.f32 %v3832, %v5450
    %v5459 = vadd.f32 %v3833, %v5455
    %v5460 = vsel %vm53, %v5458, 0.0
    %5461 = vadd.xlane.f32.xlu0 %v5460
    %v5462 = vpop.xlane.xlu0 %5461
    %v5463 = vsel %vm53, %v5459, 0.0
    %5464 = vadd.xlane.f32.xlu0 %v5463
    %v5465 = vpop.xlane.xlu0 %5464
    %v5466 = vmul.f32 %v5462, %v1676
    %v5467 = vmul.f32 %v5465, %v1676
    %v5468 = vmul.f32 %v5458, %v5458
    %v5469 = vmul.f32 %v5459, %v5459
    %v5470 = vsel %vm53, %v5468, 0.0
    %5471 = vadd.xlane.f32.xlu0 %v5470
    %v5472 = vpop.xlane.xlu0 %5471
    %v5473 = vsel %vm53, %v5469, 0.0
    %5474 = vadd.xlane.f32.xlu0 %v5473
    %v5475 = vpop.xlane.xlu0 %5474
    %v5476 = vmul.f32 %v5472, %v1676
    %v5477 = vmul.f32 %v5475, %v1676
    %v5478 = vsub.f32 %v5458, %v5466
    %v5479 = vsub.f32 %v5459, %v5467
    %v5480 = vmul.f32 %v5466, %v5466
    %v5481 = vmul.f32 %v5467, %v5467
    %v5482 = vsub.f32 %v5476, %v5480
    %v5483 = vsub.f32 %v5477, %v5481
    %v5484 = vadd.f32 %v5482, 1e-12
    %v5485 = vadd.f32 %v5483, 1e-12
    %v5486 = vrsqrt.pop %v5484
    %v5487 = vrsqrt.pop %v5485
    %v5488 = vmul.f32 %v5478, %v5486
    %v5489 = vmul.f32 %v5479, %v5487
    %v5490 = vld [vmem:[%s3834 + $0x184] ss:$0 sm:$0xff]
    %v5491 = vmul.f32 %v5488, %v5490
    %v5492 = vmul.f32 %v5489, %v5490
    %v5493 = vld [vmem:[%s3834 + $0x185] ss:$0 sm:$0xff]
    %v5494 = vadd.f32 %v5491, %v5493
    %v5495 = vadd.f32 %v5492, %v5493
    %v5496 = vld [vmem:[%s3834 + $0x20] sm:$0xff]
    %v5497 = vld [vmem:[%s3834 + $0x50] sm:$0xff]
    %v5498 = vld [vmem:[%s3834 + $0x80] sm:$0xff]
    %v5499 = vld [vmem:[%s3834 + $0xb0] sm:$0xff]
    %v5500 = vld [vmem:[%s3834 + $0x28] sm:$0xff]
    %v5501 = vld [vmem:[%s3834 + $0x58] sm:$0xff]
    %v5502 = vld [vmem:[%s3834 + $0x88] sm:$0xff]
    %v5503 = vld [vmem:[%s3834 + $0xb8] sm:$0xff]
    %v5504 = vld [vmem:[%s3834 + $0xe8] sm:$0xff]
    %v5505 = vld [vmem:[%s3834 + $0x118] sm:$0xff]
    %v5506 = vld [vmem:[%s3834 + $0x148] sm:$0xff]
    %v5507 = vld [vmem:[%s3834 + $0x178] sm:$0xff]
    %v5508 = vld [vmem:[%s3834 + $0x186] ss:$0 sm:$0xff]
    %v5510 = vsel %vm53, %v5494, 0
    %v5513 = vsel %vm53, %v5495, 0
    %5515 = vmatprep.subr.mxu0 0.0
    %5516 = vmatpush1.msra.mxu0 %v5496
    %5517 = vmatprep.subr.mxu0 0.0
    %5518 = vmatpush1.msra.mxu0 %v5497
    %5519 = vmatprep.subr.mxu0 0.0
    %5520 = vmatpush1.msra.mxu0 %v5498
    %5521 = vmatprep.subr.mxu0 0.0
    %5522 = vmatpush1.msra.mxu0 %v5499
    %5523 = vmatprep.subr.mxu0 0.0
    %5524 = vmatpush1.msra.mxu0 0.0
    %5525 = vmatprep.subr.mxu0 0.0
    %5526 = vmatpush1.msra.mxu0 0.0
    %5527 = vmatprep.subr.mxu0 0.0
    %5528 = vmatpush1.msra.mxu0 0.0
    %5529 = vmatprep.subr.mxu0 0.0
    %5530 = vmatpush1.msra.mxu0 0.0
    %5531 = vmatprep.subr.mxu0 0.0
    %5532 = vmatpush1.msra.mxu0 0.0
    %5533 = vmatprep.subr.mxu0 0.0
    %5534 = vmatpush1.msra.mxu0 0.0
    %5535 = vmatprep.subr.mxu0 0.0
    %5536 = vmatpush1.msra.mxu0 0.0
    %5537 = vmatprep.subr.mxu0 0.0
    %5538 = vmatpush1.msra.mxu0 0.0
    %5539 = vmatprep.subr.mxu0 0.0
    %5540 = vmatpush1.msra.mxu0 0.0
    %5541 = vmatprep.subr.mxu0 0.0
    %5542 = vmatpush1.msra.mxu0 0.0
    %5543 = vmatprep.subr.mxu0 0.0
    %5544 = vmatpush1.msra.mxu0 0.0
    %5545 = vmatprep.subr.mxu0 0.0
    %5546 = vmatpush1.msra.mxu0 0.0
    %5547 = vmatprep.subr.mxu0 0.0
    %5548 = vmatpush1.msra.mxu0 0.0
    %5549 = vmatprep.subr.mxu0 0.0
    %5550 = vmatpush1.msra.mxu0 0.0
    %5551 = vmatprep.subr.mxu0 0.0
    %5552 = vmatpush1.msra.mxu0 0.0
    %5553 = vmatprep.subr.mxu0 0.0
    %5554 = vmatpush1.msra.mxu0 0.0
    %5555 = vmatprep.subr.mxu0 0.0
    %5556 = vmatpush1.msra.mxu0 0.0
    %5557 = vmatprep.subr.mxu0 0.0
    %5558 = vmatpush1.msra.mxu0 0.0
    %5559 = vmatprep.subr.mxu0 0.0
    %5560 = vmatpush1.msra.mxu0 0.0
    %5561 = vmatprep.subr.mxu0 0.0
    %5562 = vmatpush1.msra.mxu0 0.0
    %5563 = vmatprep.subr.mxu0 0.0
    %5564 = vmatpush1.msra.mxu0 0.0
    %5565 = vmatprep.subr.mxu0 0.0
    %5566 = vmatpush1.msra.mxu0 0.0
    %5567 = vmatprep.subr.mxu0 0.0
    %5568 = vmatpush1.msra.mxu0 0.0
    %5569 = vmatprep.subr.mxu0 0.0
    %5570 = vmatpush1.msra.mxu0 0.0
    %5571 = vmatprep.subr.mxu0 0.0
    %5572 = vmatpush1.msra.mxu0 0.0
    %5573 = vmatprep.subr.mxu0 0.0
    %5574 = vmatpush1.msra.mxu0 0.0
    %5575 = vmatprep.subr.mxu0 0.0
    %5576 = vmatpush1.msra.mxu0 0.0
    %5577 = vmatprep.subr.mxu0 0.0
    %5578 = vmatpush1.msra.mxu0 0.0
    %5579 = vmatprep.mubr.f32.mxu0 0.0
    %5580 = vmatmul.mubr.f32.gmra.mrb[0].mxu0 %v5510
    %v5581 = vpop.f32.mrb[0].mxu0
    %v5582 = vadd.f32 %v5508, %v5581
    %v5583 = vpop.f32.mrb[0].mxu0
    %5584 = vmatprep.mubr.f32.mxu0 0.0
    %5585 = vmatmul.mubr.f32.gmra.mrb[0].mxu0 %v5513
    %v5586 = vpop.f32.mrb[0].mxu0
    %v5587 = vadd.f32 %v5508, %v5586
    %v5588 = vpop.f32.mrb[0].mxu0
    %5589 = vdwg.mxu0
    %v5590 = vmul.f32 %v5582, %v5582
    %v5591 = vmul.f32 %v5587, %v5587
    %v5592 = vmul.f32 %v5582, %v5590
    %v5593 = vmul.f32 %v5587, %v5591
    %v5594 = vmul.f32 %v5592, 0.044715
    %v5595 = vmul.f32 %v5593, 0.044715
    %v5596 = vadd.f32 %v5582, %v5594
    %v5597 = vadd.f32 %v5587, %v5595
    %v5598 = vmul.f32 %v5596, 0.7978846
    %v5599 = vmul.f32 %v5597, 0.7978846
    %v5600 = vtanh.pop %v5598
    %v5601 = vtanh.pop %v5599
    %v5602 = vadd.f32 %v5600, 1.0
    %v5603 = vadd.f32 %v5601, 1.0
    %v5604 = vmul.f32 %v5602, 0.5
    %v5605 = vmul.f32 %v5603, 0.5
    %v5606 = vmul.f32 %v5582, %v5604
    %v5607 = vmul.f32 %v5587, %v5605
    %v5608 = vld [vmem:[%s3834 + $0x187] ss:$0 sm:$0xff]
    %v5610 = vsel %vm1820, %v5606, 0
    %v5613 = vsel %vm1820, %v5607, 0
    %5615 = vmatprep.subr.mxu0 0.0
    %5616 = vmatpush1.msra.mxu0 %v5500
    %5617 = vmatprep.subr.mxu0 0.0
    %5618 = vmatpush1.msra.mxu0 %v5501
    %5619 = vmatprep.subr.mxu0 0.0
    %5620 = vmatpush1.msra.mxu0 %v5502
    %5621 = vmatprep.subr.mxu0 0.0
    %5622 = vmatpush1.msra.mxu0 %v5503
    %5623 = vmatprep.subr.mxu0 0.0
    %5624 = vmatpush1.msra.mxu0 %v5504
    %5625 = vmatprep.subr.mxu0 0.0
    %5626 = vmatpush1.msra.mxu0 %v5505
    %5627 = vmatprep.subr.mxu0 0.0
    %5628 = vmatpush1.msra.mxu0 %v5506
    %5629 = vmatprep.subr.mxu0 0.0
    %5630 = vmatpush1.msra.mxu0 %v5507
    %5631 = vmatprep.subr.mxu0 0.0
    %5632 = vmatpush1.msra.mxu0 0.0
    %5633 = vmatprep.subr.mxu0 0.0
    %5634 = vmatpush1.msra.mxu0 0.0
    %5635 = vmatprep.subr.mxu0 0.0
    %5636 = vmatpush1.msra.mxu0 0.0
    %5637 = vmatprep.subr.mxu0 0.0
    %5638 = vmatpush1.msra.mxu0 0.0
    %5639 = vmatprep.subr.mxu0 0.0
    %5640 = vmatpush1.msra.mxu0 0.0
    %5641 = vmatprep.subr.mxu0 0.0
    %5642 = vmatpush1.msra.mxu0 0.0
    %5643 = vmatprep.subr.mxu0 0.0
    %5644 = vmatpush1.msra.mxu0 0.0
    %5645 = vmatprep.subr.mxu0 0.0
    %5646 = vmatpush1.msra.mxu0 0.0
    %5647 = vmatprep.subr.mxu0 0.0
    %5648 = vmatpush1.msra.mxu0 0.0
    %5649 = vmatprep.subr.mxu0 0.0
    %5650 = vmatpush1.msra.mxu0 0.0
    %5651 = vmatprep.subr.mxu0 0.0
    %5652 = vmatpush1.msra.mxu0 0.0
    %5653 = vmatprep.subr.mxu0 0.0
    %5654 = vmatpush1.msra.mxu0 0.0
    %5655 = vmatprep.subr.mxu0 0.0
    %5656 = vmatpush1.msra.mxu0 0.0
    %5657 = vmatprep.subr.mxu0 0.0
    %5658 = vmatpush1.msra.mxu0 0.0
    %5659 = vmatprep.subr.mxu0 0.0
    %5660 = vmatpush1.msra.mxu0 0.0
    %5661 = vmatprep.subr.mxu0 0.0
    %5662 = vmatpush1.msra.mxu0 0.0
    %5663 = vmatprep.subr.mxu0 0.0
    %5664 = vmatpush1.msra.mxu0 0.0
    %5665 = vmatprep.subr.mxu0 0.0
    %5666 = vmatpush1.msra.mxu0 0.0
    %5667 = vmatprep.subr.mxu0 0.0
    %5668 = vmatpush1.msra.mxu0 0.0
    %5669 = vmatprep.subr.mxu0 0.0
    %5670 = vmatpush1.msra.mxu0 0.0
    %5671 = vmatprep.subr.mxu0 0.0
    %5672 = vmatpush1.msra.mxu0 0.0
    %5673 = vmatprep.subr.mxu0 0.0
    %5674 = vmatpush1.msra.mxu0 0.0
    %5675 = vmatprep.subr.mxu0 0.0
    %5676 = vmatpush1.msra.mxu0 0.0
    %5677 = vmatprep.subr.mxu0 0.0
    %5678 = vmatpush1.msra.mxu0 0.0
    %5679 = vmatprep.mubr.f32.mxu0 0.0
    %5680 = vmatmul.mubr.f32.gmra.mrb[0].mxu0 %v5610
    %v5681 = vpop.f32.mrb[0].mxu0
    %v5682 = vadd.f32 %v5608, %v5681
    %v5683 = vpop.f32.mrb[0].mxu0
    %5684 = vmatprep.mubr.f32.mxu0 0.0
    %5685 = vmatmul.mubr.f32.gmra.mrb[0].mxu0 %v5613
    %v5686 = vpop.f32.mrb[0].mxu0
    %v5687 = vadd.f32 %v5608, %v5686
    %v5688 = vpop.f32.mrb[0].mxu0
    %5689 = vdwg.mxu0
    %v5690 = vadd.f32 %v5494, %v5682
    %v5691 = vadd.f32 %v5495, %v5687
    %v5692 = vsel %vm53, %v5690, 0.0
    %5693 = vadd.xlane.f32.xlu0 %v5692
    %v5694 = vpop.xlane.xlu0 %5693
    %v5695 = vsel %vm53, %v5691, 0.0
    %5696 = vadd.xlane.f32.xlu0 %v5695
    %v5697 = vpop.xlane.xlu0 %5696
    %v5698 = vmul.f32 %v5694, %v1676
    %v5699 = vmul.f32 %v5697, %v1676
    %v5700 = vmul.f32 %v5690, %v5690
    %v5701 = vmul.f32 %v5691, %v5691
    %v5702 = vsel %vm53, %v5700, 0.0
    %5703 = vadd.xlane.f32.xlu0 %v5702
    %v5704 = vpop.xlane.xlu0 %5703
    %v5705 = vsel %vm53, %v5701, 0.0
    %5706 = vadd.xlane.f32.xlu0 %v5705
    %v5707 = vpop.xlane.xlu0 %5706
    %v5708 = vmul.f32 %v5704, %v1676
    %v5709 = vmul.f32 %v5707, %v1676
    %v5710 = vsub.f32 %v5690, %v5698
    %v5711 = vsub.f32 %v5691, %v5699
    %v5712 = vmul.f32 %v5698, %v5698
    %v5713 = vmul.f32 %v5699, %v5699
    %v5714 = vsub.f32 %v5708, %v5712
    %v5715 = vsub.f32 %v5709, %v5713
    %v5716 = vadd.f32 %v5714, 1e-12
    %v5717 = vadd.f32 %v5715, 1e-12
    %v5718 = vrsqrt.pop %v5716
    %v5719 = vrsqrt.pop %v5717
    %v5720 = vmul.f32 %v5710, %v5718
    %v5721 = vmul.f32 %v5711, %v5719
    %v5722 = vld [vmem:[%s3834 + $0x1b0] ss:$0 sm:$0xff]
    %v5723 = vmul.f32 %v5720, %v5722
    %v5724 = vmul.f32 %v5721, %v5722
    %v5725 = vld [vmem:[%s3834 + $0x1b1] ss:$0 sm:$0xff]
    %v5726 = vadd.f32 %v5723, %v5725
    %v5727 = vadd.f32 %v5724, %v5725
    %s5728 = scalar_lea.vmem [#allocation2], 1440
    %v5729 = vld [vmem:[%s5728] sm:$0xff]
    %v5730 = vld [vmem:[%s5728 + $0x8] sm:$0xff]
    %v5731 = vld [vmem:[%s5728 + $0x10] sm:$0xff]
    %v5732 = vld [vmem:[%s5728 + $0x30] sm:$0xff]
    %v5733 = vld [vmem:[%s5728 + $0x38] sm:$0xff]
    %v5734 = vld [vmem:[%s5728 + $0x40] sm:$0xff]
    %v5735 = vld [vmem:[%s5728 + $0x60] sm:$0xff]
    %v5736 = vld [vmem:[%s5728 + $0x68] sm:$0xff]
    %v5737 = vld [vmem:[%s5728 + $0x70] sm:$0xff]
    %v5738 = vld [vmem:[%s5728 + $0x90] sm:$0xff]
    %v5739 = vld [vmem:[%s5728 + $0x98] sm:$0xff]
    %v5740 = vld [vmem:[%s5728 + $0xa0] sm:$0xff]
    %v5742 = vsel %vm53, %v5726, 0
    %v5745 = vsel %vm53, %v5727, 0
    %5747 = vmatprep.subr.mxu0 %v5730
    %5748 = vmatpush1.msra.mxu0 %v5729
    %5749 = vmatprep.subr.mxu0 %v5733
    %5750 = vmatpush1.msra.mxu0 %v5732
    %5751 = vmatprep.subr.mxu0 %v5736
    %5752 = vmatpush1.msra.mxu0 %v5735
    %5753 = vmatprep.subr.mxu0 %v5739
    %5754 = vmatpush1.msra.mxu0 %v5738
    %5755 = vmatprep.subr.mxu0 0.0
    %5756 = vmatpush1.msra.mxu0 0.0
    %5757 = vmatprep.subr.mxu0 0.0
    %5758 = vmatpush1.msra.mxu0 0.0
    %5759 = vmatprep.subr.mxu0 0.0
    %5760 = vmatpush1.msra.mxu0 0.0
    %5761 = vmatprep.subr.mxu0 0.0
    %5762 = vmatpush1.msra.mxu0 0.0
    %5763 = vmatprep.subr.mxu0 0.0
    %5764 = vmatpush1.msra.mxu0 0.0
    %5765 = vmatprep.subr.mxu0 0.0
    %5766 = vmatpush1.msra.mxu0 0.0
    %5767 = vmatprep.subr.mxu0 0.0
    %5768 = vmatpush1.msra.mxu0 0.0
    %5769 = vmatprep.subr.mxu0 0.0
    %5770 = vmatpush1.msra.mxu0 0.0
    %5771 = vmatprep.subr.mxu0 0.0
    %5772 = vmatpush1.msra.mxu0 0.0
    %5773 = vmatprep.subr.mxu0 0.0
    %5774 = vmatpush1.msra.mxu0 0.0
    %5775 = vmatprep.subr.mxu0 0.0
    %5776 = vmatpush1.msra.mxu0 0.0
    %5777 = vmatprep.subr.mxu0 0.0
    %5778 = vmatpush1.msra.mxu0 0.0
    %5779 = vmatprep.subr.mxu0 0.0
    %5780 = vmatpush1.msra.mxu0 0.0
    %5781 = vmatprep.subr.mxu0 0.0
    %5782 = vmatpush1.msra.mxu0 0.0
    %5783 = vmatprep.subr.mxu0 0.0
    %5784 = vmatpush1.msra.mxu0 0.0
    %5785 = vmatprep.subr.mxu0 0.0
    %5786 = vmatpush1.msra.mxu0 0.0
    %5787 = vmatprep.subr.mxu0 0.0
    %5788 = vmatpush1.msra.mxu0 0.0
    %5789 = vmatprep.subr.mxu0 0.0
    %5790 = vmatpush1.msra.mxu0 0.0
    %5791 = vmatprep.subr.mxu0 0.0
    %5792 = vmatpush1.msra.mxu0 0.0
    %5793 = vmatprep.subr.mxu0 0.0
    %5794 = vmatpush1.msra.mxu0 0.0
    %5795 = vmatprep.subr.mxu0 0.0
    %5796 = vmatpush1.msra.mxu0 0.0
    %5797 = vmatprep.subr.mxu0 0.0
    %5798 = vmatpush1.msra.mxu0 0.0
    %5799 = vmatprep.subr.mxu0 0.0
    %5800 = vmatpush1.msra.mxu0 0.0
    %5801 = vmatprep.subr.mxu0 0.0
    %5802 = vmatpush1.msra.mxu0 0.0
    %5803 = vmatprep.subr.mxu0 0.0
    %5804 = vmatpush1.msra.mxu0 0.0
    %5805 = vmatprep.subr.mxu0 0.0
    %5806 = vmatpush1.msra.mxu0 0.0
    %5807 = vmatprep.subr.mxu0 0.0
    %5808 = vmatpush1.msra.mxu0 0.0
    %5809 = vmatprep.subr.mxu0 0.0
    %5810 = vmatpush1.msra.mxu0 0.0
    %5811 = vmatprep.mubr.f32.mxu0 0.0
    %5812 = vmatmul.mubr.f32.gmra.mrb[0].mxu0 %v5742
    %v5813 = vpop.f32.mrb[0].mxu0
    %v5814 = vadd.f32 0.0, %v5813
    %v5815 = vpop.f32.mrb[0].mxu0
    %v5816 = vadd.f32 0.0, %v5815
    %5817 = vmatprep.mubr.f32.mxu0 0.0
    %5818 = vmatmul.mubr.f32.gmra.mrb[0].mxu0 %v5745
    %v5819 = vpop.f32.mrb[0].mxu0
    %v5820 = vadd.f32 0.0, %v5819
    %v5821 = vpop.f32.mrb[0].mxu0
    %v5822 = vadd.f32 0.0, %v5821
    %5823 = vdwg.mxu0
    %5824 = vmatprep.subr.mxu0 0.0
    %5825 = vmatpush1.msra.mxu0 %v5731
    %5826 = vmatprep.subr.mxu0 0.0
    %5827 = vmatpush1.msra.mxu0 %v5734
    %5828 = vmatprep.subr.mxu0 0.0
    %5829 = vmatpush1.msra.mxu0 %v5737
    %5830 = vmatprep.subr.mxu0 0.0
    %5831 = vmatpush1.msra.mxu0 %v5740
    %5832 = vmatprep.subr.mxu0 0.0
    %5833 = vmatpush1.msra.mxu0 0.0
    %5834 = vmatprep.subr.mxu0 0.0
    %5835 = vmatpush1.msra.mxu0 0.0
    %5836 = vmatprep.subr.mxu0 0.0
    %5837 = vmatpush1.msra.mxu0 0.0
    %5838 = vmatprep.subr.mxu0 0.0
    %5839 = vmatpush1.msra.mxu0 0.0
    %5840 = vmatprep.subr.mxu0 0.0
    %5841 = vmatpush1.msra.mxu0 0.0
    %5842 = vmatprep.subr.mxu0 0.0
    %5843 = vmatpush1.msra.mxu0 0.0
    %5844 = vmatprep.subr.mxu0 0.0
    %5845 = vmatpush1.msra.mxu0 0.0
    %5846 = vmatprep.subr.mxu0 0.0
    %5847 = vmatpush1.msra.mxu0 0.0
    %5848 = vmatprep.subr.mxu0 0.0
    %5849 = vmatpush1.msra.mxu0 0.0
    %5850 = vmatprep.subr.mxu0 0.0
    %5851 = vmatpush1.msra.mxu0 0.0
    %5852 = vmatprep.subr.mxu0 0.0
    %5853 = vmatpush1.msra.mxu0 0.0
    %5854 = vmatprep.subr.mxu0 0.0
    %5855 = vmatpush1.msra.mxu0 0.0
    %5856 = vmatprep.subr.mxu0 0.0
    %5857 = vmatpush1.msra.mxu0 0.0
    %5858 = vmatprep.subr.mxu0 0.0
    %5859 = vmatpush1.msra.mxu0 0.0
    %5860 = vmatprep.subr.mxu0 0.0
    %5861 = vmatpush1.msra.mxu0 0.0
    %5862 = vmatprep.subr.mxu0 0.0
    %5863 = vmatpush1.msra.mxu0 0.0
    %5864 = vmatprep.subr.mxu0 0.0
    %5865 = vmatpush1.msra.mxu0 0.0
    %5866 = vmatprep.subr.mxu0 0.0
    %5867 = vmatpush1.msra.mxu0 0.0
    %5868 = vmatprep.subr.mxu0 0.0
    %5869 = vmatpush1.msra.mxu0 0.0
    %5870 = vmatprep.subr.mxu0 0.0
    %5871 = vmatpush1.msra.mxu0 0.0
    %5872 = vmatprep.subr.mxu0 0.0
    %5873 = vmatpush1.msra.mxu0 0.0
    %5874 = vmatprep.subr.mxu0 0.0
    %5875 = vmatpush1.msra.mxu0 0.0
    %5876 = vmatprep.subr.mxu0 0.0
    %5877 = vmatpush1.msra.mxu0 0.0
    %5878 = vmatprep.subr.mxu0 0.0
    %5879 = vmatpush1.msra.mxu0 0.0
    %5880 = vmatprep.subr.mxu0 0.0
    %5881 = vmatpush1.msra.mxu0 0.0
    %5882 = vmatprep.subr.mxu0 0.0
    %5883 = vmatpush1.msra.mxu0 0.0
    %5884 = vmatprep.subr.mxu0 0.0
    %5885 = vmatpush1.msra.mxu0 0.0
    %5886 = vmatprep.subr.mxu0 0.0
    %5887 = vmatpush1.msra.mxu0 0.0
    %5888 = vmatprep.mubr.f32.mxu0 0.0
    %5889 = vmatmul.mubr.f32.gmra.mrb[0].mxu0 %v5742
    %v5890 = vpop.f32.mrb[0].mxu0
    %v5891 = vadd.f32 0.0, %v5890
    %v5892 = vpop.f32.mrb[0].mxu0
    %5893 = vmatprep.mubr.f32.mxu0 0.0
    %5894 = vmatmul.mubr.f32.gmra.mrb[0].mxu0 %v5745
    %v5895 = vpop.f32.mrb[0].mxu0
    %v5896 = vadd.f32 0.0, %v5895
    %v5897 = vpop.f32.mrb[0].mxu0
    %5898 = vdwg.mxu0
    %v5899 = vld [vmem:[%s5728 + $0x180] ss:$0 sm:$0xff]
    %v5900 = vadd.f32 %v5814, %v5899
    %v5901 = vadd.f32 %v5820, %v5899
    %v5902 = vld [vmem:[%s5728 + $0x181] ss:$0 sm:$0xff]
    %v5903 = vadd.f32 %v5816, %v5902
    %v5904 = vadd.f32 %v5822, %v5902
    %v5905 = vld [vmem:[%s5728 + $0x182] ss:$0 sm:$0xff]
    %v5906 = vadd.f32 %v5891, %v5905
    %v5907 = vadd.f32 %v5896, %v5905
    %5910 = vrot.lane.b32.xlu0 %v5900, 120
    %v5911 = vpop.permute.xlu0 %5910
    %5912 = vrot.lane.b32.xlu0 %v5901, 120
    %v5913 = vpop.permute.xlu0 %5912
    %5914 = vrot.lane.b32.xlu0 %v5900, 112
    %v5915 = vpop.permute.xlu0 %5914
    %5916 = vrot.lane.b32.xlu0 %v5901, 112
    %v5917 = vpop.permute.xlu0 %5916
    %5918 = vrot.lane.b32.xlu0 %v5900, 104
    %v5919 = vpop.permute.xlu0 %5918
    %5920 = vrot.lane.b32.xlu0 %v5901, 104
    %v5921 = vpop.permute.xlu0 %5920
    %5924 = vrot.lane.b32.xlu0 %v5903, 120
    %v5925 = vpop.permute.xlu0 %5924
    %5926 = vrot.lane.b32.xlu0 %v5904, 120
    %v5927 = vpop.permute.xlu0 %5926
    %5928 = vrot.lane.b32.xlu0 %v5903, 112
    %v5929 = vpop.permute.xlu0 %5928
    %5930 = vrot.lane.b32.xlu0 %v5904, 112
    %v5931 = vpop.permute.xlu0 %5930
    %5932 = vrot.lane.b32.xlu0 %v5903, 104
    %v5933 = vpop.permute.xlu0 %5932
    %5934 = vrot.lane.b32.xlu0 %v5904, 104
    %v5935 = vpop.permute.xlu0 %5934
    %5938 = vrot.lane.b32.xlu0 %v5906, 120
    %v5939 = vpop.permute.xlu0 %5938
    %5940 = vrot.lane.b32.xlu0 %v5907, 120
    %v5941 = vpop.permute.xlu0 %5940
    %5944 = vrot.lane.b32.xlu0 %v5906, 112
    %v5945 = vpop.permute.xlu0 %5944
    %5946 = vrot.lane.b32.xlu0 %v5907, 112
    %v5947 = vpop.permute.xlu0 %5946
    %5950 = vrot.lane.b32.xlu0 %v5906, 104
    %v5951 = vpop.permute.xlu0 %5950
    %5952 = vrot.lane.b32.xlu0 %v5907, 104
    %v5953 = vpop.permute.xlu0 %5952
    %v5956 = vsel %vm269, %v5900, 0
    %v5958 = vsel %vm269, %v5903, 0
    %5960 = vmatprep.subr.mxu0 0.0
    %5961 = vmatpush1.xpose.msra.mxu0 %v5958
    %5962 = vmatprep.subr.mxu0 0.0
    %5963 = vmatpush1.xpose.msra.mxu0 0.0
    %5964 = vmatprep.subr.mxu0 0.0
    %5965 = vmatpush1.xpose.msra.mxu0 0.0
    %5966 = vmatprep.subr.mxu0 0.0
    %5967 = vmatpush1.xpose.msra.mxu0 0.0
    %5968 = vmatprep.subr.mxu0 0.0
    %5969 = vmatpush1.xpose.msra.mxu0 0.0
    %5970 = vmatprep.subr.mxu0 0.0
    %5971 = vmatpush1.xpose.msra.mxu0 0.0
    %5972 = vmatprep.subr.mxu0 0.0
    %5973 = vmatpush1.xpose.msra.mxu0 0.0
    %5974 = vmatprep.subr.mxu0 0.0
    %5975 = vmatpush1.xpose.msra.mxu0 0.0
    %5976 = vmatprep.subr.mxu0 0.0
    %5977 = vmatpush1.xpose.msra.mxu0 0.0
    %5978 = vmatprep.subr.mxu0 0.0
    %5979 = vmatpush1.xpose.msra.mxu0 0.0
    %5980 = vmatprep.subr.mxu0 0.0
    %5981 = vmatpush1.xpose.msra.mxu0 0.0
    %5982 = vmatprep.subr.mxu0 0.0
    %5983 = vmatpush1.xpose.msra.mxu0 0.0
    %5984 = vmatprep.subr.mxu0 0.0
    %5985 = vmatpush1.xpose.msra.mxu0 0.0
    %5986 = vmatprep.subr.mxu0 0.0
    %5987 = vmatpush1.xpose.msra.mxu0 0.0
    %5988 = vmatprep.subr.mxu0 0.0
    %5989 = vmatpush1.xpose.msra.mxu0 0.0
    %5990 = vmatprep.subr.mxu0 0.0
    %5991 = vmatpush1.xpose.msra.mxu0 0.0
    %5992 = vmatprep.subr.mxu0 0.0
    %5993 = vmatpush1.xpose.msra.mxu0 0.0
    %5994 = vmatprep.subr.mxu0 0.0
    %5995 = vmatpush1.xpose.msra.mxu0 0.0
    %5996 = vmatprep.subr.mxu0 0.0
    %5997 = vmatpush1.xpose.msra.mxu0 0.0
    %5998 = vmatprep.subr.mxu0 0.0
    %5999 = vmatpush1.xpose.msra.mxu0 0.0
    %6000 = vmatprep.subr.mxu0 0.0
    %6001 = vmatpush1.xpose.msra.mxu0 0.0
    %6002 = vmatprep.subr.mxu0 0.0
    %6003 = vmatpush1.xpose.msra.mxu0 0.0
    %6004 = vmatprep.subr.mxu0 0.0
    %6005 = vmatpush1.xpose.msra.mxu0 0.0
    %6006 = vmatprep.subr.mxu0 0.0
    %6007 = vmatpush1.xpose.msra.mxu0 0.0
    %6008 = vmatprep.subr.mxu0 0.0
    %6009 = vmatpush1.xpose.msra.mxu0 0.0
    %6010 = vmatprep.subr.mxu0 0.0
    %6011 = vmatpush1.xpose.msra.mxu0 0.0
    %6012 = vmatprep.subr.mxu0 0.0
    %6013 = vmatpush1.xpose.msra.mxu0 0.0
    %6014 = vmatprep.subr.mxu0 0.0
    %6015 = vmatpush1.xpose.msra.mxu0 0.0
    %6016 = vmatprep.subr.mxu0 0.0
    %6017 = vmatpush1.xpose.msra.mxu0 0.0
    %6018 = vmatprep.subr.mxu0 0.0
    %6019 = vmatpush1.xpose.msra.mxu0 0.0
    %6020 = vmatprep.subr.mxu0 0.0
    %6021 = vmatpush1.xpose.msra.mxu0 0.0
    %6022 = vmatprep.subr.mxu0 0.0
    %6023 = vmatpush1.xpose.msra.mxu0 0.0
    %6024 = vmatprep.mubr.f32.mxu0 0.0
    %6025 = vmatmul.mubr.f32.gmra.mrb[0].mxu0 %v5956
    %v6026 = vpop.f32.mrb[0].mxu0
    %v6027 = vadd.f32 0.0, %v6026
    %v6028 = vpop.f32.mrb[0].mxu0
    %6029 = vdwg.mxu0
    %v6030 = vsel %vm269, %v5911, 0
    %v6032 = vsel %vm269, %v5925, 0
    %6034 = vmatprep.subr.mxu0 0.0
    %6035 = vmatpush1.xpose.msra.mxu0 %v6032
    %6036 = vmatprep.subr.mxu0 0.0
    %6037 = vmatpush1.xpose.msra.mxu0 0.0
    %6038 = vmatprep.subr.mxu0 0.0
    %6039 = vmatpush1.xpose.msra.mxu0 0.0
    %6040 = vmatprep.subr.mxu0 0.0
    %6041 = vmatpush1.xpose.msra.mxu0 0.0
    %6042 = vmatprep.subr.mxu0 0.0
    %6043 = vmatpush1.xpose.msra.mxu0 0.0
    %6044 = vmatprep.subr.mxu0 0.0
    %6045 = vmatpush1.xpose.msra.mxu0 0.0
    %6046 = vmatprep.subr.mxu0 0.0
    %6047 = vmatpush1.xpose.msra.mxu0 0.0
    %6048 = vmatprep.subr.mxu0 0.0
    %6049 = vmatpush1.xpose.msra.mxu0 0.0
    %6050 = vmatprep.subr.mxu0 0.0
    %6051 = vmatpush1.xpose.msra.mxu0 0.0
    %6052 = vmatprep.subr.mxu0 0.0
    %6053 = vmatpush1.xpose.msra.mxu0 0.0
    %6054 = vmatprep.subr.mxu0 0.0
    %6055 = vmatpush1.xpose.msra.mxu0 0.0
    %6056 = vmatprep.subr.mxu0 0.0
    %6057 = vmatpush1.xpose.msra.mxu0 0.0
    %6058 = vmatprep.subr.mxu0 0.0
    %6059 = vmatpush1.xpose.msra.mxu0 0.0
    %6060 = vmatprep.subr.mxu0 0.0
    %6061 = vmatpush1.xpose.msra.mxu0 0.0
    %6062 = vmatprep.subr.mxu0 0.0
    %6063 = vmatpush1.xpose.msra.mxu0 0.0
    %6064 = vmatprep.subr.mxu0 0.0
    %6065 = vmatpush1.xpose.msra.mxu0 0.0
    %6066 = vmatprep.subr.mxu0 0.0
    %6067 = vmatpush1.xpose.msra.mxu0 0.0
    %6068 = vmatprep.subr.mxu0 0.0
    %6069 = vmatpush1.xpose.msra.mxu0 0.0
    %6070 = vmatprep.subr.mxu0 0.0
    %6071 = vmatpush1.xpose.msra.mxu0 0.0
    %6072 = vmatprep.subr.mxu0 0.0
    %6073 = vmatpush1.xpose.msra.mxu0 0.0
    %6074 = vmatprep.subr.mxu0 0.0
    %6075 = vmatpush1.xpose.msra.mxu0 0.0
    %6076 = vmatprep.subr.mxu0 0.0
    %6077 = vmatpush1.xpose.msra.mxu0 0.0
    %6078 = vmatprep.subr.mxu0 0.0
    %6079 = vmatpush1.xpose.msra.mxu0 0.0
    %6080 = vmatprep.subr.mxu0 0.0
    %6081 = vmatpush1.xpose.msra.mxu0 0.0
    %6082 = vmatprep.subr.mxu0 0.0
    %6083 = vmatpush1.xpose.msra.mxu0 0.0
    %6084 = vmatprep.subr.mxu0 0.0
    %6085 = vmatpush1.xpose.msra.mxu0 0.0
    %6086 = vmatprep.subr.mxu0 0.0
    %6087 = vmatpush1.xpose.msra.mxu0 0.0
    %6088 = vmatprep.subr.mxu0 0.0
    %6089 = vmatpush1.xpose.msra.mxu0 0.0
    %6090 = vmatprep.subr.mxu0 0.0
    %6091 = vmatpush1.xpose.msra.mxu0 0.0
    %6092 = vmatprep.subr.mxu0 0.0
    %6093 = vmatpush1.xpose.msra.mxu0 0.0
    %6094 = vmatprep.subr.mxu0 0.0
    %6095 = vmatpush1.xpose.msra.mxu0 0.0
    %6096 = vmatprep.subr.mxu0 0.0
    %6097 = vmatpush1.xpose.msra.mxu0 0.0
    %6098 = vmatprep.mubr.f32.mxu0 0.0
    %6099 = vmatmul.mubr.f32.gmra.mrb[0].mxu0 %v6030
    %v6100 = vpop.f32.mrb[0].mxu0
    %v6101 = vadd.f32 0.0, %v6100
    %v6102 = vpop.f32.mrb[0].mxu0
    %6103 = vdwg.mxu0
    %v6104 = vsel %vm269, %v5915, 0
    %v6106 = vsel %vm269, %v5929, 0
    %6108 = vmatprep.subr.mxu0 0.0
    %6109 = vmatpush1.xpose.msra.mxu0 %v6106
    %6110 = vmatprep.subr.mxu0 0.0
    %6111 = vmatpush1.xpose.msra.mxu0 0.0
    %6112 = vmatprep.subr.mxu0 0.0
    %6113 = vmatpush1.xpose.msra.mxu0 0.0
    %6114 = vmatprep.subr.mxu0 0.0
    %6115 = vmatpush1.xpose.msra.mxu0 0.0
    %6116 = vmatprep.subr.mxu0 0.0
    %6117 = vmatpush1.xpose.msra.mxu0 0.0
    %6118 = vmatprep.subr.mxu0 0.0
    %6119 = vmatpush1.xpose.msra.mxu0 0.0
    %6120 = vmatprep.subr.mxu0 0.0
    %6121 = vmatpush1.xpose.msra.mxu0 0.0
    %6122 = vmatprep.subr.mxu0 0.0
    %6123 = vmatpush1.xpose.msra.mxu0 0.0
    %6124 = vmatprep.subr.mxu0 0.0
    %6125 = vmatpush1.xpose.msra.mxu0 0.0
    %6126 = vmatprep.subr.mxu0 0.0
    %6127 = vmatpush1.xpose.msra.mxu0 0.0
    %6128 = vmatprep.subr.mxu0 0.0
    %6129 = vmatpush1.xpose.msra.mxu0 0.0
    %6130 = vmatprep.subr.mxu0 0.0
    %6131 = vmatpush1.xpose.msra.mxu0 0.0
    %6132 = vmatprep.subr.mxu0 0.0
    %6133 = vmatpush1.xpose.msra.mxu0 0.0
    %6134 = vmatprep.subr.mxu0 0.0
    %6135 = vmatpush1.xpose.msra.mxu0 0.0
    %6136 = vmatprep.subr.mxu0 0.0
    %6137 = vmatpush1.xpose.msra.mxu0 0.0
    %6138 = vmatprep.subr.mxu0 0.0
    %6139 = vmatpush1.xpose.msra.mxu0 0.0
    %6140 = vmatprep.subr.mxu0 0.0
    %6141 = vmatpush1.xpose.msra.mxu0 0.0
    %6142 = vmatprep.subr.mxu0 0.0
    %6143 = vmatpush1.xpose.msra.mxu0 0.0
    %6144 = vmatprep.subr.mxu0 0.0
    %6145 = vmatpush1.xpose.msra.mxu0 0.0
    %6146 = vmatprep.subr.mxu0 0.0
    %6147 = vmatpush1.xpose.msra.mxu0 0.0
    %6148 = vmatprep.subr.mxu0 0.0
    %6149 = vmatpush1.xpose.msra.mxu0 0.0
    %6150 = vmatprep.subr.mxu0 0.0
    %6151 = vmatpush1.xpose.msra.mxu0 0.0
    %6152 = vmatprep.subr.mxu0 0.0
    %6153 = vmatpush1.xpose.msra.mxu0 0.0
    %6154 = vmatprep.subr.mxu0 0.0
    %6155 = vmatpush1.xpose.msra.mxu0 0.0
    %6156 = vmatprep.subr.mxu0 0.0
    %6157 = vmatpush1.xpose.msra.mxu0 0.0
    %6158 = vmatprep.subr.mxu0 0.0
    %6159 = vmatpush1.xpose.msra.mxu0 0.0
    %6160 = vmatprep.subr.mxu0 0.0
    %6161 = vmatpush1.xpose.msra.mxu0 0.0
    %6162 = vmatprep.subr.mxu0 0.0
    %6163 = vmatpush1.xpose.msra.mxu0 0.0
    %6164 = vmatprep.subr.mxu0 0.0
    %6165 = vmatpush1.xpose.msra.mxu0 0.0
    %6166 = vmatprep.subr.mxu0 0.0
    %6167 = vmatpush1.xpose.msra.mxu0 0.0
    %6168 = vmatprep.subr.mxu0 0.0
    %6169 = vmatpush1.xpose.msra.mxu0 0.0
    %6170 = vmatprep.subr.mxu0 0.0
    %6171 = vmatpush1.xpose.msra.mxu0 0.0
    %6172 = vmatprep.mubr.f32.mxu0 0.0
    %6173 = vmatmul.mubr.f32.gmra.mrb[0].mxu0 %v6104
    %v6174 = vpop.f32.mrb[0].mxu0
    %v6175 = vadd.f32 0.0, %v6174
    %v6176 = vpop.f32.mrb[0].mxu0
    %6177 = vdwg.mxu0
    %v6178 = vsel %vm269, %v5919, 0
    %v6180 = vsel %vm269, %v5933, 0
    %6182 = vmatprep.subr.mxu0 0.0
    %6183 = vmatpush1.xpose.msra.mxu0 %v6180
    %6184 = vmatprep.subr.mxu0 0.0
    %6185 = vmatpush1.xpose.msra.mxu0 0.0
    %6186 = vmatprep.subr.mxu0 0.0
    %6187 = vmatpush1.xpose.msra.mxu0 0.0
    %6188 = vmatprep.subr.mxu0 0.0
    %6189 = vmatpush1.xpose.msra.mxu0 0.0
    %6190 = vmatprep.subr.mxu0 0.0
    %6191 = vmatpush1.xpose.msra.mxu0 0.0
    %6192 = vmatprep.subr.mxu0 0.0
    %6193 = vmatpush1.xpose.msra.mxu0 0.0
    %6194 = vmatprep.subr.mxu0 0.0
    %6195 = vmatpush1.xpose.msra.mxu0 0.0
    %6196 = vmatprep.subr.mxu0 0.0
    %6197 = vmatpush1.xpose.msra.mxu0 0.0
    %6198 = vmatprep.subr.mxu0 0.0
    %6199 = vmatpush1.xpose.msra.mxu0 0.0
    %6200 = vmatprep.subr.mxu0 0.0
    %6201 = vmatpush1.xpose.msra.mxu0 0.0
    %6202 = vmatprep.subr.mxu0 0.0
    %6203 = vmatpush1.xpose.msra.mxu0 0.0
    %6204 = vmatprep.subr.mxu0 0.0
    %6205 = vmatpush1.xpose.msra.mxu0 0.0
    %6206 = vmatprep.subr.mxu0 0.0
    %6207 = vmatpush1.xpose.msra.mxu0 0.0
    %6208 = vmatprep.subr.mxu0 0.0
    %6209 = vmatpush1.xpose.msra.mxu0 0.0
    %6210 = vmatprep.subr.mxu0 0.0
    %6211 = vmatpush1.xpose.msra.mxu0 0.0
    %6212 = vmatprep.subr.mxu0 0.0
    %6213 = vmatpush1.xpose.msra.mxu0 0.0
    %6214 = vmatprep.subr.mxu0 0.0
    %6215 = vmatpush1.xpose.msra.mxu0 0.0
    %6216 = vmatprep.subr.mxu0 0.0
    %6217 = vmatpush1.xpose.msra.mxu0 0.0
    %6218 = vmatprep.subr.mxu0 0.0
    %6219 = vmatpush1.xpose.msra.mxu0 0.0
    %6220 = vmatprep.subr.mxu0 0.0
    %6221 = vmatpush1.xpose.msra.mxu0 0.0
    %6222 = vmatprep.subr.mxu0 0.0
    %6223 = vmatpush1.xpose.msra.mxu0 0.0
    %6224 = vmatprep.subr.mxu0 0.0
    %6225 = vmatpush1.xpose.msra.mxu0 0.0
    %6226 = vmatprep.subr.mxu0 0.0
    %6227 = vmatpush1.xpose.msra.mxu0 0.0
    %6228 = vmatprep.subr.mxu0 0.0
    %6229 = vmatpush1.xpose.msra.mxu0 0.0
    %6230 = vmatprep.subr.mxu0 0.0
    %6231 = vmatpush1.xpose.msra.mxu0 0.0
    %6232 = vmatprep.subr.mxu0 0.0
    %6233 = vmatpush1.xpose.msra.mxu0 0.0
    %6234 = vmatprep.subr.mxu0 0.0
    %6235 = vmatpush1.xpose.msra.mxu0 0.0
    %6236 = vmatprep.subr.mxu0 0.0
    %6237 = vmatpush1.xpose.msra.mxu0 0.0
    %6238 = vmatprep.subr.mxu0 0.0
    %6239 = vmatpush1.xpose.msra.mxu0 0.0
    %6240 = vmatprep.subr.mxu0 0.0
    %6241 = vmatpush1.xpose.msra.mxu0 0.0
    %6242 = vmatprep.subr.mxu0 0.0
    %6243 = vmatpush1.xpose.msra.mxu0 0.0
    %6244 = vmatprep.subr.mxu0 0.0
    %6245 = vmatpush1.xpose.msra.mxu0 0.0
    %6246 = vmatprep.mubr.f32.mxu0 0.0
    %6247 = vmatmul.mubr.f32.gmra.mrb[0].mxu0 %v6178
    %v6248 = vpop.f32.mrb[0].mxu0
    %v6249 = vadd.f32 0.0, %v6248
    %v6250 = vpop.f32.mrb[0].mxu0
    %6251 = vdwg.mxu0
    %v6252 = vsel %vm269, %v5901, 0
    %v6254 = vsel %vm269, %v5904, 0
    %6256 = vmatprep.subr.mxu0 0.0
    %6257 = vmatpush1.xpose.msra.mxu0 %v6254
    %6258 = vmatprep.subr.mxu0 0.0
    %6259 = vmatpush1.xpose.msra.mxu0 0.0
    %6260 = vmatprep.subr.mxu0 0.0
    %6261 = vmatpush1.xpose.msra.mxu0 0.0
    %6262 = vmatprep.subr.mxu0 0.0
    %6263 = vmatpush1.xpose.msra.mxu0 0.0
    %6264 = vmatprep.subr.mxu0 0.0
    %6265 = vmatpush1.xpose.msra.mxu0 0.0
    %6266 = vmatprep.subr.mxu0 0.0
    %6267 = vmatpush1.xpose.msra.mxu0 0.0
    %6268 = vmatprep.subr.mxu0 0.0
    %6269 = vmatpush1.xpose.msra.mxu0 0.0
    %6270 = vmatprep.subr.mxu0 0.0
    %6271 = vmatpush1.xpose.msra.mxu0 0.0
    %6272 = vmatprep.subr.mxu0 0.0
    %6273 = vmatpush1.xpose.msra.mxu0 0.0
    %6274 = vmatprep.subr.mxu0 0.0
    %6275 = vmatpush1.xpose.msra.mxu0 0.0
    %6276 = vmatprep.subr.mxu0 0.0
    %6277 = vmatpush1.xpose.msra.mxu0 0.0
    %6278 = vmatprep.subr.mxu0 0.0
    %6279 = vmatpush1.xpose.msra.mxu0 0.0
    %6280 = vmatprep.subr.mxu0 0.0
    %6281 = vmatpush1.xpose.msra.mxu0 0.0
    %6282 = vmatprep.subr.mxu0 0.0
    %6283 = vmatpush1.xpose.msra.mxu0 0.0
    %6284 = vmatprep.subr.mxu0 0.0
    %6285 = vmatpush1.xpose.msra.mxu0 0.0
    %6286 = vmatprep.subr.mxu0 0.0
    %6287 = vmatpush1.xpose.msra.mxu0 0.0
    %6288 = vmatprep.subr.mxu0 0.0
    %6289 = vmatpush1.xpose.msra.mxu0 0.0
    %6290 = vmatprep.subr.mxu0 0.0
    %6291 = vmatpush1.xpose.msra.mxu0 0.0
    %6292 = vmatprep.subr.mxu0 0.0
    %6293 = vmatpush1.xpose.msra.mxu0 0.0
    %6294 = vmatprep.subr.mxu0 0.0
    %6295 = vmatpush1.xpose.msra.mxu0 0.0
    %6296 = vmatprep.subr.mxu0 0.0
    %6297 = vmatpush1.xpose.msra.mxu0 0.0
    %6298 = vmatprep.subr.mxu0 0.0
    %6299 = vmatpush1.xpose.msra.mxu0 0.0
    %6300 = vmatprep.subr.mxu0 0.0
    %6301 = vmatpush1.xpose.msra.mxu0 0.0
    %6302 = vmatprep.subr.mxu0 0.0
    %6303 = vmatpush1.xpose.msra.mxu0 0.0
    %6304 = vmatprep.subr.mxu0 0.0
    %6305 = vmatpush1.xpose.msra.mxu0 0.0
    %6306 = vmatprep.subr.mxu0 0.0
    %6307 = vmatpush1.xpose.msra.mxu0 0.0
    %6308 = vmatprep.subr.mxu0 0.0
    %6309 = vmatpush1.xpose.msra.mxu0 0.0
    %6310 = vmatprep.subr.mxu0 0.0
    %6311 = vmatpush1.xpose.msra.mxu0 0.0
    %6312 = vmatprep.subr.mxu0 0.0
    %6313 = vmatpush1.xpose.msra.mxu0 0.0
    %6314 = vmatprep.subr.mxu0 0.0
    %6315 = vmatpush1.xpose.msra.mxu0 0.0
    %6316 = vmatprep.subr.mxu0 0.0
    %6317 = vmatpush1.xpose.msra.mxu0 0.0
    %6318 = vmatprep.subr.mxu0 0.0
    %6319 = vmatpush1.xpose.msra.mxu0 0.0
    %6320 = vmatprep.mubr.f32.mxu0 0.0
    %6321 = vmatmul.mubr.f32.gmra.mrb[0].mxu0 %v6252
    %v6322 = vpop.f32.mrb[0].mxu0
    %v6323 = vadd.f32 0.0, %v6322
    %v6324 = vpop.f32.mrb[0].mxu0
    %6325 = vdwg.mxu0
    %v6326 = vsel %vm269, %v5913, 0
    %v6328 = vsel %vm269, %v5927, 0
    %6330 = vmatprep.subr.mxu0 0.0
    %6331 = vmatpush1.xpose.msra.mxu0 %v6328
    %6332 = vmatprep.subr.mxu0 0.0
    %6333 = vmatpush1.xpose.msra.mxu0 0.0
    %6334 = vmatprep.subr.mxu0 0.0
    %6335 = vmatpush1.xpose.msra.mxu0 0.0
    %6336 = vmatprep.subr.mxu0 0.0
    %6337 = vmatpush1.xpose.msra.mxu0 0.0
    %6338 = vmatprep.subr.mxu0 0.0
    %6339 = vmatpush1.xpose.msra.mxu0 0.0
    %6340 = vmatprep.subr.mxu0 0.0
    %6341 = vmatpush1.xpose.msra.mxu0 0.0
    %6342 = vmatprep.subr.mxu0 0.0
    %6343 = vmatpush1.xpose.msra.mxu0 0.0
    %6344 = vmatprep.subr.mxu0 0.0
    %6345 = vmatpush1.xpose.msra.mxu0 0.0
    %6346 = vmatprep.subr.mxu0 0.0
    %6347 = vmatpush1.xpose.msra.mxu0 0.0
    %6348 = vmatprep.subr.mxu0 0.0
    %6349 = vmatpush1.xpose.msra.mxu0 0.0
    %6350 = vmatprep.subr.mxu0 0.0
    %6351 = vmatpush1.xpose.msra.mxu0 0.0
    %6352 = vmatprep.subr.mxu0 0.0
    %6353 = vmatpush1.xpose.msra.mxu0 0.0
    %6354 = vmatprep.subr.mxu0 0.0
    %6355 = vmatpush1.xpose.msra.mxu0 0.0
    %6356 = vmatprep.subr.mxu0 0.0
    %6357 = vmatpush1.xpose.msra.mxu0 0.0
    %6358 = vmatprep.subr.mxu0 0.0
    %6359 = vmatpush1.xpose.msra.mxu0 0.0
    %6360 = vmatprep.subr.mxu0 0.0
    %6361 = vmatpush1.xpose.msra.mxu0 0.0
    %6362 = vmatprep.subr.mxu0 0.0
    %6363 = vmatpush1.xpose.msra.mxu0 0.0
    %6364 = vmatprep.subr.mxu0 0.0
    %6365 = vmatpush1.xpose.msra.mxu0 0.0
    %6366 = vmatprep.subr.mxu0 0.0
    %6367 = vmatpush1.xpose.msra.mxu0 0.0
    %6368 = vmatprep.subr.mxu0 0.0
    %6369 = vmatpush1.xpose.msra.mxu0 0.0
    %6370 = vmatprep.subr.mxu0 0.0
    %6371 = vmatpush1.xpose.msra.mxu0 0.0
    %6372 = vmatprep.subr.mxu0 0.0
    %6373 = vmatpush1.xpose.msra.mxu0 0.0
    %6374 = vmatprep.subr.mxu0 0.0
    %6375 = vmatpush1.xpose.msra.mxu0 0.0
    %6376 = vmatprep.subr.mxu0 0.0
    %6377 = vmatpush1.xpose.msra.mxu0 0.0
    %6378 = vmatprep.subr.mxu0 0.0
    %6379 = vmatpush1.xpose.msra.mxu0 0.0
    %6380 = vmatprep.subr.mxu0 0.0
    %6381 = vmatpush1.xpose.msra.mxu0 0.0
    %6382 = vmatprep.subr.mxu0 0.0
    %6383 = vmatpush1.xpose.msra.mxu0 0.0
    %6384 = vmatprep.subr.mxu0 0.0
    %6385 = vmatpush1.xpose.msra.mxu0 0.0
    %6386 = vmatprep.subr.mxu0 0.0
    %6387 = vmatpush1.xpose.msra.mxu0 0.0
    %6388 = vmatprep.subr.mxu0 0.0
    %6389 = vmatpush1.xpose.msra.mxu0 0.0
    %6390 = vmatprep.subr.mxu0 0.0
    %6391 = vmatpush1.xpose.msra.mxu0 0.0
    %6392 = vmatprep.subr.mxu0 0.0
    %6393 = vmatpush1.xpose.msra.mxu0 0.0
    %6394 = vmatprep.mubr.f32.mxu0 0.0
    %6395 = vmatmul.mubr.f32.gmra.mrb[0].mxu0 %v6326
    %v6396 = vpop.f32.mrb[0].mxu0
    %v6397 = vadd.f32 0.0, %v6396
    %v6398 = vpop.f32.mrb[0].mxu0
    %6399 = vdwg.mxu0
    %v6400 = vsel %vm269, %v5917, 0
    %v6402 = vsel %vm269, %v5931, 0
    %6404 = vmatprep.subr.mxu0 0.0
    %6405 = vmatpush1.xpose.msra.mxu0 %v6402
    %6406 = vmatprep.subr.mxu0 0.0
    %6407 = vmatpush1.xpose.msra.mxu0 0.0
    %6408 = vmatprep.subr.mxu0 0.0
    %6409 = vmatpush1.xpose.msra.mxu0 0.0
    %6410 = vmatprep.subr.mxu0 0.0
    %6411 = vmatpush1.xpose.msra.mxu0 0.0
    %6412 = vmatprep.subr.mxu0 0.0
    %6413 = vmatpush1.xpose.msra.mxu0 0.0
    %6414 = vmatprep.subr.mxu0 0.0
    %6415 = vmatpush1.xpose.msra.mxu0 0.0
    %6416 = vmatprep.subr.mxu0 0.0
    %6417 = vmatpush1.xpose.msra.mxu0 0.0
    %6418 = vmatprep.subr.mxu0 0.0
    %6419 = vmatpush1.xpose.msra.mxu0 0.0
    %6420 = vmatprep.subr.mxu0 0.0
    %6421 = vmatpush1.xpose.msra.mxu0 0.0
    %6422 = vmatprep.subr.mxu0 0.0
    %6423 = vmatpush1.xpose.msra.mxu0 0.0
    %6424 = vmatprep.subr.mxu0 0.0
    %6425 = vmatpush1.xpose.msra.mxu0 0.0
    %6426 = vmatprep.subr.mxu0 0.0
    %6427 = vmatpush1.xpose.msra.mxu0 0.0
    %6428 = vmatprep.subr.mxu0 0.0
    %6429 = vmatpush1.xpose.msra.mxu0 0.0
    %6430 = vmatprep.subr.mxu0 0.0
    %6431 = vmatpush1.xpose.msra.mxu0 0.0
    %6432 = vmatprep.subr.mxu0 0.0
    %6433 = vmatpush1.xpose.msra.mxu0 0.0
    %6434 = vmatprep.subr.mxu0 0.0
    %6435 = vmatpush1.xpose.msra.mxu0 0.0
    %6436 = vmatprep.subr.mxu0 0.0
    %6437 = vmatpush1.xpose.msra.mxu0 0.0
    %6438 = vmatprep.subr.mxu0 0.0
    %6439 = vmatpush1.xpose.msra.mxu0 0.0
    %6440 = vmatprep.subr.mxu0 0.0
    %6441 = vmatpush1.xpose.msra.mxu0 0.0
    %6442 = vmatprep.subr.mxu0 0.0
    %6443 = vmatpush1.xpose.msra.mxu0 0.0
    %6444 = vmatprep.subr.mxu0 0.0
    %6445 = vmatpush1.xpose.msra.mxu0 0.0
    %6446 = vmatprep.subr.mxu0 0.0
    %6447 = vmatpush1.xpose.msra.mxu0 0.0
    %6448 = vmatprep.subr.mxu0 0.0
    %6449 = vmatpush1.xpose.msra.mxu0 0.0
    %6450 = vmatprep.subr.mxu0 0.0
    %6451 = vmatpush1.xpose.msra.mxu0 0.0
    %6452 = vmatprep.subr.mxu0 0.0
    %6453 = vmatpush1.xpose.msra.mxu0 0.0
    %6454 = vmatprep.subr.mxu0 0.0
    %6455 = vmatpush1.xpose.msra.mxu0 0.0
    %6456 = vmatprep.subr.mxu0 0.0
    %6457 = vmatpush1.xpose.msra.mxu0 0.0
    %6458 = vmatprep.subr.mxu0 0.0
    %6459 = vmatpush1.xpose.msra.mxu0 0.0
    %6460 = vmatprep.subr.mxu0 0.0
    %6461 = vmatpush1.xpose.msra.mxu0 0.0
    %6462 = vmatprep.subr.mxu0 0.0
    %6463 = vmatpush1.xpose.msra.mxu0 0.0
    %6464 = vmatprep.subr.mxu0 0.0
    %6465 = vmatpush1.xpose.msra.mxu0 0.0
    %6466 = vmatprep.subr.mxu0 0.0
    %6467 = vmatpush1.xpose.msra.mxu0 0.0
    %6468 = vmatprep.mubr.f32.mxu0 0.0
    %6469 = vmatmul.mubr.f32.gmra.mrb[0].mxu0 %v6400
    %v6470 = vpop.f32.mrb[0].mxu0
    %v6471 = vadd.f32 0.0, %v6470
    %v6472 = vpop.f32.mrb[0].mxu0
    %6473 = vdwg.mxu0
    %v6474 = vsel %vm269, %v5921, 0
    %v6476 = vsel %vm269, %v5935, 0
    %6478 = vmatprep.subr.mxu0 0.0
    %6479 = vmatpush1.xpose.msra.mxu0 %v6476
    %6480 = vmatprep.subr.mxu0 0.0
    %6481 = vmatpush1.xpose.msra.mxu0 0.0
    %6482 = vmatprep.subr.mxu0 0.0
    %6483 = vmatpush1.xpose.msra.mxu0 0.0
    %6484 = vmatprep.subr.mxu0 0.0
    %6485 = vmatpush1.xpose.msra.mxu0 0.0
    %6486 = vmatprep.subr.mxu0 0.0
    %6487 = vmatpush1.xpose.msra.mxu0 0.0
    %6488 = vmatprep.subr.mxu0 0.0
    %6489 = vmatpush1.xpose.msra.mxu0 0.0
    %6490 = vmatprep.subr.mxu0 0.0
    %6491 = vmatpush1.xpose.msra.mxu0 0.0
    %6492 = vmatprep.subr.mxu0 0.0
    %6493 = vmatpush1.xpose.msra.mxu0 0.0
    %6494 = vmatprep.subr.mxu0 0.0
    %6495 = vmatpush1.xpose.msra.mxu0 0.0
    %6496 = vmatprep.subr.mxu0 0.0
    %6497 = vmatpush1.xpose.msra.mxu0 0.0
    %6498 = vmatprep.subr.mxu0 0.0
    %6499 = vmatpush1.xpose.msra.mxu0 0.0
    %6500 = vmatprep.subr.mxu0 0.0
    %6501 = vmatpush1.xpose.msra.mxu0 0.0
    %6502 = vmatprep.subr.mxu0 0.0
    %6503 = vmatpush1.xpose.msra.mxu0 0.0
    %6504 = vmatprep.subr.mxu0 0.0
    %6505 = vmatpush1.xpose.msra.mxu0 0.0
    %6506 = vmatprep.subr.mxu0 0.0
    %6507 = vmatpush1.xpose.msra.mxu0 0.0
    %6508 = vmatprep.subr.mxu0 0.0
    %6509 = vmatpush1.xpose.msra.mxu0 0.0
    %6510 = vmatprep.subr.mxu0 0.0
    %6511 = vmatpush1.xpose.msra.mxu0 0.0
    %6512 = vmatprep.subr.mxu0 0.0
    %6513 = vmatpush1.xpose.msra.mxu0 0.0
    %6514 = vmatprep.subr.mxu0 0.0
    %6515 = vmatpush1.xpose.msra.mxu0 0.0
    %6516 = vmatprep.subr.mxu0 0.0
    %6517 = vmatpush1.xpose.msra.mxu0 0.0
    %6518 = vmatprep.subr.mxu0 0.0
    %6519 = vmatpush1.xpose.msra.mxu0 0.0
    %6520 = vmatprep.subr.mxu0 0.0
    %6521 = vmatpush1.xpose.msra.mxu0 0.0
    %6522 = vmatprep.subr.mxu0 0.0
    %6523 = vmatpush1.xpose.msra.mxu0 0.0
    %6524 = vmatprep.subr.mxu0 0.0
    %6525 = vmatpush1.xpose.msra.mxu0 0.0
    %6526 = vmatprep.subr.mxu0 0.0
    %6527 = vmatpush1.xpose.msra.mxu0 0.0
    %6528 = vmatprep.subr.mxu0 0.0
    %6529 = vmatpush1.xpose.msra.mxu0 0.0
    %6530 = vmatprep.subr.mxu0 0.0
    %6531 = vmatpush1.xpose.msra.mxu0 0.0
    %6532 = vmatprep.subr.mxu0 0.0
    %6533 = vmatpush1.xpose.msra.mxu0 0.0
    %6534 = vmatprep.subr.mxu0 0.0
    %6535 = vmatpush1.xpose.msra.mxu0 0.0
    %6536 = vmatprep.subr.mxu0 0.0
    %6537 = vmatpush1.xpose.msra.mxu0 0.0
    %6538 = vmatprep.subr.mxu0 0.0
    %6539 = vmatpush1.xpose.msra.mxu0 0.0
    %6540 = vmatprep.subr.mxu0 0.0
    %6541 = vmatpush1.xpose.msra.mxu0 0.0
    %6542 = vmatprep.mubr.f32.mxu0 0.0
    %6543 = vmatmul.mubr.f32.gmra.mrb[0].mxu0 %v6474
    %v6544 = vpop.f32.mrb[0].mxu0
    %v6545 = vadd.f32 0.0, %v6544
    %v6546 = vpop.f32.mrb[0].mxu0
    %6547 = vdwg.mxu0
    %v6548 = vmul.f32 %v6027, 0.35355338
    %v6549 = vmul.f32 %v6101, 0.35355338
    %v6550 = vmul.f32 %v6175, 0.35355338
    %v6551 = vmul.f32 %v6249, 0.35355338
    %v6552 = vmul.f32 %v6323, 0.35355338
    %v6553 = vmul.f32 %v6397, 0.35355338
    %v6554 = vmul.f32 %v6471, 0.35355338
    %v6555 = vmul.f32 %v6545, 0.35355338
    %v6556 = vadd.f32 %v6548, %v33
    %v6557 = vadd.f32 %v6549, %v34
    %v6558 = vadd.f32 %v6550, %v35
    %v6559 = vadd.f32 %v6551, %v36
    %v6560 = vadd.f32 %v6552, %v37
    %v6561 = vadd.f32 %v6553, %v38
    %v6562 = vadd.f32 %v6554, %v39
    %v6563 = vadd.f32 %v6555, %v40
    %v6564 = vsel %vm269, %v6556, -inf
    %6565 = vmax.xlane.f32.xlu0 %v6564
    %v6566 = vpop.xlane.xlu0 %6565
    %v6567 = vsel %vm269, %v6557, -inf
    %6568 = vmax.xlane.f32.xlu0 %v6567
    %v6569 = vpop.xlane.xlu0 %6568
    %v6570 = vsel %vm269, %v6558, -inf
    %6571 = vmax.xlane.f32.xlu0 %v6570
    %v6572 = vpop.xlane.xlu0 %6571
    %v6573 = vsel %vm269, %v6559, -inf
    %6574 = vmax.xlane.f32.xlu0 %v6573
    %v6575 = vpop.xlane.xlu0 %6574
    %v6576 = vsel %vm269, %v6560, -inf
    %6577 = vmax.xlane.f32.xlu0 %v6576
    %v6578 = vpop.xlane.xlu0 %6577
    %v6579 = vsel %vm269, %v6561, -inf
    %6580 = vmax.xlane.f32.xlu0 %v6579
    %v6581 = vpop.xlane.xlu0 %6580
    %v6582 = vsel %vm269, %v6562, -inf
    %6583 = vmax.xlane.f32.xlu0 %v6582
    %v6584 = vpop.xlane.xlu0 %6583
    %v6585 = vsel %vm269, %v6563, -inf
    %6586 = vmax.xlane.f32.xlu0 %v6585
    %v6587 = vpop.xlane.xlu0 %6586
    %v6588 = vsub.f32 %v6556, %v6566
    %v6589 = vsub.f32 %v6557, %v6569
    %v6590 = vsub.f32 %v6558, %v6572
    %v6591 = vsub.f32 %v6559, %v6575
    %v6592 = vsub.f32 %v6560, %v6578
    %v6593 = vsub.f32 %v6561, %v6581
    %v6594 = vsub.f32 %v6562, %v6584
    %v6595 = vsub.f32 %v6563, %v6587
    %v6596 = vmul.f32 %v6588, 1.442695
    %v6597 = vpow.pop %v6596
    %v6598 = vmul.f32 %v6589, 1.442695
    %v6599 = vpow.pop %v6598
    %v6600 = vmul.f32 %v6590, 1.442695
    %v6601 = vpow.pop %v6600
    %v6602 = vmul.f32 %v6591, 1.442695
    %v6603 = vpow.pop %v6602
    %v6604 = vmul.f32 %v6592, 1.442695
    %v6605 = vpow.pop %v6604
    %v6606 = vmul.f32 %v6593, 1.442695
    %v6607 = vpow.pop %v6606
    %v6608 = vmul.f32 %v6594, 1.442695
    %v6609 = vpow.pop %v6608
    %v6610 = vmul.f32 %v6595, 1.442695
    %v6611 = vpow.pop %v6610
    %v6612 = vsel %vm269, %v6597, 0.0
    %6613 = vadd.xlane.f32.xlu0 %v6612
    %v6614 = vpop.xlane.xlu0 %6613
    %v6615 = vsel %vm269, %v6599, 0.0
    %6616 = vadd.xlane.f32.xlu0 %v6615
    %v6617 = vpop.xlane.xlu0 %6616
    %v6618 = vsel %vm269, %v6601, 0.0
    %6619 = vadd.xlane.f32.xlu0 %v6618
    %v6620 = vpop.xlane.xlu0 %6619
    %v6621 = vsel %vm269, %v6603, 0.0
    %6622 = vadd.xlane.f32.xlu0 %v6621
    %v6623 = vpop.xlane.xlu0 %6622
    %v6624 = vsel %vm269, %v6605, 0.0
    %6625 = vadd.xlane.f32.xlu0 %v6624
    %v6626 = vpop.xlane.xlu0 %6625
    %v6627 = vsel %vm269, %v6607, 0.0
    %6628 = vadd.xlane.f32.xlu0 %v6627
    %v6629 = vpop.xlane.xlu0 %6628
    %v6630 = vsel %vm269, %v6609, 0.0
    %6631 = vadd.xlane.f32.xlu0 %v6630
    %v6632 = vpop.xlane.xlu0 %6631
    %v6633 = vsel %vm269, %v6611, 0.0
    %6634 = vadd.xlane.f32.xlu0 %v6633
    %v6635 = vpop.xlane.xlu0 %6634
    %v6636 = vrcp.pop %v6614
    %v6637 = vrcp.pop %v6617
    %v6638 = vrcp.pop %v6620
    %v6639 = vrcp.pop %v6623
    %v6640 = vrcp.pop %v6626
    %v6641 = vrcp.pop %v6629
    %v6642 = vrcp.pop %v6632
    %v6643 = vrcp.pop %v6635
    %v6644 = vmul.f32 %v6597, %v6636
    %v6645 = vmul.f32 %v6599, %v6637
    %v6646 = vmul.f32 %v6601, %v6638
    %v6647 = vmul.f32 %v6603, %v6639
    %v6648 = vmul.f32 %v6605, %v6640
    %v6649 = vmul.f32 %v6607, %v6641
    %v6650 = vmul.f32 %v6609, %v6642
    %v6651 = vmul.f32 %v6611, %v6643
    %v6653 = vsel %vm269, %v6644, 0
    %6655 = vmatprep.subr.mxu0 0.0
    %6656 = vmatpush1.msra.mxu0 %v5906
    %6657 = vmatprep.subr.mxu0 0.0
    %6658 = vmatpush1.msra.mxu0 0.0
    %6659 = vmatprep.subr.mxu0 0.0
    %6660 = vmatpush1.msra.mxu0 0.0
    %6661 = vmatprep.subr.mxu0 0.0
    %6662 = vmatpush1.msra.mxu0 0.0
    %6663 = vmatprep.subr.mxu0 0.0
    %6664 = vmatpush1.msra.mxu0 0.0
    %6665 = vmatprep.subr.mxu0 0.0
    %6666 = vmatpush1.msra.mxu0 0.0
    %6667 = vmatprep.subr.mxu0 0.0
    %6668 = vmatpush1.msra.mxu0 0.0
    %6669 = vmatprep.subr.mxu0 0.0
    %6670 = vmatpush1.msra.mxu0 0.0
    %6671 = vmatprep.subr.mxu0 0.0
    %6672 = vmatpush1.msra.mxu0 0.0
    %6673 = vmatprep.subr.mxu0 0.0
    %6674 = vmatpush1.msra.mxu0 0.0
    %6675 = vmatprep.subr.mxu0 0.0
    %6676 = vmatpush1.msra.mxu0 0.0
    %6677 = vmatprep.subr.mxu0 0.0
    %6678 = vmatpush1.msra.mxu0 0.0
    %6679 = vmatprep.subr.mxu0 0.0
    %6680 = vmatpush1.msra.mxu0 0.0
    %6681 = vmatprep.subr.mxu0 0.0
    %6682 = vmatpush1.msra.mxu0 0.0
    %6683 = vmatprep.subr.mxu0 0.0
    %6684 = vmatpush1.msra.mxu0 0.0
    %6685 = vmatprep.subr.mxu0 0.0
    %6686 = vmatpush1.msra.mxu0 0.0
    %6687 = vmatprep.subr.mxu0 0.0
    %6688 = vmatpush1.msra.mxu0 0.0
    %6689 = vmatprep.subr.mxu0 0.0
    %6690 = vmatpush1.msra.mxu0 0.0
    %6691 = vmatprep.subr.mxu0 0.0
    %6692 = vmatpush1.msra.mxu0 0.0
    %6693 = vmatprep.subr.mxu0 0.0
    %6694 = vmatpush1.msra.mxu0 0.0
    %6695 = vmatprep.subr.mxu0 0.0
    %6696 = vmatpush1.msra.mxu0 0.0
    %6697 = vmatprep.subr.mxu0 0.0
    %6698 = vmatpush1.msra.mxu0 0.0
    %6699 = vmatprep.subr.mxu0 0.0
    %6700 = vmatpush1.msra.mxu0 0.0
    %6701 = vmatprep.subr.mxu0 0.0
    %6702 = vmatpush1.msra.mxu0 0.0
    %6703 = vmatprep.subr.mxu0 0.0
    %6704 = vmatpush1.msra.mxu0 0.0
    %6705 = vmatprep.subr.mxu0 0.0
    %6706 = vmatpush1.msra.mxu0 0.0
    %6707 = vmatprep.subr.mxu0 0.0
    %6708 = vmatpush1.msra.mxu0 0.0
    %6709 = vmatprep.subr.mxu0 0.0
    %6710 = vmatpush1.msra.mxu0 0.0
    %6711 = vmatprep.subr.mxu0 0.0
    %6712 = vmatpush1.msra.mxu0 0.0
    %6713 = vmatprep.subr.mxu0 0.0
    %6714 = vmatpush1.msra.mxu0 0.0
    %6715 = vmatprep.subr.mxu0 0.0
    %6716 = vmatpush1.msra.mxu0 0.0
    %6717 = vmatprep.subr.mxu0 0.0
    %6718 = vmatpush1.msra.mxu0 0.0
    %6719 = vmatprep.mubr.f32.mxu0 0.0
    %6720 = vmatmul.mubr.f32.gmra.mrb[0].mxu0 %v6653
    %v6721 = vpop.f32.mrb[0].mxu0
    %v6722 = vadd.f32 0.0, %v6721
    %v6723 = vpop.f32.mrb[0].mxu0
    %6724 = vdwg.mxu0
    %v6726 = vsel %vm269, %v6645, 0
    %6728 = vmatprep.subr.mxu0 0.0
    %6729 = vmatpush1.msra.mxu0 %v5939
    %6730 = vmatprep.subr.mxu0 0.0
    %6731 = vmatpush1.msra.mxu0 0.0
    %6732 = vmatprep.subr.mxu0 0.0
    %6733 = vmatpush1.msra.mxu0 0.0
    %6734 = vmatprep.subr.mxu0 0.0
    %6735 = vmatpush1.msra.mxu0 0.0
    %6736 = vmatprep.subr.mxu0 0.0
    %6737 = vmatpush1.msra.mxu0 0.0
    %6738 = vmatprep.subr.mxu0 0.0
    %6739 = vmatpush1.msra.mxu0 0.0
    %6740 = vmatprep.subr.mxu0 0.0
    %6741 = vmatpush1.msra.mxu0 0.0
    %6742 = vmatprep.subr.mxu0 0.0
    %6743 = vmatpush1.msra.mxu0 0.0
    %6744 = vmatprep.subr.mxu0 0.0
    %6745 = vmatpush1.msra.mxu0 0.0
    %6746 = vmatprep.subr.mxu0 0.0
    %6747 = vmatpush1.msra.mxu0 0.0
    %6748 = vmatprep.subr.mxu0 0.0
    %6749 = vmatpush1.msra.mxu0 0.0
    %6750 = vmatprep.subr.mxu0 0.0
    %6751 = vmatpush1.msra.mxu0 0.0
    %6752 = vmatprep.subr.mxu0 0.0
    %6753 = vmatpush1.msra.mxu0 0.0
    %6754 = vmatprep.subr.mxu0 0.0
    %6755 = vmatpush1.msra.mxu0 0.0
    %6756 = vmatprep.subr.mxu0 0.0
    %6757 = vmatpush1.msra.mxu0 0.0
    %6758 = vmatprep.subr.mxu0 0.0
    %6759 = vmatpush1.msra.mxu0 0.0
    %6760 = vmatprep.subr.mxu0 0.0
    %6761 = vmatpush1.msra.mxu0 0.0
    %6762 = vmatprep.subr.mxu0 0.0
    %6763 = vmatpush1.msra.mxu0 0.0
    %6764 = vmatprep.subr.mxu0 0.0
    %6765 = vmatpush1.msra.mxu0 0.0
    %6766 = vmatprep.subr.mxu0 0.0
    %6767 = vmatpush1.msra.mxu0 0.0
    %6768 = vmatprep.subr.mxu0 0.0
    %6769 = vmatpush1.msra.mxu0 0.0
    %6770 = vmatprep.subr.mxu0 0.0
    %6771 = vmatpush1.msra.mxu0 0.0
    %6772 = vmatprep.subr.mxu0 0.0
    %6773 = vmatpush1.msra.mxu0 0.0
    %6774 = vmatprep.subr.mxu0 0.0
    %6775 = vmatpush1.msra.mxu0 0.0
    %6776 = vmatprep.subr.mxu0 0.0
    %6777 = vmatpush1.msra.mxu0 0.0
    %6778 = vmatprep.subr.mxu0 0.0
    %6779 = vmatpush1.msra.mxu0 0.0
    %6780 = vmatprep.subr.mxu0 0.0
    %6781 = vmatpush1.msra.mxu0 0.0
    %6782 = vmatprep.subr.mxu0 0.0
    %6783 = vmatpush1.msra.mxu0 0.0
    %6784 = vmatprep.subr.mxu0 0.0
    %6785 = vmatpush1.msra.mxu0 0.0
    %6786 = vmatprep.subr.mxu0 0.0
    %6787 = vmatpush1.msra.mxu0 0.0
    %6788 = vmatprep.subr.mxu0 0.0
    %6789 = vmatpush1.msra.mxu0 0.0
    %6790 = vmatprep.subr.mxu0 0.0
    %6791 = vmatpush1.msra.mxu0 0.0
    %6792 = vmatprep.mubr.f32.mxu0 0.0
    %6793 = vmatmul.mubr.f32.gmra.mrb[0].mxu0 %v6726
    %v6794 = vpop.f32.mrb[0].mxu0
    %v6795 = vadd.f32 0.0, %v6794
    %v6796 = vpop.f32.mrb[0].mxu0
    %6797 = vdwg.mxu0
    %v6799 = vsel %vm269, %v6646, 0
    %6801 = vmatprep.subr.mxu0 0.0
    %6802 = vmatpush1.msra.mxu0 %v5945
    %6803 = vmatprep.subr.mxu0 0.0
    %6804 = vmatpush1.msra.mxu0 0.0
    %6805 = vmatprep.subr.mxu0 0.0
    %6806 = vmatpush1.msra.mxu0 0.0
    %6807 = vmatprep.subr.mxu0 0.0
    %6808 = vmatpush1.msra.mxu0 0.0
    %6809 = vmatprep.subr.mxu0 0.0
    %6810 = vmatpush1.msra.mxu0 0.0
    %6811 = vmatprep.subr.mxu0 0.0
    %6812 = vmatpush1.msra.mxu0 0.0
    %6813 = vmatprep.subr.mxu0 0.0
    %6814 = vmatpush1.msra.mxu0 0.0
    %6815 = vmatprep.subr.mxu0 0.0
    %6816 = vmatpush1.msra.mxu0 0.0
    %6817 = vmatprep.subr.mxu0 0.0
    %6818 = vmatpush1.msra.mxu0 0.0
    %6819 = vmatprep.subr.mxu0 0.0
    %6820 = vmatpush1.msra.mxu0 0.0
    %6821 = vmatprep.subr.mxu0 0.0
    %6822 = vmatpush1.msra.mxu0 0.0
    %6823 = vmatprep.subr.mxu0 0.0
    %6824 = vmatpush1.msra.mxu0 0.0
    %6825 = vmatprep.subr.mxu0 0.0
    %6826 = vmatpush1.msra.mxu0 0.0
    %6827 = vmatprep.subr.mxu0 0.0
    %6828 = vmatpush1.msra.mxu0 0.0
    %6829 = vmatprep.subr.mxu0 0.0
    %6830 = vmatpush1.msra.mxu0 0.0
    %6831 = vmatprep.subr.mxu0 0.0
    %6832 = vmatpush1.msra.mxu0 0.0
    %6833 = vmatprep.subr.mxu0 0.0
    %6834 = vmatpush1.msra.mxu0 0.0
    %6835 = vmatprep.subr.mxu0 0.0
    %6836 = vmatpush1.msra.mxu0 0.0
    %6837 = vmatprep.subr.mxu0 0.0
    %6838 = vmatpush1.msra.mxu0 0.0
    %6839 = vmatprep.subr.mxu0 0.0
    %6840 = vmatpush1.msra.mxu0 0.0
    %6841 = vmatprep.subr.mxu0 0.0
    %6842 = vmatpush1.msra.mxu0 0.0
    %6843 = vmatprep.subr.mxu0 0.0
    %6844 = vmatpush1.msra.mxu0 0.0
    %6845 = vmatprep.subr.mxu0 0.0
    %6846 = vmatpush1.msra.mxu0 0.0
    %6847 = vmatprep.subr.mxu0 0.0
    %6848 = vmatpush1.msra.mxu0 0.0
    %6849 = vmatprep.subr.mxu0 0.0
    %6850 = vmatpush1.msra.mxu0 0.0
    %6851 = vmatprep.subr.mxu0 0.0
    %6852 = vmatpush1.msra.mxu0 0.0
    %6853 = vmatprep.subr.mxu0 0.0
    %6854 = vmatpush1.msra.mxu0 0.0
    %6855 = vmatprep.subr.mxu0 0.0
    %6856 = vmatpush1.msra.mxu0 0.0
    %6857 = vmatprep.subr.mxu0 0.0
    %6858 = vmatpush1.msra.mxu0 0.0
    %6859 = vmatprep.subr.mxu0 0.0
    %6860 = vmatpush1.msra.mxu0 0.0
    %6861 = vmatprep.subr.mxu0 0.0
    %6862 = vmatpush1.msra.mxu0 0.0
    %6863 = vmatprep.subr.mxu0 0.0
    %6864 = vmatpush1.msra.mxu0 0.0
    %6865 = vmatprep.mubr.f32.mxu0 0.0
    %6866 = vmatmul.mubr.f32.gmra.mrb[0].mxu0 %v6799
    %v6867 = vpop.f32.mrb[0].mxu0
    %v6868 = vadd.f32 0.0, %v6867
    %v6869 = vpop.f32.mrb[0].mxu0
    %6870 = vdwg.mxu0
    %v6872 = vsel %vm269, %v6647, 0
    %6874 = vmatprep.subr.mxu0 0.0
    %6875 = vmatpush1.msra.mxu0 %v5951
    %6876 = vmatprep.subr.mxu0 0.0
    %6877 = vmatpush1.msra.mxu0 0.0
    %6878 = vmatprep.subr.mxu0 0.0
    %6879 = vmatpush1.msra.mxu0 0.0
    %6880 = vmatprep.subr.mxu0 0.0
    %6881 = vmatpush1.msra.mxu0 0.0
    %6882 = vmatprep.subr.mxu0 0.0
    %6883 = vmatpush1.msra.mxu0 0.0
    %6884 = vmatprep.subr.mxu0 0.0
    %6885 = vmatpush1.msra.mxu0 0.0
    %6886 = vmatprep.subr.mxu0 0.0
    %6887 = vmatpush1.msra.mxu0 0.0
    %6888 = vmatprep.subr.mxu0 0.0
    %6889 = vmatpush1.msra.mxu0 0.0
    %6890 = vmatprep.subr.mxu0 0.0
    %6891 = vmatpush1.msra.mxu0 0.0
    %6892 = vmatprep.subr.mxu0 0.0
    %6893 = vmatpush1.msra.mxu0 0.0
    %6894 = vmatprep.subr.mxu0 0.0
    %6895 = vmatpush1.msra.mxu0 0.0
    %6896 = vmatprep.subr.mxu0 0.0
    %6897 = vmatpush1.msra.mxu0 0.0
    %6898 = vmatprep.subr.mxu0 0.0
    %6899 = vmatpush1.msra.mxu0 0.0
    %6900 = vmatprep.subr.mxu0 0.0
    %6901 = vmatpush1.msra.mxu0 0.0
    %6902 = vmatprep.subr.mxu0 0.0
    %6903 = vmatpush1.msra.mxu0 0.0
    %6904 = vmatprep.subr.mxu0 0.0
    %6905 = vmatpush1.msra.mxu0 0.0
    %6906 = vmatprep.subr.mxu0 0.0
    %6907 = vmatpush1.msra.mxu0 0.0
    %6908 = vmatprep.subr.mxu0 0.0
    %6909 = vmatpush1.msra.mxu0 0.0
    %6910 = vmatprep.subr.mxu0 0.0
    %6911 = vmatpush1.msra.mxu0 0.0
    %6912 = vmatprep.subr.mxu0 0.0
    %6913 = vmatpush1.msra.mxu0 0.0
    %6914 = vmatprep.subr.mxu0 0.0
    %6915 = vmatpush1.msra.mxu0 0.0
    %6916 = vmatprep.subr.mxu0 0.0
    %6917 = vmatpush1.msra.mxu0 0.0
    %6918 = vmatprep.subr.mxu0 0.0
    %6919 = vmatpush1.msra.mxu0 0.0
    %6920 = vmatprep.subr.mxu0 0.0
    %6921 = vmatpush1.msra.mxu0 0.0
    %6922 = vmatprep.subr.mxu0 0.0
    %6923 = vmatpush1.msra.mxu0 0.0
    %6924 = vmatprep.subr.mxu0 0.0
    %6925 = vmatpush1.msra.mxu0 0.0
    %6926 = vmatprep.subr.mxu0 0.0
    %6927 = vmatpush1.msra.mxu0 0.0
    %6928 = vmatprep.subr.mxu0 0.0
    %6929 = vmatpush1.msra.mxu0 0.0
    %6930 = vmatprep.subr.mxu0 0.0
    %6931 = vmatpush1.msra.mxu0 0.0
    %6932 = vmatprep.subr.mxu0 0.0
    %6933 = vmatpush1.msra.mxu0 0.0
    %6934 = vmatprep.subr.mxu0 0.0
    %6935 = vmatpush1.msra.mxu0 0.0
    %6936 = vmatprep.subr.mxu0 0.0
    %6937 = vmatpush1.msra.mxu0 0.0
    %6938 = vmatprep.mubr.f32.mxu0 0.0
    %6939 = vmatmul.mubr.f32.gmra.mrb[0].mxu0 %v6872
    %v6940 = vpop.f32.mrb[0].mxu0
    %v6941 = vadd.f32 0.0, %v6940
    %v6942 = vpop.f32.mrb[0].mxu0
    %6943 = vdwg.mxu0
    %v6945 = vsel %vm269, %v6648, 0
    %6947 = vmatprep.subr.mxu0 0.0
    %6948 = vmatpush1.msra.mxu0 %v5907
    %6949 = vmatprep.subr.mxu0 0.0
    %6950 = vmatpush1.msra.mxu0 0.0
    %6951 = vmatprep.subr.mxu0 0.0
    %6952 = vmatpush1.msra.mxu0 0.0
    %6953 = vmatprep.subr.mxu0 0.0
    %6954 = vmatpush1.msra.mxu0 0.0
    %6955 = vmatprep.subr.mxu0 0.0
    %6956 = vmatpush1.msra.mxu0 0.0
    %6957 = vmatprep.subr.mxu0 0.0
    %6958 = vmatpush1.msra.mxu0 0.0
    %6959 = vmatprep.subr.mxu0 0.0
    %6960 = vmatpush1.msra.mxu0 0.0
    %6961 = vmatprep.subr.mxu0 0.0
    %6962 = vmatpush1.msra.mxu0 0.0
    %6963 = vmatprep.subr.mxu0 0.0
    %6964 = vmatpush1.msra.mxu0 0.0
    %6965 = vmatprep.subr.mxu0 0.0
    %6966 = vmatpush1.msra.mxu0 0.0
    %6967 = vmatprep.subr.mxu0 0.0
    %6968 = vmatpush1.msra.mxu0 0.0
    %6969 = vmatprep.subr.mxu0 0.0
    %6970 = vmatpush1.msra.mxu0 0.0
    %6971 = vmatprep.subr.mxu0 0.0
    %6972 = vmatpush1.msra.mxu0 0.0
    %6973 = vmatprep.subr.mxu0 0.0
    %6974 = vmatpush1.msra.mxu0 0.0
    %6975 = vmatprep.subr.mxu0 0.0
    %6976 = vmatpush1.msra.mxu0 0.0
    %6977 = vmatprep.subr.mxu0 0.0
    %6978 = vmatpush1.msra.mxu0 0.0
    %6979 = vmatprep.subr.mxu0 0.0
    %6980 = vmatpush1.msra.mxu0 0.0
    %6981 = vmatprep.subr.mxu0 0.0
    %6982 = vmatpush1.msra.mxu0 0.0
    %6983 = vmatprep.subr.mxu0 0.0
    %6984 = vmatpush1.msra.mxu0 0.0
    %6985 = vmatprep.subr.mxu0 0.0
    %6986 = vmatpush1.msra.mxu0 0.0
    %6987 = vmatprep.subr.mxu0 0.0
    %6988 = vmatpush1.msra.mxu0 0.0
    %6989 = vmatprep.subr.mxu0 0.0
    %6990 = vmatpush1.msra.mxu0 0.0
    %6991 = vmatprep.subr.mxu0 0.0
    %6992 = vmatpush1.msra.mxu0 0.0
    %6993 = vmatprep.subr.mxu0 0.0
    %6994 = vmatpush1.msra.mxu0 0.0
    %6995 = vmatprep.subr.mxu0 0.0
    %6996 = vmatpush1.msra.mxu0 0.0
    %6997 = vmatprep.subr.mxu0 0.0
    %6998 = vmatpush1.msra.mxu0 0.0
    %6999 = vmatprep.subr.mxu0 0.0
    %7000 = vmatpush1.msra.mxu0 0.0
    %7001 = vmatprep.subr.mxu0 0.0
    %7002 = vmatpush1.msra.mxu0 0.0
    %7003 = vmatprep.subr.mxu0 0.0
    %7004 = vmatpush1.msra.mxu0 0.0
    %7005 = vmatprep.subr.mxu0 0.0
    %7006 = vmatpush1.msra.mxu0 0.0
    %7007 = vmatprep.subr.mxu0 0.0
    %7008 = vmatpush1.msra.mxu0 0.0
    %7009 = vmatprep.subr.mxu0 0.0
    %7010 = vmatpush1.msra.mxu0 0.0
    %7011 = vmatprep.mubr.f32.mxu0 0.0
    %7012 = vmatmul.mubr.f32.gmra.mrb[0].mxu0 %v6945
    %v7013 = vpop.f32.mrb[0].mxu0
    %v7014 = vadd.f32 0.0, %v7013
    %v7015 = vpop.f32.mrb[0].mxu0
    %7016 = vdwg.mxu0
    %v7018 = vsel %vm269, %v6649, 0
    %7020 = vmatprep.subr.mxu0 0.0
    %7021 = vmatpush1.msra.mxu0 %v5941
    %7022 = vmatprep.subr.mxu0 0.0
    %7023 = vmatpush1.msra.mxu0 0.0
    %7024 = vmatprep.subr.mxu0 0.0
    %7025 = vmatpush1.msra.mxu0 0.0
    %7026 = vmatprep.subr.mxu0 0.0
    %7027 = vmatpush1.msra.mxu0 0.0
    %7028 = vmatprep.subr.mxu0 0.0
    %7029 = vmatpush1.msra.mxu0 0.0
    %7030 = vmatprep.subr.mxu0 0.0
    %7031 = vmatpush1.msra.mxu0 0.0
    %7032 = vmatprep.subr.mxu0 0.0
    %7033 = vmatpush1.msra.mxu0 0.0
    %7034 = vmatprep.subr.mxu0 0.0
    %7035 = vmatpush1.msra.mxu0 0.0
    %7036 = vmatprep.subr.mxu0 0.0
    %7037 = vmatpush1.msra.mxu0 0.0
    %7038 = vmatprep.subr.mxu0 0.0
    %7039 = vmatpush1.msra.mxu0 0.0
    %7040 = vmatprep.subr.mxu0 0.0
    %7041 = vmatpush1.msra.mxu0 0.0
    %7042 = vmatprep.subr.mxu0 0.0
    %7043 = vmatpush1.msra.mxu0 0.0
    %7044 = vmatprep.subr.mxu0 0.0
    %7045 = vmatpush1.msra.mxu0 0.0
    %7046 = vmatprep.subr.mxu0 0.0
    %7047 = vmatpush1.msra.mxu0 0.0
    %7048 = vmatprep.subr.mxu0 0.0
    %7049 = vmatpush1.msra.mxu0 0.0
    %7050 = vmatprep.subr.mxu0 0.0
    %7051 = vmatpush1.msra.mxu0 0.0
    %7052 = vmatprep.subr.mxu0 0.0
    %7053 = vmatpush1.msra.mxu0 0.0
    %7054 = vmatprep.subr.mxu0 0.0
    %7055 = vmatpush1.msra.mxu0 0.0
    %7056 = vmatprep.subr.mxu0 0.0
    %7057 = vmatpush1.msra.mxu0 0.0
    %7058 = vmatprep.subr.mxu0 0.0
    %7059 = vmatpush1.msra.mxu0 0.0
    %7060 = vmatprep.subr.mxu0 0.0
    %7061 = vmatpush1.msra.mxu0 0.0
    %7062 = vmatprep.subr.mxu0 0.0
    %7063 = vmatpush1.msra.mxu0 0.0
    %7064 = vmatprep.subr.mxu0 0.0
    %7065 = vmatpush1.msra.mxu0 0.0
    %7066 = vmatprep.subr.mxu0 0.0
    %7067 = vmatpush1.msra.mxu0 0.0
    %7068 = vmatprep.subr.mxu0 0.0
    %7069 = vmatpush1.msra.mxu0 0.0
    %7070 = vmatprep.subr.mxu0 0.0
    %7071 = vmatpush1.msra.mxu0 0.0
    %7072 = vmatprep.subr.mxu0 0.0
    %7073 = vmatpush1.msra.mxu0 0.0
    %7074 = vmatprep.subr.mxu0 0.0
    %7075 = vmatpush1.msra.mxu0 0.0
    %7076 = vmatprep.subr.mxu0 0.0
    %7077 = vmatpush1.msra.mxu0 0.0
    %7078 = vmatprep.subr.mxu0 0.0
    %7079 = vmatpush1.msra.mxu0 0.0
    %7080 = vmatprep.subr.mxu0 0.0
    %7081 = vmatpush1.msra.mxu0 0.0
    %7082 = vmatprep.subr.mxu0 0.0
    %7083 = vmatpush1.msra.mxu0 0.0
    %7084 = vmatprep.mubr.f32.mxu0 0.0
    %7085 = vmatmul.mubr.f32.gmra.mrb[0].mxu0 %v7018
    %v7086 = vpop.f32.mrb[0].mxu0
    %v7087 = vadd.f32 0.0, %v7086
    %v7088 = vpop.f32.mrb[0].mxu0
    %7089 = vdwg.mxu0
    %v7091 = vsel %vm269, %v6650, 0
    %7093 = vmatprep.subr.mxu0 0.0
    %7094 = vmatpush1.msra.mxu0 %v5947
    %7095 = vmatprep.subr.mxu0 0.0
    %7096 = vmatpush1.msra.mxu0 0.0
    %7097 = vmatprep.subr.mxu0 0.0
    %7098 = vmatpush1.msra.mxu0 0.0
    %7099 = vmatprep.subr.mxu0 0.0
    %7100 = vmatpush1.msra.mxu0 0.0
    %7101 = vmatprep.subr.mxu0 0.0
    %7102 = vmatpush1.msra.mxu0 0.0
    %7103 = vmatprep.subr.mxu0 0.0
    %7104 = vmatpush1.msra.mxu0 0.0
    %7105 = vmatprep.subr.mxu0 0.0
    %7106 = vmatpush1.msra.mxu0 0.0
    %7107 = vmatprep.subr.mxu0 0.0
    %7108 = vmatpush1.msra.mxu0 0.0
    %7109 = vmatprep.subr.mxu0 0.0
    %7110 = vmatpush1.msra.mxu0 0.0
    %7111 = vmatprep.subr.mxu0 0.0
    %7112 = vmatpush1.msra.mxu0 0.0
    %7113 = vmatprep.subr.mxu0 0.0
    %7114 = vmatpush1.msra.mxu0 0.0
    %7115 = vmatprep.subr.mxu0 0.0
    %7116 = vmatpush1.msra.mxu0 0.0
    %7117 = vmatprep.subr.mxu0 0.0
    %7118 = vmatpush1.msra.mxu0 0.0
    %7119 = vmatprep.subr.mxu0 0.0
    %7120 = vmatpush1.msra.mxu0 0.0
    %7121 = vmatprep.subr.mxu0 0.0
    %7122 = vmatpush1.msra.mxu0 0.0
    %7123 = vmatprep.subr.mxu0 0.0
    %7124 = vmatpush1.msra.mxu0 0.0
    %7125 = vmatprep.subr.mxu0 0.0
    %7126 = vmatpush1.msra.mxu0 0.0
    %7127 = vmatprep.subr.mxu0 0.0
    %7128 = vmatpush1.msra.mxu0 0.0
    %7129 = vmatprep.subr.mxu0 0.0
    %7130 = vmatpush1.msra.mxu0 0.0
    %7131 = vmatprep.subr.mxu0 0.0
    %7132 = vmatpush1.msra.mxu0 0.0
    %7133 = vmatprep.subr.mxu0 0.0
    %7134 = vmatpush1.msra.mxu0 0.0
    %7135 = vmatprep.subr.mxu0 0.0
    %7136 = vmatpush1.msra.mxu0 0.0
    %7137 = vmatprep.subr.mxu0 0.0
    %7138 = vmatpush1.msra.mxu0 0.0
    %7139 = vmatprep.subr.mxu0 0.0
    %7140 = vmatpush1.msra.mxu0 0.0
    %7141 = vmatprep.subr.mxu0 0.0
    %7142 = vmatpush1.msra.mxu0 0.0
    %7143 = vmatprep.subr.mxu0 0.0
    %7144 = vmatpush1.msra.mxu0 0.0
    %7145 = vmatprep.subr.mxu0 0.0
    %7146 = vmatpush1.msra.mxu0 0.0
    %7147 = vmatprep.subr.mxu0 0.0
    %7148 = vmatpush1.msra.mxu0 0.0
    %7149 = vmatprep.subr.mxu0 0.0
    %7150 = vmatpush1.msra.mxu0 0.0
    %7151 = vmatprep.subr.mxu0 0.0
    %7152 = vmatpush1.msra.mxu0 0.0
    %7153 = vmatprep.subr.mxu0 0.0
    %7154 = vmatpush1.msra.mxu0 0.0
    %7155 = vmatprep.subr.mxu0 0.0
    %7156 = vmatpush1.msra.mxu0 0.0
    %7157 = vmatprep.mubr.f32.mxu0 0.0
    %7158 = vmatmul.mubr.f32.gmra.mrb[0].mxu0 %v7091
    %v7159 = vpop.f32.mrb[0].mxu0
    %v7160 = vadd.f32 0.0, %v7159
    %v7161 = vpop.f32.mrb[0].mxu0
    %7162 = vdwg.mxu0
    %v7164 = vsel %vm269, %v6651, 0
    %7166 = vmatprep.subr.mxu0 0.0
    %7167 = vmatpush1.msra.mxu0 %v5953
    %7168 = vmatprep.subr.mxu0 0.0
    %7169 = vmatpush1.msra.mxu0 0.0
    %7170 = vmatprep.subr.mxu0 0.0
    %7171 = vmatpush1.msra.mxu0 0.0
    %7172 = vmatprep.subr.mxu0 0.0
    %7173 = vmatpush1.msra.mxu0 0.0
    %7174 = vmatprep.subr.mxu0 0.0
    %7175 = vmatpush1.msra.mxu0 0.0
    %7176 = vmatprep.subr.mxu0 0.0
    %7177 = vmatpush1.msra.mxu0 0.0
    %7178 = vmatprep.subr.mxu0 0.0
    %7179 = vmatpush1.msra.mxu0 0.0
    %7180 = vmatprep.subr.mxu0 0.0
    %7181 = vmatpush1.msra.mxu0 0.0
    %7182 = vmatprep.subr.mxu0 0.0
    %7183 = vmatpush1.msra.mxu0 0.0
    %7184 = vmatprep.subr.mxu0 0.0
    %7185 = vmatpush1.msra.mxu0 0.0
    %7186 = vmatprep.subr.mxu0 0.0
    %7187 = vmatpush1.msra.mxu0 0.0
    %7188 = vmatprep.subr.mxu0 0.0
    %7189 = vmatpush1.msra.mxu0 0.0
    %7190 = vmatprep.subr.mxu0 0.0
    %7191 = vmatpush1.msra.mxu0 0.0
    %7192 = vmatprep.subr.mxu0 0.0
    %7193 = vmatpush1.msra.mxu0 0.0
    %7194 = vmatprep.subr.mxu0 0.0
    %7195 = vmatpush1.msra.mxu0 0.0
    %7196 = vmatprep.subr.mxu0 0.0
    %7197 = vmatpush1.msra.mxu0 0.0
    %7198 = vmatprep.subr.mxu0 0.0
    %7199 = vmatpush1.msra.mxu0 0.0
    %7200 = vmatprep.subr.mxu0 0.0
    %7201 = vmatpush1.msra.mxu0 0.0
    %7202 = vmatprep.subr.mxu0 0.0
    %7203 = vmatpush1.msra.mxu0 0.0
    %7204 = vmatprep.subr.mxu0 0.0
    %7205 = vmatpush1.msra.mxu0 0.0
    %7206 = vmatprep.subr.mxu0 0.0
    %7207 = vmatpush1.msra.mxu0 0.0
    %7208 = vmatprep.subr.mxu0 0.0
    %7209 = vmatpush1.msra.mxu0 0.0
    %7210 = vmatprep.subr.mxu0 0.0
    %7211 = vmatpush1.msra.mxu0 0.0
    %7212 = vmatprep.subr.mxu0 0.0
    %7213 = vmatpush1.msra.mxu0 0.0
    %7214 = vmatprep.subr.mxu0 0.0
    %7215 = vmatpush1.msra.mxu0 0.0
    %7216 = vmatprep.subr.mxu0 0.0
    %7217 = vmatpush1.msra.mxu0 0.0
    %7218 = vmatprep.subr.mxu0 0.0
    %7219 = vmatpush1.msra.mxu0 0.0
    %7220 = vmatprep.subr.mxu0 0.0
    %7221 = vmatpush1.msra.mxu0 0.0
    %7222 = vmatprep.subr.mxu0 0.0
    %7223 = vmatpush1.msra.mxu0 0.0
    %7224 = vmatprep.subr.mxu0 0.0
    %7225 = vmatpush1.msra.mxu0 0.0
    %7226 = vmatprep.subr.mxu0 0.0
    %7227 = vmatpush1.msra.mxu0 0.0
    %7228 = vmatprep.subr.mxu0 0.0
    %7229 = vmatpush1.msra.mxu0 0.0
    %7230 = vmatprep.mubr.f32.mxu0 0.0
    %7231 = vmatmul.mubr.f32.gmra.mrb[0].mxu0 %v7164
    %v7232 = vpop.f32.mrb[0].mxu0
    %v7233 = vadd.f32 0.0, %v7232
    %v7234 = vpop.f32.mrb[0].mxu0
    %7235 = vdwg.mxu0
    %7238 = vrot.lane.b32.xlu0 %v6795, 8
    %v7239 = vpop.permute.xlu0 %7238
    %7240 = vrot.lane.b32.xlu0 %v7087, 8
    %v7241 = vpop.permute.xlu0 %7240
    %7246 = vrot.lane.b32.xlu0 %v6868, 16
    %v7247 = vpop.permute.xlu0 %7246
    %7248 = vrot.lane.b32.xlu0 %v7160, 16
    %v7249 = vpop.permute.xlu0 %7248
    %7254 = vrot.lane.b32.xlu0 %v6941, 24
    %v7255 = vpop.permute.xlu0 %7254
    %7256 = vrot.lane.b32.xlu0 %v7233, 24
    %v7257 = vpop.permute.xlu0 %7256
    %v7260 = vsel %vm269, %v6722, %v7239
    %v7261 = vsel %vm269, %v7014, %v7241
    %v7262 = vsel %vm1576, %v7260, %v7247
    %v7263 = vsel %vm1576, %v7261, %v7249
    %v7264 = vsel %vm1579, %v7262, %v7255
    %v7265 = vsel %vm1579, %v7263, %v7257
    %v7266 = vld [vmem:[%s5728 + $0x18] sm:$0xff]
    %v7267 = vld [vmem:[%s5728 + $0x48] sm:$0xff]
    %v7268 = vld [vmem:[%s5728 + $0x78] sm:$0xff]
    %v7269 = vld [vmem:[%s5728 + $0xa8] sm:$0xff]
    %v7270 = vld [vmem:[%s5728 + $0x183] ss:$0 sm:$0xff]
    %v7272 = vsel %vm53, %v7264, 0
    %v7275 = vsel %vm53, %v7265, 0
    %7277 = vmatprep.subr.mxu0 0.0
    %7278 = vmatpush1.msra.mxu0 %v7266
    %7279 = vmatprep.subr.mxu0 0.0
    %7280 = vmatpush1.msra.mxu0 %v7267
    %7281 = vmatprep.subr.mxu0 0.0
    %7282 = vmatpush1.msra.mxu0 %v7268
    %7283 = vmatprep.subr.mxu0 0.0
    %7284 = vmatpush1.msra.mxu0 %v7269
    %7285 = vmatprep.subr.mxu0 0.0
    %7286 = vmatpush1.msra.mxu0 0.0
    %7287 = vmatprep.subr.mxu0 0.0
    %7288 = vmatpush1.msra.mxu0 0.0
    %7289 = vmatprep.subr.mxu0 0.0
    %7290 = vmatpush1.msra.mxu0 0.0
    %7291 = vmatprep.subr.mxu0 0.0
    %7292 = vmatpush1.msra.mxu0 0.0
    %7293 = vmatprep.subr.mxu0 0.0
    %7294 = vmatpush1.msra.mxu0 0.0
    %7295 = vmatprep.subr.mxu0 0.0
    %7296 = vmatpush1.msra.mxu0 0.0
    %7297 = vmatprep.subr.mxu0 0.0
    %7298 = vmatpush1.msra.mxu0 0.0
    %7299 = vmatprep.subr.mxu0 0.0
    %7300 = vmatpush1.msra.mxu0 0.0
    %7301 = vmatprep.subr.mxu0 0.0
    %7302 = vmatpush1.msra.mxu0 0.0
    %7303 = vmatprep.subr.mxu0 0.0
    %7304 = vmatpush1.msra.mxu0 0.0
    %7305 = vmatprep.subr.mxu0 0.0
    %7306 = vmatpush1.msra.mxu0 0.0
    %7307 = vmatprep.subr.mxu0 0.0
    %7308 = vmatpush1.msra.mxu0 0.0
    %7309 = vmatprep.subr.mxu0 0.0
    %7310 = vmatpush1.msra.mxu0 0.0
    %7311 = vmatprep.subr.mxu0 0.0
    %7312 = vmatpush1.msra.mxu0 0.0
    %7313 = vmatprep.subr.mxu0 0.0
    %7314 = vmatpush1.msra.mxu0 0.0
    %7315 = vmatprep.subr.mxu0 0.0
    %7316 = vmatpush1.msra.mxu0 0.0
    %7317 = vmatprep.subr.mxu0 0.0
    %7318 = vmatpush1.msra.mxu0 0.0
    %7319 = vmatprep.subr.mxu0 0.0
    %7320 = vmatpush1.msra.mxu0 0.0
    %7321 = vmatprep.subr.mxu0 0.0
    %7322 = vmatpush1.msra.mxu0 0.0
    %7323 = vmatprep.subr.mxu0 0.0
    %7324 = vmatpush1.msra.mxu0 0.0
    %7325 = vmatprep.subr.mxu0 0.0
    %7326 = vmatpush1.msra.mxu0 0.0
    %7327 = vmatprep.subr.mxu0 0.0
    %7328 = vmatpush1.msra.mxu0 0.0
    %7329 = vmatprep.subr.mxu0 0.0
    %7330 = vmatpush1.msra.mxu0 0.0
    %7331 = vmatprep.subr.mxu0 0.0
    %7332 = vmatpush1.msra.mxu0 0.0
    %7333 = vmatprep.subr.mxu0 0.0
    %7334 = vmatpush1.msra.mxu0 0.0
    %7335 = vmatprep.subr.mxu0 0.0
    %7336 = vmatpush1.msra.mxu0 0.0
    %7337 = vmatprep.subr.mxu0 0.0
    %7338 = vmatpush1.msra.mxu0 0.0
    %7339 = vmatprep.subr.mxu0 0.0
    %7340 = vmatpush1.msra.mxu0 0.0
    %7341 = vmatprep.mubr.f32.mxu0 0.0
    %7342 = vmatmul.mubr.f32.gmra.mrb[0].mxu0 %v7272
    %v7343 = vpop.f32.mrb[0].mxu0
    %v7344 = vadd.f32 %v7270, %v7343
    %v7345 = vpop.f32.mrb[0].mxu0
    %7346 = vmatprep.mubr.f32.mxu0 0.0
    %7347 = vmatmul.mubr.f32.gmra.mrb[0].mxu0 %v7275
    %v7348 = vpop.f32.mrb[0].mxu0
    %v7349 = vadd.f32 %v7270, %v7348
    %v7350 = vpop.f32.mrb[0].mxu0
    %7351 = vdwg.mxu0
    %v7352 = vadd.f32 %v5726, %v7344
    %v7353 = vadd.f32 %v5727, %v7349
    %v7354 = vsel %vm53, %v7352, 0.0
    %7355 = vadd.xlane.f32.xlu0 %v7354
    %v7356 = vpop.xlane.xlu0 %7355
    %v7357 = vsel %vm53, %v7353, 0.0
    %7358 = vadd.xlane.f32.xlu0 %v7357
    %v7359 = vpop.xlane.xlu0 %7358
    %v7360 = vmul.f32 %v7356, %v1676
    %v7361 = vmul.f32 %v7359, %v1676
    %v7362 = vmul.f32 %v7352, %v7352
    %v7363 = vmul.f32 %v7353, %v7353
    %v7364 = vsel %vm53, %v7362, 0.0
    %7365 = vadd.xlane.f32.xlu0 %v7364
    %v7366 = vpop.xlane.xlu0 %7365
    %v7367 = vsel %vm53, %v7363, 0.0
    %7368 = vadd.xlane.f32.xlu0 %v7367
    %v7369 = vpop.xlane.xlu0 %7368
    %v7370 = vmul.f32 %v7366, %v1676
    %v7371 = vmul.f32 %v7369, %v1676
    %v7372 = vsub.f32 %v7352, %v7360
    %v7373 = vsub.f32 %v7353, %v7361
    %v7374 = vmul.f32 %v7360, %v7360
    %v7375 = vmul.f32 %v7361, %v7361
    %v7376 = vsub.f32 %v7370, %v7374
    %v7377 = vsub.f32 %v7371, %v7375
    %v7378 = vadd.f32 %v7376, 1e-12
    %v7379 = vadd.f32 %v7377, 1e-12
    %v7380 = vrsqrt.pop %v7378
    %v7381 = vrsqrt.pop %v7379
    %v7382 = vmul.f32 %v7372, %v7380
    %v7383 = vmul.f32 %v7373, %v7381
    %v7384 = vld [vmem:[%s5728 + $0x184] ss:$0 sm:$0xff]
    %v7385 = vmul.f32 %v7382, %v7384
    %v7386 = vmul.f32 %v7383, %v7384
    %v7387 = vld [vmem:[%s5728 + $0x185] ss:$0 sm:$0xff]
    %v7388 = vadd.f32 %v7385, %v7387
    %v7389 = vadd.f32 %v7386, %v7387
    %v7390 = vld [vmem:[%s5728 + $0x20] sm:$0xff]
    %v7391 = vld [vmem:[%s5728 + $0x50] sm:$0xff]
    %v7392 = vld [vmem:[%s5728 + $0x80] sm:$0xff]
    %v7393 = vld [vmem:[%s5728 + $0xb0] sm:$0xff]
    %v7394 = vld [vmem:[%s5728 + $0x28] sm:$0xff]
    %v7395 = vld [vmem:[%s5728 + $0x58] sm:$0xff]
    %v7396 = vld [vmem:[%s5728 + $0x88] sm:$0xff]
    %v7397 = vld [vmem:[%s5728 + $0xb8] sm:$0xff]
    %v7398 = vld [vmem:[%s5728 + $0xe8] sm:$0xff]
    %v7399 = vld [vmem:[%s5728 + $0x118] sm:$0xff]
    %v7400 = vld [vmem:[%s5728 + $0x148] sm:$0xff]
    %v7401 = vld [vmem:[%s5728 + $0x178] sm:$0xff]
    %v7402 = vld [vmem:[%s5728 + $0x186] ss:$0 sm:$0xff]
    %v7404 = vsel %vm53, %v7388, 0
    %v7407 = vsel %vm53, %v7389, 0
    %7409 = vmatprep.subr.mxu0 0.0
    %7410 = vmatpush1.msra.mxu0 %v7390
    %7411 = vmatprep.subr.mxu0 0.0
    %7412 = vmatpush1.msra.mxu0 %v7391
    %7413 = vmatprep.subr.mxu0 0.0
    %7414 = vmatpush1.msra.mxu0 %v7392
    %7415 = vmatprep.subr.mxu0 0.0
    %7416 = vmatpush1.msra.mxu0 %v7393
    %7417 = vmatprep.subr.mxu0 0.0
    %7418 = vmatpush1.msra.mxu0 0.0
    %7419 = vmatprep.subr.mxu0 0.0
    %7420 = vmatpush1.msra.mxu0 0.0
    %7421 = vmatprep.subr.mxu0 0.0
    %7422 = vmatpush1.msra.mxu0 0.0
    %7423 = vmatprep.subr.mxu0 0.0
    %7424 = vmatpush1.msra.mxu0 0.0
    %7425 = vmatprep.subr.mxu0 0.0
    %7426 = vmatpush1.msra.mxu0 0.0
    %7427 = vmatprep.subr.mxu0 0.0
    %7428 = vmatpush1.msra.mxu0 0.0
    %7429 = vmatprep.subr.mxu0 0.0
    %7430 = vmatpush1.msra.mxu0 0.0
    %7431 = vmatprep.subr.mxu0 0.0
    %7432 = vmatpush1.msra.mxu0 0.0
    %7433 = vmatprep.subr.mxu0 0.0
    %7434 = vmatpush1.msra.mxu0 0.0
    %7435 = vmatprep.subr.mxu0 0.0
    %7436 = vmatpush1.msra.mxu0 0.0
    %7437 = vmatprep.subr.mxu0 0.0
    %7438 = vmatpush1.msra.mxu0 0.0
    %7439 = vmatprep.subr.mxu0 0.0
    %7440 = vmatpush1.msra.mxu0 0.0
    %7441 = vmatprep.subr.mxu0 0.0
    %7442 = vmatpush1.msra.mxu0 0.0
    %7443 = vmatprep.subr.mxu0 0.0
    %7444 = vmatpush1.msra.mxu0 0.0
    %7445 = vmatprep.subr.mxu0 0.0
    %7446 = vmatpush1.msra.mxu0 0.0
    %7447 = vmatprep.subr.mxu0 0.0
    %7448 = vmatpush1.msra.mxu0 0.0
    %7449 = vmatprep.subr.mxu0 0.0
    %7450 = vmatpush1.msra.mxu0 0.0
    %7451 = vmatprep.subr.mxu0 0.0
    %7452 = vmatpush1.msra.mxu0 0.0
    %7453 = vmatprep.subr.mxu0 0.0
    %7454 = vmatpush1.msra.mxu0 0.0
    %7455 = vmatprep.subr.mxu0 0.0
    %7456 = vmatpush1.msra.mxu0 0.0
    %7457 = vmatprep.subr.mxu0 0.0
    %7458 = vmatpush1.msra.mxu0 0.0
    %7459 = vmatprep.subr.mxu0 0.0
    %7460 = vmatpush1.msra.mxu0 0.0
    %7461 = vmatprep.subr.mxu0 0.0
    %7462 = vmatpush1.msra.mxu0 0.0
    %7463 = vmatprep.subr.mxu0 0.0
    %7464 = vmatpush1.msra.mxu0 0.0
    %7465 = vmatprep.subr.mxu0 0.0
    %7466 = vmatpush1.msra.mxu0 0.0
    %7467 = vmatprep.subr.mxu0 0.0
    %7468 = vmatpush1.msra.mxu0 0.0
    %7469 = vmatprep.subr.mxu0 0.0
    %7470 = vmatpush1.msra.mxu0 0.0
    %7471 = vmatprep.subr.mxu0 0.0
    %7472 = vmatpush1.msra.mxu0 0.0
    %7473 = vmatprep.mubr.f32.mxu0 0.0
    %7474 = vmatmul.mubr.f32.gmra.mrb[0].mxu0 %v7404
    %v7475 = vpop.f32.mrb[0].mxu0
    %v7476 = vadd.f32 %v7402, %v7475
    %v7477 = vpop.f32.mrb[0].mxu0
    %7478 = vmatprep.mubr.f32.mxu0 0.0
    %7479 = vmatmul.mubr.f32.gmra.mrb[0].mxu0 %v7407
    %v7480 = vpop.f32.mrb[0].mxu0
    %v7481 = vadd.f32 %v7402, %v7480
    %v7482 = vpop.f32.mrb[0].mxu0
    %7483 = vdwg.mxu0
    %v7484 = vmul.f32 %v7476, %v7476
    %v7485 = vmul.f32 %v7481, %v7481
    %v7486 = vmul.f32 %v7476, %v7484
    %v7487 = vmul.f32 %v7481, %v7485
    %v7488 = vmul.f32 %v7486, 0.044715
    %v7489 = vmul.f32 %v7487, 0.044715
    %v7490 = vadd.f32 %v7476, %v7488
    %v7491 = vadd.f32 %v7481, %v7489
    %v7492 = vmul.f32 %v7490, 0.7978846
    %v7493 = vmul.f32 %v7491, 0.7978846
    %v7494 = vtanh.pop %v7492
    %v7495 = vtanh.pop %v7493
    %v7496 = vadd.f32 %v7494, 1.0
    %v7497 = vadd.f32 %v7495, 1.0
    %v7498 = vmul.f32 %v7496, 0.5
    %v7499 = vmul.f32 %v7497, 0.5
    %v7500 = vmul.f32 %v7476, %v7498
    %v7501 = vmul.f32 %v7481, %v7499
    %v7502 = vld [vmem:[%s5728 + $0x187] ss:$0 sm:$0xff]
    %v7504 = vsel %vm1820, %v7500, 0
    %v7507 = vsel %vm1820, %v7501, 0
    %7509 = vmatprep.subr.mxu0 0.0
    %7510 = vmatpush1.msra.mxu0 %v7394
    %7511 = vmatprep.subr.mxu0 0.0
    %7512 = vmatpush1.msra.mxu0 %v7395
    %7513 = vmatprep.subr.mxu0 0.0
    %7514 = vmatpush1.msra.mxu0 %v7396
    %7515 = vmatprep.subr.mxu0 0.0
    %7516 = vmatpush1.msra.mxu0 %v7397
    %7517 = vmatprep.subr.mxu0 0.0
    %7518 = vmatpush1.msra.mxu0 %v7398
    %7519 = vmatprep.subr.mxu0 0.0
    %7520 = vmatpush1.msra.mxu0 %v7399
    %7521 = vmatprep.subr.mxu0 0.0
    %7522 = vmatpush1.msra.mxu0 %v7400
    %7523 = vmatprep.subr.mxu0 0.0
    %7524 = vmatpush1.msra.mxu0 %v7401
    %7525 = vmatprep.subr.mxu0 0.0
    %7526 = vmatpush1.msra.mxu0 0.0
    %7527 = vmatprep.subr.mxu0 0.0
    %7528 = vmatpush1.msra.mxu0 0.0
    %7529 = vmatprep.subr.mxu0 0.0
    %7530 = vmatpush1.msra.mxu0 0.0
    %7531 = vmatprep.subr.mxu0 0.0
    %7532 = vmatpush1.msra.mxu0 0.0
    %7533 = vmatprep.subr.mxu0 0.0
    %7534 = vmatpush1.msra.mxu0 0.0
    %7535 = vmatprep.subr.mxu0 0.0
    %7536 = vmatpush1.msra.mxu0 0.0
    %7537 = vmatprep.subr.mxu0 0.0
    %7538 = vmatpush1.msra.mxu0 0.0
    %7539 = vmatprep.subr.mxu0 0.0
    %7540 = vmatpush1.msra.mxu0 0.0
    %7541 = vmatprep.subr.mxu0 0.0
    %7542 = vmatpush1.msra.mxu0 0.0
    %7543 = vmatprep.subr.mxu0 0.0
    %7544 = vmatpush1.msra.mxu0 0.0
    %7545 = vmatprep.subr.mxu0 0.0
    %7546 = vmatpush1.msra.mxu0 0.0
    %7547 = vmatprep.subr.mxu0 0.0
    %7548 = vmatpush1.msra.mxu0 0.0
    %7549 = vmatprep.subr.mxu0 0.0
    %7550 = vmatpush1.msra.mxu0 0.0
    %7551 = vmatprep.subr.mxu0 0.0
    %7552 = vmatpush1.msra.mxu0 0.0
    %7553 = vmatprep.subr.mxu0 0.0
    %7554 = vmatpush1.msra.mxu0 0.0
    %7555 = vmatprep.subr.mxu0 0.0
    %7556 = vmatpush1.msra.mxu0 0.0
    %7557 = vmatprep.subr.mxu0 0.0
    %7558 = vmatpush1.msra.mxu0 0.0
    %7559 = vmatprep.subr.mxu0 0.0
    %7560 = vmatpush1.msra.mxu0 0.0
    %7561 = vmatprep.subr.mxu0 0.0
    %7562 = vmatpush1.msra.mxu0 0.0
    %7563 = vmatprep.subr.mxu0 0.0
    %7564 = vmatpush1.msra.mxu0 0.0
    %7565 = vmatprep.subr.mxu0 0.0
    %7566 = vmatpush1.msra.mxu0 0.0
    %7567 = vmatprep.subr.mxu0 0.0
    %7568 = vmatpush1.msra.mxu0 0.0
    %7569 = vmatprep.subr.mxu0 0.0
    %7570 = vmatpush1.msra.mxu0 0.0
    %7571 = vmatprep.subr.mxu0 0.0
    %7572 = vmatpush1.msra.mxu0 0.0
    %7573 = vmatprep.mubr.f32.mxu0 0.0
    %7574 = vmatmul.mubr.f32.gmra.mrb[0].mxu0 %v7504
    %v7575 = vpop.f32.mrb[0].mxu0
    %v7576 = vadd.f32 %v7502, %v7575
    %v7577 = vpop.f32.mrb[0].mxu0
    %7578 = vmatprep.mubr.f32.mxu0 0.0
    %7579 = vmatmul.mubr.f32.gmra.mrb[0].mxu0 %v7507
    %v7580 = vpop.f32.mrb[0].mxu0
    %v7581 = vadd.f32 %v7502, %v7580
    %v7582 = vpop.f32.mrb[0].mxu0
    %7583 = vdwg.mxu0
    %v7584 = vadd.f32 %v7388, %v7576
    %v7585 = vadd.f32 %v7389, %v7581
    %v7586 = vsel %vm53, %v7584, 0.0
    %7587 = vadd.xlane.f32.xlu0 %v7586
    %v7588 = vpop.xlane.xlu0 %7587
    %v7589 = vsel %vm53, %v7585, 0.0
    %7590 = vadd.xlane.f32.xlu0 %v7589
    %v7591 = vpop.xlane.xlu0 %7590
    %v7592 = vmul.f32 %v7588, %v1676
    %v7593 = vmul.f32 %v7591, %v1676
    %v7594 = vmul.f32 %v7584, %v7584
    %v7595 = vmul.f32 %v7585, %v7585
    %v7596 = vsel %vm53, %v7594, 0.0
    %7597 = vadd.xlane.f32.xlu0 %v7596
    %v7598 = vpop.xlane.xlu0 %7597
    %v7599 = vsel %vm53, %v7595, 0.0
    %7600 = vadd.xlane.f32.xlu0 %v7599
    %v7601 = vpop.xlane.xlu0 %7600
    %v7602 = vmul.f32 %v7598, %v1676
    %v7603 = vmul.f32 %v7601, %v1676
    %v7604 = vsub.f32 %v7584, %v7592
    %v7605 = vsub.f32 %v7585, %v7593
    %v7606 = vmul.f32 %v7592, %v7592
    %v7607 = vmul.f32 %v7593, %v7593
    %v7608 = vsub.f32 %v7602, %v7606
    %v7609 = vsub.f32 %v7603, %v7607
    %v7610 = vadd.f32 %v7608, 1e-12
    %v7611 = vadd.f32 %v7609, 1e-12
    %v7612 = vrsqrt.pop %v7610
    %v7613 = vrsqrt.pop %v7611
    %v7614 = vmul.f32 %v7604, %v7612
    %v7615 = vmul.f32 %v7605, %v7613
    %v7616 = vld [vmem:[%s5728 + $0x1b0] ss:$0 sm:$0xff]
    %v7617 = vmul.f32 %v7614, %v7616
    %v7618 = vmul.f32 %v7615, %v7616
    %v7619 = vld [vmem:[%s5728 + $0x1b1] ss:$0 sm:$0xff]
    %v7620 = vadd.f32 %v7617, %v7619
    %v7621 = vadd.f32 %v7618, %v7619
    %v7624 = vrot.slane %v7621, 7
    %vm7625 = vcmask 1041409
    %v7626 = vsel %vm7625, %v7624, %v7620
    %v7628 = vrot.slane %v5727, 7
    %v7629 = vsel %vm7625, %v7628, %v5726
    %7630 = vrot.lane.b32.xlu0 %v7629, 32
    %v7631 = vpop.permute.xlu0 %7630
    %v7633 = vrot.slane %v3833, 7
    %v7634 = vsel %vm7625, %v7633, %v3832
    %7635 = vrot.lane.b32.xlu0 %v7634, 64
    %v7636 = vpop.permute.xlu0 %7635
    %v7638 = vrot.slane %v1939, 7
    %v7639 = vsel %vm7625, %v7638, %v1938
    %7640 = vrot.lane.b32.xlu0 %v7639, 96
    %v7641 = vpop.permute.xlu0 %7640
    %v7643 = vsel %vm53, %v7626, %v7631
    %v7644 = vsel %vm1820, %v7643, %v7636
    %vm7645 = vcmask 785408
    %v7646 = vsel %vm7645, %v7644, %v7641
    %v7647 = vld [vmem:[%s3] sm:$0xff]
    %v7648 = vld [vmem:[%s3 + $0x8] sm:$0xff]
    %v7649 = vld [vmem:[%s3 + $0x10] sm:$0xff]
    %v7650 = vld [vmem:[%s3 + $0x18] sm:$0xff]
    %v7651 = vld [vmem:[%s3 + $0x20] sm:$0xff]
    %v7652 = vld [vmem:[%s3 + $0x28] sm:$0xff]
    %v7653 = vld [vmem:[%s3 + $0x30] sm:$0xff]
    %v7654 = vld [vmem:[%s3 + $0x38] sm:$0xff]
    %v7655 = vld [vmem:[%s3 + $0x40] sm:$0xff]
    %v7656 = vld [vmem:[%s3 + $0x48] sm:$0xff]
    %v7657 = vld [vmem:[%s3 + $0x50] sm:$0xff]
    %v7658 = vld [vmem:[%s3 + $0x58] sm:$0xff]
    %v7659 = vld [vmem:[%s3 + $0x60] sm:$0xff]
    %v7660 = vld [vmem:[%s3 + $0x68] sm:$0xff]
    %v7661 = vld [vmem:[%s3 + $0x70] sm:$0xff]
    %v7662 = vld [vmem:[%s3 + $0x78] sm:$0xff]
    %v7663 = vld [vmem:[%s3 + $0x80] sm:$0x1]
    %v7664 = vlaneseq
    %v7665 = vshrl.u32 %v7664, 7
    %v7666 = vsub.s32 0, %v7665
    %v7667 = vrot.slane %v7663, %v7666
    %7668 = vmatprep.subr.mxu0 0.0
    %7669 = vmatpush1.msra.mxu0 %v7647
    %7670 = vmatprep.subr.mxu0 0.0
    %7671 = vmatpush1.msra.mxu0 %v7648
    %7672 = vmatprep.subr.mxu0 0.0
    %7673 = vmatpush1.msra.mxu0 %v7649
    %7674 = vmatprep.subr.mxu0 0.0
    %7675 = vmatpush1.msra.mxu0 %v7650
    %7676 = vmatprep.subr.mxu0 0.0
    %7677 = vmatpush1.msra.mxu0 %v7651
    %7678 = vmatprep.subr.mxu0 0.0
    %7679 = vmatpush1.msra.mxu0 %v7652
    %7680 = vmatprep.subr.mxu0 0.0
    %7681 = vmatpush1.msra.mxu0 %v7653
    %7682 = vmatprep.subr.mxu0 0.0
    %7683 = vmatpush1.msra.mxu0 %v7654
    %7684 = vmatprep.subr.mxu0 0.0
    %7685 = vmatpush1.msra.mxu0 %v7655
    %7686 = vmatprep.subr.mxu0 0.0
    %7687 = vmatpush1.msra.mxu0 %v7656
    %7688 = vmatprep.subr.mxu0 0.0
    %7689 = vmatpush1.msra.mxu0 %v7657
    %7690 = vmatprep.subr.mxu0 0.0
    %7691 = vmatpush1.msra.mxu0 %v7658
    %7692 = vmatprep.subr.mxu0 0.0
    %7693 = vmatpush1.msra.mxu0 %v7659
    %7694 = vmatprep.subr.mxu0 0.0
    %7695 = vmatpush1.msra.mxu0 %v7660
    %7696 = vmatprep.subr.mxu0 0.0
    %7697 = vmatpush1.msra.mxu0 %v7661
    %7698 = vmatprep.subr.mxu0 0.0
    %7699 = vmatpush1.msra.mxu0 %v7662
    %7700 = vmatprep.subr.mxu0 0.0
    %7701 = vmatpush1.msra.mxu0 0.0
    %7702 = vmatprep.subr.mxu0 0.0
    %7703 = vmatpush1.msra.mxu0 0.0
    %7704 = vmatprep.subr.mxu0 0.0
    %7705 = vmatpush1.msra.mxu0 0.0
    %7706 = vmatprep.subr.mxu0 0.0
    %7707 = vmatpush1.msra.mxu0 0.0
    %7708 = vmatprep.subr.mxu0 0.0
    %7709 = vmatpush1.msra.mxu0 0.0
    %7710 = vmatprep.subr.mxu0 0.0
    %7711 = vmatpush1.msra.mxu0 0.0
    %7712 = vmatprep.subr.mxu0 0.0
    %7713 = vmatpush1.msra.mxu0 0.0
    %7714 = vmatprep.subr.mxu0 0.0
    %7715 = vmatpush1.msra.mxu0 0.0
    %7716 = vmatprep.subr.mxu0 0.0
    %7717 = vmatpush1.msra.mxu0 0.0
    %7718 = vmatprep.subr.mxu0 0.0
    %7719 = vmatpush1.msra.mxu0 0.0
    %7720 = vmatprep.subr.mxu0 0.0
    %7721 = vmatpush1.msra.mxu0 0.0
    %7722 = vmatprep.subr.mxu0 0.0
    %7723 = vmatpush1.msra.mxu0 0.0
    %7724 = vmatprep.subr.mxu0 0.0
    %7725 = vmatpush1.msra.mxu0 0.0
    %7726 = vmatprep.subr.mxu0 0.0
    %7727 = vmatpush1.msra.mxu0 0.0
    %7728 = vmatprep.subr.mxu0 0.0
    %7729 = vmatpush1.msra.mxu0 0.0
    %7730 = vmatprep.subr.mxu0 0.0
    %7731 = vmatpush1.msra.mxu0 0.0
    %7732 = vmatprep.mubr.f32.mxu0 0.0
    %7733 = vmatmul.mubr.f32.gmra.mrb[0].mxu0 %v7646
    %v7734 = vpop.f32.mrb[0].mxu0
    %v7735 = vadd.f32 %v7667, %v7734
    %v7736 = vpop.f32.mrb[0].mxu0
    %7737 = vdwg.mxu0
    %v7738 = vlaneseq
    %v7739 = vand.u32 %v7738, 127
    %vm7740 = vcmp.lt.s32.totalorder %v7739, 6
    %v7741 = vxor.u32 %v7735, 2147483648
    %v7742 = vmul.f32 %v7741, 1.442695
    %v7743 = vpow.pop %v7742
    %v7744 = vadd.f32 %v7743, 1.0
    %v7745 = vrcp.pop %v7744
    %v7746 = vmul.f32 1.0, %v7745
    %v7747 = vsel %vm7740, %v7746, %v7735
    %vm7748 = vcmask 1041408
    %v7749 = vsel %vm7748, %v7747, 0.0
    %7750 = vst [vmem:[%s4] sm:$0xff] %v7749
    // Predicated region
    $region22: #{forward.1} parent=1 // pred_check
      _
    $region23: #{forward.1} parent=1 // pred_check_branch
      %7752 = sbr.rel (0) target = $region25
    $region24: #{forward.1} parent=1 // pred_region
      _
    $region25: #{forward.1} parent=1 // pred_fallthru
      _
    // Predicated region
    $region26: #{forward.1} parent=1 // pred_check
      _
    $region27: #{forward.1} parent=1 // pred_check_branch
      %7754 = sbr.rel (0) target = $region29
    $region28: #{forward.1} parent=1 // pred_region
      _
    $region29: #{forward.1} parent=1 // pred_fallthru
      _
    %7755 = vsyncpa [#allocation3], 1

</llo_original>
